<compile_context>
chip_gen: v5e
topology: v5e:2x2
jax: 0.10.0
libtpu: 0.0.40
codegen_flags: <defaults>
</compile_context>

<pallas_src>
import numpy as np
import jax
import jax.numpy as jnp
from jax.experimental import pallas as pl
from jax.experimental.pallas import tpu as pltpu

# ---- static layout constants (FashionMNIST 28x28, conv1 pad=1, conv2 pad=0) ----
H = W = 28
C1, C2 = 32, 64
W1F = 32            # flat row width of the conv1 output (28 valid + 4 slack)
N1 = 904            # conv1 flat rows per image (28*32 valid + 8 slack)
M1 = 864            # pool1 4-shift-max rows   (>= 64*13 + 2*13 + 1; +33 <= N1)
W2F = 16            # flat row width of the pool1 output (14 valid + 2 slack)
NP1 = 240           # pool1 flat rows (15*16, >= max conv2 read index 233 + 1)
N2C = 200           # conv2 flat output rows   (>= pool2 max read index 192 + 1)
M2 = 176            # pool2 4-shift-max rows   (>= 32*5 + 2*5 + 1; +17 <= N2C)
NFEAT = 36          # 6*6 pooled positions
FC_IN = NFEAT * C2  # 2304
FC_OUT = 600
FC_OUT_PAD = 640    # lane-dense (multiple of 128) fc output block
IMG_BLK = 4         # images per grid step (lane-concat -> 128/256-lane matmuls)
_EPS = 1e-5         # torch BatchNorm2d default eps


# ----------------------------------------------------------------------------
# Kernels
# ----------------------------------------------------------------------------
def _features_kernel(x_ref, w1_ref, s1_ref, c1_ref, s1t_ref,
                     w2_ref, s2_ref, c2_ref, s2t_ref, out_ref):
    # G = IMG_BLK.  Lane axis carries the image-concat everywhere:
    #   x_ref:   (1, N1, 9*G)     bf16  im2col conv1 input, lane = img*9 + tap
    #   w1_ref:  (9*G, C1*G)      bf16  block-diagonal conv1 weights
    #   s1/c1:   (1, C1*G)        f32   folded BN1 scale / bias (tiled per img)
    #   s1t_ref: (NP1, M1)        bf16  0/1 pool1 select + crop + re-layout
    #   w2_ref:  (9, C1*G, C2*G)  bf16  block-diagonal conv2 taps
    #   s2/c2:   (1, C2*G)        f32   folded BN2 scale / bias (tiled per img)
    #   s2t_ref: (NFEAT, M2)      bf16  0/1 pool2 select
    #   out_ref: (1, NFEAT, C2*G) bf16  pooled features, lane = img*64 + chan
    bf = jnp.bfloat16

    # -- layer1 conv: one bf16 MXU matmul over the host-side im2col patches --
    y1 = jnp.dot(x_ref[0], w1_ref[...], preferred_element_type=jnp.float32)
    y1 = jnp.maximum(y1 * s1_ref[...] + c1_ref[...], 0.0)            # (N1, C1*G)

    # -- pool1 (2x2/2): max of 4 contiguous shifted views, then one 0/1 matmul
    #    does the stride-2 selection, crop and width-16 re-layout --
    m1 = jnp.maximum(jnp.maximum(y1[0:M1], y1[1:M1 + 1]),
                     jnp.maximum(y1[W1F:W1F + M1], y1[W1F + 1:W1F + 1 + M1]))
    p1 = jnp.dot(s1t_ref[...], m1.astype(bf),
                 preferred_element_type=jnp.float32)                 # (NP1, C1*G)

    # -- layer2 conv: 9 accumulated block-diagonal bf16 MXU matmuls --
    acc2 = jnp.zeros((N2C, C2 * IMG_BLK), jnp.float32)
    for kh in range(3):
        for kw in range(3):
            t = kh * 3 + kw
            off = kh * W2F + kw
            acc2 = acc2 + jnp.dot(p1[off:off + N2C].astype(bf), w2_ref[t],
                                  preferred_element_type=jnp.float32)
    y2 = jnp.maximum(acc2 * s2_ref[...] + c2_ref[...], 0.0)          # (N2C, C2*G)

    # -- pool2 + crop, same selection trick --
    m2 = jnp.maximum(jnp.maximum(y2[0:M2], y2[1:M2 + 1]),
                     jnp.maximum(y2[W2F:W2F + M2], y2[W2F + 1:W2F + 1 + M2]))
    feat = jnp.dot(s2t_ref[...], m2.astype(bf),
                   preferred_element_type=jnp.float32)               # (NFEAT, C2*G)
    out_ref[0] = feat.astype(jnp.bfloat16)


def _fc_kernel(x_ref, w_ref, b_ref, out_ref):
    # x: (BM, FC_IN) bf16, w: (FC_IN, 640) bf16, b: (1, 640) f32, out: (BM, 640) f32
    out_ref[...] = jnp.dot(x_ref[...], w_ref[...],
                           preferred_element_type=jnp.float32) + b_ref[...]


# ----------------------------------------------------------------------------
# pallas_call wrappers
# ----------------------------------------------------------------------------
def extract_features(x_col, prep):
    nsteps = x_col.shape[0]
    return pl.pallas_call(
        _features_kernel,
        out_shape=jax.ShapeDtypeStruct((nsteps, NFEAT, C2 * IMG_BLK), jnp.bfloat16),
        grid=(nsteps,),
        in_specs=[
            pl.BlockSpec((1, N1, 9 * IMG_BLK), lambda g: (g, 0, 0)),
            pl.BlockSpec((9 * IMG_BLK, C1 * IMG_BLK), lambda g: (0, 0)),
            pl.BlockSpec((1, C1 * IMG_BLK), lambda g: (0, 0)),
            pl.BlockSpec((1, C1 * IMG_BLK), lambda g: (0, 0)),
            pl.BlockSpec((NP1, M1), lambda g: (0, 0)),
            pl.BlockSpec((9, C1 * IMG_BLK, C2 * IMG_BLK), lambda g: (0, 0, 0)),
            pl.BlockSpec((1, C2 * IMG_BLK), lambda g: (0, 0)),
            pl.BlockSpec((1, C2 * IMG_BLK), lambda g: (0, 0)),
            pl.BlockSpec((NFEAT, M2), lambda g: (0, 0)),
        ],
        out_specs=pl.BlockSpec((1, NFEAT, C2 * IMG_BLK), lambda g: (g, 0, 0)),
        compiler_params=pltpu.CompilerParams(
            dimension_semantics=("parallel",)),   # v7x: the 2 TCs split the steps
    )(x_col, prep["w1"], prep["s1"], prep["c1"], prep["s1t"],
      prep["w2"], prep["s2"], prep["c2"], prep["s2t"])


def fc(x, prep, bm):
    b_pad = x.shape[0]
    return pl.pallas_call(
        _fc_kernel,
        out_shape=jax.ShapeDtypeStruct((b_pad, FC_OUT_PAD), jnp.float32),
        grid=(b_pad // bm,),
        in_specs=[
            pl.BlockSpec((bm, FC_IN), lambda i: (i, 0)),
            pl.BlockSpec((FC_IN, FC_OUT_PAD), lambda i: (0, 0)),   # resident weight
            pl.BlockSpec((1, FC_OUT_PAD), lambda i: (0, 0)),
        ],
        out_specs=pl.BlockSpec((bm, FC_OUT_PAD), lambda i: (i, 0)),
        compiler_params=pltpu.CompilerParams(
            dimension_semantics=("parallel",)),
    )(x, prep["wfc"], prep["bfc"])


# ----------------------------------------------------------------------------
# One-off parameter prep (outside the jitted hot path)
# ----------------------------------------------------------------------------
def prepare_params(p, img_blk=IMG_BLK):
    """Fold BN into scale/bias, build block-diagonal bf16 conv weights for the
    lane-concatenated image block, build the 0/1 pool-selection matrices, and
    permute/pad the fc weight (torch NCHW .view order -> kernel (pos, chan))."""
    f = lambda a: np.asarray(a, np.float32)
    s1 = f(p["g1"]) / np.sqrt(f(p["v1"]) + _EPS)
    c1 = f(p["bt1"]) + (f(p["b1"]) - f(p["m1"])) * s1
    s2 = f(p["g2"]) / np.sqrt(f(p["v2"]) + _EPS)
    c2 = f(p["bt2"]) + (f(p["b2"]) - f(p["m2"])) * s2

    # conv taps -> (tap, [cin,] cout), then block-diagonal over the image block
    w1t = f(p["w1"]).transpose(2, 3, 1, 0).reshape(9, C1)            # (tap, cout)
    w2t = f(p["w2"]).transpose(2, 3, 1, 0).reshape(9, C1, C2)        # (tap, cin, cout)
    w1blk = np.zeros((9 * img_blk, C1 * img_blk), np.float32)
    w2blk = np.zeros((9, C1 * img_blk, C2 * img_blk), np.float32)
    for i in range(img_blk):
        w1blk[i * 9:(i + 1) * 9, i * C1:(i + 1) * C1] = w1t
        w2blk[:, i * C1:(i + 1) * C1, i * C2:(i + 1) * C2] = w2t

    # pool1: out row i*16 + j  <-  m1 row 64*i + 2*j   (i, j < 14)
    s1t = np.zeros((NP1, M1), np.float32)
    ii, jj = np.meshgrid(np.arange(14), np.arange(14), indexing="ij")
    s1t[(ii * W2F + jj).ravel(), (2 * W1F * ii + 2 * jj).ravel()] = 1.0
    # pool2: out row i*6 + j   <-  m2 row 32*i + 2*j   (i, j < 6)
    s2t = np.zeros((NFEAT, M2), np.float32)
    ii, jj = np.meshgrid(np.arange(6), np.arange(6), indexing="ij")
    s2t[(ii * 6 + jj).ravel(), (2 * W2F * ii + 2 * jj).ravel()] = 1.0

    # fc: torch flattens (c, i, j) -> c*36 + i*6 + j; the kernel emits
    # (pos = i*6+j, c) flattened as pos*64 + c.  Permute rows once, pad
    # 600 -> 640 output lanes (zero columns) so stores are lane-dense.
    wfc = f(p["wfc"]).reshape(FC_OUT, C2, NFEAT)             # (n, c, pos)
    wfc = wfc.transpose(2, 1, 0).reshape(FC_IN, FC_OUT)      # ((pos, c), n)
    wfc = np.pad(wfc, ((0, 0), (0, FC_OUT_PAD - FC_OUT)))
    bfc = np.pad(f(p["bfc"]), (0, FC_OUT_PAD - FC_OUT)).reshape(1, FC_OUT_PAD)

    bf = jnp.bfloat16
    return {
        "w1": jnp.asarray(w1blk, bf),
        "s1": jnp.asarray(np.tile(s1, img_blk).reshape(1, -1)),
        "c1": jnp.asarray(np.tile(c1, img_blk).reshape(1, -1)),
        "s1t": jnp.asarray(s1t, bf),
        "w2": jnp.asarray(w2blk, bf),
        "s2": jnp.asarray(np.tile(s2, img_blk).reshape(1, -1)),
        "c2": jnp.asarray(np.tile(c2, img_blk).reshape(1, -1)),
        "s2t": jnp.asarray(s2t, bf),
        "wfc": jnp.asarray(wfc, bf),
        "bfc": jnp.asarray(bfc, jnp.float32),
    }


# ----------------------------------------------------------------------------
# Forward passes
# ----------------------------------------------------------------------------
def pallas_forward(x_nchw, prep):
    B = x_nchw.shape[0]
    blk = int(np.lcm(IMG_BLK, 8))            # multiple of IMG_BLK and the fc tile
    b_pad = -(-B // blk) * blk
    nsteps = b_pad // IMG_BLK                 # even and >= 2 whenever B >= 1

    # host-side im2col (tiny: 904x9 bf16 per image) so conv1 is one MXU matmul.
    # Flat row layout: row r*32 + c (c < 28 valid, c >= 28 / rows >= 896 slack).
    img = jnp.pad(x_nchw[:, 0], ((0, b_pad - B), (1, 1), (1, 1)))    # (b_pad,30,30)
    taps = [img[:, kh:kh + 28, kw:kw + 28]
            for kh in range(3) for kw in range(3)]
    xc = jnp.stack(taps, axis=-1)                                    # (b_pad,28,28,9)
    xc = jnp.pad(xc, ((0, 0), (0, 0), (0, W1F - 28), (0, 0)))        # (b_pad,28,32,9)
    xc = xc.reshape(b_pad, 28 * W1F, 9)
    xc = jnp.pad(xc, ((0, 0), (0, N1 - 28 * W1F), (0, 0)))           # (b_pad,904,9)
    # lane-concat IMG_BLK images per grid step: lane index = img*9 + tap
    xc = xc.reshape(nsteps, IMG_BLK, N1, 9).transpose(0, 2, 1, 3)
    xc = xc.reshape(nsteps, N1, IMG_BLK * 9).astype(jnp.bfloat16)

    feats = extract_features(xc, prep)        # (nsteps, 36, 64*IMG_BLK) bf16
    # un-concat the lane axis; flatten per image as (pos, chan) = pos*64 + chan
    feats = feats.reshape(nsteps, NFEAT, IMG_BLK, C2).transpose(0, 2, 1, 3)
    feats = feats.reshape(b_pad, FC_IN)                              # bf16

    bm = 64 if b_pad % 64 == 0 else 8
    logits = fc(feats, prep, bm)              # (b_pad, 640) f32
    return logits[:B, :FC_OUT]


def reference_forward(x_nchw, p):
    """Pure-JAX f32 reference (HIGHEST precision)."""
    def block(x, w, b, gamma, beta, mean, var, pad):
        y = jax.lax.conv_general_dilated(
            x, w, window_strides=(1, 1), padding=((pad, pad), (pad, pad)),
            dimension_numbers=("NCHW", "OIHW", "NCHW"),
            precision=jax.lax.Precision.HIGHEST)
        y = y + b[None, :, None, None]
        y = (y - mean[None, :, None, None]) / jnp.sqrt(var[None, :, None, None] + _EPS)
        y = y * gamma[None, :, None, None] + beta[None, :, None, None]
        y = jnp.maximum(y, 0.0)
        return jax.lax.reduce_window(y, -jnp.inf, jax.lax.max,
                                     (1, 1, 2, 2), (1, 1, 2, 2), "VALID")

    y = block(x_nchw, p["w1"], p["b1"], p["g1"], p["bt1"], p["m1"], p["v1"], 1)
    y = block(y, p["w2"], p["b2"], p["g2"], p["bt2"], p["m2"], p["v2"], 0)
    flat = y.reshape(y.shape[0], -1)
    return jnp.dot(flat, p["wfc"].T,
                   precision=jax.lax.Precision.HIGHEST) + p["bfc"]


# ----------------------------------------------------------------------------
if __name__ == "__main__":
    key = jax.random.PRNGKey(0)
    ks = jax.random.split(key, 15)
    f32 = jnp.float32
    # FashionCNN shapes: conv1 1->32 (pad 1), conv2 32->64 (pad 0),
    # fc1: 64*6*6 = 2304 -> 600.  BatchNorm uses running stats (eval mode).
    p = {
        "w1": jax.random.normal(ks[0], (32, 1, 3, 3), f32) * 0.2,
        "b1": jax.random.normal(ks[1], (32,), f32) * 0.1,
        "g1": jax.random.uniform(ks[2], (32,), f32, 0.5, 1.5),
        "bt1": jax.random.normal(ks[3], (32,), f32) * 0.1,
        "m1": jax.random.normal(ks[4], (32,), f32) * 0.1,
        "v1": jax.random.uniform(ks[5], (32,), f32, 0.5, 1.5),
        "w2": jax.random.normal(ks[6], (64, 32, 3, 3), f32) * 0.05,
        "b2": jax.random.normal(ks[7], (64,), f32) * 0.1,
        "g2": jax.random.uniform(ks[8], (64,), f32, 0.5, 1.5),
        "bt2": jax.random.normal(ks[9], (64,), f32) * 0.1,
        "m2": jax.random.normal(ks[10], (64,), f32) * 0.1,
        "v2": jax.random.uniform(ks[11], (64,), f32, 0.5, 1.5),
        "wfc": jax.random.normal(ks[12], (600, 2304), f32) * 0.02,
        "bfc": jax.random.normal(ks[13], (600,), f32) * 0.1,
    }
    B = 8                                                   # 2 feature grid steps
    x = jax.random.normal(ks[14], (B, 1, 28, 28), f32)      # NCHW FashionMNIST-like

    prep = jax.tree_util.tree_map(jax.block_until_ready, prepare_params(p))

    out = jax.jit(pallas_forward)(x, prep)
    out = jax.block_until_ready(out)
    assert out.shape == (B, FC_OUT) and out.dtype == jnp.float32

    # All three stage-matmuls now use bf16 MXU operands (per perf guidance), so
    # tolerance vs the f32 HIGHEST reference is relaxed accordingly.
    ref = reference_forward(x, p)
    np.testing.assert_allclose(np.asarray(out), np.asarray(ref),
                               rtol=2.5e-2, atol=7.5e-2)
    print("KERNEL_OK")
</pallas_src>

<mosaic_0001>
module attributes {stable_mosaic.version = 11 : i64} {
  func.func @_features_kernel(%arg0: i32, %arg1: memref<1x904x36xbf16, #tpu.memory_space<vmem>>, %arg2: memref<36x128xbf16, #tpu.memory_space<vmem>>, %arg3: memref<1x128xf32, #tpu.memory_space<vmem>>, %arg4: memref<1x128xf32, #tpu.memory_space<vmem>>, %arg5: memref<240x864xbf16, #tpu.memory_space<vmem>>, %arg6: memref<9x128x256xbf16, #tpu.memory_space<vmem>>, %arg7: memref<1x256xf32, #tpu.memory_space<vmem>>, %arg8: memref<1x256xf32, #tpu.memory_space<vmem>>, %arg9: memref<36x176xbf16, #tpu.memory_space<vmem>>, %arg10: memref<1x36x256xbf16, #tpu.memory_space<vmem>>) attributes {dimension_semantics = [#tpu.dimension_semantics<parallel>], iteration_bounds = array<i64: 2>, scalar_prefetch = 0 : i64, scratch_operands = 0 : i64, tpu.core_type = #tpu.core_type<tc>, window_params = [{transform_indices = @transform_0, window_bounds = array<i64: 1, 904, 36>}, {pipeline_mode = #tpu.pipeline_mode<synchronous>, transform_indices = @transform_1, window_bounds = array<i64: 36, 128>}, {pipeline_mode = #tpu.pipeline_mode<synchronous>, transform_indices = @transform_2, window_bounds = array<i64: 1, 128>}, {pipeline_mode = #tpu.pipeline_mode<synchronous>, transform_indices = @transform_3, window_bounds = array<i64: 1, 128>}, {pipeline_mode = #tpu.pipeline_mode<synchronous>, transform_indices = @transform_4, window_bounds = array<i64: 240, 864>}, {pipeline_mode = #tpu.pipeline_mode<synchronous>, transform_indices = @transform_5, window_bounds = array<i64: 9, 128, 256>}, {pipeline_mode = #tpu.pipeline_mode<synchronous>, transform_indices = @transform_6, window_bounds = array<i64: 1, 256>}, {pipeline_mode = #tpu.pipeline_mode<synchronous>, transform_indices = @transform_7, window_bounds = array<i64: 1, 256>}, {pipeline_mode = #tpu.pipeline_mode<synchronous>, transform_indices = @transform_8, window_bounds = array<i64: 36, 176>}, {transform_indices = @transform_9, window_bounds = array<i64: 1, 36, 256>}]} {
    %c0 = arith.constant 0 : index
    %c0_0 = arith.constant 0 : index
    %c0_1 = arith.constant 0 : index
    %0 = vector.load %arg1[%c0, %c0_0, %c0_1] : memref<1x904x36xbf16, #tpu.memory_space<vmem>>, vector<1x904x36xbf16>
    %1 = vector.shape_cast %0 : vector<1x904x36xbf16> to vector<904x36xbf16>
    %c0_2 = arith.constant 0 : index
    %c0_3 = arith.constant 0 : index
    %2 = vector.load %arg2[%c0_2, %c0_3] : memref<36x128xbf16, #tpu.memory_space<vmem>>, vector<36x128xbf16>
    %cst = arith.constant dense<0.000000e+00> : vector<904x128xf32>
    %3 = tpu.matmul %1, %2, %cst {dimension_numbers = #tpu.dot_dimension_numbers<[1], [0], [0], [1], [0, 0, 1, 1], [], []>} : vector<904x36xbf16>, vector<36x128xbf16>, vector<904x128xf32> -> vector<904x128xf32>
    %c0_4 = arith.constant 0 : index
    %c0_5 = arith.constant 0 : index
    %4 = vector.load %arg3[%c0_4, %c0_5] : memref<1x128xf32, #tpu.memory_space<vmem>>, vector<1x128xf32>
    %5 = vector.broadcast %4 : vector<1x128xf32> to vector<904x128xf32>
    %6 = arith.mulf %3, %5 : vector<904x128xf32>
    %c0_6 = arith.constant 0 : index
    %c0_7 = arith.constant 0 : index
    %7 = vector.load %arg4[%c0_6, %c0_7] : memref<1x128xf32, #tpu.memory_space<vmem>>, vector<1x128xf32>
    %8 = vector.broadcast %7 : vector<1x128xf32> to vector<904x128xf32>
    %9 = arith.addf %6, %8 : vector<904x128xf32>
    %cst_8 = arith.constant 0.000000e+00 : f32
    %10 = vector.broadcast %cst_8 : f32 to vector<904x128xf32>
    %11 = arith.maximumf %9, %10 : vector<904x128xf32>
    %12 = vector.extract_strided_slice %11 {offsets = [0, 0], sizes = [864, 128], strides = [1, 1]} : vector<904x128xf32> to vector<864x128xf32>
    %13 = vector.extract_strided_slice %11 {offsets = [1, 0], sizes = [864, 128], strides = [1, 1]} : vector<904x128xf32> to vector<864x128xf32>
    %14 = arith.maximumf %12, %13 : vector<864x128xf32>
    %15 = vector.extract_strided_slice %11 {offsets = [32, 0], sizes = [864, 128], strides = [1, 1]} : vector<904x128xf32> to vector<864x128xf32>
    %16 = vector.extract_strided_slice %11 {offsets = [33, 0], sizes = [864, 128], strides = [1, 1]} : vector<904x128xf32> to vector<864x128xf32>
    %17 = arith.maximumf %15, %16 : vector<864x128xf32>
    %18 = arith.maximumf %14, %17 : vector<864x128xf32>
    %c0_9 = arith.constant 0 : index
    %c0_10 = arith.constant 0 : index
    %19 = vector.load %arg5[%c0_9, %c0_10] : memref<240x864xbf16, #tpu.memory_space<vmem>>, vector<240x864xbf16>
    %20 = arith.truncf %18 : vector<864x128xf32> to vector<864x128xbf16>
    %cst_11 = arith.constant dense<0.000000e+00> : vector<240x128xf32>
    %21 = tpu.matmul %19, %20, %cst_11 {dimension_numbers = #tpu.dot_dimension_numbers<[1], [0], [0], [1], [0, 0, 1, 1], [], []>} : vector<240x864xbf16>, vector<864x128xbf16>, vector<240x128xf32> -> vector<240x128xf32>
    %cst_12 = arith.constant 0.000000e+00 : f32
    %22 = vector.broadcast %cst_12 : f32 to vector<200x256xf32>
    %23 = vector.extract_strided_slice %21 {offsets = [0, 0], sizes = [200, 128], strides = [1, 1]} : vector<240x128xf32> to vector<200x128xf32>
    %24 = arith.truncf %23 : vector<200x128xf32> to vector<200x128xbf16>
    %c0_13 = arith.constant 0 : index
    %c0_14 = arith.constant 0 : index
    %c0_15 = arith.constant 0 : index
    %25 = vector.load %arg6[%c0_13, %c0_14, %c0_15] : memref<9x128x256xbf16, #tpu.memory_space<vmem>>, vector<1x128x256xbf16>
    %26 = vector.shape_cast %25 : vector<1x128x256xbf16> to vector<128x256xbf16>
    %cst_16 = arith.constant dense<0.000000e+00> : vector<200x256xf32>
    %27 = tpu.matmul %24, %26, %cst_16 {dimension_numbers = #tpu.dot_dimension_numbers<[1], [0], [0], [1], [0, 0, 1, 1], [], []>} : vector<200x128xbf16>, vector<128x256xbf16>, vector<200x256xf32> -> vector<200x256xf32>
    %28 = arith.addf %22, %27 : vector<200x256xf32>
    %29 = vector.extract_strided_slice %21 {offsets = [1, 0], sizes = [200, 128], strides = [1, 1]} : vector<240x128xf32> to vector<200x128xf32>
    %30 = arith.truncf %29 : vector<200x128xf32> to vector<200x128xbf16>
    %c1 = arith.constant 1 : index
    %c0_17 = arith.constant 0 : index
    %c0_18 = arith.constant 0 : index
    %31 = vector.load %arg6[%c1, %c0_17, %c0_18] : memref<9x128x256xbf16, #tpu.memory_space<vmem>>, vector<1x128x256xbf16>
    %32 = vector.shape_cast %31 : vector<1x128x256xbf16> to vector<128x256xbf16>
    %cst_19 = arith.constant dense<0.000000e+00> : vector<200x256xf32>
    %33 = tpu.matmul %30, %32, %cst_19 {dimension_numbers = #tpu.dot_dimension_numbers<[1], [0], [0], [1], [0, 0, 1, 1], [], []>} : vector<200x128xbf16>, vector<128x256xbf16>, vector<200x256xf32> -> vector<200x256xf32>
    %34 = arith.addf %28, %33 : vector<200x256xf32>
    %35 = vector.extract_strided_slice %21 {offsets = [2, 0], sizes = [200, 128], strides = [1, 1]} : vector<240x128xf32> to vector<200x128xf32>
    %36 = arith.truncf %35 : vector<200x128xf32> to vector<200x128xbf16>
    %c2 = arith.constant 2 : index
    %c0_20 = arith.constant 0 : index
    %c0_21 = arith.constant 0 : index
    %37 = vector.load %arg6[%c2, %c0_20, %c0_21] : memref<9x128x256xbf16, #tpu.memory_space<vmem>>, vector<1x128x256xbf16>
    %38 = vector.shape_cast %37 : vector<1x128x256xbf16> to vector<128x256xbf16>
    %cst_22 = arith.constant dense<0.000000e+00> : vector<200x256xf32>
    %39 = tpu.matmul %36, %38, %cst_22 {dimension_numbers = #tpu.dot_dimension_numbers<[1], [0], [0], [1], [0, 0, 1, 1], [], []>} : vector<200x128xbf16>, vector<128x256xbf16>, vector<200x256xf32> -> vector<200x256xf32>
    %40 = arith.addf %34, %39 : vector<200x256xf32>
    %41 = vector.extract_strided_slice %21 {offsets = [16, 0], sizes = [200, 128], strides = [1, 1]} : vector<240x128xf32> to vector<200x128xf32>
    %42 = arith.truncf %41 : vector<200x128xf32> to vector<200x128xbf16>
    %c3 = arith.constant 3 : index
    %c0_23 = arith.constant 0 : index
    %c0_24 = arith.constant 0 : index
    %43 = vector.load %arg6[%c3, %c0_23, %c0_24] : memref<9x128x256xbf16, #tpu.memory_space<vmem>>, vector<1x128x256xbf16>
    %44 = vector.shape_cast %43 : vector<1x128x256xbf16> to vector<128x256xbf16>
    %cst_25 = arith.constant dense<0.000000e+00> : vector<200x256xf32>
    %45 = tpu.matmul %42, %44, %cst_25 {dimension_numbers = #tpu.dot_dimension_numbers<[1], [0], [0], [1], [0, 0, 1, 1], [], []>} : vector<200x128xbf16>, vector<128x256xbf16>, vector<200x256xf32> -> vector<200x256xf32>
    %46 = arith.addf %40, %45 : vector<200x256xf32>
    %47 = vector.extract_strided_slice %21 {offsets = [17, 0], sizes = [200, 128], strides = [1, 1]} : vector<240x128xf32> to vector<200x128xf32>
    %48 = arith.truncf %47 : vector<200x128xf32> to vector<200x128xbf16>
    %c4 = arith.constant 4 : index
    %c0_26 = arith.constant 0 : index
    %c0_27 = arith.constant 0 : index
    %49 = vector.load %arg6[%c4, %c0_26, %c0_27] : memref<9x128x256xbf16, #tpu.memory_space<vmem>>, vector<1x128x256xbf16>
    %50 = vector.shape_cast %49 : vector<1x128x256xbf16> to vector<128x256xbf16>
    %cst_28 = arith.constant dense<0.000000e+00> : vector<200x256xf32>
    %51 = tpu.matmul %48, %50, %cst_28 {dimension_numbers = #tpu.dot_dimension_numbers<[1], [0], [0], [1], [0, 0, 1, 1], [], []>} : vector<200x128xbf16>, vector<128x256xbf16>, vector<200x256xf32> -> vector<200x256xf32>
    %52 = arith.addf %46, %51 : vector<200x256xf32>
    %53 = vector.extract_strided_slice %21 {offsets = [18, 0], sizes = [200, 128], strides = [1, 1]} : vector<240x128xf32> to vector<200x128xf32>
    %54 = arith.truncf %53 : vector<200x128xf32> to vector<200x128xbf16>
    %c5 = arith.constant 5 : index
    %c0_29 = arith.constant 0 : index
    %c0_30 = arith.constant 0 : index
    %55 = vector.load %arg6[%c5, %c0_29, %c0_30] : memref<9x128x256xbf16, #tpu.memory_space<vmem>>, vector<1x128x256xbf16>
    %56 = vector.shape_cast %55 : vector<1x128x256xbf16> to vector<128x256xbf16>
    %cst_31 = arith.constant dense<0.000000e+00> : vector<200x256xf32>
    %57 = tpu.matmul %54, %56, %cst_31 {dimension_numbers = #tpu.dot_dimension_numbers<[1], [0], [0], [1], [0, 0, 1, 1], [], []>} : vector<200x128xbf16>, vector<128x256xbf16>, vector<200x256xf32> -> vector<200x256xf32>
    %58 = arith.addf %52, %57 : vector<200x256xf32>
    %59 = vector.extract_strided_slice %21 {offsets = [32, 0], sizes = [200, 128], strides = [1, 1]} : vector<240x128xf32> to vector<200x128xf32>
    %60 = arith.truncf %59 : vector<200x128xf32> to vector<200x128xbf16>
    %c6 = arith.constant 6 : index
    %c0_32 = arith.constant 0 : index
    %c0_33 = arith.constant 0 : index
    %61 = vector.load %arg6[%c6, %c0_32, %c0_33] : memref<9x128x256xbf16, #tpu.memory_space<vmem>>, vector<1x128x256xbf16>
    %62 = vector.shape_cast %61 : vector<1x128x256xbf16> to vector<128x256xbf16>
    %cst_34 = arith.constant dense<0.000000e+00> : vector<200x256xf32>
    %63 = tpu.matmul %60, %62, %cst_34 {dimension_numbers = #tpu.dot_dimension_numbers<[1], [0], [0], [1], [0, 0, 1, 1], [], []>} : vector<200x128xbf16>, vector<128x256xbf16>, vector<200x256xf32> -> vector<200x256xf32>
    %64 = arith.addf %58, %63 : vector<200x256xf32>
    %65 = vector.extract_strided_slice %21 {offsets = [33, 0], sizes = [200, 128], strides = [1, 1]} : vector<240x128xf32> to vector<200x128xf32>
    %66 = arith.truncf %65 : vector<200x128xf32> to vector<200x128xbf16>
    %c7 = arith.constant 7 : index
    %c0_35 = arith.constant 0 : index
    %c0_36 = arith.constant 0 : index
    %67 = vector.load %arg6[%c7, %c0_35, %c0_36] : memref<9x128x256xbf16, #tpu.memory_space<vmem>>, vector<1x128x256xbf16>
    %68 = vector.shape_cast %67 : vector<1x128x256xbf16> to vector<128x256xbf16>
    %cst_37 = arith.constant dense<0.000000e+00> : vector<200x256xf32>
    %69 = tpu.matmul %66, %68, %cst_37 {dimension_numbers = #tpu.dot_dimension_numbers<[1], [0], [0], [1], [0, 0, 1, 1], [], []>} : vector<200x128xbf16>, vector<128x256xbf16>, vector<200x256xf32> -> vector<200x256xf32>
    %70 = arith.addf %64, %69 : vector<200x256xf32>
    %71 = vector.extract_strided_slice %21 {offsets = [34, 0], sizes = [200, 128], strides = [1, 1]} : vector<240x128xf32> to vector<200x128xf32>
    %72 = arith.truncf %71 : vector<200x128xf32> to vector<200x128xbf16>
    %c8 = arith.constant 8 : index
    %c0_38 = arith.constant 0 : index
    %c0_39 = arith.constant 0 : index
    %73 = vector.load %arg6[%c8, %c0_38, %c0_39] : memref<9x128x256xbf16, #tpu.memory_space<vmem>>, vector<1x128x256xbf16>
    %74 = vector.shape_cast %73 : vector<1x128x256xbf16> to vector<128x256xbf16>
    %cst_40 = arith.constant dense<0.000000e+00> : vector<200x256xf32>
    %75 = tpu.matmul %72, %74, %cst_40 {dimension_numbers = #tpu.dot_dimension_numbers<[1], [0], [0], [1], [0, 0, 1, 1], [], []>} : vector<200x128xbf16>, vector<128x256xbf16>, vector<200x256xf32> -> vector<200x256xf32>
    %76 = arith.addf %70, %75 : vector<200x256xf32>
    %c0_41 = arith.constant 0 : index
    %c0_42 = arith.constant 0 : index
    %77 = vector.load %arg7[%c0_41, %c0_42] : memref<1x256xf32, #tpu.memory_space<vmem>>, vector<1x256xf32>
    %78 = vector.broadcast %77 : vector<1x256xf32> to vector<200x256xf32>
    %79 = arith.mulf %76, %78 : vector<200x256xf32>
    %c0_43 = arith.constant 0 : index
    %c0_44 = arith.constant 0 : index
    %80 = vector.load %arg8[%c0_43, %c0_44] : memref<1x256xf32, #tpu.memory_space<vmem>>, vector<1x256xf32>
    %81 = vector.broadcast %80 : vector<1x256xf32> to vector<200x256xf32>
    %82 = arith.addf %79, %81 : vector<200x256xf32>
    %cst_45 = arith.constant 0.000000e+00 : f32
    %83 = vector.broadcast %cst_45 : f32 to vector<200x256xf32>
    %84 = arith.maximumf %82, %83 : vector<200x256xf32>
    %85 = vector.extract_strided_slice %84 {offsets = [0, 0], sizes = [176, 256], strides = [1, 1]} : vector<200x256xf32> to vector<176x256xf32>
    %86 = vector.extract_strided_slice %84 {offsets = [1, 0], sizes = [176, 256], strides = [1, 1]} : vector<200x256xf32> to vector<176x256xf32>
    %87 = arith.maximumf %85, %86 : vector<176x256xf32>
    %88 = vector.extract_strided_slice %84 {offsets = [16, 0], sizes = [176, 256], strides = [1, 1]} : vector<200x256xf32> to vector<176x256xf32>
    %89 = vector.extract_strided_slice %84 {offsets = [17, 0], sizes = [176, 256], strides = [1, 1]} : vector<200x256xf32> to vector<176x256xf32>
    %90 = arith.maximumf %88, %89 : vector<176x256xf32>
    %91 = arith.maximumf %87, %90 : vector<176x256xf32>
    %c0_46 = arith.constant 0 : index
    %c0_47 = arith.constant 0 : index
    %92 = vector.load %arg9[%c0_46, %c0_47] : memref<36x176xbf16, #tpu.memory_space<vmem>>, vector<36x176xbf16>
    %93 = arith.truncf %91 : vector<176x256xf32> to vector<176x256xbf16>
    %cst_48 = arith.constant dense<0.000000e+00> : vector<36x256xf32>
    %94 = tpu.matmul %92, %93, %cst_48 {dimension_numbers = #tpu.dot_dimension_numbers<[1], [0], [0], [1], [0, 0, 1, 1], [], []>} : vector<36x176xbf16>, vector<176x256xbf16>, vector<36x256xf32> -> vector<36x256xf32>
    %95 = arith.truncf %94 : vector<36x256xf32> to vector<36x256xbf16>
    %c0_49 = arith.constant 0 : index
    %c0_50 = arith.constant 0 : index
    %c0_51 = arith.constant 0 : index
    %96 = vector.load %arg10[%c0_49, %c0_50, %c0_51] : memref<1x36x256xbf16, #tpu.memory_space<vmem>>, vector<1x36x256xbf16>
    %97 = vector.shape_cast %96 : vector<1x36x256xbf16> to vector<36x256xbf16>
    %98 = vector.shape_cast %95 : vector<36x256xbf16> to vector<1x36x256xbf16>
    tpu.vector_store %arg10[%c0_49, %c0_50, %c0_51], %98 {strides = array<i32>} : memref<1x36x256xbf16, #tpu.memory_space<vmem>>, vector<1x36x256xbf16>,
    return
  }
  func.func @transform_0(%arg0: i32) -> (i32, i32, i32) {
    %c0_i32 = arith.constant 0 : i32
    %c0_i32_0 = arith.constant 0 : i32
    %c0_i32_1 = arith.constant 0 : i32
    return %arg0, %c0_i32, %c0_i32_0 : i32, i32, i32
  }
  func.func @transform_1(%arg0: i32) -> (i32, i32) {
    %c0_i32 = arith.constant 0 : i32
    %c0_i32_0 = arith.constant 0 : i32
    %c0_i32_1 = arith.constant 0 : i32
    return %c0_i32, %c0_i32_0 : i32, i32
  }
  func.func @transform_2(%arg0: i32) -> (i32, i32) {
    %c0_i32 = arith.constant 0 : i32
    %c0_i32_0 = arith.constant 0 : i32
    %c0_i32_1 = arith.constant 0 : i32
    return %c0_i32, %c0_i32_0 : i32, i32
  }
  func.func @transform_3(%arg0: i32) -> (i32, i32) {
    %c0_i32 = arith.constant 0 : i32
    %c0_i32_0 = arith.constant 0 : i32
    %c0_i32_1 = arith.constant 0 : i32
    return %c0_i32, %c0_i32_0 : i32, i32
  }
  func.func @transform_4(%arg0: i32) -> (i32, i32) {
    %c0_i32 = arith.constant 0 : i32
    %c0_i32_0 = arith.constant 0 : i32
    %c0_i32_1 = arith.constant 0 : i32
    return %c0_i32, %c0_i32_0 : i32, i32
  }
  func.func @transform_5(%arg0: i32) -> (i32, i32, i32) {
    %c0_i32 = arith.constant 0 : i32
    %c0_i32_0 = arith.constant 0 : i32
    %c0_i32_1 = arith.constant 0 : i32
    %c0_i32_2 = arith.constant 0 : i32
    return %c0_i32, %c0_i32_0, %c0_i32_1 : i32, i32, i32
  }
  func.func @transform_6(%arg0: i32) -> (i32, i32) {
    %c0_i32 = arith.constant 0 : i32
    %c0_i32_0 = arith.constant 0 : i32
    %c0_i32_1 = arith.constant 0 : i32
    return %c0_i32, %c0_i32_0 : i32, i32
  }
  func.func @transform_7(%arg0: i32) -> (i32, i32) {
    %c0_i32 = arith.constant 0 : i32
    %c0_i32_0 = arith.constant 0 : i32
    %c0_i32_1 = arith.constant 0 : i32
    return %c0_i32, %c0_i32_0 : i32, i32
  }
  func.func @transform_8(%arg0: i32) -> (i32, i32) {
    %c0_i32 = arith.constant 0 : i32
    %c0_i32_0 = arith.constant 0 : i32
    %c0_i32_1 = arith.constant 0 : i32
    return %c0_i32, %c0_i32_0 : i32, i32
  }
  func.func @transform_9(%arg0: i32) -> (i32, i32, i32) {
    %c0_i32 = arith.constant 0 : i32
    %c0_i32_0 = arith.constant 0 : i32
    %c0_i32_1 = arith.constant 0 : i32
    return %arg0, %c0_i32, %c0_i32_0 : i32, i32, i32
  }
}

module attributes {stable_mosaic.version = 11 : i64} {
  func.func @_fc_kernel(%arg0: i32, %arg1: memref<8x2304xbf16, #tpu.memory_space<vmem>>, %arg2: memref<2304x640xbf16, #tpu.memory_space<vmem>>, %arg3: memref<1x640xf32, #tpu.memory_space<vmem>>, %arg4: memref<8x640xf32, #tpu.memory_space<vmem>>) attributes {dimension_semantics = [#tpu.dimension_semantics<parallel>], iteration_bounds = array<i64: 1>, scalar_prefetch = 0 : i64, scratch_operands = 0 : i64, tpu.core_type = #tpu.core_type<tc>, window_params = [{transform_indices = @transform_0, window_bounds = array<i64: 8, 2304>}, {pipeline_mode = #tpu.pipeline_mode<synchronous>, transform_indices = @transform_1, window_bounds = array<i64: 2304, 640>}, {pipeline_mode = #tpu.pipeline_mode<synchronous>, transform_indices = @transform_2, window_bounds = array<i64: 1, 640>}, {transform_indices = @transform_3, window_bounds = array<i64: 8, 640>}]} {
    %c0 = arith.constant 0 : index
    %c0_0 = arith.constant 0 : index
    %0 = vector.load %arg1[%c0, %c0_0] : memref<8x2304xbf16, #tpu.memory_space<vmem>>, vector<8x2304xbf16>
    %c0_1 = arith.constant 0 : index
    %c0_2 = arith.constant 0 : index
    %1 = vector.load %arg2[%c0_1, %c0_2] : memref<2304x640xbf16, #tpu.memory_space<vmem>>, vector<2304x640xbf16>
    %cst = arith.constant dense<0.000000e+00> : vector<8x640xf32>
    %2 = tpu.matmul %0, %1, %cst {dimension_numbers = #tpu.dot_dimension_numbers<[1], [0], [0], [1], [0, 0, 1, 1], [], []>} : vector<8x2304xbf16>, vector<2304x640xbf16>, vector<8x640xf32> -> vector<8x640xf32>
    %c0_3 = arith.constant 0 : index
    %c0_4 = arith.constant 0 : index
    %3 = vector.load %arg3[%c0_3, %c0_4] : memref<1x640xf32, #tpu.memory_space<vmem>>, vector<1x640xf32>
    %4 = vector.broadcast %3 : vector<1x640xf32> to vector<8x640xf32>
    %5 = arith.addf %2, %4 : vector<8x640xf32>
    %c0_5 = arith.constant 0 : index
    %c0_6 = arith.constant 0 : index
    %6 = vector.load %arg4[%c0_5, %c0_6] : memref<8x640xf32, #tpu.memory_space<vmem>>, vector<8x640xf32>
    tpu.vector_store %arg4[%c0_5, %c0_6], %5 {strides = array<i32>} : memref<8x640xf32, #tpu.memory_space<vmem>>, vector<8x640xf32>,
    return
  }
  func.func @transform_0(%arg0: i32) -> (i32, i32) {
    %c0_i32 = arith.constant 0 : i32
    %c0_i32_0 = arith.constant 0 : i32
    return %arg0, %c0_i32 : i32, i32
  }
  func.func @transform_1(%arg0: i32) -> (i32, i32) {
    %c0_i32 = arith.constant 0 : i32
    %c0_i32_0 = arith.constant 0 : i32
    %c0_i32_1 = arith.constant 0 : i32
    return %c0_i32, %c0_i32_0 : i32, i32
  }
  func.func @transform_2(%arg0: i32) -> (i32, i32) {
    %c0_i32 = arith.constant 0 : i32
    %c0_i32_0 = arith.constant 0 : i32
    %c0_i32_1 = arith.constant 0 : i32
    return %c0_i32, %c0_i32_0 : i32, i32
  }
  func.func @transform_3(%arg0: i32) -> (i32, i32) {
    %c0_i32 = arith.constant 0 : i32
    %c0_i32_0 = arith.constant 0 : i32
    return %arg0, %c0_i32 : i32, i32
  }
}

</mosaic_0001>

<llo_original>
// kernel: pallas_forward.2
$region0: #{pallas_forward.2}
  #allocation0 [shape = 'u32[]', space=smem, size = 0x4, offset = 0x4, fixed_abs, tag = 'smem constant byte address 0x4 - core index']
  #allocation1 [shape = 'u32[72,128]{1,0:T(1,128)}', space=vmem, size = 0x9000, scoped, tag = 'internal scratch']
  %s0 = inlined_call_operand.vmem [shape: bf16[2,904,36], index: 0, kind: input, shape index: {}]
  %s1 = inlined_call_operand.vmem [shape: bf16[36,128], index: 1, kind: input, shape index: {}]
  %s2 = inlined_call_operand.vmem [shape: f32[1,128], index: 2, kind: input, shape index: {}]
  %s3 = inlined_call_operand.vmem [shape: f32[1,128], index: 3, kind: input, shape index: {}]
  %s4 = inlined_call_operand.vmem [shape: bf16[240,864], index: 4, kind: input, shape index: {}]
  %s5 = inlined_call_operand.vmem [shape: bf16[9,128,256], index: 5, kind: input, shape index: {}]
  %s6 = inlined_call_operand.vmem [shape: f32[1,256], index: 6, kind: input, shape index: {}]
  %s7 = inlined_call_operand.vmem [shape: f32[1,256], index: 7, kind: input, shape index: {}]
  %s8 = inlined_call_operand.vmem [shape: bf16[36,176], index: 8, kind: input, shape index: {}]
  %s9 = inlined_call_operand.vmem [shape: bf16[2,36,256], index: 9, kind: output, shape index: {}]
  %s10 = sld [smem:[#allocation0]]
  $region69: #{pallas_forward.2} parent=0
    _
  %s12 = ssub.s32 1, %s10
  %s13 = scalar_select 0, %s12, %s10
  loop: start=0, step=1, limit=4
  $region2: #{pallas_forward.2} parent=0 // loop_pre_header
    _
  $region3: #{pallas_forward.2} parent=0 // loop_header
    %s15 = sphi 0, %s19
    %p16 = scmp.ge.s32.totalorder %s15, 4
    %s25 = sphi 0, %s27
    %s28 = sphi 0, %s25
    %s29 = sphi 0, %s28
    %s45 = sphi 0, %s29
    %s49 = sphi 0, %s49
    %s51 = sphi 0, %s49
    %s52 = sphi 0, %s51
    %s66 = sphi 0, %s52
    %s70 = sphi 0, %s70
    %s72 = sphi 0, %s70
    %s73 = sphi 0, %s72
    %s87 = sphi 0, %s73
    %s91 = sphi 0, %s91
    %s93 = sphi 0, %s91
    %s94 = sphi 0, %s93
    %s108 = sphi 0, %s94
    %s112 = sphi 0, %s112
    %s114 = sphi 0, %s112
    %s115 = sphi 0, %s114
    %s129 = sphi 0, %s115
    %s133 = sphi 0, %s133
    %s135 = sphi 0, %s133
    %s136 = sphi 0, %s135
    %s150 = sphi 0, %s136
    %s154 = sphi 0, %s154
    %s156 = sphi 0, %s154
    %s157 = sphi 0, %s156
    %s171 = sphi 0, %s157
    %s175 = sphi 0, %s175
    %s177 = sphi 0, %s175
    %s178 = sphi 0, %s177
    %s192 = sphi 0, %s178
    %s196 = sphi 0, %s196
    %s198 = sphi 0, %s196
    %s199 = sphi 0, %s198
    %s213 = sphi 0, %s199
    %s219 = sphi 0, %s221
    %s222 = sphi 0, %s219
    %s223 = sphi 0, %s222
    %s239 = sphi 0, %s223
  $region4: #{pallas_forward.2} parent=0 // loop_header_branch
    %18 = sbr.rel (%p16) target = $region8
  $region5: #{pallas_forward.2} parent=0 // loop_body
    %s20 = ssub.s32 %s15, 1
    %s21 = ssub.s32 %s15, 2
    %s22 = sadd.s32 %s15, 1
    %s23 = ssub.s32 %s15, %s22
    %p24 = scmp.eq.s32.totalorder %s23, 0
    %s26 = sadd.s32 %s25, 1
    %s27 = scalar_select %p24, %s25, %s26
    %p30 = pneg %p24
    %p31 = scmp.eq.s32.totalorder %s15, 1
    %p32 = por %p30, %p31
    %p33 = scmp.ne.s32.totalorder %s25, %s28
    %p34 = scmp.eq.s32.totalorder %s15, 0
    %p35 = por %p33, %p34
    %p36 = scmp.ne.s32.totalorder %s25, %s28
    %p37 = scmp.eq.s32.totalorder %s20, 1
    %p38 = por %p36, %p37
    %p39 = scmp.ne.s32.totalorder %s28, %s29
    %p40 = scmp.eq.s32.totalorder %s20, 0
    %p41 = por %p39, %p40
    %p42 = scmp.ne.s32.totalorder %s28, %s29
    %p43 = scmp.eq.s32.totalorder %s21, 1
    %p44 = por %p42, %p43
    %p46 = scmp.ne.s32.totalorder %s29, %s45
    %p47 = scmp.eq.s32.totalorder %s21, 0
    %p48 = por %p46, %p47
    %s50 = sadd.s32 %s49, 1
    %p53 = scmp.eq.s32.totalorder %s15, 1
    %p54 = scmp.ne.s32.totalorder %s49, %s51
    %p55 = scmp.eq.s32.totalorder %s15, 0
    %p56 = por %p54, %p55
    %p57 = scmp.ne.s32.totalorder %s49, %s51
    %p58 = scmp.eq.s32.totalorder %s20, 1
    %p59 = por %p57, %p58
    %p60 = scmp.ne.s32.totalorder %s51, %s52
    %p61 = scmp.eq.s32.totalorder %s20, 0
    %p62 = por %p60, %p61
    %p63 = scmp.ne.s32.totalorder %s51, %s52
    %p64 = scmp.eq.s32.totalorder %s21, 1
    %p65 = por %p63, %p64
    %p67 = scmp.ne.s32.totalorder %s52, %s66
    %p68 = scmp.eq.s32.totalorder %s21, 0
    %p69 = por %p67, %p68
    %s71 = sadd.s32 %s70, 1
    %p74 = scmp.eq.s32.totalorder %s15, 1
    %p75 = scmp.ne.s32.totalorder %s70, %s72
    %p76 = scmp.eq.s32.totalorder %s15, 0
    %p77 = por %p75, %p76
    %p78 = scmp.ne.s32.totalorder %s70, %s72
    %p79 = scmp.eq.s32.totalorder %s20, 1
    %p80 = por %p78, %p79
    %p81 = scmp.ne.s32.totalorder %s72, %s73
    %p82 = scmp.eq.s32.totalorder %s20, 0
    %p83 = por %p81, %p82
    %p84 = scmp.ne.s32.totalorder %s72, %s73
    %p85 = scmp.eq.s32.totalorder %s21, 1
    %p86 = por %p84, %p85
    %p88 = scmp.ne.s32.totalorder %s73, %s87
    %p89 = scmp.eq.s32.totalorder %s21, 0
    %p90 = por %p88, %p89
    %s92 = sadd.s32 %s91, 1
    %p95 = scmp.eq.s32.totalorder %s15, 1
    %p96 = scmp.ne.s32.totalorder %s91, %s93
    %p97 = scmp.eq.s32.totalorder %s15, 0
    %p98 = por %p96, %p97
    %p99 = scmp.ne.s32.totalorder %s91, %s93
    %p100 = scmp.eq.s32.totalorder %s20, 1
    %p101 = por %p99, %p100
    %p102 = scmp.ne.s32.totalorder %s93, %s94
    %p103 = scmp.eq.s32.totalorder %s20, 0
    %p104 = por %p102, %p103
    %p105 = scmp.ne.s32.totalorder %s93, %s94
    %p106 = scmp.eq.s32.totalorder %s21, 1
    %p107 = por %p105, %p106
    %p109 = scmp.ne.s32.totalorder %s94, %s108
    %p110 = scmp.eq.s32.totalorder %s21, 0
    %p111 = por %p109, %p110
    %s113 = sadd.s32 %s112, 1
    %p116 = scmp.eq.s32.totalorder %s15, 1
    %p117 = scmp.ne.s32.totalorder %s112, %s114
    %p118 = scmp.eq.s32.totalorder %s15, 0
    %p119 = por %p117, %p118
    %p120 = scmp.ne.s32.totalorder %s112, %s114
    %p121 = scmp.eq.s32.totalorder %s20, 1
    %p122 = por %p120, %p121
    %p123 = scmp.ne.s32.totalorder %s114, %s115
    %p124 = scmp.eq.s32.totalorder %s20, 0
    %p125 = por %p123, %p124
    %p126 = scmp.ne.s32.totalorder %s114, %s115
    %p127 = scmp.eq.s32.totalorder %s21, 1
    %p128 = por %p126, %p127
    %p130 = scmp.ne.s32.totalorder %s115, %s129
    %p131 = scmp.eq.s32.totalorder %s21, 0
    %p132 = por %p130, %p131
    %s134 = sadd.s32 %s133, 1
    %p137 = scmp.eq.s32.totalorder %s15, 1
    %p138 = scmp.ne.s32.totalorder %s133, %s135
    %p139 = scmp.eq.s32.totalorder %s15, 0
    %p140 = por %p138, %p139
    %p141 = scmp.ne.s32.totalorder %s133, %s135
    %p142 = scmp.eq.s32.totalorder %s20, 1
    %p143 = por %p141, %p142
    %p144 = scmp.ne.s32.totalorder %s135, %s136
    %p145 = scmp.eq.s32.totalorder %s20, 0
    %p146 = por %p144, %p145
    %p147 = scmp.ne.s32.totalorder %s135, %s136
    %p148 = scmp.eq.s32.totalorder %s21, 1
    %p149 = por %p147, %p148
    %p151 = scmp.ne.s32.totalorder %s136, %s150
    %p152 = scmp.eq.s32.totalorder %s21, 0
    %p153 = por %p151, %p152
    %s155 = sadd.s32 %s154, 1
    %p158 = scmp.eq.s32.totalorder %s15, 1
    %p159 = scmp.ne.s32.totalorder %s154, %s156
    %p160 = scmp.eq.s32.totalorder %s15, 0
    %p161 = por %p159, %p160
    %p162 = scmp.ne.s32.totalorder %s154, %s156
    %p163 = scmp.eq.s32.totalorder %s20, 1
    %p164 = por %p162, %p163
    %p165 = scmp.ne.s32.totalorder %s156, %s157
    %p166 = scmp.eq.s32.totalorder %s20, 0
    %p167 = por %p165, %p166
    %p168 = scmp.ne.s32.totalorder %s156, %s157
    %p169 = scmp.eq.s32.totalorder %s21, 1
    %p170 = por %p168, %p169
    %p172 = scmp.ne.s32.totalorder %s157, %s171
    %p173 = scmp.eq.s32.totalorder %s21, 0
    %p174 = por %p172, %p173
    %s176 = sadd.s32 %s175, 1
    %p179 = scmp.eq.s32.totalorder %s15, 1
    %p180 = scmp.ne.s32.totalorder %s175, %s177
    %p181 = scmp.eq.s32.totalorder %s15, 0
    %p182 = por %p180, %p181
    %p183 = scmp.ne.s32.totalorder %s175, %s177
    %p184 = scmp.eq.s32.totalorder %s20, 1
    %p185 = por %p183, %p184
    %p186 = scmp.ne.s32.totalorder %s177, %s178
    %p187 = scmp.eq.s32.totalorder %s20, 0
    %p188 = por %p186, %p187
    %p189 = scmp.ne.s32.totalorder %s177, %s178
    %p190 = scmp.eq.s32.totalorder %s21, 1
    %p191 = por %p189, %p190
    %p193 = scmp.ne.s32.totalorder %s178, %s192
    %p194 = scmp.eq.s32.totalorder %s21, 0
    %p195 = por %p193, %p194
    %s197 = sadd.s32 %s196, 1
    %p200 = scmp.eq.s32.totalorder %s15, 1
    %p201 = scmp.ne.s32.totalorder %s196, %s198
    %p202 = scmp.eq.s32.totalorder %s15, 0
    %p203 = por %p201, %p202
    %p204 = scmp.ne.s32.totalorder %s196, %s198
    %p205 = scmp.eq.s32.totalorder %s20, 1
    %p206 = por %p204, %p205
    %p207 = scmp.ne.s32.totalorder %s198, %s199
    %p208 = scmp.eq.s32.totalorder %s20, 0
    %p209 = por %p207, %p208
    %p210 = scmp.ne.s32.totalorder %s198, %s199
    %p211 = scmp.eq.s32.totalorder %s21, 1
    %p212 = por %p210, %p211
    %p214 = scmp.ne.s32.totalorder %s199, %s213
    %p215 = scmp.eq.s32.totalorder %s21, 0
    %p216 = por %p214, %p215
    %s217 = ssub.s32 %s15, %s22
    %p218 = scmp.eq.s32.totalorder %s217, 0
    %s220 = sadd.s32 %s219, 1
    %s221 = scalar_select %p218, %s219, %s220
    %p224 = pneg %p218
    %p225 = scmp.eq.s32.totalorder %s15, 1
    %p226 = por %p224, %p225
    %p227 = scmp.ne.s32.totalorder %s219, %s222
    %p228 = scmp.eq.s32.totalorder %s15, 0
    %p229 = por %p227, %p228
    %p230 = scmp.ne.s32.totalorder %s219, %s222
    %p231 = scmp.eq.s32.totalorder %s20, 1
    %p232 = por %p230, %p231
    %p233 = scmp.ne.s32.totalorder %s222, %s223
    %p234 = scmp.eq.s32.totalorder %s20, 0
    %p235 = por %p233, %p234
    %p236 = scmp.ne.s32.totalorder %s222, %s223
    %p237 = scmp.eq.s32.totalorder %s21, 1
    %p238 = por %p236, %p237
    %p240 = scmp.ne.s32.totalorder %s223, %s239
    %p241 = scmp.eq.s32.totalorder %s21, 0
    %p242 = por %p240, %p241
    %p243 = scmp.le.s32.totalorder 1, %s15
    %p244 = scmp.lt.s32.totalorder %s15, 3
    %p245 = pnand %p243, %p244
    %p246 = pneg %p245
    // Predicated region
    $region9: #{pallas_forward.2} parent=5 // pred_check
      _
    $region10: #{pallas_forward.2} parent=5 // pred_check_branch
      %248 = sbr.rel (%p245) target = $region12
    $region11: #{pallas_forward.2} parent=5 // pred_region
      %s249 = ssub.s32 %s15, 1
      // Predicated region
      $region13: #{pallas_forward.2} parent=11 // pred_check
        %p250 = pneg %p62
      $region14: #{pallas_forward.2} parent=11 // pred_check_branch
        %252 = sbr.rel (%p250) target = $region16
      $region15: #{pallas_forward.2} parent=11 // pred_region
        _
      $region16: #{pallas_forward.2} parent=11 // pred_fallthru
        _
      // Predicated region
      $region17: #{pallas_forward.2} parent=11 // pred_check
        %p253 = pneg %p83
      $region18: #{pallas_forward.2} parent=11 // pred_check_branch
        %255 = sbr.rel (%p253) target = $region20
      $region19: #{pallas_forward.2} parent=11 // pred_region
        _
      $region20: #{pallas_forward.2} parent=11 // pred_fallthru
        _
      // Predicated region
      $region21: #{pallas_forward.2} parent=11 // pred_check
        %p256 = pneg %p104
      $region22: #{pallas_forward.2} parent=11 // pred_check_branch
        %258 = sbr.rel (%p256) target = $region24
      $region23: #{pallas_forward.2} parent=11 // pred_region
        _
      $region24: #{pallas_forward.2} parent=11 // pred_fallthru
        _
      // Predicated region
      $region25: #{pallas_forward.2} parent=11 // pred_check
        %p259 = pneg %p125
      $region26: #{pallas_forward.2} parent=11 // pred_check_branch
        %261 = sbr.rel (%p259) target = $region28
      $region27: #{pallas_forward.2} parent=11 // pred_region
        _
      $region28: #{pallas_forward.2} parent=11 // pred_fallthru
        _
      // Predicated region
      $region29: #{pallas_forward.2} parent=11 // pred_check
        %p262 = pneg %p146
      $region30: #{pallas_forward.2} parent=11 // pred_check_branch
        %264 = sbr.rel (%p262) target = $region32
      $region31: #{pallas_forward.2} parent=11 // pred_region
        _
      $region32: #{pallas_forward.2} parent=11 // pred_fallthru
        _
      // Predicated region
      $region33: #{pallas_forward.2} parent=11 // pred_check
        %p265 = pneg %p167
      $region34: #{pallas_forward.2} parent=11 // pred_check_branch
        %267 = sbr.rel (%p265) target = $region36
      $region35: #{pallas_forward.2} parent=11 // pred_region
        _
      $region36: #{pallas_forward.2} parent=11 // pred_fallthru
        _
      // Predicated region
      $region37: #{pallas_forward.2} parent=11 // pred_check
        %p268 = pneg %p188
      $region38: #{pallas_forward.2} parent=11 // pred_check_branch
        %270 = sbr.rel (%p268) target = $region40
      $region39: #{pallas_forward.2} parent=11 // pred_region
        _
      $region40: #{pallas_forward.2} parent=11 // pred_fallthru
        _
      // Predicated region
      $region41: #{pallas_forward.2} parent=11 // pred_check
        %p271 = pneg %p209
      $region42: #{pallas_forward.2} parent=11 // pred_check_branch
        %273 = sbr.rel (%p271) target = $region44
      $region43: #{pallas_forward.2} parent=11 // pred_region
        _
      $region44: #{pallas_forward.2} parent=11 // pred_fallthru
        _
    $region12: #{pallas_forward.2} parent=5 // pred_fallthru
      _
    %p274 = scmp.lt.s32.totalorder %s15, 2
    // Predicated region
    $region45: #{pallas_forward.2} parent=5 // pred_check
      %p275 = pneg %p274
    $region46: #{pallas_forward.2} parent=5 // pred_check_branch
      %277 = sbr.rel (%p275) target = $region48
    $region47: #{pallas_forward.2} parent=5 // pred_region
      // Predicated region
      $region49: #{pallas_forward.2} parent=47 // pred_check
        %p278 = pneg %p35
      $region50: #{pallas_forward.2} parent=47 // pred_check_branch
        %280 = sbr.rel (%p278) target = $region52
      $region51: #{pallas_forward.2} parent=47 // pred_region
        %p281 = scmp.lt.s32.totalorder %s15, 1
        %s282 = scalar_select %p281, %s15, 1
        %s283 = smul.addr %s282, 113
        %s284 = smul.addr %s283, 4
        %s285 = scalar_lea.vmem %s0, %s284
      $region52: #{pallas_forward.2} parent=47 // pred_fallthru
        _
    $region48: #{pallas_forward.2} parent=5 // pred_fallthru
      _
    %p286 = scmp.le.s32.totalorder 1, %s15
    %p287 = scmp.lt.s32.totalorder %s15, 3
    %p288 = pnand %p286, %p287
    %p289 = pneg %p288
    // Predicated region
    $region53: #{pallas_forward.2} parent=5 // pred_check
      _
    $region54: #{pallas_forward.2} parent=5 // pred_check_branch
      %291 = sbr.rel (%p288) target = $region56
    $region55: #{pallas_forward.2} parent=5 // pred_region
      %s292 = ssub.s32 %s15, 1
      %p293 = scmp.lt.s32.totalorder %s20, 1
      %s294 = scalar_select %p293, %s20, 1
      %s295 = smul.addr %s294, 113
      %s296 = smul.addr %s295, 4
      %s297 = scalar_lea.vmem %s0, %s296
      %p298 = pneg %p41
      %p299 = pneg %p38
      %p300 = pneg %p62
      %p301 = pneg %p59
      %p302 = pneg %p83
      %p303 = pneg %p80
      %p304 = pneg %p104
      %p305 = pneg %p101
      %p306 = pneg %p125
      %p307 = pneg %p122
      %p308 = pneg %p146
      %p309 = pneg %p143
      %p310 = pneg %p167
      %p311 = pneg %p164
      %p312 = pneg %p188
      %p313 = pneg %p185
      %p314 = pneg %p209
      %p315 = pneg %p206
      %p316 = pneg %p235
      %p317 = pneg %p232
      %p318 = scmp.lt.s32.totalorder %s20, 1
      %s319 = scalar_select %p318, %s20, 1
      %s320 = smul.addr %s319, 10
      %s321 = smul.addr %s320, 4
      %s322 = scalar_lea.vmem %s9, %s321
      %p323 = scmp.lt.s32.totalorder %s20, 1
      %s324 = scalar_select %p323, %s20, 1
      %s325 = smul.addr %s324, 113
      %s326 = smul.addr %s325, 4
      %s327 = scalar_lea.vmem %s0, %s326
      %p328 = scmp.lt.s32.totalorder %s20, 1
      %s329 = scalar_select %p328, %s20, 1
      %s330 = smul.addr %s329, 10
      %s331 = smul.addr %s330, 4
      %s332 = scalar_lea.vmem %s9, %s331
      %v334 = vld [vmem:[%s327] sm:$0xf]
      %v335 = vld [vmem:[%s327 + $0x4] sm:$0xf]
      %v336 = vld [vmem:[%s327 + $0x8] sm:$0xf]
      %v337 = vld [vmem:[%s327 + $0xc] sm:$0xf]
      %v338 = vld [vmem:[%s327 + $0x10] sm:$0xf]
      %v339 = vld [vmem:[%s327 + $0x14] sm:$0xf]
      %v340 = vld [vmem:[%s327 + $0x18] sm:$0xf]
      %v341 = vld [vmem:[%s327 + $0x1c] sm:$0xf]
      %v342 = vld [vmem:[%s327 + $0x20] sm:$0xf]
      %v343 = vld [vmem:[%s327 + $0x24] sm:$0xf]
      %v344 = vld [vmem:[%s327 + $0x28] sm:$0xf]
      %v345 = vld [vmem:[%s327 + $0x2c] sm:$0xf]
      %v346 = vld [vmem:[%s327 + $0x30] sm:$0xf]
      %v347 = vld [vmem:[%s327 + $0x34] sm:$0xf]
      %v348 = vld [vmem:[%s327 + $0x38] sm:$0xf]
      %v349 = vld [vmem:[%s327 + $0x3c] sm:$0xf]
      %v350 = vld [vmem:[%s327 + $0x40] sm:$0xf]
      %v351 = vld [vmem:[%s327 + $0x44] sm:$0xf]
      %v352 = vld [vmem:[%s327 + $0x48] sm:$0xf]
      %v353 = vld [vmem:[%s327 + $0x4c] sm:$0xf]
      %v354 = vld [vmem:[%s327 + $0x50] sm:$0xf]
      %v355 = vld [vmem:[%s327 + $0x54] sm:$0xf]
      %v356 = vld [vmem:[%s327 + $0x58] sm:$0xf]
      %v357 = vld [vmem:[%s327 + $0x5c] sm:$0xf]
      %v358 = vld [vmem:[%s327 + $0x60] sm:$0xf]
      %v359 = vld [vmem:[%s327 + $0x64] sm:$0xf]
      %v360 = vld [vmem:[%s327 + $0x68] sm:$0xf]
      %v361 = vld [vmem:[%s327 + $0x6c] sm:$0xf]
      %v362 = vld [vmem:[%s327 + $0x70] sm:$0xf]
      %v363 = vld [vmem:[%s327 + $0x74] sm:$0xf]
      %v364 = vld [vmem:[%s327 + $0x78] sm:$0xf]
      %v365 = vld [vmem:[%s327 + $0x7c] sm:$0xf]
      %v366 = vld [vmem:[%s327 + $0x80] sm:$0xf]
      %v367 = vld [vmem:[%s327 + $0x84] sm:$0xf]
      %v368 = vld [vmem:[%s327 + $0x88] sm:$0xf]
      %v369 = vld [vmem:[%s327 + $0x8c] sm:$0xf]
      %v370 = vld [vmem:[%s327 + $0x90] sm:$0xf]
      %v371 = vld [vmem:[%s327 + $0x94] sm:$0xf]
      %v372 = vld [vmem:[%s327 + $0x98] sm:$0xf]
      %v373 = vld [vmem:[%s327 + $0x9c] sm:$0xf]
      %v374 = vld [vmem:[%s327 + $0xa0] sm:$0xf]
      %v375 = vld [vmem:[%s327 + $0xa4] sm:$0xf]
      %v376 = vld [vmem:[%s327 + $0xa8] sm:$0xf]
      %v377 = vld [vmem:[%s327 + $0xac] sm:$0xf]
      %v378 = vld [vmem:[%s327 + $0xb0] sm:$0xf]
      %v379 = vld [vmem:[%s327 + $0xb4] sm:$0xf]
      %v380 = vld [vmem:[%s327 + $0xb8] sm:$0xf]
      %v381 = vld [vmem:[%s327 + $0xbc] sm:$0xf]
      %v382 = vld [vmem:[%s327 + $0xc0] sm:$0xf]
      %v383 = vld [vmem:[%s327 + $0xc4] sm:$0xf]
      %v384 = vld [vmem:[%s327 + $0xc8] sm:$0xf]
      %v385 = vld [vmem:[%s327 + $0xcc] sm:$0xf]
      %v386 = vld [vmem:[%s327 + $0xd0] sm:$0xf]
      %v387 = vld [vmem:[%s327 + $0xd4] sm:$0xf]
      %v388 = vld [vmem:[%s327 + $0xd8] sm:$0xf]
      %v389 = vld [vmem:[%s327 + $0xdc] sm:$0xf]
      %v390 = vld [vmem:[%s327 + $0xe0] sm:$0xf]
      %v391 = vld [vmem:[%s327 + $0xe4] sm:$0xf]
      %v392 = vld [vmem:[%s327 + $0xe8] sm:$0xf]
      %v393 = vld [vmem:[%s327 + $0xec] sm:$0xf]
      %v394 = vld [vmem:[%s327 + $0xf0] sm:$0xf]
      %v395 = vld [vmem:[%s327 + $0xf4] sm:$0xf]
      %v396 = vld [vmem:[%s327 + $0xf8] sm:$0xf]
      %v397 = vld [vmem:[%s327 + $0xfc] sm:$0xf]
      %v398 = vld [vmem:[%s327 + $0x100] sm:$0xf]
      %v399 = vld [vmem:[%s327 + $0x104] sm:$0xf]
      %v400 = vld [vmem:[%s327 + $0x108] sm:$0xf]
      %v401 = vld [vmem:[%s327 + $0x10c] sm:$0xf]
      %v402 = vld [vmem:[%s327 + $0x110] sm:$0xf]
      %v403 = vld [vmem:[%s327 + $0x114] sm:$0xf]
      %v404 = vld [vmem:[%s327 + $0x118] sm:$0xf]
      %v405 = vld [vmem:[%s327 + $0x11c] sm:$0xf]
      %v406 = vld [vmem:[%s327 + $0x120] sm:$0xf]
      %v407 = vld [vmem:[%s327 + $0x124] sm:$0xf]
      %v408 = vld [vmem:[%s327 + $0x128] sm:$0xf]
      %v409 = vld [vmem:[%s327 + $0x12c] sm:$0xf]
      %v410 = vld [vmem:[%s327 + $0x130] sm:$0xf]
      %v411 = vld [vmem:[%s327 + $0x134] sm:$0xf]
      %v412 = vld [vmem:[%s327 + $0x138] sm:$0xf]
      %v413 = vld [vmem:[%s327 + $0x13c] sm:$0xf]
      %v414 = vld [vmem:[%s327 + $0x140] sm:$0xf]
      %v415 = vld [vmem:[%s327 + $0x144] sm:$0xf]
      %v416 = vld [vmem:[%s327 + $0x148] sm:$0xf]
      %v417 = vld [vmem:[%s327 + $0x14c] sm:$0xf]
      %v418 = vld [vmem:[%s327 + $0x150] sm:$0xf]
      %v419 = vld [vmem:[%s327 + $0x154] sm:$0xf]
      %v420 = vld [vmem:[%s327 + $0x158] sm:$0xf]
      %v421 = vld [vmem:[%s327 + $0x15c] sm:$0xf]
      %v422 = vld [vmem:[%s327 + $0x160] sm:$0xf]
      %v423 = vld [vmem:[%s327 + $0x164] sm:$0xf]
      %v424 = vld [vmem:[%s327 + $0x168] sm:$0xf]
      %v425 = vld [vmem:[%s327 + $0x16c] sm:$0xf]
      %v426 = vld [vmem:[%s327 + $0x170] sm:$0xf]
      %v427 = vld [vmem:[%s327 + $0x174] sm:$0xf]
      %v428 = vld [vmem:[%s327 + $0x178] sm:$0xf]
      %v429 = vld [vmem:[%s327 + $0x17c] sm:$0xf]
      %v430 = vld [vmem:[%s327 + $0x180] sm:$0xf]
      %v431 = vld [vmem:[%s327 + $0x184] sm:$0xf]
      %v432 = vld [vmem:[%s327 + $0x188] sm:$0xf]
      %v433 = vld [vmem:[%s327 + $0x18c] sm:$0xf]
      %v434 = vld [vmem:[%s327 + $0x190] sm:$0xf]
      %v435 = vld [vmem:[%s327 + $0x194] sm:$0xf]
      %v436 = vld [vmem:[%s327 + $0x198] sm:$0xf]
      %v437 = vld [vmem:[%s327 + $0x19c] sm:$0xf]
      %v438 = vld [vmem:[%s327 + $0x1a0] sm:$0xf]
      %v439 = vld [vmem:[%s327 + $0x1a4] sm:$0xf]
      %v440 = vld [vmem:[%s327 + $0x1a8] sm:$0xf]
      %v441 = vld [vmem:[%s327 + $0x1ac] sm:$0xf]
      %v442 = vld [vmem:[%s327 + $0x1b0] sm:$0xf]
      %v443 = vld [vmem:[%s327 + $0x1b4] sm:$0xf]
      %v444 = vld [vmem:[%s327 + $0x1b8] sm:$0xf]
      %v445 = vld [vmem:[%s327 + $0x1bc] sm:$0xf]
      %v446 = vld [vmem:[%s327 + $0x1c0] sm:$0xf]
      %v447 = vld [vmem:[%s1] sm:$0xf]
      %v448 = vld [vmem:[%s1 + $0x4] sm:$0xf]
      %v449 = vld [vmem:[%s1 + $0x8] sm:$0xf]
      %v450 = vld [vmem:[%s1 + $0xc] sm:$0xf]
      %v451 = vld [vmem:[%s1 + $0x10] sm:$0x3]
      %v565 = vunpack.c.l.b16 %v334
      %v566 = vunpack.c.l.b16 %v335
      %v567 = vunpack.c.l.b16 %v336
      %v568 = vunpack.c.l.b16 %v337
      %v569 = vunpack.c.l.b16 %v338
      %v570 = vunpack.c.l.b16 %v339
      %v571 = vunpack.c.l.b16 %v340
      %v572 = vunpack.c.l.b16 %v341
      %v573 = vunpack.c.l.b16 %v342
      %v574 = vunpack.c.l.b16 %v343
      %v575 = vunpack.c.l.b16 %v344
      %v576 = vunpack.c.l.b16 %v345
      %v577 = vunpack.c.l.b16 %v346
      %v578 = vunpack.c.l.b16 %v347
      %v579 = vunpack.c.l.b16 %v348
      %v580 = vunpack.c.l.b16 %v349
      %v581 = vunpack.c.l.b16 %v350
      %v582 = vunpack.c.l.b16 %v351
      %v583 = vunpack.c.l.b16 %v352
      %v584 = vunpack.c.l.b16 %v353
      %v585 = vunpack.c.l.b16 %v354
      %v586 = vunpack.c.l.b16 %v355
      %v587 = vunpack.c.l.b16 %v356
      %v588 = vunpack.c.l.b16 %v357
      %v589 = vunpack.c.l.b16 %v358
      %v590 = vunpack.c.l.b16 %v359
      %v591 = vunpack.c.l.b16 %v360
      %v592 = vunpack.c.l.b16 %v361
      %v593 = vunpack.c.l.b16 %v362
      %v594 = vunpack.c.l.b16 %v363
      %v595 = vunpack.c.l.b16 %v364
      %v596 = vunpack.c.l.b16 %v365
      %v597 = vunpack.c.l.b16 %v366
      %v598 = vunpack.c.l.b16 %v367
      %v599 = vunpack.c.l.b16 %v368
      %v600 = vunpack.c.l.b16 %v369
      %v601 = vunpack.c.l.b16 %v370
      %v602 = vunpack.c.l.b16 %v371
      %v603 = vunpack.c.l.b16 %v372
      %v604 = vunpack.c.l.b16 %v373
      %v605 = vunpack.c.l.b16 %v374
      %v606 = vunpack.c.l.b16 %v375
      %v607 = vunpack.c.l.b16 %v376
      %v608 = vunpack.c.l.b16 %v377
      %v609 = vunpack.c.l.b16 %v378
      %v610 = vunpack.c.l.b16 %v379
      %v611 = vunpack.c.l.b16 %v380
      %v612 = vunpack.c.l.b16 %v381
      %v613 = vunpack.c.l.b16 %v382
      %v614 = vunpack.c.l.b16 %v383
      %v615 = vunpack.c.l.b16 %v384
      %v616 = vunpack.c.l.b16 %v385
      %v617 = vunpack.c.l.b16 %v386
      %v618 = vunpack.c.l.b16 %v387
      %v619 = vunpack.c.l.b16 %v388
      %v620 = vunpack.c.l.b16 %v389
      %v621 = vunpack.c.l.b16 %v390
      %v622 = vunpack.c.l.b16 %v391
      %v623 = vunpack.c.l.b16 %v392
      %v624 = vunpack.c.l.b16 %v393
      %v625 = vunpack.c.l.b16 %v394
      %v626 = vunpack.c.l.b16 %v395
      %v627 = vunpack.c.l.b16 %v396
      %v628 = vunpack.c.l.b16 %v397
      %v629 = vunpack.c.l.b16 %v398
      %v630 = vunpack.c.l.b16 %v399
      %v631 = vunpack.c.l.b16 %v400
      %v632 = vunpack.c.l.b16 %v401
      %v633 = vunpack.c.l.b16 %v402
      %v634 = vunpack.c.l.b16 %v403
      %v635 = vunpack.c.l.b16 %v404
      %v636 = vunpack.c.l.b16 %v405
      %v637 = vunpack.c.l.b16 %v406
      %v638 = vunpack.c.l.b16 %v407
      %v639 = vunpack.c.l.b16 %v408
      %v640 = vunpack.c.l.b16 %v409
      %v641 = vunpack.c.l.b16 %v410
      %v642 = vunpack.c.l.b16 %v411
      %v643 = vunpack.c.l.b16 %v412
      %v644 = vunpack.c.l.b16 %v413
      %v645 = vunpack.c.l.b16 %v414
      %v646 = vunpack.c.l.b16 %v415
      %v647 = vunpack.c.l.b16 %v416
      %v648 = vunpack.c.l.b16 %v417
      %v649 = vunpack.c.l.b16 %v418
      %v650 = vunpack.c.l.b16 %v419
      %v651 = vunpack.c.l.b16 %v420
      %v652 = vunpack.c.l.b16 %v421
      %v653 = vunpack.c.l.b16 %v422
      %v654 = vunpack.c.l.b16 %v423
      %v655 = vunpack.c.l.b16 %v424
      %v656 = vunpack.c.l.b16 %v425
      %v657 = vunpack.c.l.b16 %v426
      %v658 = vunpack.c.l.b16 %v427
      %v659 = vunpack.c.l.b16 %v428
      %v660 = vunpack.c.l.b16 %v429
      %v661 = vunpack.c.l.b16 %v430
      %v662 = vunpack.c.l.b16 %v431
      %v663 = vunpack.c.l.b16 %v432
      %v664 = vunpack.c.l.b16 %v433
      %v665 = vunpack.c.l.b16 %v434
      %v666 = vunpack.c.l.b16 %v435
      %v667 = vunpack.c.l.b16 %v436
      %v668 = vunpack.c.l.b16 %v437
      %v669 = vunpack.c.l.b16 %v438
      %v670 = vunpack.c.l.b16 %v439
      %v671 = vunpack.c.l.b16 %v440
      %v672 = vunpack.c.l.b16 %v441
      %v673 = vunpack.c.l.b16 %v442
      %v674 = vunpack.c.l.b16 %v443
      %v675 = vunpack.c.l.b16 %v444
      %v676 = vunpack.c.l.b16 %v445
      %v677 = vunpack.c.l.b16 %v446
      %v678 = vpack.c.b16 %v566, %v565
      %v679 = vpack.c.b16 %v568, %v567
      %v680 = vpack.c.b16 %v570, %v569
      %v681 = vpack.c.b16 %v572, %v571
      %v682 = vpack.c.b16 %v574, %v573
      %v683 = vpack.c.b16 %v576, %v575
      %v684 = vpack.c.b16 %v578, %v577
      %v685 = vpack.c.b16 %v580, %v579
      %v686 = vpack.c.b16 %v582, %v581
      %v687 = vpack.c.b16 %v584, %v583
      %v688 = vpack.c.b16 %v586, %v585
      %v689 = vpack.c.b16 %v588, %v587
      %v690 = vpack.c.b16 %v590, %v589
      %v691 = vpack.c.b16 %v592, %v591
      %v692 = vpack.c.b16 %v594, %v593
      %v693 = vpack.c.b16 %v596, %v595
      %v694 = vpack.c.b16 %v598, %v597
      %v695 = vpack.c.b16 %v600, %v599
      %v696 = vpack.c.b16 %v602, %v601
      %v697 = vpack.c.b16 %v604, %v603
      %v698 = vpack.c.b16 %v606, %v605
      %v699 = vpack.c.b16 %v608, %v607
      %v700 = vpack.c.b16 %v610, %v609
      %v701 = vpack.c.b16 %v612, %v611
      %v702 = vpack.c.b16 %v614, %v613
      %v703 = vpack.c.b16 %v616, %v615
      %v704 = vpack.c.b16 %v618, %v617
      %v705 = vpack.c.b16 %v620, %v619
      %v706 = vpack.c.b16 %v622, %v621
      %v707 = vpack.c.b16 %v624, %v623
      %v708 = vpack.c.b16 %v626, %v625
      %v709 = vpack.c.b16 %v628, %v627
      %v710 = vpack.c.b16 %v630, %v629
      %v711 = vpack.c.b16 %v632, %v631
      %v712 = vpack.c.b16 %v634, %v633
      %v713 = vpack.c.b16 %v636, %v635
      %v714 = vpack.c.b16 %v638, %v637
      %v715 = vpack.c.b16 %v640, %v639
      %v716 = vpack.c.b16 %v642, %v641
      %v717 = vpack.c.b16 %v644, %v643
      %v718 = vpack.c.b16 %v646, %v645
      %v719 = vpack.c.b16 %v648, %v647
      %v720 = vpack.c.b16 %v650, %v649
      %v721 = vpack.c.b16 %v652, %v651
      %v722 = vpack.c.b16 %v654, %v653
      %v723 = vpack.c.b16 %v656, %v655
      %v724 = vpack.c.b16 %v658, %v657
      %v725 = vpack.c.b16 %v660, %v659
      %v726 = vpack.c.b16 %v662, %v661
      %v727 = vpack.c.b16 %v664, %v663
      %v728 = vpack.c.b16 %v666, %v665
      %v729 = vpack.c.b16 %v668, %v667
      %v730 = vpack.c.b16 %v670, %v669
      %v731 = vpack.c.b16 %v672, %v671
      %v732 = vpack.c.b16 %v674, %v673
      %v733 = vpack.c.b16 %v676, %v675
      %v734 = vpack.c.b16 %v677, %v677
      %v740 = vunpack.c.l.b16 %v447
      %v741 = vunpack.c.l.b16 %v448
      %v742 = vunpack.c.l.b16 %v449
      %v743 = vunpack.c.l.b16 %v450
      %v744 = vunpack.c.l.b16 %v451
      %v745 = vpack.c.b16 %v741, %v740
      %v746 = vpack.c.b16 %v743, %v742
      %v747 = vpack.c.b16 %v744, %v744
      %vm750 = vcmask 293888
      %v752 = vsel %vm750, %v678, 0
      %v755 = vsel %vm750, %v679, 0
      %v758 = vsel %vm750, %v680, 0
      %v761 = vsel %vm750, %v681, 0
      %v764 = vsel %vm750, %v682, 0
      %v767 = vsel %vm750, %v683, 0
      %v770 = vsel %vm750, %v684, 0
      %v773 = vsel %vm750, %v685, 0
      %v776 = vsel %vm750, %v686, 0
      %v779 = vsel %vm750, %v687, 0
      %v782 = vsel %vm750, %v688, 0
      %v785 = vsel %vm750, %v689, 0
      %v788 = vsel %vm750, %v690, 0
      %v791 = vsel %vm750, %v691, 0
      %v794 = vsel %vm750, %v692, 0
      %v797 = vsel %vm750, %v693, 0
      %v800 = vsel %vm750, %v694, 0
      %v803 = vsel %vm750, %v695, 0
      %v806 = vsel %vm750, %v696, 0
      %v809 = vsel %vm750, %v697, 0
      %v812 = vsel %vm750, %v698, 0
      %v815 = vsel %vm750, %v699, 0
      %v818 = vsel %vm750, %v700, 0
      %v821 = vsel %vm750, %v701, 0
      %v824 = vsel %vm750, %v702, 0
      %v827 = vsel %vm750, %v703, 0
      %v830 = vsel %vm750, %v704, 0
      %v833 = vsel %vm750, %v705, 0
      %v836 = vsel %vm750, %v706, 0
      %v839 = vsel %vm750, %v707, 0
      %v842 = vsel %vm750, %v708, 0
      %v845 = vsel %vm750, %v709, 0
      %v848 = vsel %vm750, %v710, 0
      %v851 = vsel %vm750, %v711, 0
      %v854 = vsel %vm750, %v712, 0
      %v857 = vsel %vm750, %v713, 0
      %v860 = vsel %vm750, %v714, 0
      %v863 = vsel %vm750, %v715, 0
      %v866 = vsel %vm750, %v716, 0
      %v869 = vsel %vm750, %v717, 0
      %v872 = vsel %vm750, %v718, 0
      %v875 = vsel %vm750, %v719, 0
      %v878 = vsel %vm750, %v720, 0
      %v881 = vsel %vm750, %v721, 0
      %v884 = vsel %vm750, %v722, 0
      %v887 = vsel %vm750, %v723, 0
      %v890 = vsel %vm750, %v724, 0
      %v893 = vsel %vm750, %v725, 0
      %v896 = vsel %vm750, %v726, 0
      %v899 = vsel %vm750, %v727, 0
      %v902 = vsel %vm750, %v728, 0
      %v905 = vsel %vm750, %v729, 0
      %v908 = vsel %vm750, %v730, 0
      %v911 = vsel %vm750, %v731, 0
      %v914 = vsel %vm750, %v732, 0
      %v917 = vsel %vm750, %v733, 0
      %v920 = vsel %vm750, %v734, 0
      %vm922 = vcmask 1041408
      %v924 = vsel %vm922, %v747, 0
      %926 = vmatpush.bf16.msra.mxu0 0
      %927 = vmatpush.bf16.msra.mxu0 0
      %928 = vmatpush.bf16.msra.mxu0 0
      %929 = vmatpush.bf16.msra.mxu0 0
      %930 = vmatpush.bf16.msra.mxu0 0
      %931 = vmatpush.bf16.msra.mxu0 %v924
      %932 = vmatpush.bf16.msra.mxu0 %v746
      %933 = vmatpush.bf16.msra.mxu0 %v745
      %934 = vmatmul.bf16.gmra.mxu0 %v752
      %v935 = vpop.f32.mrf.mxu0
      %v936 = vadd.f32 0.0, %v935
      %v937 = vpop.f32.mrf.mxu0
      %v938 = vadd.f32 0.0, %v937
      %939 = vmatmul.bf16.gmra.mxu0 %v755
      %v940 = vpop.f32.mrf.mxu0
      %v941 = vadd.f32 0.0, %v940
      %v942 = vpop.f32.mrf.mxu0
      %v943 = vadd.f32 0.0, %v942
      %944 = vmatmul.bf16.gmra.mxu0 %v758
      %v945 = vpop.f32.mrf.mxu0
      %v946 = vadd.f32 0.0, %v945
      %v947 = vpop.f32.mrf.mxu0
      %v948 = vadd.f32 0.0, %v947
      %949 = vmatmul.bf16.gmra.mxu0 %v761
      %v950 = vpop.f32.mrf.mxu0
      %v951 = vadd.f32 0.0, %v950
      %v952 = vpop.f32.mrf.mxu0
      %v953 = vadd.f32 0.0, %v952
      %954 = vmatmul.bf16.gmra.mxu0 %v764
      %v955 = vpop.f32.mrf.mxu0
      %v956 = vadd.f32 0.0, %v955
      %v957 = vpop.f32.mrf.mxu0
      %v958 = vadd.f32 0.0, %v957
      %959 = vmatmul.bf16.gmra.mxu0 %v767
      %v960 = vpop.f32.mrf.mxu0
      %v961 = vadd.f32 0.0, %v960
      %v962 = vpop.f32.mrf.mxu0
      %v963 = vadd.f32 0.0, %v962
      %964 = vmatmul.bf16.gmra.mxu0 %v770
      %v965 = vpop.f32.mrf.mxu0
      %v966 = vadd.f32 0.0, %v965
      %v967 = vpop.f32.mrf.mxu0
      %v968 = vadd.f32 0.0, %v967
      %969 = vmatmul.bf16.gmra.mxu0 %v773
      %v970 = vpop.f32.mrf.mxu0
      %v971 = vadd.f32 0.0, %v970
      %v972 = vpop.f32.mrf.mxu0
      %v973 = vadd.f32 0.0, %v972
      %974 = vmatmul.bf16.gmra.mxu0 %v776
      %v975 = vpop.f32.mrf.mxu0
      %v976 = vadd.f32 0.0, %v975
      %v977 = vpop.f32.mrf.mxu0
      %v978 = vadd.f32 0.0, %v977
      %979 = vmatmul.bf16.gmra.mxu0 %v779
      %v980 = vpop.f32.mrf.mxu0
      %v981 = vadd.f32 0.0, %v980
      %v982 = vpop.f32.mrf.mxu0
      %v983 = vadd.f32 0.0, %v982
      %984 = vmatmul.bf16.gmra.mxu0 %v782
      %v985 = vpop.f32.mrf.mxu0
      %v986 = vadd.f32 0.0, %v985
      %v987 = vpop.f32.mrf.mxu0
      %v988 = vadd.f32 0.0, %v987
      %989 = vmatmul.bf16.gmra.mxu0 %v785
      %v990 = vpop.f32.mrf.mxu0
      %v991 = vadd.f32 0.0, %v990
      %v992 = vpop.f32.mrf.mxu0
      %v993 = vadd.f32 0.0, %v992
      %994 = vmatmul.bf16.gmra.mxu0 %v788
      %v995 = vpop.f32.mrf.mxu0
      %v996 = vadd.f32 0.0, %v995
      %v997 = vpop.f32.mrf.mxu0
      %v998 = vadd.f32 0.0, %v997
      %999 = vmatmul.bf16.gmra.mxu0 %v791
      %v1000 = vpop.f32.mrf.mxu0
      %v1001 = vadd.f32 0.0, %v1000
      %v1002 = vpop.f32.mrf.mxu0
      %v1003 = vadd.f32 0.0, %v1002
      %1004 = vmatmul.bf16.gmra.mxu0 %v794
      %v1005 = vpop.f32.mrf.mxu0
      %v1006 = vadd.f32 0.0, %v1005
      %v1007 = vpop.f32.mrf.mxu0
      %v1008 = vadd.f32 0.0, %v1007
      %1009 = vmatmul.bf16.gmra.mxu0 %v797
      %v1010 = vpop.f32.mrf.mxu0
      %v1011 = vadd.f32 0.0, %v1010
      %v1012 = vpop.f32.mrf.mxu0
      %v1013 = vadd.f32 0.0, %v1012
      %1014 = vmatmul.bf16.gmra.mxu0 %v800
      %v1015 = vpop.f32.mrf.mxu0
      %v1016 = vadd.f32 0.0, %v1015
      %v1017 = vpop.f32.mrf.mxu0
      %v1018 = vadd.f32 0.0, %v1017
      %1019 = vmatmul.bf16.gmra.mxu0 %v803
      %v1020 = vpop.f32.mrf.mxu0
      %v1021 = vadd.f32 0.0, %v1020
      %v1022 = vpop.f32.mrf.mxu0
      %v1023 = vadd.f32 0.0, %v1022
      %1024 = vmatmul.bf16.gmra.mxu0 %v806
      %v1025 = vpop.f32.mrf.mxu0
      %v1026 = vadd.f32 0.0, %v1025
      %v1027 = vpop.f32.mrf.mxu0
      %v1028 = vadd.f32 0.0, %v1027
      %1029 = vmatmul.bf16.gmra.mxu0 %v809
      %v1030 = vpop.f32.mrf.mxu0
      %v1031 = vadd.f32 0.0, %v1030
      %v1032 = vpop.f32.mrf.mxu0
      %v1033 = vadd.f32 0.0, %v1032
      %1034 = vmatmul.bf16.gmra.mxu0 %v812
      %v1035 = vpop.f32.mrf.mxu0
      %v1036 = vadd.f32 0.0, %v1035
      %v1037 = vpop.f32.mrf.mxu0
      %v1038 = vadd.f32 0.0, %v1037
      %1039 = vmatmul.bf16.gmra.mxu0 %v815
      %v1040 = vpop.f32.mrf.mxu0
      %v1041 = vadd.f32 0.0, %v1040
      %v1042 = vpop.f32.mrf.mxu0
      %v1043 = vadd.f32 0.0, %v1042
      %1044 = vmatmul.bf16.gmra.mxu0 %v818
      %v1045 = vpop.f32.mrf.mxu0
      %v1046 = vadd.f32 0.0, %v1045
      %v1047 = vpop.f32.mrf.mxu0
      %v1048 = vadd.f32 0.0, %v1047
      %1049 = vmatmul.bf16.gmra.mxu0 %v821
      %v1050 = vpop.f32.mrf.mxu0
      %v1051 = vadd.f32 0.0, %v1050
      %v1052 = vpop.f32.mrf.mxu0
      %v1053 = vadd.f32 0.0, %v1052
      %1054 = vmatmul.bf16.gmra.mxu0 %v824
      %v1055 = vpop.f32.mrf.mxu0
      %v1056 = vadd.f32 0.0, %v1055
      %v1057 = vpop.f32.mrf.mxu0
      %v1058 = vadd.f32 0.0, %v1057
      %1059 = vmatmul.bf16.gmra.mxu0 %v827
      %v1060 = vpop.f32.mrf.mxu0
      %v1061 = vadd.f32 0.0, %v1060
      %v1062 = vpop.f32.mrf.mxu0
      %v1063 = vadd.f32 0.0, %v1062
      %1064 = vmatmul.bf16.gmra.mxu0 %v830
      %v1065 = vpop.f32.mrf.mxu0
      %v1066 = vadd.f32 0.0, %v1065
      %v1067 = vpop.f32.mrf.mxu0
      %v1068 = vadd.f32 0.0, %v1067
      %1069 = vmatmul.bf16.gmra.mxu0 %v833
      %v1070 = vpop.f32.mrf.mxu0
      %v1071 = vadd.f32 0.0, %v1070
      %v1072 = vpop.f32.mrf.mxu0
      %v1073 = vadd.f32 0.0, %v1072
      %1074 = vmatmul.bf16.gmra.mxu0 %v836
      %v1075 = vpop.f32.mrf.mxu0
      %v1076 = vadd.f32 0.0, %v1075
      %v1077 = vpop.f32.mrf.mxu0
      %v1078 = vadd.f32 0.0, %v1077
      %1079 = vmatmul.bf16.gmra.mxu0 %v839
      %v1080 = vpop.f32.mrf.mxu0
      %v1081 = vadd.f32 0.0, %v1080
      %v1082 = vpop.f32.mrf.mxu0
      %v1083 = vadd.f32 0.0, %v1082
      %1084 = vmatmul.bf16.gmra.mxu0 %v842
      %v1085 = vpop.f32.mrf.mxu0
      %v1086 = vadd.f32 0.0, %v1085
      %v1087 = vpop.f32.mrf.mxu0
      %v1088 = vadd.f32 0.0, %v1087
      %1089 = vmatmul.bf16.gmra.mxu0 %v845
      %v1090 = vpop.f32.mrf.mxu0
      %v1091 = vadd.f32 0.0, %v1090
      %v1092 = vpop.f32.mrf.mxu0
      %v1093 = vadd.f32 0.0, %v1092
      %1094 = vmatmul.bf16.gmra.mxu0 %v848
      %v1095 = vpop.f32.mrf.mxu0
      %v1096 = vadd.f32 0.0, %v1095
      %v1097 = vpop.f32.mrf.mxu0
      %v1098 = vadd.f32 0.0, %v1097
      %1099 = vmatmul.bf16.gmra.mxu0 %v851
      %v1100 = vpop.f32.mrf.mxu0
      %v1101 = vadd.f32 0.0, %v1100
      %v1102 = vpop.f32.mrf.mxu0
      %v1103 = vadd.f32 0.0, %v1102
      %1104 = vmatmul.bf16.gmra.mxu0 %v854
      %v1105 = vpop.f32.mrf.mxu0
      %v1106 = vadd.f32 0.0, %v1105
      %v1107 = vpop.f32.mrf.mxu0
      %v1108 = vadd.f32 0.0, %v1107
      %1109 = vmatmul.bf16.gmra.mxu0 %v857
      %v1110 = vpop.f32.mrf.mxu0
      %v1111 = vadd.f32 0.0, %v1110
      %v1112 = vpop.f32.mrf.mxu0
      %v1113 = vadd.f32 0.0, %v1112
      %1114 = vmatmul.bf16.gmra.mxu0 %v860
      %v1115 = vpop.f32.mrf.mxu0
      %v1116 = vadd.f32 0.0, %v1115
      %v1117 = vpop.f32.mrf.mxu0
      %v1118 = vadd.f32 0.0, %v1117
      %1119 = vmatmul.bf16.gmra.mxu0 %v863
      %v1120 = vpop.f32.mrf.mxu0
      %v1121 = vadd.f32 0.0, %v1120
      %v1122 = vpop.f32.mrf.mxu0
      %v1123 = vadd.f32 0.0, %v1122
      %1124 = vmatmul.bf16.gmra.mxu0 %v866
      %v1125 = vpop.f32.mrf.mxu0
      %v1126 = vadd.f32 0.0, %v1125
      %v1127 = vpop.f32.mrf.mxu0
      %v1128 = vadd.f32 0.0, %v1127
      %1129 = vmatmul.bf16.gmra.mxu0 %v869
      %v1130 = vpop.f32.mrf.mxu0
      %v1131 = vadd.f32 0.0, %v1130
      %v1132 = vpop.f32.mrf.mxu0
      %v1133 = vadd.f32 0.0, %v1132
      %1134 = vmatmul.bf16.gmra.mxu0 %v872
      %v1135 = vpop.f32.mrf.mxu0
      %v1136 = vadd.f32 0.0, %v1135
      %v1137 = vpop.f32.mrf.mxu0
      %v1138 = vadd.f32 0.0, %v1137
      %1139 = vmatmul.bf16.gmra.mxu0 %v875
      %v1140 = vpop.f32.mrf.mxu0
      %v1141 = vadd.f32 0.0, %v1140
      %v1142 = vpop.f32.mrf.mxu0
      %v1143 = vadd.f32 0.0, %v1142
      %1144 = vmatmul.bf16.gmra.mxu0 %v878
      %v1145 = vpop.f32.mrf.mxu0
      %v1146 = vadd.f32 0.0, %v1145
      %v1147 = vpop.f32.mrf.mxu0
      %v1148 = vadd.f32 0.0, %v1147
      %1149 = vmatmul.bf16.gmra.mxu0 %v881
      %v1150 = vpop.f32.mrf.mxu0
      %v1151 = vadd.f32 0.0, %v1150
      %v1152 = vpop.f32.mrf.mxu0
      %v1153 = vadd.f32 0.0, %v1152
      %1154 = vmatmul.bf16.gmra.mxu0 %v884
      %v1155 = vpop.f32.mrf.mxu0
      %v1156 = vadd.f32 0.0, %v1155
      %v1157 = vpop.f32.mrf.mxu0
      %v1158 = vadd.f32 0.0, %v1157
      %1159 = vmatmul.bf16.gmra.mxu0 %v887
      %v1160 = vpop.f32.mrf.mxu0
      %v1161 = vadd.f32 0.0, %v1160
      %v1162 = vpop.f32.mrf.mxu0
      %v1163 = vadd.f32 0.0, %v1162
      %1164 = vmatmul.bf16.gmra.mxu0 %v890
      %v1165 = vpop.f32.mrf.mxu0
      %v1166 = vadd.f32 0.0, %v1165
      %v1167 = vpop.f32.mrf.mxu0
      %v1168 = vadd.f32 0.0, %v1167
      %1169 = vmatmul.bf16.gmra.mxu0 %v893
      %v1170 = vpop.f32.mrf.mxu0
      %v1171 = vadd.f32 0.0, %v1170
      %v1172 = vpop.f32.mrf.mxu0
      %v1173 = vadd.f32 0.0, %v1172
      %1174 = vmatmul.bf16.gmra.mxu0 %v896
      %v1175 = vpop.f32.mrf.mxu0
      %v1176 = vadd.f32 0.0, %v1175
      %v1177 = vpop.f32.mrf.mxu0
      %v1178 = vadd.f32 0.0, %v1177
      %1179 = vmatmul.bf16.gmra.mxu0 %v899
      %v1180 = vpop.f32.mrf.mxu0
      %v1181 = vadd.f32 0.0, %v1180
      %v1182 = vpop.f32.mrf.mxu0
      %v1183 = vadd.f32 0.0, %v1182
      %1184 = vmatmul.bf16.gmra.mxu0 %v902
      %v1185 = vpop.f32.mrf.mxu0
      %v1186 = vadd.f32 0.0, %v1185
      %v1187 = vpop.f32.mrf.mxu0
      %v1188 = vadd.f32 0.0, %v1187
      %1189 = vmatmul.bf16.gmra.mxu0 %v905
      %v1190 = vpop.f32.mrf.mxu0
      %v1191 = vadd.f32 0.0, %v1190
      %v1192 = vpop.f32.mrf.mxu0
      %v1193 = vadd.f32 0.0, %v1192
      %1194 = vmatmul.bf16.gmra.mxu0 %v908
      %v1195 = vpop.f32.mrf.mxu0
      %v1196 = vadd.f32 0.0, %v1195
      %v1197 = vpop.f32.mrf.mxu0
      %v1198 = vadd.f32 0.0, %v1197
      %1199 = vmatmul.bf16.gmra.mxu0 %v911
      %v1200 = vpop.f32.mrf.mxu0
      %v1201 = vadd.f32 0.0, %v1200
      %v1202 = vpop.f32.mrf.mxu0
      %v1203 = vadd.f32 0.0, %v1202
      %1204 = vmatmul.bf16.gmra.mxu0 %v914
      %v1205 = vpop.f32.mrf.mxu0
      %v1206 = vadd.f32 0.0, %v1205
      %v1207 = vpop.f32.mrf.mxu0
      %v1208 = vadd.f32 0.0, %v1207
      %1209 = vmatmul.bf16.gmra.mxu0 %v917
      %v1210 = vpop.f32.mrf.mxu0
      %v1211 = vadd.f32 0.0, %v1210
      %v1212 = vpop.f32.mrf.mxu0
      %v1213 = vadd.f32 0.0, %v1212
      %1214 = vmatmul.bf16.gmra.mxu0 %v920
      %v1215 = vpop.f32.mrf.mxu0
      %v1216 = vadd.f32 0.0, %v1215
      %v1217 = vpop.f32.mrf.mxu0
      %1218 = vdwg.mxu0
      %v1219 = vld [vmem:[%s2] sm:$0x1]
      %v1221 = vperm.slane %v1219, 0
      %v1223 = vmul.f32 %v936, %v1221
      %v1224 = vmul.f32 %v938, %v1221
      %v1225 = vmul.f32 %v941, %v1221
      %v1226 = vmul.f32 %v943, %v1221
      %v1227 = vmul.f32 %v946, %v1221
      %v1228 = vmul.f32 %v948, %v1221
      %v1229 = vmul.f32 %v951, %v1221
      %v1230 = vmul.f32 %v953, %v1221
      %v1231 = vmul.f32 %v956, %v1221
      %v1232 = vmul.f32 %v958, %v1221
      %v1233 = vmul.f32 %v961, %v1221
      %v1234 = vmul.f32 %v963, %v1221
      %v1235 = vmul.f32 %v966, %v1221
      %v1236 = vmul.f32 %v968, %v1221
      %v1237 = vmul.f32 %v971, %v1221
      %v1238 = vmul.f32 %v973, %v1221
      %v1239 = vmul.f32 %v976, %v1221
      %v1240 = vmul.f32 %v978, %v1221
      %v1241 = vmul.f32 %v981, %v1221
      %v1242 = vmul.f32 %v983, %v1221
      %v1243 = vmul.f32 %v986, %v1221
      %v1244 = vmul.f32 %v988, %v1221
      %v1245 = vmul.f32 %v991, %v1221
      %v1246 = vmul.f32 %v993, %v1221
      %v1247 = vmul.f32 %v996, %v1221
      %v1248 = vmul.f32 %v998, %v1221
      %v1249 = vmul.f32 %v1001, %v1221
      %v1250 = vmul.f32 %v1003, %v1221
      %v1251 = vmul.f32 %v1006, %v1221
      %v1252 = vmul.f32 %v1008, %v1221
      %v1253 = vmul.f32 %v1011, %v1221
      %v1254 = vmul.f32 %v1013, %v1221
      %v1255 = vmul.f32 %v1016, %v1221
      %v1256 = vmul.f32 %v1018, %v1221
      %v1257 = vmul.f32 %v1021, %v1221
      %v1258 = vmul.f32 %v1023, %v1221
      %v1259 = vmul.f32 %v1026, %v1221
      %v1260 = vmul.f32 %v1028, %v1221
      %v1261 = vmul.f32 %v1031, %v1221
      %v1262 = vmul.f32 %v1033, %v1221
      %v1263 = vmul.f32 %v1036, %v1221
      %v1264 = vmul.f32 %v1038, %v1221
      %v1265 = vmul.f32 %v1041, %v1221
      %v1266 = vmul.f32 %v1043, %v1221
      %v1267 = vmul.f32 %v1046, %v1221
      %v1268 = vmul.f32 %v1048, %v1221
      %v1269 = vmul.f32 %v1051, %v1221
      %v1270 = vmul.f32 %v1053, %v1221
      %v1271 = vmul.f32 %v1056, %v1221
      %v1272 = vmul.f32 %v1058, %v1221
      %v1273 = vmul.f32 %v1061, %v1221
      %v1274 = vmul.f32 %v1063, %v1221
      %v1275 = vmul.f32 %v1066, %v1221
      %v1276 = vmul.f32 %v1068, %v1221
      %v1277 = vmul.f32 %v1071, %v1221
      %v1278 = vmul.f32 %v1073, %v1221
      %v1279 = vmul.f32 %v1076, %v1221
      %v1280 = vmul.f32 %v1078, %v1221
      %v1281 = vmul.f32 %v1081, %v1221
      %v1282 = vmul.f32 %v1083, %v1221
      %v1283 = vmul.f32 %v1086, %v1221
      %v1284 = vmul.f32 %v1088, %v1221
      %v1285 = vmul.f32 %v1091, %v1221
      %v1286 = vmul.f32 %v1093, %v1221
      %v1287 = vmul.f32 %v1096, %v1221
      %v1288 = vmul.f32 %v1098, %v1221
      %v1289 = vmul.f32 %v1101, %v1221
      %v1290 = vmul.f32 %v1103, %v1221
      %v1291 = vmul.f32 %v1106, %v1221
      %v1292 = vmul.f32 %v1108, %v1221
      %v1293 = vmul.f32 %v1111, %v1221
      %v1294 = vmul.f32 %v1113, %v1221
      %v1295 = vmul.f32 %v1116, %v1221
      %v1296 = vmul.f32 %v1118, %v1221
      %v1297 = vmul.f32 %v1121, %v1221
      %v1298 = vmul.f32 %v1123, %v1221
      %v1299 = vmul.f32 %v1126, %v1221
      %v1300 = vmul.f32 %v1128, %v1221
      %v1301 = vmul.f32 %v1131, %v1221
      %v1302 = vmul.f32 %v1133, %v1221
      %v1303 = vmul.f32 %v1136, %v1221
      %v1304 = vmul.f32 %v1138, %v1221
      %v1305 = vmul.f32 %v1141, %v1221
      %v1306 = vmul.f32 %v1143, %v1221
      %v1307 = vmul.f32 %v1146, %v1221
      %v1308 = vmul.f32 %v1148, %v1221
      %v1309 = vmul.f32 %v1151, %v1221
      %v1310 = vmul.f32 %v1153, %v1221
      %v1311 = vmul.f32 %v1156, %v1221
      %v1312 = vmul.f32 %v1158, %v1221
      %v1313 = vmul.f32 %v1161, %v1221
      %v1314 = vmul.f32 %v1163, %v1221
      %v1315 = vmul.f32 %v1166, %v1221
      %v1316 = vmul.f32 %v1168, %v1221
      %v1317 = vmul.f32 %v1171, %v1221
      %v1318 = vmul.f32 %v1173, %v1221
      %v1319 = vmul.f32 %v1176, %v1221
      %v1320 = vmul.f32 %v1178, %v1221
      %v1321 = vmul.f32 %v1181, %v1221
      %v1322 = vmul.f32 %v1183, %v1221
      %v1323 = vmul.f32 %v1186, %v1221
      %v1324 = vmul.f32 %v1188, %v1221
      %v1325 = vmul.f32 %v1191, %v1221
      %v1326 = vmul.f32 %v1193, %v1221
      %v1327 = vmul.f32 %v1196, %v1221
      %v1328 = vmul.f32 %v1198, %v1221
      %v1329 = vmul.f32 %v1201, %v1221
      %v1330 = vmul.f32 %v1203, %v1221
      %v1331 = vmul.f32 %v1206, %v1221
      %v1332 = vmul.f32 %v1208, %v1221
      %v1333 = vmul.f32 %v1211, %v1221
      %v1334 = vmul.f32 %v1213, %v1221
      %v1335 = vmul.f32 %v1216, %v1221
      %v1336 = vld [vmem:[%s3] sm:$0x1]
      %v1338 = vperm.slane %v1336, 0
      %v1340 = vadd.f32 %v1223, %v1338
      %v1341 = vadd.f32 %v1224, %v1338
      %v1342 = vadd.f32 %v1225, %v1338
      %v1343 = vadd.f32 %v1226, %v1338
      %v1344 = vadd.f32 %v1227, %v1338
      %v1345 = vadd.f32 %v1228, %v1338
      %v1346 = vadd.f32 %v1229, %v1338
      %v1347 = vadd.f32 %v1230, %v1338
      %v1348 = vadd.f32 %v1231, %v1338
      %v1349 = vadd.f32 %v1232, %v1338
      %v1350 = vadd.f32 %v1233, %v1338
      %v1351 = vadd.f32 %v1234, %v1338
      %v1352 = vadd.f32 %v1235, %v1338
      %v1353 = vadd.f32 %v1236, %v1338
      %v1354 = vadd.f32 %v1237, %v1338
      %v1355 = vadd.f32 %v1238, %v1338
      %v1356 = vadd.f32 %v1239, %v1338
      %v1357 = vadd.f32 %v1240, %v1338
      %v1358 = vadd.f32 %v1241, %v1338
      %v1359 = vadd.f32 %v1242, %v1338
      %v1360 = vadd.f32 %v1243, %v1338
      %v1361 = vadd.f32 %v1244, %v1338
      %v1362 = vadd.f32 %v1245, %v1338
      %v1363 = vadd.f32 %v1246, %v1338
      %v1364 = vadd.f32 %v1247, %v1338
      %v1365 = vadd.f32 %v1248, %v1338
      %v1366 = vadd.f32 %v1249, %v1338
      %v1367 = vadd.f32 %v1250, %v1338
      %v1368 = vadd.f32 %v1251, %v1338
      %v1369 = vadd.f32 %v1252, %v1338
      %v1370 = vadd.f32 %v1253, %v1338
      %v1371 = vadd.f32 %v1254, %v1338
      %v1372 = vadd.f32 %v1255, %v1338
      %v1373 = vadd.f32 %v1256, %v1338
      %v1374 = vadd.f32 %v1257, %v1338
      %v1375 = vadd.f32 %v1258, %v1338
      %v1376 = vadd.f32 %v1259, %v1338
      %v1377 = vadd.f32 %v1260, %v1338
      %v1378 = vadd.f32 %v1261, %v1338
      %v1379 = vadd.f32 %v1262, %v1338
      %v1380 = vadd.f32 %v1263, %v1338
      %v1381 = vadd.f32 %v1264, %v1338
      %v1382 = vadd.f32 %v1265, %v1338
      %v1383 = vadd.f32 %v1266, %v1338
      %v1384 = vadd.f32 %v1267, %v1338
      %v1385 = vadd.f32 %v1268, %v1338
      %v1386 = vadd.f32 %v1269, %v1338
      %v1387 = vadd.f32 %v1270, %v1338
      %v1388 = vadd.f32 %v1271, %v1338
      %v1389 = vadd.f32 %v1272, %v1338
      %v1390 = vadd.f32 %v1273, %v1338
      %v1391 = vadd.f32 %v1274, %v1338
      %v1392 = vadd.f32 %v1275, %v1338
      %v1393 = vadd.f32 %v1276, %v1338
      %v1394 = vadd.f32 %v1277, %v1338
      %v1395 = vadd.f32 %v1278, %v1338
      %v1396 = vadd.f32 %v1279, %v1338
      %v1397 = vadd.f32 %v1280, %v1338
      %v1398 = vadd.f32 %v1281, %v1338
      %v1399 = vadd.f32 %v1282, %v1338
      %v1400 = vadd.f32 %v1283, %v1338
      %v1401 = vadd.f32 %v1284, %v1338
      %v1402 = vadd.f32 %v1285, %v1338
      %v1403 = vadd.f32 %v1286, %v1338
      %v1404 = vadd.f32 %v1287, %v1338
      %v1405 = vadd.f32 %v1288, %v1338
      %v1406 = vadd.f32 %v1289, %v1338
      %v1407 = vadd.f32 %v1290, %v1338
      %v1408 = vadd.f32 %v1291, %v1338
      %v1409 = vadd.f32 %v1292, %v1338
      %v1410 = vadd.f32 %v1293, %v1338
      %v1411 = vadd.f32 %v1294, %v1338
      %v1412 = vadd.f32 %v1295, %v1338
      %v1413 = vadd.f32 %v1296, %v1338
      %v1414 = vadd.f32 %v1297, %v1338
      %v1415 = vadd.f32 %v1298, %v1338
      %v1416 = vadd.f32 %v1299, %v1338
      %v1417 = vadd.f32 %v1300, %v1338
      %v1418 = vadd.f32 %v1301, %v1338
      %v1419 = vadd.f32 %v1302, %v1338
      %v1420 = vadd.f32 %v1303, %v1338
      %v1421 = vadd.f32 %v1304, %v1338
      %v1422 = vadd.f32 %v1305, %v1338
      %v1423 = vadd.f32 %v1306, %v1338
      %v1424 = vadd.f32 %v1307, %v1338
      %v1425 = vadd.f32 %v1308, %v1338
      %v1426 = vadd.f32 %v1309, %v1338
      %v1427 = vadd.f32 %v1310, %v1338
      %v1428 = vadd.f32 %v1311, %v1338
      %v1429 = vadd.f32 %v1312, %v1338
      %v1430 = vadd.f32 %v1313, %v1338
      %v1431 = vadd.f32 %v1314, %v1338
      %v1432 = vadd.f32 %v1315, %v1338
      %v1433 = vadd.f32 %v1316, %v1338
      %v1434 = vadd.f32 %v1317, %v1338
      %v1435 = vadd.f32 %v1318, %v1338
      %v1436 = vadd.f32 %v1319, %v1338
      %v1437 = vadd.f32 %v1320, %v1338
      %v1438 = vadd.f32 %v1321, %v1338
      %v1439 = vadd.f32 %v1322, %v1338
      %v1440 = vadd.f32 %v1323, %v1338
      %v1441 = vadd.f32 %v1324, %v1338
      %v1442 = vadd.f32 %v1325, %v1338
      %v1443 = vadd.f32 %v1326, %v1338
      %v1444 = vadd.f32 %v1327, %v1338
      %v1445 = vadd.f32 %v1328, %v1338
      %v1446 = vadd.f32 %v1329, %v1338
      %v1447 = vadd.f32 %v1330, %v1338
      %v1448 = vadd.f32 %v1331, %v1338
      %v1449 = vadd.f32 %v1332, %v1338
      %v1450 = vadd.f32 %v1333, %v1338
      %v1451 = vadd.f32 %v1334, %v1338
      %v1452 = vadd.f32 %v1335, %v1338
      %v1453 = vmax.f32 %v1340, 0.0
      %v1454 = vmax.f32 %v1341, 0.0
      %v1455 = vmax.f32 %v1342, 0.0
      %v1456 = vmax.f32 %v1343, 0.0
      %v1457 = vmax.f32 %v1344, 0.0
      %v1458 = vmax.f32 %v1345, 0.0
      %v1459 = vmax.f32 %v1346, 0.0
      %v1460 = vmax.f32 %v1347, 0.0
      %v1461 = vmax.f32 %v1348, 0.0
      %v1462 = vmax.f32 %v1349, 0.0
      %v1463 = vmax.f32 %v1350, 0.0
      %v1464 = vmax.f32 %v1351, 0.0
      %v1465 = vmax.f32 %v1352, 0.0
      %v1466 = vmax.f32 %v1353, 0.0
      %v1467 = vmax.f32 %v1354, 0.0
      %v1468 = vmax.f32 %v1355, 0.0
      %v1469 = vmax.f32 %v1356, 0.0
      %v1470 = vmax.f32 %v1357, 0.0
      %v1471 = vmax.f32 %v1358, 0.0
      %v1472 = vmax.f32 %v1359, 0.0
      %v1473 = vmax.f32 %v1360, 0.0
      %v1474 = vmax.f32 %v1361, 0.0
      %v1475 = vmax.f32 %v1362, 0.0
      %v1476 = vmax.f32 %v1363, 0.0
      %v1477 = vmax.f32 %v1364, 0.0
      %v1478 = vmax.f32 %v1365, 0.0
      %v1479 = vmax.f32 %v1366, 0.0
      %v1480 = vmax.f32 %v1367, 0.0
      %v1481 = vmax.f32 %v1368, 0.0
      %v1482 = vmax.f32 %v1369, 0.0
      %v1483 = vmax.f32 %v1370, 0.0
      %v1484 = vmax.f32 %v1371, 0.0
      %v1485 = vmax.f32 %v1372, 0.0
      %v1486 = vmax.f32 %v1373, 0.0
      %v1487 = vmax.f32 %v1374, 0.0
      %v1488 = vmax.f32 %v1375, 0.0
      %v1489 = vmax.f32 %v1376, 0.0
      %v1490 = vmax.f32 %v1377, 0.0
      %v1491 = vmax.f32 %v1378, 0.0
      %v1492 = vmax.f32 %v1379, 0.0
      %v1493 = vmax.f32 %v1380, 0.0
      %v1494 = vmax.f32 %v1381, 0.0
      %v1495 = vmax.f32 %v1382, 0.0
      %v1496 = vmax.f32 %v1383, 0.0
      %v1497 = vmax.f32 %v1384, 0.0
      %v1498 = vmax.f32 %v1385, 0.0
      %v1499 = vmax.f32 %v1386, 0.0
      %v1500 = vmax.f32 %v1387, 0.0
      %v1501 = vmax.f32 %v1388, 0.0
      %v1502 = vmax.f32 %v1389, 0.0
      %v1503 = vmax.f32 %v1390, 0.0
      %v1504 = vmax.f32 %v1391, 0.0
      %v1505 = vmax.f32 %v1392, 0.0
      %v1506 = vmax.f32 %v1393, 0.0
      %v1507 = vmax.f32 %v1394, 0.0
      %v1508 = vmax.f32 %v1395, 0.0
      %v1509 = vmax.f32 %v1396, 0.0
      %v1510 = vmax.f32 %v1397, 0.0
      %v1511 = vmax.f32 %v1398, 0.0
      %v1512 = vmax.f32 %v1399, 0.0
      %v1513 = vmax.f32 %v1400, 0.0
      %v1514 = vmax.f32 %v1401, 0.0
      %v1515 = vmax.f32 %v1402, 0.0
      %v1516 = vmax.f32 %v1403, 0.0
      %v1517 = vmax.f32 %v1404, 0.0
      %v1518 = vmax.f32 %v1405, 0.0
      %v1519 = vmax.f32 %v1406, 0.0
      %v1520 = vmax.f32 %v1407, 0.0
      %v1521 = vmax.f32 %v1408, 0.0
      %v1522 = vmax.f32 %v1409, 0.0
      %v1523 = vmax.f32 %v1410, 0.0
      %v1524 = vmax.f32 %v1411, 0.0
      %v1525 = vmax.f32 %v1412, 0.0
      %v1526 = vmax.f32 %v1413, 0.0
      %v1527 = vmax.f32 %v1414, 0.0
      %v1528 = vmax.f32 %v1415, 0.0
      %v1529 = vmax.f32 %v1416, 0.0
      %v1530 = vmax.f32 %v1417, 0.0
      %v1531 = vmax.f32 %v1418, 0.0
      %v1532 = vmax.f32 %v1419, 0.0
      %v1533 = vmax.f32 %v1420, 0.0
      %v1534 = vmax.f32 %v1421, 0.0
      %v1535 = vmax.f32 %v1422, 0.0
      %v1536 = vmax.f32 %v1423, 0.0
      %v1537 = vmax.f32 %v1424, 0.0
      %v1538 = vmax.f32 %v1425, 0.0
      %v1539 = vmax.f32 %v1426, 0.0
      %v1540 = vmax.f32 %v1427, 0.0
      %v1541 = vmax.f32 %v1428, 0.0
      %v1542 = vmax.f32 %v1429, 0.0
      %v1543 = vmax.f32 %v1430, 0.0
      %v1544 = vmax.f32 %v1431, 0.0
      %v1545 = vmax.f32 %v1432, 0.0
      %v1546 = vmax.f32 %v1433, 0.0
      %v1547 = vmax.f32 %v1434, 0.0
      %v1548 = vmax.f32 %v1435, 0.0
      %v1549 = vmax.f32 %v1436, 0.0
      %v1550 = vmax.f32 %v1437, 0.0
      %v1551 = vmax.f32 %v1438, 0.0
      %v1552 = vmax.f32 %v1439, 0.0
      %v1553 = vmax.f32 %v1440, 0.0
      %v1554 = vmax.f32 %v1441, 0.0
      %v1555 = vmax.f32 %v1442, 0.0
      %v1556 = vmax.f32 %v1443, 0.0
      %v1557 = vmax.f32 %v1444, 0.0
      %v1558 = vmax.f32 %v1445, 0.0
      %v1559 = vmax.f32 %v1446, 0.0
      %v1560 = vmax.f32 %v1447, 0.0
      %v1561 = vmax.f32 %v1448, 0.0
      %v1562 = vmax.f32 %v1449, 0.0
      %v1563 = vmax.f32 %v1450, 0.0
      %v1564 = vmax.f32 %v1451, 0.0
      %v1565 = vmax.f32 %v1452, 0.0
      %vm1675 = vcmask 1046528
      %v1676 = vrot.slane %v1453, 1
      %v1677 = vrot.slane %v1454, 1
      %v1678 = vsel %vm1675, %v1676, %v1677
      %v1679 = vrot.slane %v1455, 1
      %v1680 = vsel %vm1675, %v1677, %v1679
      %v1681 = vrot.slane %v1456, 1
      %v1682 = vsel %vm1675, %v1679, %v1681
      %v1683 = vrot.slane %v1457, 1
      %v1684 = vsel %vm1675, %v1681, %v1683
      %v1685 = vrot.slane %v1458, 1
      %v1686 = vsel %vm1675, %v1683, %v1685
      %v1687 = vrot.slane %v1459, 1
      %v1688 = vsel %vm1675, %v1685, %v1687
      %v1689 = vrot.slane %v1460, 1
      %v1690 = vsel %vm1675, %v1687, %v1689
      %v1691 = vrot.slane %v1461, 1
      %v1692 = vsel %vm1675, %v1689, %v1691
      %v1693 = vrot.slane %v1462, 1
      %v1694 = vsel %vm1675, %v1691, %v1693
      %v1695 = vrot.slane %v1463, 1
      %v1696 = vsel %vm1675, %v1693, %v1695
      %v1697 = vrot.slane %v1464, 1
      %v1698 = vsel %vm1675, %v1695, %v1697
      %v1699 = vrot.slane %v1465, 1
      %v1700 = vsel %vm1675, %v1697, %v1699
      %v1701 = vrot.slane %v1466, 1
      %v1702 = vsel %vm1675, %v1699, %v1701
      %v1703 = vrot.slane %v1467, 1
      %v1704 = vsel %vm1675, %v1701, %v1703
      %v1705 = vrot.slane %v1468, 1
      %v1706 = vsel %vm1675, %v1703, %v1705
      %v1707 = vrot.slane %v1469, 1
      %v1708 = vsel %vm1675, %v1705, %v1707
      %v1709 = vrot.slane %v1470, 1
      %v1710 = vsel %vm1675, %v1707, %v1709
      %v1711 = vrot.slane %v1471, 1
      %v1712 = vsel %vm1675, %v1709, %v1711
      %v1713 = vrot.slane %v1472, 1
      %v1714 = vsel %vm1675, %v1711, %v1713
      %v1715 = vrot.slane %v1473, 1
      %v1716 = vsel %vm1675, %v1713, %v1715
      %v1717 = vrot.slane %v1474, 1
      %v1718 = vsel %vm1675, %v1715, %v1717
      %v1719 = vrot.slane %v1475, 1
      %v1720 = vsel %vm1675, %v1717, %v1719
      %v1721 = vrot.slane %v1476, 1
      %v1722 = vsel %vm1675, %v1719, %v1721
      %v1723 = vrot.slane %v1477, 1
      %v1724 = vsel %vm1675, %v1721, %v1723
      %v1725 = vrot.slane %v1478, 1
      %v1726 = vsel %vm1675, %v1723, %v1725
      %v1727 = vrot.slane %v1479, 1
      %v1728 = vsel %vm1675, %v1725, %v1727
      %v1729 = vrot.slane %v1480, 1
      %v1730 = vsel %vm1675, %v1727, %v1729
      %v1731 = vrot.slane %v1481, 1
      %v1732 = vsel %vm1675, %v1729, %v1731
      %v1733 = vrot.slane %v1482, 1
      %v1734 = vsel %vm1675, %v1731, %v1733
      %v1735 = vrot.slane %v1483, 1
      %v1736 = vsel %vm1675, %v1733, %v1735
      %v1737 = vrot.slane %v1484, 1
      %v1738 = vsel %vm1675, %v1735, %v1737
      %v1739 = vrot.slane %v1485, 1
      %v1740 = vsel %vm1675, %v1737, %v1739
      %v1741 = vrot.slane %v1486, 1
      %v1742 = vsel %vm1675, %v1739, %v1741
      %v1743 = vrot.slane %v1487, 1
      %v1744 = vsel %vm1675, %v1741, %v1743
      %v1745 = vrot.slane %v1488, 1
      %v1746 = vsel %vm1675, %v1743, %v1745
      %v1747 = vrot.slane %v1489, 1
      %v1748 = vsel %vm1675, %v1745, %v1747
      %v1749 = vrot.slane %v1490, 1
      %v1750 = vsel %vm1675, %v1747, %v1749
      %v1751 = vrot.slane %v1491, 1
      %v1752 = vsel %vm1675, %v1749, %v1751
      %v1753 = vrot.slane %v1492, 1
      %v1754 = vsel %vm1675, %v1751, %v1753
      %v1755 = vrot.slane %v1493, 1
      %v1756 = vsel %vm1675, %v1753, %v1755
      %v1757 = vrot.slane %v1494, 1
      %v1758 = vsel %vm1675, %v1755, %v1757
      %v1759 = vrot.slane %v1495, 1
      %v1760 = vsel %vm1675, %v1757, %v1759
      %v1761 = vrot.slane %v1496, 1
      %v1762 = vsel %vm1675, %v1759, %v1761
      %v1763 = vrot.slane %v1497, 1
      %v1764 = vsel %vm1675, %v1761, %v1763
      %v1765 = vrot.slane %v1498, 1
      %v1766 = vsel %vm1675, %v1763, %v1765
      %v1767 = vrot.slane %v1499, 1
      %v1768 = vsel %vm1675, %v1765, %v1767
      %v1769 = vrot.slane %v1500, 1
      %v1770 = vsel %vm1675, %v1767, %v1769
      %v1771 = vrot.slane %v1501, 1
      %v1772 = vsel %vm1675, %v1769, %v1771
      %v1773 = vrot.slane %v1502, 1
      %v1774 = vsel %vm1675, %v1771, %v1773
      %v1775 = vrot.slane %v1503, 1
      %v1776 = vsel %vm1675, %v1773, %v1775
      %v1777 = vrot.slane %v1504, 1
      %v1778 = vsel %vm1675, %v1775, %v1777
      %v1779 = vrot.slane %v1505, 1
      %v1780 = vsel %vm1675, %v1777, %v1779
      %v1781 = vrot.slane %v1506, 1
      %v1782 = vsel %vm1675, %v1779, %v1781
      %v1783 = vrot.slane %v1507, 1
      %v1784 = vsel %vm1675, %v1781, %v1783
      %v1785 = vrot.slane %v1508, 1
      %v1786 = vsel %vm1675, %v1783, %v1785
      %v1787 = vrot.slane %v1509, 1
      %v1788 = vsel %vm1675, %v1785, %v1787
      %v1789 = vrot.slane %v1510, 1
      %v1790 = vsel %vm1675, %v1787, %v1789
      %v1791 = vrot.slane %v1511, 1
      %v1792 = vsel %vm1675, %v1789, %v1791
      %v1793 = vrot.slane %v1512, 1
      %v1794 = vsel %vm1675, %v1791, %v1793
      %v1795 = vrot.slane %v1513, 1
      %v1796 = vsel %vm1675, %v1793, %v1795
      %v1797 = vrot.slane %v1514, 1
      %v1798 = vsel %vm1675, %v1795, %v1797
      %v1799 = vrot.slane %v1515, 1
      %v1800 = vsel %vm1675, %v1797, %v1799
      %v1801 = vrot.slane %v1516, 1
      %v1802 = vsel %vm1675, %v1799, %v1801
      %v1803 = vrot.slane %v1517, 1
      %v1804 = vsel %vm1675, %v1801, %v1803
      %v1805 = vrot.slane %v1518, 1
      %v1806 = vsel %vm1675, %v1803, %v1805
      %v1807 = vrot.slane %v1519, 1
      %v1808 = vsel %vm1675, %v1805, %v1807
      %v1809 = vrot.slane %v1520, 1
      %v1810 = vsel %vm1675, %v1807, %v1809
      %v1811 = vrot.slane %v1521, 1
      %v1812 = vsel %vm1675, %v1809, %v1811
      %v1813 = vrot.slane %v1522, 1
      %v1814 = vsel %vm1675, %v1811, %v1813
      %v1815 = vrot.slane %v1523, 1
      %v1816 = vsel %vm1675, %v1813, %v1815
      %v1817 = vrot.slane %v1524, 1
      %v1818 = vsel %vm1675, %v1815, %v1817
      %v1819 = vrot.slane %v1525, 1
      %v1820 = vsel %vm1675, %v1817, %v1819
      %v1821 = vrot.slane %v1526, 1
      %v1822 = vsel %vm1675, %v1819, %v1821
      %v1823 = vrot.slane %v1527, 1
      %v1824 = vsel %vm1675, %v1821, %v1823
      %v1825 = vrot.slane %v1528, 1
      %v1826 = vsel %vm1675, %v1823, %v1825
      %v1827 = vrot.slane %v1529, 1
      %v1828 = vsel %vm1675, %v1825, %v1827
      %v1829 = vrot.slane %v1530, 1
      %v1830 = vsel %vm1675, %v1827, %v1829
      %v1831 = vrot.slane %v1531, 1
      %v1832 = vsel %vm1675, %v1829, %v1831
      %v1833 = vrot.slane %v1532, 1
      %v1834 = vsel %vm1675, %v1831, %v1833
      %v1835 = vrot.slane %v1533, 1
      %v1836 = vsel %vm1675, %v1833, %v1835
      %v1837 = vrot.slane %v1534, 1
      %v1838 = vsel %vm1675, %v1835, %v1837
      %v1839 = vrot.slane %v1535, 1
      %v1840 = vsel %vm1675, %v1837, %v1839
      %v1841 = vrot.slane %v1536, 1
      %v1842 = vsel %vm1675, %v1839, %v1841
      %v1843 = vrot.slane %v1537, 1
      %v1844 = vsel %vm1675, %v1841, %v1843
      %v1845 = vrot.slane %v1538, 1
      %v1846 = vsel %vm1675, %v1843, %v1845
      %v1847 = vrot.slane %v1539, 1
      %v1848 = vsel %vm1675, %v1845, %v1847
      %v1849 = vrot.slane %v1540, 1
      %v1850 = vsel %vm1675, %v1847, %v1849
      %v1851 = vrot.slane %v1541, 1
      %v1852 = vsel %vm1675, %v1849, %v1851
      %v1853 = vrot.slane %v1542, 1
      %v1854 = vsel %vm1675, %v1851, %v1853
      %v1855 = vrot.slane %v1543, 1
      %v1856 = vsel %vm1675, %v1853, %v1855
      %v1857 = vrot.slane %v1544, 1
      %v1858 = vsel %vm1675, %v1855, %v1857
      %v1859 = vrot.slane %v1545, 1
      %v1860 = vsel %vm1675, %v1857, %v1859
      %v1861 = vrot.slane %v1546, 1
      %v1862 = vsel %vm1675, %v1859, %v1861
      %v1863 = vrot.slane %v1547, 1
      %v1864 = vsel %vm1675, %v1861, %v1863
      %v1865 = vrot.slane %v1548, 1
      %v1866 = vsel %vm1675, %v1863, %v1865
      %v1867 = vrot.slane %v1549, 1
      %v1868 = vsel %vm1675, %v1865, %v1867
      %v1869 = vrot.slane %v1550, 1
      %v1870 = vsel %vm1675, %v1867, %v1869
      %v1871 = vrot.slane %v1551, 1
      %v1872 = vsel %vm1675, %v1869, %v1871
      %v1873 = vrot.slane %v1552, 1
      %v1874 = vsel %vm1675, %v1871, %v1873
      %v1875 = vrot.slane %v1553, 1
      %v1876 = vsel %vm1675, %v1873, %v1875
      %v1877 = vrot.slane %v1554, 1
      %v1878 = vsel %vm1675, %v1875, %v1877
      %v1879 = vrot.slane %v1555, 1
      %v1880 = vsel %vm1675, %v1877, %v1879
      %v1881 = vrot.slane %v1556, 1
      %v1882 = vsel %vm1675, %v1879, %v1881
      %v1883 = vrot.slane %v1557, 1
      %v1884 = vsel %vm1675, %v1881, %v1883
      %v1885 = vrot.slane %v1558, 1
      %v1886 = vsel %vm1675, %v1883, %v1885
      %v1887 = vrot.slane %v1559, 1
      %v1888 = vsel %vm1675, %v1885, %v1887
      %v1889 = vrot.slane %v1560, 1
      %v1890 = vsel %vm1675, %v1887, %v1889
      %v1891 = vrot.slane %v1561, 1
      %v1892 = vsel %vm1675, %v1889, %v1891
      %v2001 = vmax.f32 %v1453, %v1678
      %v2002 = vmax.f32 %v1454, %v1680
      %v2003 = vmax.f32 %v1455, %v1682
      %v2004 = vmax.f32 %v1456, %v1684
      %v2005 = vmax.f32 %v1457, %v1686
      %v2006 = vmax.f32 %v1458, %v1688
      %v2007 = vmax.f32 %v1459, %v1690
      %v2008 = vmax.f32 %v1460, %v1692
      %v2009 = vmax.f32 %v1461, %v1694
      %v2010 = vmax.f32 %v1462, %v1696
      %v2011 = vmax.f32 %v1463, %v1698
      %v2012 = vmax.f32 %v1464, %v1700
      %v2013 = vmax.f32 %v1465, %v1702
      %v2014 = vmax.f32 %v1466, %v1704
      %v2015 = vmax.f32 %v1467, %v1706
      %v2016 = vmax.f32 %v1468, %v1708
      %v2017 = vmax.f32 %v1469, %v1710
      %v2018 = vmax.f32 %v1470, %v1712
      %v2019 = vmax.f32 %v1471, %v1714
      %v2020 = vmax.f32 %v1472, %v1716
      %v2021 = vmax.f32 %v1473, %v1718
      %v2022 = vmax.f32 %v1474, %v1720
      %v2023 = vmax.f32 %v1475, %v1722
      %v2024 = vmax.f32 %v1476, %v1724
      %v2025 = vmax.f32 %v1477, %v1726
      %v2026 = vmax.f32 %v1478, %v1728
      %v2027 = vmax.f32 %v1479, %v1730
      %v2028 = vmax.f32 %v1480, %v1732
      %v2029 = vmax.f32 %v1481, %v1734
      %v2030 = vmax.f32 %v1482, %v1736
      %v2031 = vmax.f32 %v1483, %v1738
      %v2032 = vmax.f32 %v1484, %v1740
      %v2033 = vmax.f32 %v1485, %v1742
      %v2034 = vmax.f32 %v1486, %v1744
      %v2035 = vmax.f32 %v1487, %v1746
      %v2036 = vmax.f32 %v1488, %v1748
      %v2037 = vmax.f32 %v1489, %v1750
      %v2038 = vmax.f32 %v1490, %v1752
      %v2039 = vmax.f32 %v1491, %v1754
      %v2040 = vmax.f32 %v1492, %v1756
      %v2041 = vmax.f32 %v1493, %v1758
      %v2042 = vmax.f32 %v1494, %v1760
      %v2043 = vmax.f32 %v1495, %v1762
      %v2044 = vmax.f32 %v1496, %v1764
      %v2045 = vmax.f32 %v1497, %v1766
      %v2046 = vmax.f32 %v1498, %v1768
      %v2047 = vmax.f32 %v1499, %v1770
      %v2048 = vmax.f32 %v1500, %v1772
      %v2049 = vmax.f32 %v1501, %v1774
      %v2050 = vmax.f32 %v1502, %v1776
      %v2051 = vmax.f32 %v1503, %v1778
      %v2052 = vmax.f32 %v1504, %v1780
      %v2053 = vmax.f32 %v1505, %v1782
      %v2054 = vmax.f32 %v1506, %v1784
      %v2055 = vmax.f32 %v1507, %v1786
      %v2056 = vmax.f32 %v1508, %v1788
      %v2057 = vmax.f32 %v1509, %v1790
      %v2058 = vmax.f32 %v1510, %v1792
      %v2059 = vmax.f32 %v1511, %v1794
      %v2060 = vmax.f32 %v1512, %v1796
      %v2061 = vmax.f32 %v1513, %v1798
      %v2062 = vmax.f32 %v1514, %v1800
      %v2063 = vmax.f32 %v1515, %v1802
      %v2064 = vmax.f32 %v1516, %v1804
      %v2065 = vmax.f32 %v1517, %v1806
      %v2066 = vmax.f32 %v1518, %v1808
      %v2067 = vmax.f32 %v1519, %v1810
      %v2068 = vmax.f32 %v1520, %v1812
      %v2069 = vmax.f32 %v1521, %v1814
      %v2070 = vmax.f32 %v1522, %v1816
      %v2071 = vmax.f32 %v1523, %v1818
      %v2072 = vmax.f32 %v1524, %v1820
      %v2073 = vmax.f32 %v1525, %v1822
      %v2074 = vmax.f32 %v1526, %v1824
      %v2075 = vmax.f32 %v1527, %v1826
      %v2076 = vmax.f32 %v1528, %v1828
      %v2077 = vmax.f32 %v1529, %v1830
      %v2078 = vmax.f32 %v1530, %v1832
      %v2079 = vmax.f32 %v1531, %v1834
      %v2080 = vmax.f32 %v1532, %v1836
      %v2081 = vmax.f32 %v1533, %v1838
      %v2082 = vmax.f32 %v1534, %v1840
      %v2083 = vmax.f32 %v1535, %v1842
      %v2084 = vmax.f32 %v1536, %v1844
      %v2085 = vmax.f32 %v1537, %v1846
      %v2086 = vmax.f32 %v1538, %v1848
      %v2087 = vmax.f32 %v1539, %v1850
      %v2088 = vmax.f32 %v1540, %v1852
      %v2089 = vmax.f32 %v1541, %v1854
      %v2090 = vmax.f32 %v1542, %v1856
      %v2091 = vmax.f32 %v1543, %v1858
      %v2092 = vmax.f32 %v1544, %v1860
      %v2093 = vmax.f32 %v1545, %v1862
      %v2094 = vmax.f32 %v1546, %v1864
      %v2095 = vmax.f32 %v1547, %v1866
      %v2096 = vmax.f32 %v1548, %v1868
      %v2097 = vmax.f32 %v1549, %v1870
      %v2098 = vmax.f32 %v1550, %v1872
      %v2099 = vmax.f32 %v1551, %v1874
      %v2100 = vmax.f32 %v1552, %v1876
      %v2101 = vmax.f32 %v1553, %v1878
      %v2102 = vmax.f32 %v1554, %v1880
      %v2103 = vmax.f32 %v1555, %v1882
      %v2104 = vmax.f32 %v1556, %v1884
      %v2105 = vmax.f32 %v1557, %v1886
      %v2106 = vmax.f32 %v1558, %v1888
      %v2107 = vmax.f32 %v1559, %v1890
      %v2108 = vmax.f32 %v1560, %v1892
      %v2113 = vrot.slane %v1562, 1
      %v2114 = vsel %vm1675, %v1891, %v2113
      %v2115 = vrot.slane %v1563, 1
      %v2116 = vsel %vm1675, %v2113, %v2115
      %v2117 = vrot.slane %v1564, 1
      %v2118 = vsel %vm1675, %v2115, %v2117
      %v2119 = vrot.slane %v1565, 1
      %v2120 = vsel %vm1675, %v2117, %v2119
      %v2125 = vmax.f32 %v1561, %v2114
      %v2126 = vmax.f32 %v1562, %v2116
      %v2127 = vmax.f32 %v1563, %v2118
      %v2128 = vmax.f32 %v1564, %v2120
      %v2129 = vmax.f32 %v2001, %v2005
      %v2130 = vmax.f32 %v2002, %v2006
      %v2131 = vmax.f32 %v2003, %v2007
      %v2132 = vmax.f32 %v2004, %v2008
      %v2133 = vmax.f32 %v2005, %v2009
      %v2134 = vmax.f32 %v2006, %v2010
      %v2135 = vmax.f32 %v2007, %v2011
      %v2136 = vmax.f32 %v2008, %v2012
      %v2137 = vmax.f32 %v2009, %v2013
      %v2138 = vmax.f32 %v2010, %v2014
      %v2139 = vmax.f32 %v2011, %v2015
      %v2140 = vmax.f32 %v2012, %v2016
      %v2141 = vmax.f32 %v2013, %v2017
      %v2142 = vmax.f32 %v2014, %v2018
      %v2143 = vmax.f32 %v2015, %v2019
      %v2144 = vmax.f32 %v2016, %v2020
      %v2145 = vmax.f32 %v2017, %v2021
      %v2146 = vmax.f32 %v2018, %v2022
      %v2147 = vmax.f32 %v2019, %v2023
      %v2148 = vmax.f32 %v2020, %v2024
      %v2149 = vmax.f32 %v2021, %v2025
      %v2150 = vmax.f32 %v2022, %v2026
      %v2151 = vmax.f32 %v2023, %v2027
      %v2152 = vmax.f32 %v2024, %v2028
      %v2153 = vmax.f32 %v2025, %v2029
      %v2154 = vmax.f32 %v2026, %v2030
      %v2155 = vmax.f32 %v2027, %v2031
      %v2156 = vmax.f32 %v2028, %v2032
      %v2157 = vmax.f32 %v2029, %v2033
      %v2158 = vmax.f32 %v2030, %v2034
      %v2159 = vmax.f32 %v2031, %v2035
      %v2160 = vmax.f32 %v2032, %v2036
      %v2161 = vmax.f32 %v2033, %v2037
      %v2162 = vmax.f32 %v2034, %v2038
      %v2163 = vmax.f32 %v2035, %v2039
      %v2164 = vmax.f32 %v2036, %v2040
      %v2165 = vmax.f32 %v2037, %v2041
      %v2166 = vmax.f32 %v2038, %v2042
      %v2167 = vmax.f32 %v2039, %v2043
      %v2168 = vmax.f32 %v2040, %v2044
      %v2169 = vmax.f32 %v2041, %v2045
      %v2170 = vmax.f32 %v2042, %v2046
      %v2171 = vmax.f32 %v2043, %v2047
      %v2172 = vmax.f32 %v2044, %v2048
      %v2173 = vmax.f32 %v2045, %v2049
      %v2174 = vmax.f32 %v2046, %v2050
      %v2175 = vmax.f32 %v2047, %v2051
      %v2176 = vmax.f32 %v2048, %v2052
      %v2177 = vmax.f32 %v2049, %v2053
      %v2178 = vmax.f32 %v2050, %v2054
      %v2179 = vmax.f32 %v2051, %v2055
      %v2180 = vmax.f32 %v2052, %v2056
      %v2181 = vmax.f32 %v2053, %v2057
      %v2182 = vmax.f32 %v2054, %v2058
      %v2183 = vmax.f32 %v2055, %v2059
      %v2184 = vmax.f32 %v2056, %v2060
      %v2185 = vmax.f32 %v2057, %v2061
      %v2186 = vmax.f32 %v2058, %v2062
      %v2187 = vmax.f32 %v2059, %v2063
      %v2188 = vmax.f32 %v2060, %v2064
      %v2189 = vmax.f32 %v2061, %v2065
      %v2190 = vmax.f32 %v2062, %v2066
      %v2191 = vmax.f32 %v2063, %v2067
      %v2192 = vmax.f32 %v2064, %v2068
      %v2193 = vmax.f32 %v2065, %v2069
      %v2194 = vmax.f32 %v2066, %v2070
      %v2195 = vmax.f32 %v2067, %v2071
      %v2196 = vmax.f32 %v2068, %v2072
      %v2197 = vmax.f32 %v2069, %v2073
      %v2198 = vmax.f32 %v2070, %v2074
      %v2199 = vmax.f32 %v2071, %v2075
      %v2200 = vmax.f32 %v2072, %v2076
      %v2201 = vmax.f32 %v2073, %v2077
      %v2202 = vmax.f32 %v2074, %v2078
      %v2203 = vmax.f32 %v2075, %v2079
      %v2204 = vmax.f32 %v2076, %v2080
      %v2205 = vmax.f32 %v2077, %v2081
      %v2206 = vmax.f32 %v2078, %v2082
      %v2207 = vmax.f32 %v2079, %v2083
      %v2208 = vmax.f32 %v2080, %v2084
      %v2209 = vmax.f32 %v2081, %v2085
      %v2210 = vmax.f32 %v2082, %v2086
      %v2211 = vmax.f32 %v2083, %v2087
      %v2212 = vmax.f32 %v2084, %v2088
      %v2213 = vmax.f32 %v2085, %v2089
      %v2214 = vmax.f32 %v2086, %v2090
      %v2215 = vmax.f32 %v2087, %v2091
      %v2216 = vmax.f32 %v2088, %v2092
      %v2217 = vmax.f32 %v2089, %v2093
      %v2218 = vmax.f32 %v2090, %v2094
      %v2219 = vmax.f32 %v2091, %v2095
      %v2220 = vmax.f32 %v2092, %v2096
      %v2221 = vmax.f32 %v2093, %v2097
      %v2222 = vmax.f32 %v2094, %v2098
      %v2223 = vmax.f32 %v2095, %v2099
      %v2224 = vmax.f32 %v2096, %v2100
      %v2225 = vmax.f32 %v2097, %v2101
      %v2226 = vmax.f32 %v2098, %v2102
      %v2227 = vmax.f32 %v2099, %v2103
      %v2228 = vmax.f32 %v2100, %v2104
      %v2229 = vmax.f32 %v2101, %v2105
      %v2230 = vmax.f32 %v2102, %v2106
      %v2231 = vmax.f32 %v2103, %v2107
      %v2232 = vmax.f32 %v2104, %v2108
      %v2233 = vmax.f32 %v2105, %v2125
      %v2234 = vmax.f32 %v2106, %v2126
      %v2235 = vmax.f32 %v2107, %v2127
      %v2236 = vmax.f32 %v2108, %v2128
      %v2237 = vld [vmem:[%s4] sm:$0xff]
      %v2238 = vld [vmem:[%s4 + $0x8] sm:$0xff]
      %v2239 = vld [vmem:[%s4 + $0x10] sm:$0xff]
      %v2240 = vld [vmem:[%s4 + $0x18] sm:$0xf]
      %v2241 = vld [vmem:[%s4 + $0x1c] sm:$0xff]
      %v2242 = vld [vmem:[%s4 + $0x24] sm:$0xff]
      %v2243 = vld [vmem:[%s4 + $0x2c] sm:$0xff]
      %v2244 = vld [vmem:[%s4 + $0x34] sm:$0xf]
      %v2245 = vld [vmem:[%s4 + $0x38] sm:$0xff]
      %v2246 = vld [vmem:[%s4 + $0x40] sm:$0xff]
      %v2247 = vld [vmem:[%s4 + $0x48] sm:$0xff]
      %v2248 = vld [vmem:[%s4 + $0x50] sm:$0xf]
      %v2249 = vld [vmem:[%s4 + $0x54] sm:$0xff]
      %v2250 = vld [vmem:[%s4 + $0x5c] sm:$0xff]
      %v2251 = vld [vmem:[%s4 + $0x64] sm:$0xff]
      %v2252 = vld [vmem:[%s4 + $0x6c] sm:$0xf]
      %v2253 = vld [vmem:[%s4 + $0x70] sm:$0xff]
      %v2254 = vld [vmem:[%s4 + $0x78] sm:$0xff]
      %v2255 = vld [vmem:[%s4 + $0x80] sm:$0xff]
      %v2256 = vld [vmem:[%s4 + $0x88] sm:$0xf]
      %v2257 = vld [vmem:[%s4 + $0x8c] sm:$0xff]
      %v2258 = vld [vmem:[%s4 + $0x94] sm:$0xff]
      %v2259 = vld [vmem:[%s4 + $0x9c] sm:$0xff]
      %v2260 = vld [vmem:[%s4 + $0xa4] sm:$0xf]
      %v2261 = vld [vmem:[%s4 + $0xa8] sm:$0xff]
      %v2262 = vld [vmem:[%s4 + $0xb0] sm:$0xff]
      %v2263 = vld [vmem:[%s4 + $0xb8] sm:$0xff]
      %v2264 = vld [vmem:[%s4 + $0xc0] sm:$0xf]
      %v2265 = vld [vmem:[%s4 + $0xc4] sm:$0xff]
      %v2266 = vld [vmem:[%s4 + $0xcc] sm:$0xff]
      %v2267 = vld [vmem:[%s4 + $0xd4] sm:$0xff]
      %v2268 = vld [vmem:[%s4 + $0xdc] sm:$0xf]
      %v2269 = vld [vmem:[%s4 + $0xe0] sm:$0xff]
      %v2270 = vld [vmem:[%s4 + $0xe8] sm:$0xff]
      %v2271 = vld [vmem:[%s4 + $0xf0] sm:$0xff]
      %v2272 = vld [vmem:[%s4 + $0xf8] sm:$0xf]
      %v2273 = vld [vmem:[%s4 + $0xfc] sm:$0xff]
      %v2274 = vld [vmem:[%s4 + $0x104] sm:$0xff]
      %v2275 = vld [vmem:[%s4 + $0x10c] sm:$0xff]
      %v2276 = vld [vmem:[%s4 + $0x114] sm:$0xf]
      %v2277 = vld [vmem:[%s4 + $0x118] sm:$0xff]
      %v2278 = vld [vmem:[%s4 + $0x120] sm:$0xff]
      %v2279 = vld [vmem:[%s4 + $0x128] sm:$0xff]
      %v2280 = vld [vmem:[%s4 + $0x130] sm:$0xf]
      %v2281 = vld [vmem:[%s4 + $0x134] sm:$0xff]
      %v2282 = vld [vmem:[%s4 + $0x13c] sm:$0xff]
      %v2283 = vld [vmem:[%s4 + $0x144] sm:$0xff]
      %v2284 = vld [vmem:[%s4 + $0x14c] sm:$0xf]
      %v2285 = vld [vmem:[%s4 + $0x150] sm:$0xff]
      %v2286 = vld [vmem:[%s4 + $0x158] sm:$0xff]
      %v2287 = vld [vmem:[%s4 + $0x160] sm:$0xff]
      %v2288 = vld [vmem:[%s4 + $0x168] sm:$0xf]
      %v2289 = vld [vmem:[%s4 + $0x16c] sm:$0xff]
      %v2290 = vld [vmem:[%s4 + $0x174] sm:$0xff]
      %v2291 = vld [vmem:[%s4 + $0x17c] sm:$0xff]
      %v2292 = vld [vmem:[%s4 + $0x184] sm:$0xf]
      %v2293 = vld [vmem:[%s4 + $0x188] sm:$0xff]
      %v2294 = vld [vmem:[%s4 + $0x190] sm:$0xff]
      %v2295 = vld [vmem:[%s4 + $0x198] sm:$0xff]
      %v2296 = vld [vmem:[%s4 + $0x1a0] sm:$0xf]
      %v2297 = vld [vmem:[%s4 + $0x1a4] sm:$0xff]
      %v2298 = vld [vmem:[%s4 + $0x1ac] sm:$0xff]
      %v2299 = vld [vmem:[%s4 + $0x1b4] sm:$0xff]
      %v2300 = vld [vmem:[%s4 + $0x1bc] sm:$0xf]
      %v2301 = vld [vmem:[%s4 + $0x1c0] sm:$0xff]
      %v2302 = vld [vmem:[%s4 + $0x1c8] sm:$0xff]
      %v2303 = vld [vmem:[%s4 + $0x1d0] sm:$0xff]
      %v2304 = vld [vmem:[%s4 + $0x1d8] sm:$0xf]
      %v2305 = vld [vmem:[%s4 + $0x1dc] sm:$0xff]
      %v2306 = vld [vmem:[%s4 + $0x1e4] sm:$0xff]
      %v2307 = vld [vmem:[%s4 + $0x1ec] sm:$0xff]
      %v2308 = vld [vmem:[%s4 + $0x1f4] sm:$0xf]
      %v2309 = vld [vmem:[%s4 + $0x1f8] sm:$0xff]
      %v2310 = vld [vmem:[%s4 + $0x200] sm:$0xff]
      %v2311 = vld [vmem:[%s4 + $0x208] sm:$0xff]
      %v2312 = vld [vmem:[%s4 + $0x210] sm:$0xf]
      %v2313 = vld [vmem:[%s4 + $0x214] sm:$0xff]
      %v2314 = vld [vmem:[%s4 + $0x21c] sm:$0xff]
      %v2315 = vld [vmem:[%s4 + $0x224] sm:$0xff]
      %v2316 = vld [vmem:[%s4 + $0x22c] sm:$0xf]
      %v2317 = vld [vmem:[%s4 + $0x230] sm:$0xff]
      %v2318 = vld [vmem:[%s4 + $0x238] sm:$0xff]
      %v2319 = vld [vmem:[%s4 + $0x240] sm:$0xff]
      %v2320 = vld [vmem:[%s4 + $0x248] sm:$0xf]
      %v2321 = vld [vmem:[%s4 + $0x24c] sm:$0xff]
      %v2322 = vld [vmem:[%s4 + $0x254] sm:$0xff]
      %v2323 = vld [vmem:[%s4 + $0x25c] sm:$0xff]
      %v2324 = vld [vmem:[%s4 + $0x264] sm:$0xf]
      %v2325 = vld [vmem:[%s4 + $0x268] sm:$0xff]
      %v2326 = vld [vmem:[%s4 + $0x270] sm:$0xff]
      %v2327 = vld [vmem:[%s4 + $0x278] sm:$0xff]
      %v2328 = vld [vmem:[%s4 + $0x280] sm:$0xf]
      %v2329 = vld [vmem:[%s4 + $0x284] sm:$0xff]
      %v2330 = vld [vmem:[%s4 + $0x28c] sm:$0xff]
      %v2331 = vld [vmem:[%s4 + $0x294] sm:$0xff]
      %v2332 = vld [vmem:[%s4 + $0x29c] sm:$0xf]
      %v2333 = vld [vmem:[%s4 + $0x2a0] sm:$0xff]
      %v2334 = vld [vmem:[%s4 + $0x2a8] sm:$0xff]
      %v2335 = vld [vmem:[%s4 + $0x2b0] sm:$0xff]
      %v2336 = vld [vmem:[%s4 + $0x2b8] sm:$0xf]
      %v2337 = vld [vmem:[%s4 + $0x2bc] sm:$0xff]
      %v2338 = vld [vmem:[%s4 + $0x2c4] sm:$0xff]
      %v2339 = vld [vmem:[%s4 + $0x2cc] sm:$0xff]
      %v2340 = vld [vmem:[%s4 + $0x2d4] sm:$0xf]
      %v2341 = vld [vmem:[%s4 + $0x2d8] sm:$0xff]
      %v2342 = vld [vmem:[%s4 + $0x2e0] sm:$0xff]
      %v2343 = vld [vmem:[%s4 + $0x2e8] sm:$0xff]
      %v2344 = vld [vmem:[%s4 + $0x2f0] sm:$0xf]
      %v2345 = vld [vmem:[%s4 + $0x2f4] sm:$0xff]
      %v2346 = vld [vmem:[%s4 + $0x2fc] sm:$0xff]
      %v2347 = vld [vmem:[%s4 + $0x304] sm:$0xff]
      %v2348 = vld [vmem:[%s4 + $0x30c] sm:$0xf]
      %v2349 = vld [vmem:[%s4 + $0x310] sm:$0xff]
      %v2350 = vld [vmem:[%s4 + $0x318] sm:$0xff]
      %v2351 = vld [vmem:[%s4 + $0x320] sm:$0xff]
      %v2352 = vld [vmem:[%s4 + $0x328] sm:$0xf]
      %v2353 = vld [vmem:[%s4 + $0x32c] sm:$0xff]
      %v2354 = vld [vmem:[%s4 + $0x334] sm:$0xff]
      %v2355 = vld [vmem:[%s4 + $0x33c] sm:$0xff]
      %v2356 = vld [vmem:[%s4 + $0x344] sm:$0xf]
      %v2357 = vpack.c.bf16 %v2130, %v2129
      %v2358 = vpack.c.bf16 %v2132, %v2131
      %v2359 = vpack.c.bf16 %v2134, %v2133
      %v2360 = vpack.c.bf16 %v2136, %v2135
      %v2361 = vpack.c.bf16 %v2138, %v2137
      %v2362 = vpack.c.bf16 %v2140, %v2139
      %v2363 = vpack.c.bf16 %v2142, %v2141
      %v2364 = vpack.c.bf16 %v2144, %v2143
      %v2365 = vpack.c.bf16 %v2146, %v2145
      %v2366 = vpack.c.bf16 %v2148, %v2147
      %v2367 = vpack.c.bf16 %v2150, %v2149
      %v2368 = vpack.c.bf16 %v2152, %v2151
      %v2369 = vpack.c.bf16 %v2154, %v2153
      %v2370 = vpack.c.bf16 %v2156, %v2155
      %v2371 = vpack.c.bf16 %v2158, %v2157
      %v2372 = vpack.c.bf16 %v2160, %v2159
      %v2373 = vpack.c.bf16 %v2162, %v2161
      %v2374 = vpack.c.bf16 %v2164, %v2163
      %v2375 = vpack.c.bf16 %v2166, %v2165
      %v2376 = vpack.c.bf16 %v2168, %v2167
      %v2377 = vpack.c.bf16 %v2170, %v2169
      %v2378 = vpack.c.bf16 %v2172, %v2171
      %v2379 = vpack.c.bf16 %v2174, %v2173
      %v2380 = vpack.c.bf16 %v2176, %v2175
      %v2381 = vpack.c.bf16 %v2178, %v2177
      %v2382 = vpack.c.bf16 %v2180, %v2179
      %v2383 = vpack.c.bf16 %v2182, %v2181
      %v2384 = vpack.c.bf16 %v2184, %v2183
      %v2385 = vpack.c.bf16 %v2186, %v2185
      %v2386 = vpack.c.bf16 %v2188, %v2187
      %v2387 = vpack.c.bf16 %v2190, %v2189
      %v2388 = vpack.c.bf16 %v2192, %v2191
      %v2389 = vpack.c.bf16 %v2194, %v2193
      %v2390 = vpack.c.bf16 %v2196, %v2195
      %v2391 = vpack.c.bf16 %v2198, %v2197
      %v2392 = vpack.c.bf16 %v2200, %v2199
      %v2393 = vpack.c.bf16 %v2202, %v2201
      %v2394 = vpack.c.bf16 %v2204, %v2203
      %v2395 = vpack.c.bf16 %v2206, %v2205
      %v2396 = vpack.c.bf16 %v2208, %v2207
      %v2397 = vpack.c.bf16 %v2210, %v2209
      %v2398 = vpack.c.bf16 %v2212, %v2211
      %v2399 = vpack.c.bf16 %v2214, %v2213
      %v2400 = vpack.c.bf16 %v2216, %v2215
      %v2401 = vpack.c.bf16 %v2218, %v2217
      %v2402 = vpack.c.bf16 %v2220, %v2219
      %v2403 = vpack.c.bf16 %v2222, %v2221
      %v2404 = vpack.c.bf16 %v2224, %v2223
      %v2405 = vpack.c.bf16 %v2226, %v2225
      %v2406 = vpack.c.bf16 %v2228, %v2227
      %v2407 = vpack.c.bf16 %v2230, %v2229
      %v2408 = vpack.c.bf16 %v2232, %v2231
      %v2409 = vpack.c.bf16 %v2234, %v2233
      %v2410 = vpack.c.bf16 %v2236, %v2235
      %v2531 = vunpack.c.l.b16 %v2237
      %v2532 = vunpack.c.h.b16 %v2237
      %v2533 = vunpack.c.l.b16 %v2238
      %v2534 = vunpack.c.h.b16 %v2238
      %v2535 = vunpack.c.l.b16 %v2239
      %v2536 = vunpack.c.h.b16 %v2239
      %v2537 = vunpack.c.l.b16 %v2240
      %v2538 = vunpack.c.l.b16 %v2241
      %v2539 = vunpack.c.h.b16 %v2241
      %v2540 = vunpack.c.l.b16 %v2242
      %v2541 = vunpack.c.h.b16 %v2242
      %v2542 = vunpack.c.l.b16 %v2243
      %v2543 = vunpack.c.h.b16 %v2243
      %v2544 = vunpack.c.l.b16 %v2244
      %v2545 = vunpack.c.l.b16 %v2245
      %v2546 = vunpack.c.h.b16 %v2245
      %v2547 = vunpack.c.l.b16 %v2246
      %v2548 = vunpack.c.h.b16 %v2246
      %v2549 = vunpack.c.l.b16 %v2247
      %v2550 = vunpack.c.h.b16 %v2247
      %v2551 = vunpack.c.l.b16 %v2248
      %v2552 = vunpack.c.l.b16 %v2249
      %v2553 = vunpack.c.h.b16 %v2249
      %v2554 = vunpack.c.l.b16 %v2250
      %v2555 = vunpack.c.h.b16 %v2250
      %v2556 = vunpack.c.l.b16 %v2251
      %v2557 = vunpack.c.h.b16 %v2251
      %v2558 = vunpack.c.l.b16 %v2252
      %v2559 = vunpack.c.l.b16 %v2253
      %v2560 = vunpack.c.h.b16 %v2253
      %v2561 = vunpack.c.l.b16 %v2254
      %v2562 = vunpack.c.h.b16 %v2254
      %v2563 = vunpack.c.l.b16 %v2255
      %v2564 = vunpack.c.h.b16 %v2255
      %v2565 = vunpack.c.l.b16 %v2256
      %v2566 = vunpack.c.l.b16 %v2257
      %v2567 = vunpack.c.h.b16 %v2257
      %v2568 = vunpack.c.l.b16 %v2258
      %v2569 = vunpack.c.h.b16 %v2258
      %v2570 = vunpack.c.l.b16 %v2259
      %v2571 = vunpack.c.h.b16 %v2259
      %v2572 = vunpack.c.l.b16 %v2260
      %v2573 = vunpack.c.l.b16 %v2261
      %v2574 = vunpack.c.h.b16 %v2261
      %v2575 = vunpack.c.l.b16 %v2262
      %v2576 = vunpack.c.h.b16 %v2262
      %v2577 = vunpack.c.l.b16 %v2263
      %v2578 = vunpack.c.h.b16 %v2263
      %v2579 = vunpack.c.l.b16 %v2264
      %v2580 = vunpack.c.l.b16 %v2265
      %v2581 = vunpack.c.h.b16 %v2265
      %v2582 = vunpack.c.l.b16 %v2266
      %v2583 = vunpack.c.h.b16 %v2266
      %v2584 = vunpack.c.l.b16 %v2267
      %v2585 = vunpack.c.h.b16 %v2267
      %v2586 = vunpack.c.l.b16 %v2268
      %v2587 = vunpack.c.l.b16 %v2269
      %v2588 = vunpack.c.h.b16 %v2269
      %v2589 = vunpack.c.l.b16 %v2270
      %v2590 = vunpack.c.h.b16 %v2270
      %v2591 = vunpack.c.l.b16 %v2271
      %v2592 = vunpack.c.h.b16 %v2271
      %v2593 = vunpack.c.l.b16 %v2272
      %v2594 = vunpack.c.l.b16 %v2273
      %v2595 = vunpack.c.h.b16 %v2273
      %v2596 = vunpack.c.l.b16 %v2274
      %v2597 = vunpack.c.h.b16 %v2274
      %v2598 = vunpack.c.l.b16 %v2275
      %v2599 = vunpack.c.h.b16 %v2275
      %v2600 = vunpack.c.l.b16 %v2276
      %v2601 = vunpack.c.l.b16 %v2277
      %v2602 = vunpack.c.h.b16 %v2277
      %v2603 = vunpack.c.l.b16 %v2278
      %v2604 = vunpack.c.h.b16 %v2278
      %v2605 = vunpack.c.l.b16 %v2279
      %v2606 = vunpack.c.h.b16 %v2279
      %v2607 = vunpack.c.l.b16 %v2280
      %v2608 = vunpack.c.l.b16 %v2281
      %v2609 = vunpack.c.h.b16 %v2281
      %v2610 = vunpack.c.l.b16 %v2282
      %v2611 = vunpack.c.h.b16 %v2282
      %v2612 = vunpack.c.l.b16 %v2283
      %v2613 = vunpack.c.h.b16 %v2283
      %v2614 = vunpack.c.l.b16 %v2284
      %v2615 = vunpack.c.l.b16 %v2285
      %v2616 = vunpack.c.h.b16 %v2285
      %v2617 = vunpack.c.l.b16 %v2286
      %v2618 = vunpack.c.h.b16 %v2286
      %v2619 = vunpack.c.l.b16 %v2287
      %v2620 = vunpack.c.h.b16 %v2287
      %v2621 = vunpack.c.l.b16 %v2288
      %v2622 = vunpack.c.l.b16 %v2289
      %v2623 = vunpack.c.h.b16 %v2289
      %v2624 = vunpack.c.l.b16 %v2290
      %v2625 = vunpack.c.h.b16 %v2290
      %v2626 = vunpack.c.l.b16 %v2291
      %v2627 = vunpack.c.h.b16 %v2291
      %v2628 = vunpack.c.l.b16 %v2292
      %v2629 = vunpack.c.l.b16 %v2293
      %v2630 = vunpack.c.h.b16 %v2293
      %v2631 = vunpack.c.l.b16 %v2294
      %v2632 = vunpack.c.h.b16 %v2294
      %v2633 = vunpack.c.l.b16 %v2295
      %v2634 = vunpack.c.h.b16 %v2295
      %v2635 = vunpack.c.l.b16 %v2296
      %v2636 = vunpack.c.l.b16 %v2297
      %v2637 = vunpack.c.h.b16 %v2297
      %v2638 = vunpack.c.l.b16 %v2298
      %v2639 = vunpack.c.h.b16 %v2298
      %v2640 = vunpack.c.l.b16 %v2299
      %v2641 = vunpack.c.h.b16 %v2299
      %v2642 = vunpack.c.l.b16 %v2300
      %v2643 = vunpack.c.l.b16 %v2301
      %v2644 = vunpack.c.h.b16 %v2301
      %v2645 = vunpack.c.l.b16 %v2302
      %v2646 = vunpack.c.h.b16 %v2302
      %v2647 = vunpack.c.l.b16 %v2303
      %v2648 = vunpack.c.h.b16 %v2303
      %v2649 = vunpack.c.l.b16 %v2304
      %v2650 = vunpack.c.l.b16 %v2305
      %v2651 = vunpack.c.h.b16 %v2305
      %v2652 = vunpack.c.l.b16 %v2306
      %v2653 = vunpack.c.h.b16 %v2306
      %v2654 = vunpack.c.l.b16 %v2307
      %v2655 = vunpack.c.h.b16 %v2307
      %v2656 = vunpack.c.l.b16 %v2308
      %v2657 = vunpack.c.l.b16 %v2309
      %v2658 = vunpack.c.h.b16 %v2309
      %v2659 = vunpack.c.l.b16 %v2310
      %v2660 = vunpack.c.h.b16 %v2310
      %v2661 = vunpack.c.l.b16 %v2311
      %v2662 = vunpack.c.h.b16 %v2311
      %v2663 = vunpack.c.l.b16 %v2312
      %v2664 = vunpack.c.l.b16 %v2313
      %v2665 = vunpack.c.h.b16 %v2313
      %v2666 = vunpack.c.l.b16 %v2314
      %v2667 = vunpack.c.h.b16 %v2314
      %v2668 = vunpack.c.l.b16 %v2315
      %v2669 = vunpack.c.h.b16 %v2315
      %v2670 = vunpack.c.l.b16 %v2316
      %v2671 = vunpack.c.l.b16 %v2317
      %v2672 = vunpack.c.h.b16 %v2317
      %v2673 = vunpack.c.l.b16 %v2318
      %v2674 = vunpack.c.h.b16 %v2318
      %v2675 = vunpack.c.l.b16 %v2319
      %v2676 = vunpack.c.h.b16 %v2319
      %v2677 = vunpack.c.l.b16 %v2320
      %v2678 = vunpack.c.l.b16 %v2321
      %v2679 = vunpack.c.h.b16 %v2321
      %v2680 = vunpack.c.l.b16 %v2322
      %v2681 = vunpack.c.h.b16 %v2322
      %v2682 = vunpack.c.l.b16 %v2323
      %v2683 = vunpack.c.h.b16 %v2323
      %v2684 = vunpack.c.l.b16 %v2324
      %v2685 = vunpack.c.l.b16 %v2325
      %v2686 = vunpack.c.h.b16 %v2325
      %v2687 = vunpack.c.l.b16 %v2326
      %v2688 = vunpack.c.h.b16 %v2326
      %v2689 = vunpack.c.l.b16 %v2327
      %v2690 = vunpack.c.h.b16 %v2327
      %v2691 = vunpack.c.l.b16 %v2328
      %v2692 = vunpack.c.l.b16 %v2329
      %v2693 = vunpack.c.h.b16 %v2329
      %v2694 = vunpack.c.l.b16 %v2330
      %v2695 = vunpack.c.h.b16 %v2330
      %v2696 = vunpack.c.l.b16 %v2331
      %v2697 = vunpack.c.h.b16 %v2331
      %v2698 = vunpack.c.l.b16 %v2332
      %v2699 = vunpack.c.l.b16 %v2333
      %v2700 = vunpack.c.h.b16 %v2333
      %v2701 = vunpack.c.l.b16 %v2334
      %v2702 = vunpack.c.h.b16 %v2334
      %v2703 = vunpack.c.l.b16 %v2335
      %v2704 = vunpack.c.h.b16 %v2335
      %v2705 = vunpack.c.l.b16 %v2336
      %v2706 = vunpack.c.l.b16 %v2337
      %v2707 = vunpack.c.h.b16 %v2337
      %v2708 = vunpack.c.l.b16 %v2338
      %v2709 = vunpack.c.h.b16 %v2338
      %v2710 = vunpack.c.l.b16 %v2339
      %v2711 = vunpack.c.h.b16 %v2339
      %v2712 = vunpack.c.l.b16 %v2340
      %v2713 = vunpack.c.l.b16 %v2341
      %v2714 = vunpack.c.h.b16 %v2341
      %v2715 = vunpack.c.l.b16 %v2342
      %v2716 = vunpack.c.h.b16 %v2342
      %v2717 = vunpack.c.l.b16 %v2343
      %v2718 = vunpack.c.h.b16 %v2343
      %v2719 = vunpack.c.l.b16 %v2344
      %v2720 = vunpack.c.l.b16 %v2345
      %v2721 = vunpack.c.h.b16 %v2345
      %v2722 = vunpack.c.l.b16 %v2346
      %v2723 = vunpack.c.h.b16 %v2346
      %v2724 = vunpack.c.l.b16 %v2347
      %v2725 = vunpack.c.h.b16 %v2347
      %v2726 = vunpack.c.l.b16 %v2348
      %v2727 = vunpack.c.l.b16 %v2349
      %v2728 = vunpack.c.h.b16 %v2349
      %v2729 = vunpack.c.l.b16 %v2350
      %v2730 = vunpack.c.h.b16 %v2350
      %v2731 = vunpack.c.l.b16 %v2351
      %v2732 = vunpack.c.h.b16 %v2351
      %v2733 = vunpack.c.l.b16 %v2352
      %v2734 = vunpack.c.l.b16 %v2353
      %v2735 = vunpack.c.h.b16 %v2353
      %v2736 = vunpack.c.l.b16 %v2354
      %v2737 = vunpack.c.h.b16 %v2354
      %v2738 = vunpack.c.l.b16 %v2355
      %v2739 = vunpack.c.h.b16 %v2355
      %v2740 = vunpack.c.l.b16 %v2356
      %v2741 = vpack.c.b16 %v2538, %v2531
      %v2742 = vpack.c.b16 %v2539, %v2532
      %v2743 = vpack.c.b16 %v2540, %v2533
      %v2744 = vpack.c.b16 %v2541, %v2534
      %v2745 = vpack.c.b16 %v2542, %v2535
      %v2746 = vpack.c.b16 %v2543, %v2536
      %v2747 = vpack.c.b16 %v2544, %v2537
      %v2748 = vpack.c.b16 %v2552, %v2545
      %v2749 = vpack.c.b16 %v2553, %v2546
      %v2750 = vpack.c.b16 %v2554, %v2547
      %v2751 = vpack.c.b16 %v2555, %v2548
      %v2752 = vpack.c.b16 %v2556, %v2549
      %v2753 = vpack.c.b16 %v2557, %v2550
      %v2754 = vpack.c.b16 %v2558, %v2551
      %v2755 = vpack.c.b16 %v2566, %v2559
      %v2756 = vpack.c.b16 %v2567, %v2560
      %v2757 = vpack.c.b16 %v2568, %v2561
      %v2758 = vpack.c.b16 %v2569, %v2562
      %v2759 = vpack.c.b16 %v2570, %v2563
      %v2760 = vpack.c.b16 %v2571, %v2564
      %v2761 = vpack.c.b16 %v2572, %v2565
      %v2762 = vpack.c.b16 %v2580, %v2573
      %v2763 = vpack.c.b16 %v2581, %v2574
      %v2764 = vpack.c.b16 %v2582, %v2575
      %v2765 = vpack.c.b16 %v2583, %v2576
      %v2766 = vpack.c.b16 %v2584, %v2577
      %v2767 = vpack.c.b16 %v2585, %v2578
      %v2768 = vpack.c.b16 %v2586, %v2579
      %v2769 = vpack.c.b16 %v2594, %v2587
      %v2770 = vpack.c.b16 %v2595, %v2588
      %v2771 = vpack.c.b16 %v2596, %v2589
      %v2772 = vpack.c.b16 %v2597, %v2590
      %v2773 = vpack.c.b16 %v2598, %v2591
      %v2774 = vpack.c.b16 %v2599, %v2592
      %v2775 = vpack.c.b16 %v2600, %v2593
      %v2776 = vpack.c.b16 %v2608, %v2601
      %v2777 = vpack.c.b16 %v2609, %v2602
      %v2778 = vpack.c.b16 %v2610, %v2603
      %v2779 = vpack.c.b16 %v2611, %v2604
      %v2780 = vpack.c.b16 %v2612, %v2605
      %v2781 = vpack.c.b16 %v2613, %v2606
      %v2782 = vpack.c.b16 %v2614, %v2607
      %v2783 = vpack.c.b16 %v2622, %v2615
      %v2784 = vpack.c.b16 %v2623, %v2616
      %v2785 = vpack.c.b16 %v2624, %v2617
      %v2786 = vpack.c.b16 %v2625, %v2618
      %v2787 = vpack.c.b16 %v2626, %v2619
      %v2788 = vpack.c.b16 %v2627, %v2620
      %v2789 = vpack.c.b16 %v2628, %v2621
      %v2790 = vpack.c.b16 %v2636, %v2629
      %v2791 = vpack.c.b16 %v2637, %v2630
      %v2792 = vpack.c.b16 %v2638, %v2631
      %v2793 = vpack.c.b16 %v2639, %v2632
      %v2794 = vpack.c.b16 %v2640, %v2633
      %v2795 = vpack.c.b16 %v2641, %v2634
      %v2796 = vpack.c.b16 %v2642, %v2635
      %v2797 = vpack.c.b16 %v2650, %v2643
      %v2798 = vpack.c.b16 %v2651, %v2644
      %v2799 = vpack.c.b16 %v2652, %v2645
      %v2800 = vpack.c.b16 %v2653, %v2646
      %v2801 = vpack.c.b16 %v2654, %v2647
      %v2802 = vpack.c.b16 %v2655, %v2648
      %v2803 = vpack.c.b16 %v2656, %v2649
      %v2804 = vpack.c.b16 %v2664, %v2657
      %v2805 = vpack.c.b16 %v2665, %v2658
      %v2806 = vpack.c.b16 %v2666, %v2659
      %v2807 = vpack.c.b16 %v2667, %v2660
      %v2808 = vpack.c.b16 %v2668, %v2661
      %v2809 = vpack.c.b16 %v2669, %v2662
      %v2810 = vpack.c.b16 %v2670, %v2663
      %v2811 = vpack.c.b16 %v2678, %v2671
      %v2812 = vpack.c.b16 %v2679, %v2672
      %v2813 = vpack.c.b16 %v2680, %v2673
      %v2814 = vpack.c.b16 %v2681, %v2674
      %v2815 = vpack.c.b16 %v2682, %v2675
      %v2816 = vpack.c.b16 %v2683, %v2676
      %v2817 = vpack.c.b16 %v2684, %v2677
      %v2818 = vpack.c.b16 %v2692, %v2685
      %v2819 = vpack.c.b16 %v2693, %v2686
      %v2820 = vpack.c.b16 %v2694, %v2687
      %v2821 = vpack.c.b16 %v2695, %v2688
      %v2822 = vpack.c.b16 %v2696, %v2689
      %v2823 = vpack.c.b16 %v2697, %v2690
      %v2824 = vpack.c.b16 %v2698, %v2691
      %v2825 = vpack.c.b16 %v2706, %v2699
      %v2826 = vpack.c.b16 %v2707, %v2700
      %v2827 = vpack.c.b16 %v2708, %v2701
      %v2828 = vpack.c.b16 %v2709, %v2702
      %v2829 = vpack.c.b16 %v2710, %v2703
      %v2830 = vpack.c.b16 %v2711, %v2704
      %v2831 = vpack.c.b16 %v2712, %v2705
      %v2832 = vpack.c.b16 %v2720, %v2713
      %v2833 = vpack.c.b16 %v2721, %v2714
      %v2834 = vpack.c.b16 %v2722, %v2715
      %v2835 = vpack.c.b16 %v2723, %v2716
      %v2836 = vpack.c.b16 %v2724, %v2717
      %v2837 = vpack.c.b16 %v2725, %v2718
      %v2838 = vpack.c.b16 %v2726, %v2719
      %v2839 = vpack.c.b16 %v2734, %v2727
      %v2840 = vpack.c.b16 %v2735, %v2728
      %v2841 = vpack.c.b16 %v2736, %v2729
      %v2842 = vpack.c.b16 %v2737, %v2730
      %v2843 = vpack.c.b16 %v2738, %v2731
      %v2844 = vpack.c.b16 %v2739, %v2732
      %v2845 = vpack.c.b16 %v2740, %v2733
      %vm2936 = vcmask 785408
      %v2938 = vsel %vm2936, %v2747, 0
      %v2941 = vsel %vm2936, %v2754, 0
      %v2944 = vsel %vm2936, %v2761, 0
      %v2947 = vsel %vm2936, %v2768, 0
      %v2950 = vsel %vm2936, %v2775, 0
      %v2953 = vsel %vm2936, %v2782, 0
      %v2956 = vsel %vm2936, %v2789, 0
      %v2959 = vsel %vm2936, %v2796, 0
      %v2962 = vsel %vm2936, %v2803, 0
      %v2965 = vsel %vm2936, %v2810, 0
      %v2968 = vsel %vm2936, %v2817, 0
      %v2971 = vsel %vm2936, %v2824, 0
      %v2974 = vsel %vm2936, %v2831, 0
      %v2977 = vsel %vm2936, %v2838, 0
      %v2980 = vsel %vm2936, %v2845, 0
      %2982 = vmatpush.bf16.msra.mxu0 %v2364
      %2983 = vmatpush.bf16.msra.mxu0 %v2363
      %2984 = vmatpush.bf16.msra.mxu0 %v2362
      %2985 = vmatpush.bf16.msra.mxu0 %v2361
      %2986 = vmatpush.bf16.msra.mxu0 %v2360
      %2987 = vmatpush.bf16.msra.mxu0 %v2359
      %2988 = vmatpush.bf16.msra.mxu0 %v2358
      %2989 = vmatpush.bf16.msra.mxu0 %v2357
      %2990 = vmatmul.bf16.gmra.mxu0 %v2741
      %v2991 = vpop.f32.mrf.mxu0
      %v2992 = vadd.f32 0.0, %v2991
      %v2993 = vpop.f32.mrf.mxu0
      %v2994 = vadd.f32 0.0, %v2993
      %2995 = vmatmul.bf16.gmra.mxu0 %v2748
      %v2996 = vpop.f32.mrf.mxu0
      %v2997 = vadd.f32 0.0, %v2996
      %v2998 = vpop.f32.mrf.mxu0
      %v2999 = vadd.f32 0.0, %v2998
      %3000 = vmatmul.bf16.gmra.mxu0 %v2755
      %v3001 = vpop.f32.mrf.mxu0
      %v3002 = vadd.f32 0.0, %v3001
      %v3003 = vpop.f32.mrf.mxu0
      %v3004 = vadd.f32 0.0, %v3003
      %3005 = vmatmul.bf16.gmra.mxu0 %v2762
      %v3006 = vpop.f32.mrf.mxu0
      %v3007 = vadd.f32 0.0, %v3006
      %v3008 = vpop.f32.mrf.mxu0
      %v3009 = vadd.f32 0.0, %v3008
      %3010 = vmatmul.bf16.gmra.mxu0 %v2769
      %v3011 = vpop.f32.mrf.mxu0
      %v3012 = vadd.f32 0.0, %v3011
      %v3013 = vpop.f32.mrf.mxu0
      %v3014 = vadd.f32 0.0, %v3013
      %3015 = vmatmul.bf16.gmra.mxu0 %v2776
      %v3016 = vpop.f32.mrf.mxu0
      %v3017 = vadd.f32 0.0, %v3016
      %v3018 = vpop.f32.mrf.mxu0
      %v3019 = vadd.f32 0.0, %v3018
      %3020 = vmatmul.bf16.gmra.mxu0 %v2783
      %v3021 = vpop.f32.mrf.mxu0
      %v3022 = vadd.f32 0.0, %v3021
      %v3023 = vpop.f32.mrf.mxu0
      %v3024 = vadd.f32 0.0, %v3023
      %3025 = vmatmul.bf16.gmra.mxu0 %v2790
      %v3026 = vpop.f32.mrf.mxu0
      %v3027 = vadd.f32 0.0, %v3026
      %v3028 = vpop.f32.mrf.mxu0
      %v3029 = vadd.f32 0.0, %v3028
      %3030 = vmatmul.bf16.gmra.mxu0 %v2797
      %v3031 = vpop.f32.mrf.mxu0
      %v3032 = vadd.f32 0.0, %v3031
      %v3033 = vpop.f32.mrf.mxu0
      %v3034 = vadd.f32 0.0, %v3033
      %3035 = vmatmul.bf16.gmra.mxu0 %v2804
      %v3036 = vpop.f32.mrf.mxu0
      %v3037 = vadd.f32 0.0, %v3036
      %v3038 = vpop.f32.mrf.mxu0
      %v3039 = vadd.f32 0.0, %v3038
      %3040 = vmatmul.bf16.gmra.mxu0 %v2811
      %v3041 = vpop.f32.mrf.mxu0
      %v3042 = vadd.f32 0.0, %v3041
      %v3043 = vpop.f32.mrf.mxu0
      %v3044 = vadd.f32 0.0, %v3043
      %3045 = vmatmul.bf16.gmra.mxu0 %v2818
      %v3046 = vpop.f32.mrf.mxu0
      %v3047 = vadd.f32 0.0, %v3046
      %v3048 = vpop.f32.mrf.mxu0
      %v3049 = vadd.f32 0.0, %v3048
      %3050 = vmatmul.bf16.gmra.mxu0 %v2825
      %v3051 = vpop.f32.mrf.mxu0
      %v3052 = vadd.f32 0.0, %v3051
      %v3053 = vpop.f32.mrf.mxu0
      %v3054 = vadd.f32 0.0, %v3053
      %3055 = vmatmul.bf16.gmra.mxu0 %v2832
      %v3056 = vpop.f32.mrf.mxu0
      %v3057 = vadd.f32 0.0, %v3056
      %v3058 = vpop.f32.mrf.mxu0
      %v3059 = vadd.f32 0.0, %v3058
      %3060 = vmatmul.bf16.gmra.mxu0 %v2839
      %v3061 = vpop.f32.mrf.mxu0
      %v3062 = vadd.f32 0.0, %v3061
      %v3063 = vpop.f32.mrf.mxu0
      %v3064 = vadd.f32 0.0, %v3063
      %3065 = vdwg.mxu0
      %3066 = vmatpush.bf16.msra.mxu0 %v2372
      %3067 = vmatpush.bf16.msra.mxu0 %v2371
      %3068 = vmatpush.bf16.msra.mxu0 %v2370
      %3069 = vmatpush.bf16.msra.mxu0 %v2369
      %3070 = vmatpush.bf16.msra.mxu0 %v2368
      %3071 = vmatpush.bf16.msra.mxu0 %v2367
      %3072 = vmatpush.bf16.msra.mxu0 %v2366
      %3073 = vmatpush.bf16.msra.mxu0 %v2365
      %3074 = vmatmul.bf16.gmra.mxu0 %v2742
      %v3075 = vpop.f32.mrf.mxu0
      %v3076 = vadd.f32 %v2992, %v3075
      %v3077 = vpop.f32.mrf.mxu0
      %v3078 = vadd.f32 %v2994, %v3077
      %3079 = vmatmul.bf16.gmra.mxu0 %v2749
      %v3080 = vpop.f32.mrf.mxu0
      %v3081 = vadd.f32 %v2997, %v3080
      %v3082 = vpop.f32.mrf.mxu0
      %v3083 = vadd.f32 %v2999, %v3082
      %3084 = vmatmul.bf16.gmra.mxu0 %v2756
      %v3085 = vpop.f32.mrf.mxu0
      %v3086 = vadd.f32 %v3002, %v3085
      %v3087 = vpop.f32.mrf.mxu0
      %v3088 = vadd.f32 %v3004, %v3087
      %3089 = vmatmul.bf16.gmra.mxu0 %v2763
      %v3090 = vpop.f32.mrf.mxu0
      %v3091 = vadd.f32 %v3007, %v3090
      %v3092 = vpop.f32.mrf.mxu0
      %v3093 = vadd.f32 %v3009, %v3092
      %3094 = vmatmul.bf16.gmra.mxu0 %v2770
      %v3095 = vpop.f32.mrf.mxu0
      %v3096 = vadd.f32 %v3012, %v3095
      %v3097 = vpop.f32.mrf.mxu0
      %v3098 = vadd.f32 %v3014, %v3097
      %3099 = vmatmul.bf16.gmra.mxu0 %v2777
      %v3100 = vpop.f32.mrf.mxu0
      %v3101 = vadd.f32 %v3017, %v3100
      %v3102 = vpop.f32.mrf.mxu0
      %v3103 = vadd.f32 %v3019, %v3102
      %3104 = vmatmul.bf16.gmra.mxu0 %v2784
      %v3105 = vpop.f32.mrf.mxu0
      %v3106 = vadd.f32 %v3022, %v3105
      %v3107 = vpop.f32.mrf.mxu0
      %v3108 = vadd.f32 %v3024, %v3107
      %3109 = vmatmul.bf16.gmra.mxu0 %v2791
      %v3110 = vpop.f32.mrf.mxu0
      %v3111 = vadd.f32 %v3027, %v3110
      %v3112 = vpop.f32.mrf.mxu0
      %v3113 = vadd.f32 %v3029, %v3112
      %3114 = vmatmul.bf16.gmra.mxu0 %v2798
      %v3115 = vpop.f32.mrf.mxu0
      %v3116 = vadd.f32 %v3032, %v3115
      %v3117 = vpop.f32.mrf.mxu0
      %v3118 = vadd.f32 %v3034, %v3117
      %3119 = vmatmul.bf16.gmra.mxu0 %v2805
      %v3120 = vpop.f32.mrf.mxu0
      %v3121 = vadd.f32 %v3037, %v3120
      %v3122 = vpop.f32.mrf.mxu0
      %v3123 = vadd.f32 %v3039, %v3122
      %3124 = vmatmul.bf16.gmra.mxu0 %v2812
      %v3125 = vpop.f32.mrf.mxu0
      %v3126 = vadd.f32 %v3042, %v3125
      %v3127 = vpop.f32.mrf.mxu0
      %v3128 = vadd.f32 %v3044, %v3127
      %3129 = vmatmul.bf16.gmra.mxu0 %v2819
      %v3130 = vpop.f32.mrf.mxu0
      %v3131 = vadd.f32 %v3047, %v3130
      %v3132 = vpop.f32.mrf.mxu0
      %v3133 = vadd.f32 %v3049, %v3132
      %3134 = vmatmul.bf16.gmra.mxu0 %v2826
      %v3135 = vpop.f32.mrf.mxu0
      %v3136 = vadd.f32 %v3052, %v3135
      %v3137 = vpop.f32.mrf.mxu0
      %v3138 = vadd.f32 %v3054, %v3137
      %3139 = vmatmul.bf16.gmra.mxu0 %v2833
      %v3140 = vpop.f32.mrf.mxu0
      %v3141 = vadd.f32 %v3057, %v3140
      %v3142 = vpop.f32.mrf.mxu0
      %v3143 = vadd.f32 %v3059, %v3142
      %3144 = vmatmul.bf16.gmra.mxu0 %v2840
      %v3145 = vpop.f32.mrf.mxu0
      %v3146 = vadd.f32 %v3062, %v3145
      %v3147 = vpop.f32.mrf.mxu0
      %v3148 = vadd.f32 %v3064, %v3147
      %3149 = vdwg.mxu0
      %3150 = vmatpush.bf16.msra.mxu0 %v2380
      %3151 = vmatpush.bf16.msra.mxu0 %v2379
      %3152 = vmatpush.bf16.msra.mxu0 %v2378
      %3153 = vmatpush.bf16.msra.mxu0 %v2377
      %3154 = vmatpush.bf16.msra.mxu0 %v2376
      %3155 = vmatpush.bf16.msra.mxu0 %v2375
      %3156 = vmatpush.bf16.msra.mxu0 %v2374
      %3157 = vmatpush.bf16.msra.mxu0 %v2373
      %3158 = vmatmul.bf16.gmra.mxu0 %v2743
      %v3159 = vpop.f32.mrf.mxu0
      %v3160 = vadd.f32 %v3076, %v3159
      %v3161 = vpop.f32.mrf.mxu0
      %v3162 = vadd.f32 %v3078, %v3161
      %3163 = vmatmul.bf16.gmra.mxu0 %v2750
      %v3164 = vpop.f32.mrf.mxu0
      %v3165 = vadd.f32 %v3081, %v3164
      %v3166 = vpop.f32.mrf.mxu0
      %v3167 = vadd.f32 %v3083, %v3166
      %3168 = vmatmul.bf16.gmra.mxu0 %v2757
      %v3169 = vpop.f32.mrf.mxu0
      %v3170 = vadd.f32 %v3086, %v3169
      %v3171 = vpop.f32.mrf.mxu0
      %v3172 = vadd.f32 %v3088, %v3171
      %3173 = vmatmul.bf16.gmra.mxu0 %v2764
      %v3174 = vpop.f32.mrf.mxu0
      %v3175 = vadd.f32 %v3091, %v3174
      %v3176 = vpop.f32.mrf.mxu0
      %v3177 = vadd.f32 %v3093, %v3176
      %3178 = vmatmul.bf16.gmra.mxu0 %v2771
      %v3179 = vpop.f32.mrf.mxu0
      %v3180 = vadd.f32 %v3096, %v3179
      %v3181 = vpop.f32.mrf.mxu0
      %v3182 = vadd.f32 %v3098, %v3181
      %3183 = vmatmul.bf16.gmra.mxu0 %v2778
      %v3184 = vpop.f32.mrf.mxu0
      %v3185 = vadd.f32 %v3101, %v3184
      %v3186 = vpop.f32.mrf.mxu0
      %v3187 = vadd.f32 %v3103, %v3186
      %3188 = vmatmul.bf16.gmra.mxu0 %v2785
      %v3189 = vpop.f32.mrf.mxu0
      %v3190 = vadd.f32 %v3106, %v3189
      %v3191 = vpop.f32.mrf.mxu0
      %v3192 = vadd.f32 %v3108, %v3191
      %3193 = vmatmul.bf16.gmra.mxu0 %v2792
      %v3194 = vpop.f32.mrf.mxu0
      %v3195 = vadd.f32 %v3111, %v3194
      %v3196 = vpop.f32.mrf.mxu0
      %v3197 = vadd.f32 %v3113, %v3196
      %3198 = vmatmul.bf16.gmra.mxu0 %v2799
      %v3199 = vpop.f32.mrf.mxu0
      %v3200 = vadd.f32 %v3116, %v3199
      %v3201 = vpop.f32.mrf.mxu0
      %v3202 = vadd.f32 %v3118, %v3201
      %3203 = vmatmul.bf16.gmra.mxu0 %v2806
      %v3204 = vpop.f32.mrf.mxu0
      %v3205 = vadd.f32 %v3121, %v3204
      %v3206 = vpop.f32.mrf.mxu0
      %v3207 = vadd.f32 %v3123, %v3206
      %3208 = vmatmul.bf16.gmra.mxu0 %v2813
      %v3209 = vpop.f32.mrf.mxu0
      %v3210 = vadd.f32 %v3126, %v3209
      %v3211 = vpop.f32.mrf.mxu0
      %v3212 = vadd.f32 %v3128, %v3211
      %3213 = vmatmul.bf16.gmra.mxu0 %v2820
      %v3214 = vpop.f32.mrf.mxu0
      %v3215 = vadd.f32 %v3131, %v3214
      %v3216 = vpop.f32.mrf.mxu0
      %v3217 = vadd.f32 %v3133, %v3216
      %3218 = vmatmul.bf16.gmra.mxu0 %v2827
      %v3219 = vpop.f32.mrf.mxu0
      %v3220 = vadd.f32 %v3136, %v3219
      %v3221 = vpop.f32.mrf.mxu0
      %v3222 = vadd.f32 %v3138, %v3221
      %3223 = vmatmul.bf16.gmra.mxu0 %v2834
      %v3224 = vpop.f32.mrf.mxu0
      %v3225 = vadd.f32 %v3141, %v3224
      %v3226 = vpop.f32.mrf.mxu0
      %v3227 = vadd.f32 %v3143, %v3226
      %3228 = vmatmul.bf16.gmra.mxu0 %v2841
      %v3229 = vpop.f32.mrf.mxu0
      %v3230 = vadd.f32 %v3146, %v3229
      %v3231 = vpop.f32.mrf.mxu0
      %v3232 = vadd.f32 %v3148, %v3231
      %3233 = vdwg.mxu0
      %3234 = vmatpush.bf16.msra.mxu0 %v2388
      %3235 = vmatpush.bf16.msra.mxu0 %v2387
      %3236 = vmatpush.bf16.msra.mxu0 %v2386
      %3237 = vmatpush.bf16.msra.mxu0 %v2385
      %3238 = vmatpush.bf16.msra.mxu0 %v2384
      %3239 = vmatpush.bf16.msra.mxu0 %v2383
      %3240 = vmatpush.bf16.msra.mxu0 %v2382
      %3241 = vmatpush.bf16.msra.mxu0 %v2381
      %3242 = vmatmul.bf16.gmra.mxu0 %v2744
      %v3243 = vpop.f32.mrf.mxu0
      %v3244 = vadd.f32 %v3160, %v3243
      %v3245 = vpop.f32.mrf.mxu0
      %v3246 = vadd.f32 %v3162, %v3245
      %3247 = vmatmul.bf16.gmra.mxu0 %v2751
      %v3248 = vpop.f32.mrf.mxu0
      %v3249 = vadd.f32 %v3165, %v3248
      %v3250 = vpop.f32.mrf.mxu0
      %v3251 = vadd.f32 %v3167, %v3250
      %3252 = vmatmul.bf16.gmra.mxu0 %v2758
      %v3253 = vpop.f32.mrf.mxu0
      %v3254 = vadd.f32 %v3170, %v3253
      %v3255 = vpop.f32.mrf.mxu0
      %v3256 = vadd.f32 %v3172, %v3255
      %3257 = vmatmul.bf16.gmra.mxu0 %v2765
      %v3258 = vpop.f32.mrf.mxu0
      %v3259 = vadd.f32 %v3175, %v3258
      %v3260 = vpop.f32.mrf.mxu0
      %v3261 = vadd.f32 %v3177, %v3260
      %3262 = vmatmul.bf16.gmra.mxu0 %v2772
      %v3263 = vpop.f32.mrf.mxu0
      %v3264 = vadd.f32 %v3180, %v3263
      %v3265 = vpop.f32.mrf.mxu0
      %v3266 = vadd.f32 %v3182, %v3265
      %3267 = vmatmul.bf16.gmra.mxu0 %v2779
      %v3268 = vpop.f32.mrf.mxu0
      %v3269 = vadd.f32 %v3185, %v3268
      %v3270 = vpop.f32.mrf.mxu0
      %v3271 = vadd.f32 %v3187, %v3270
      %3272 = vmatmul.bf16.gmra.mxu0 %v2786
      %v3273 = vpop.f32.mrf.mxu0
      %v3274 = vadd.f32 %v3190, %v3273
      %v3275 = vpop.f32.mrf.mxu0
      %v3276 = vadd.f32 %v3192, %v3275
      %3277 = vmatmul.bf16.gmra.mxu0 %v2793
      %v3278 = vpop.f32.mrf.mxu0
      %v3279 = vadd.f32 %v3195, %v3278
      %v3280 = vpop.f32.mrf.mxu0
      %v3281 = vadd.f32 %v3197, %v3280
      %3282 = vmatmul.bf16.gmra.mxu0 %v2800
      %v3283 = vpop.f32.mrf.mxu0
      %v3284 = vadd.f32 %v3200, %v3283
      %v3285 = vpop.f32.mrf.mxu0
      %v3286 = vadd.f32 %v3202, %v3285
      %3287 = vmatmul.bf16.gmra.mxu0 %v2807
      %v3288 = vpop.f32.mrf.mxu0
      %v3289 = vadd.f32 %v3205, %v3288
      %v3290 = vpop.f32.mrf.mxu0
      %v3291 = vadd.f32 %v3207, %v3290
      %3292 = vmatmul.bf16.gmra.mxu0 %v2814
      %v3293 = vpop.f32.mrf.mxu0
      %v3294 = vadd.f32 %v3210, %v3293
      %v3295 = vpop.f32.mrf.mxu0
      %v3296 = vadd.f32 %v3212, %v3295
      %3297 = vmatmul.bf16.gmra.mxu0 %v2821
      %v3298 = vpop.f32.mrf.mxu0
      %v3299 = vadd.f32 %v3215, %v3298
      %v3300 = vpop.f32.mrf.mxu0
      %v3301 = vadd.f32 %v3217, %v3300
      %3302 = vmatmul.bf16.gmra.mxu0 %v2828
      %v3303 = vpop.f32.mrf.mxu0
      %v3304 = vadd.f32 %v3220, %v3303
      %v3305 = vpop.f32.mrf.mxu0
      %v3306 = vadd.f32 %v3222, %v3305
      %3307 = vmatmul.bf16.gmra.mxu0 %v2835
      %v3308 = vpop.f32.mrf.mxu0
      %v3309 = vadd.f32 %v3225, %v3308
      %v3310 = vpop.f32.mrf.mxu0
      %v3311 = vadd.f32 %v3227, %v3310
      %3312 = vmatmul.bf16.gmra.mxu0 %v2842
      %v3313 = vpop.f32.mrf.mxu0
      %v3314 = vadd.f32 %v3230, %v3313
      %v3315 = vpop.f32.mrf.mxu0
      %v3316 = vadd.f32 %v3232, %v3315
      %3317 = vdwg.mxu0
      %3318 = vmatpush.bf16.msra.mxu0 %v2396
      %3319 = vmatpush.bf16.msra.mxu0 %v2395
      %3320 = vmatpush.bf16.msra.mxu0 %v2394
      %3321 = vmatpush.bf16.msra.mxu0 %v2393
      %3322 = vmatpush.bf16.msra.mxu0 %v2392
      %3323 = vmatpush.bf16.msra.mxu0 %v2391
      %3324 = vmatpush.bf16.msra.mxu0 %v2390
      %3325 = vmatpush.bf16.msra.mxu0 %v2389
      %3326 = vmatmul.bf16.gmra.mxu0 %v2745
      %v3327 = vpop.f32.mrf.mxu0
      %v3328 = vadd.f32 %v3244, %v3327
      %v3329 = vpop.f32.mrf.mxu0
      %v3330 = vadd.f32 %v3246, %v3329
      %3331 = vmatmul.bf16.gmra.mxu0 %v2752
      %v3332 = vpop.f32.mrf.mxu0
      %v3333 = vadd.f32 %v3249, %v3332
      %v3334 = vpop.f32.mrf.mxu0
      %v3335 = vadd.f32 %v3251, %v3334
      %3336 = vmatmul.bf16.gmra.mxu0 %v2759
      %v3337 = vpop.f32.mrf.mxu0
      %v3338 = vadd.f32 %v3254, %v3337
      %v3339 = vpop.f32.mrf.mxu0
      %v3340 = vadd.f32 %v3256, %v3339
      %3341 = vmatmul.bf16.gmra.mxu0 %v2766
      %v3342 = vpop.f32.mrf.mxu0
      %v3343 = vadd.f32 %v3259, %v3342
      %v3344 = vpop.f32.mrf.mxu0
      %v3345 = vadd.f32 %v3261, %v3344
      %3346 = vmatmul.bf16.gmra.mxu0 %v2773
      %v3347 = vpop.f32.mrf.mxu0
      %v3348 = vadd.f32 %v3264, %v3347
      %v3349 = vpop.f32.mrf.mxu0
      %v3350 = vadd.f32 %v3266, %v3349
      %3351 = vmatmul.bf16.gmra.mxu0 %v2780
      %v3352 = vpop.f32.mrf.mxu0
      %v3353 = vadd.f32 %v3269, %v3352
      %v3354 = vpop.f32.mrf.mxu0
      %v3355 = vadd.f32 %v3271, %v3354
      %3356 = vmatmul.bf16.gmra.mxu0 %v2787
      %v3357 = vpop.f32.mrf.mxu0
      %v3358 = vadd.f32 %v3274, %v3357
      %v3359 = vpop.f32.mrf.mxu0
      %v3360 = vadd.f32 %v3276, %v3359
      %3361 = vmatmul.bf16.gmra.mxu0 %v2794
      %v3362 = vpop.f32.mrf.mxu0
      %v3363 = vadd.f32 %v3279, %v3362
      %v3364 = vpop.f32.mrf.mxu0
      %v3365 = vadd.f32 %v3281, %v3364
      %3366 = vmatmul.bf16.gmra.mxu0 %v2801
      %v3367 = vpop.f32.mrf.mxu0
      %v3368 = vadd.f32 %v3284, %v3367
      %v3369 = vpop.f32.mrf.mxu0
      %v3370 = vadd.f32 %v3286, %v3369
      %3371 = vmatmul.bf16.gmra.mxu0 %v2808
      %v3372 = vpop.f32.mrf.mxu0
      %v3373 = vadd.f32 %v3289, %v3372
      %v3374 = vpop.f32.mrf.mxu0
      %v3375 = vadd.f32 %v3291, %v3374
      %3376 = vmatmul.bf16.gmra.mxu0 %v2815
      %v3377 = vpop.f32.mrf.mxu0
      %v3378 = vadd.f32 %v3294, %v3377
      %v3379 = vpop.f32.mrf.mxu0
      %v3380 = vadd.f32 %v3296, %v3379
      %3381 = vmatmul.bf16.gmra.mxu0 %v2822
      %v3382 = vpop.f32.mrf.mxu0
      %v3383 = vadd.f32 %v3299, %v3382
      %v3384 = vpop.f32.mrf.mxu0
      %v3385 = vadd.f32 %v3301, %v3384
      %3386 = vmatmul.bf16.gmra.mxu0 %v2829
      %v3387 = vpop.f32.mrf.mxu0
      %v3388 = vadd.f32 %v3304, %v3387
      %v3389 = vpop.f32.mrf.mxu0
      %v3390 = vadd.f32 %v3306, %v3389
      %3391 = vmatmul.bf16.gmra.mxu0 %v2836
      %v3392 = vpop.f32.mrf.mxu0
      %v3393 = vadd.f32 %v3309, %v3392
      %v3394 = vpop.f32.mrf.mxu0
      %v3395 = vadd.f32 %v3311, %v3394
      %3396 = vmatmul.bf16.gmra.mxu0 %v2843
      %v3397 = vpop.f32.mrf.mxu0
      %v3398 = vadd.f32 %v3314, %v3397
      %v3399 = vpop.f32.mrf.mxu0
      %v3400 = vadd.f32 %v3316, %v3399
      %3401 = vdwg.mxu0
      %3402 = vmatpush.bf16.msra.mxu0 %v2404
      %3403 = vmatpush.bf16.msra.mxu0 %v2403
      %3404 = vmatpush.bf16.msra.mxu0 %v2402
      %3405 = vmatpush.bf16.msra.mxu0 %v2401
      %3406 = vmatpush.bf16.msra.mxu0 %v2400
      %3407 = vmatpush.bf16.msra.mxu0 %v2399
      %3408 = vmatpush.bf16.msra.mxu0 %v2398
      %3409 = vmatpush.bf16.msra.mxu0 %v2397
      %3410 = vmatmul.bf16.gmra.mxu0 %v2746
      %v3411 = vpop.f32.mrf.mxu0
      %v3412 = vadd.f32 %v3328, %v3411
      %v3413 = vpop.f32.mrf.mxu0
      %v3414 = vadd.f32 %v3330, %v3413
      %3415 = vmatmul.bf16.gmra.mxu0 %v2753
      %v3416 = vpop.f32.mrf.mxu0
      %v3417 = vadd.f32 %v3333, %v3416
      %v3418 = vpop.f32.mrf.mxu0
      %v3419 = vadd.f32 %v3335, %v3418
      %3420 = vmatmul.bf16.gmra.mxu0 %v2760
      %v3421 = vpop.f32.mrf.mxu0
      %v3422 = vadd.f32 %v3338, %v3421
      %v3423 = vpop.f32.mrf.mxu0
      %v3424 = vadd.f32 %v3340, %v3423
      %3425 = vmatmul.bf16.gmra.mxu0 %v2767
      %v3426 = vpop.f32.mrf.mxu0
      %v3427 = vadd.f32 %v3343, %v3426
      %v3428 = vpop.f32.mrf.mxu0
      %v3429 = vadd.f32 %v3345, %v3428
      %3430 = vmatmul.bf16.gmra.mxu0 %v2774
      %v3431 = vpop.f32.mrf.mxu0
      %v3432 = vadd.f32 %v3348, %v3431
      %v3433 = vpop.f32.mrf.mxu0
      %v3434 = vadd.f32 %v3350, %v3433
      %3435 = vmatmul.bf16.gmra.mxu0 %v2781
      %v3436 = vpop.f32.mrf.mxu0
      %v3437 = vadd.f32 %v3353, %v3436
      %v3438 = vpop.f32.mrf.mxu0
      %v3439 = vadd.f32 %v3355, %v3438
      %3440 = vmatmul.bf16.gmra.mxu0 %v2788
      %v3441 = vpop.f32.mrf.mxu0
      %v3442 = vadd.f32 %v3358, %v3441
      %v3443 = vpop.f32.mrf.mxu0
      %v3444 = vadd.f32 %v3360, %v3443
      %3445 = vmatmul.bf16.gmra.mxu0 %v2795
      %v3446 = vpop.f32.mrf.mxu0
      %v3447 = vadd.f32 %v3363, %v3446
      %v3448 = vpop.f32.mrf.mxu0
      %v3449 = vadd.f32 %v3365, %v3448
      %3450 = vmatmul.bf16.gmra.mxu0 %v2802
      %v3451 = vpop.f32.mrf.mxu0
      %v3452 = vadd.f32 %v3368, %v3451
      %v3453 = vpop.f32.mrf.mxu0
      %v3454 = vadd.f32 %v3370, %v3453
      %3455 = vmatmul.bf16.gmra.mxu0 %v2809
      %v3456 = vpop.f32.mrf.mxu0
      %v3457 = vadd.f32 %v3373, %v3456
      %v3458 = vpop.f32.mrf.mxu0
      %v3459 = vadd.f32 %v3375, %v3458
      %3460 = vmatmul.bf16.gmra.mxu0 %v2816
      %v3461 = vpop.f32.mrf.mxu0
      %v3462 = vadd.f32 %v3378, %v3461
      %v3463 = vpop.f32.mrf.mxu0
      %v3464 = vadd.f32 %v3380, %v3463
      %3465 = vmatmul.bf16.gmra.mxu0 %v2823
      %v3466 = vpop.f32.mrf.mxu0
      %v3467 = vadd.f32 %v3383, %v3466
      %v3468 = vpop.f32.mrf.mxu0
      %v3469 = vadd.f32 %v3385, %v3468
      %3470 = vmatmul.bf16.gmra.mxu0 %v2830
      %v3471 = vpop.f32.mrf.mxu0
      %v3472 = vadd.f32 %v3388, %v3471
      %v3473 = vpop.f32.mrf.mxu0
      %v3474 = vadd.f32 %v3390, %v3473
      %3475 = vmatmul.bf16.gmra.mxu0 %v2837
      %v3476 = vpop.f32.mrf.mxu0
      %v3477 = vadd.f32 %v3393, %v3476
      %v3478 = vpop.f32.mrf.mxu0
      %v3479 = vadd.f32 %v3395, %v3478
      %3480 = vmatmul.bf16.gmra.mxu0 %v2844
      %v3481 = vpop.f32.mrf.mxu0
      %v3482 = vadd.f32 %v3398, %v3481
      %v3483 = vpop.f32.mrf.mxu0
      %v3484 = vadd.f32 %v3400, %v3483
      %3485 = vdwg.mxu0
      %3486 = vmatpush.bf16.msra.mxu0 0
      %3487 = vmatpush.bf16.msra.mxu0 0
      %3488 = vmatpush.bf16.msra.mxu0 %v2410
      %3489 = vmatpush.bf16.msra.mxu0 %v2409
      %3490 = vmatpush.bf16.msra.mxu0 %v2408
      %3491 = vmatpush.bf16.msra.mxu0 %v2407
      %3492 = vmatpush.bf16.msra.mxu0 %v2406
      %3493 = vmatpush.bf16.msra.mxu0 %v2405
      %3494 = vmatmul.bf16.gmra.mxu0 %v2938
      %v3495 = vpop.f32.mrf.mxu0
      %v3496 = vadd.f32 %v3412, %v3495
      %v3497 = vpop.f32.mrf.mxu0
      %v3498 = vadd.f32 %v3414, %v3497
      %3499 = vmatmul.bf16.gmra.mxu0 %v2941
      %v3500 = vpop.f32.mrf.mxu0
      %v3501 = vadd.f32 %v3417, %v3500
      %v3502 = vpop.f32.mrf.mxu0
      %v3503 = vadd.f32 %v3419, %v3502
      %3504 = vmatmul.bf16.gmra.mxu0 %v2944
      %v3505 = vpop.f32.mrf.mxu0
      %v3506 = vadd.f32 %v3422, %v3505
      %v3507 = vpop.f32.mrf.mxu0
      %v3508 = vadd.f32 %v3424, %v3507
      %3509 = vmatmul.bf16.gmra.mxu0 %v2947
      %v3510 = vpop.f32.mrf.mxu0
      %v3511 = vadd.f32 %v3427, %v3510
      %v3512 = vpop.f32.mrf.mxu0
      %v3513 = vadd.f32 %v3429, %v3512
      %3514 = vmatmul.bf16.gmra.mxu0 %v2950
      %v3515 = vpop.f32.mrf.mxu0
      %v3516 = vadd.f32 %v3432, %v3515
      %v3517 = vpop.f32.mrf.mxu0
      %v3518 = vadd.f32 %v3434, %v3517
      %3519 = vmatmul.bf16.gmra.mxu0 %v2953
      %v3520 = vpop.f32.mrf.mxu0
      %v3521 = vadd.f32 %v3437, %v3520
      %v3522 = vpop.f32.mrf.mxu0
      %v3523 = vadd.f32 %v3439, %v3522
      %3524 = vmatmul.bf16.gmra.mxu0 %v2956
      %v3525 = vpop.f32.mrf.mxu0
      %v3526 = vadd.f32 %v3442, %v3525
      %v3527 = vpop.f32.mrf.mxu0
      %v3528 = vadd.f32 %v3444, %v3527
      %3529 = vmatmul.bf16.gmra.mxu0 %v2959
      %v3530 = vpop.f32.mrf.mxu0
      %v3531 = vadd.f32 %v3447, %v3530
      %v3532 = vpop.f32.mrf.mxu0
      %v3533 = vadd.f32 %v3449, %v3532
      %3534 = vmatmul.bf16.gmra.mxu0 %v2962
      %v3535 = vpop.f32.mrf.mxu0
      %v3536 = vadd.f32 %v3452, %v3535
      %v3537 = vpop.f32.mrf.mxu0
      %v3538 = vadd.f32 %v3454, %v3537
      %3539 = vmatmul.bf16.gmra.mxu0 %v2965
      %v3540 = vpop.f32.mrf.mxu0
      %v3541 = vadd.f32 %v3457, %v3540
      %v3542 = vpop.f32.mrf.mxu0
      %v3543 = vadd.f32 %v3459, %v3542
      %3544 = vmatmul.bf16.gmra.mxu0 %v2968
      %v3545 = vpop.f32.mrf.mxu0
      %v3546 = vadd.f32 %v3462, %v3545
      %v3547 = vpop.f32.mrf.mxu0
      %v3548 = vadd.f32 %v3464, %v3547
      %3549 = vmatmul.bf16.gmra.mxu0 %v2971
      %v3550 = vpop.f32.mrf.mxu0
      %v3551 = vadd.f32 %v3467, %v3550
      %v3552 = vpop.f32.mrf.mxu0
      %v3553 = vadd.f32 %v3469, %v3552
      %3554 = vmatmul.bf16.gmra.mxu0 %v2974
      %v3555 = vpop.f32.mrf.mxu0
      %v3556 = vadd.f32 %v3472, %v3555
      %v3557 = vpop.f32.mrf.mxu0
      %v3558 = vadd.f32 %v3474, %v3557
      %3559 = vmatmul.bf16.gmra.mxu0 %v2977
      %v3560 = vpop.f32.mrf.mxu0
      %v3561 = vadd.f32 %v3477, %v3560
      %v3562 = vpop.f32.mrf.mxu0
      %v3563 = vadd.f32 %v3479, %v3562
      %3564 = vmatmul.bf16.gmra.mxu0 %v2980
      %v3565 = vpop.f32.mrf.mxu0
      %v3566 = vadd.f32 %v3482, %v3565
      %v3567 = vpop.f32.mrf.mxu0
      %v3568 = vadd.f32 %v3484, %v3567
      %3569 = vdwg.mxu0
      %v3570 = vpack.c.bf16 %v3498, %v3496
      %v3571 = vpack.c.bf16 %v3503, %v3501
      %v3572 = vpack.c.bf16 %v3508, %v3506
      %v3573 = vpack.c.bf16 %v3513, %v3511
      %v3574 = vpack.c.bf16 %v3518, %v3516
      %v3575 = vpack.c.bf16 %v3523, %v3521
      %v3576 = vpack.c.bf16 %v3528, %v3526
      %v3577 = vpack.c.bf16 %v3533, %v3531
      %v3578 = vpack.c.bf16 %v3538, %v3536
      %v3579 = vpack.c.bf16 %v3543, %v3541
      %v3580 = vpack.c.bf16 %v3548, %v3546
      %v3581 = vpack.c.bf16 %v3553, %v3551
      %v3582 = vpack.c.bf16 %v3556, %v3556
      %v3583 = vld [vmem:[%s5] sm:$0xff]
      %v3584 = vld [vmem:[%s5 + $0x8] sm:$0xff]
      %v3585 = vld [vmem:[%s5 + $0x10] sm:$0xff]
      %v3586 = vld [vmem:[%s5 + $0x18] sm:$0xff]
      %v3587 = vld [vmem:[%s5 + $0x20] sm:$0xff]
      %v3588 = vld [vmem:[%s5 + $0x28] sm:$0xff]
      %v3589 = vld [vmem:[%s5 + $0x30] sm:$0xff]
      %v3590 = vld [vmem:[%s5 + $0x38] sm:$0xff]
      %v3591 = vld [vmem:[%s5 + $0x40] sm:$0xff]
      %v3592 = vld [vmem:[%s5 + $0x48] sm:$0xff]
      %v3593 = vld [vmem:[%s5 + $0x50] sm:$0xff]
      %v3594 = vld [vmem:[%s5 + $0x58] sm:$0xff]
      %v3595 = vld [vmem:[%s5 + $0x60] sm:$0xff]
      %v3596 = vld [vmem:[%s5 + $0x68] sm:$0xff]
      %v3597 = vld [vmem:[%s5 + $0x70] sm:$0xff]
      %v3598 = vld [vmem:[%s5 + $0x78] sm:$0xff]
      %v3599 = vpack.c.bf16 %v3558, %v3556
      %s3600 = scalar_lea.vmem %s5, 128
      %v3601 = vld [vmem:[%s3600] sm:$0xff]
      %v3602 = vld [vmem:[%s3600 + $0x8] sm:$0xff]
      %v3603 = vld [vmem:[%s3600 + $0x10] sm:$0xff]
      %v3604 = vld [vmem:[%s3600 + $0x18] sm:$0xff]
      %v3605 = vld [vmem:[%s3600 + $0x20] sm:$0xff]
      %v3606 = vld [vmem:[%s3600 + $0x28] sm:$0xff]
      %v3607 = vld [vmem:[%s3600 + $0x30] sm:$0xff]
      %v3608 = vld [vmem:[%s3600 + $0x38] sm:$0xff]
      %v3609 = vld [vmem:[%s3600 + $0x40] sm:$0xff]
      %v3610 = vld [vmem:[%s3600 + $0x48] sm:$0xff]
      %v3611 = vld [vmem:[%s3600 + $0x50] sm:$0xff]
      %v3612 = vld [vmem:[%s3600 + $0x58] sm:$0xff]
      %v3613 = vld [vmem:[%s3600 + $0x60] sm:$0xff]
      %v3614 = vld [vmem:[%s3600 + $0x68] sm:$0xff]
      %v3615 = vld [vmem:[%s3600 + $0x70] sm:$0xff]
      %v3616 = vld [vmem:[%s3600 + $0x78] sm:$0xff]
      %vm3617 = vsmask.f32 7424
      %v3619 = vshrl.u32 %v3570, 16
      %v3621 = vshll.u32 %v3570, 16
      %v3623 = vrot.slane %v3621, 1
      %v3624 = vor.u32 %v3619, %v3623
      %v3626 = vshll.u32 %v3571, 16
      %v3628 = vrot.slane %v3626, 1
      %v3629 = vsel %vm3617, %v3624, %v3628
      %v3630 = vshrl.u32 %v3571, 16
      %v3632 = vor.u32 %v3630, %v3628
      %v3634 = vshll.u32 %v3572, 16
      %v3636 = vrot.slane %v3634, 1
      %v3637 = vsel %vm3617, %v3632, %v3636
      %v3638 = vshrl.u32 %v3572, 16
      %v3640 = vor.u32 %v3638, %v3636
      %v3642 = vshll.u32 %v3573, 16
      %v3644 = vrot.slane %v3642, 1
      %v3645 = vsel %vm3617, %v3640, %v3644
      %v3646 = vshrl.u32 %v3573, 16
      %v3648 = vor.u32 %v3646, %v3644
      %v3650 = vshll.u32 %v3574, 16
      %v3652 = vrot.slane %v3650, 1
      %v3653 = vsel %vm3617, %v3648, %v3652
      %v3654 = vshrl.u32 %v3574, 16
      %v3656 = vor.u32 %v3654, %v3652
      %v3658 = vshll.u32 %v3575, 16
      %v3660 = vrot.slane %v3658, 1
      %v3661 = vsel %vm3617, %v3656, %v3660
      %v3662 = vshrl.u32 %v3575, 16
      %v3664 = vor.u32 %v3662, %v3660
      %v3666 = vshll.u32 %v3576, 16
      %v3668 = vrot.slane %v3666, 1
      %v3669 = vsel %vm3617, %v3664, %v3668
      %v3670 = vshrl.u32 %v3576, 16
      %v3672 = vor.u32 %v3670, %v3668
      %v3674 = vshll.u32 %v3577, 16
      %v3676 = vrot.slane %v3674, 1
      %v3677 = vsel %vm3617, %v3672, %v3676
      %v3678 = vshrl.u32 %v3577, 16
      %v3680 = vor.u32 %v3678, %v3676
      %v3682 = vshll.u32 %v3578, 16
      %v3684 = vrot.slane %v3682, 1
      %v3685 = vsel %vm3617, %v3680, %v3684
      %v3686 = vshrl.u32 %v3578, 16
      %v3688 = vor.u32 %v3686, %v3684
      %v3690 = vshll.u32 %v3579, 16
      %v3692 = vrot.slane %v3690, 1
      %v3693 = vsel %vm3617, %v3688, %v3692
      %v3694 = vshrl.u32 %v3579, 16
      %v3696 = vor.u32 %v3694, %v3692
      %v3698 = vshll.u32 %v3580, 16
      %v3700 = vrot.slane %v3698, 1
      %v3701 = vsel %vm3617, %v3696, %v3700
      %v3702 = vshrl.u32 %v3580, 16
      %v3704 = vor.u32 %v3702, %v3700
      %v3706 = vshll.u32 %v3581, 16
      %v3708 = vrot.slane %v3706, 1
      %v3709 = vsel %vm3617, %v3704, %v3708
      %v3710 = vshrl.u32 %v3581, 16
      %v3712 = vor.u32 %v3710, %v3708
      %v3714 = vshll.u32 %v3599, 16
      %v3716 = vrot.slane %v3714, 1
      %v3717 = vsel %vm3617, %v3712, %v3716
      %v3718 = vshrl.u32 %v3599, 16
      %v3720 = vor.u32 %v3718, %v3716
      %v3750 = vunpack.c.l.b16 %v3601
      %v3751 = vunpack.c.h.b16 %v3601
      %v3752 = vunpack.c.l.b16 %v3602
      %v3753 = vunpack.c.h.b16 %v3602
      %v3754 = vunpack.c.l.b16 %v3603
      %v3755 = vunpack.c.h.b16 %v3603
      %v3756 = vunpack.c.l.b16 %v3604
      %v3757 = vunpack.c.h.b16 %v3604
      %v3758 = vunpack.c.l.b16 %v3605
      %v3759 = vunpack.c.h.b16 %v3605
      %v3760 = vunpack.c.l.b16 %v3606
      %v3761 = vunpack.c.h.b16 %v3606
      %v3762 = vunpack.c.l.b16 %v3607
      %v3763 = vunpack.c.h.b16 %v3607
      %v3764 = vunpack.c.l.b16 %v3608
      %v3765 = vunpack.c.h.b16 %v3608
      %v3766 = vunpack.c.l.b16 %v3609
      %v3767 = vunpack.c.h.b16 %v3609
      %v3768 = vunpack.c.l.b16 %v3610
      %v3769 = vunpack.c.h.b16 %v3610
      %v3770 = vunpack.c.l.b16 %v3611
      %v3771 = vunpack.c.h.b16 %v3611
      %v3772 = vunpack.c.l.b16 %v3612
      %v3773 = vunpack.c.h.b16 %v3612
      %v3774 = vunpack.c.l.b16 %v3613
      %v3775 = vunpack.c.h.b16 %v3613
      %v3776 = vunpack.c.l.b16 %v3614
      %v3777 = vunpack.c.h.b16 %v3614
      %v3778 = vunpack.c.l.b16 %v3615
      %v3779 = vunpack.c.h.b16 %v3615
      %v3780 = vunpack.c.l.b16 %v3616
      %v3781 = vunpack.c.h.b16 %v3616
      %v3782 = vpack.c.b16 %v3752, %v3750
      %v3783 = vpack.c.b16 %v3753, %v3751
      %v3784 = vpack.c.b16 %v3756, %v3754
      %v3785 = vpack.c.b16 %v3757, %v3755
      %v3786 = vpack.c.b16 %v3760, %v3758
      %v3787 = vpack.c.b16 %v3761, %v3759
      %v3788 = vpack.c.b16 %v3764, %v3762
      %v3789 = vpack.c.b16 %v3765, %v3763
      %v3790 = vpack.c.b16 %v3768, %v3766
      %v3791 = vpack.c.b16 %v3769, %v3767
      %v3792 = vpack.c.b16 %v3772, %v3770
      %v3793 = vpack.c.b16 %v3773, %v3771
      %v3794 = vpack.c.b16 %v3776, %v3774
      %v3795 = vpack.c.b16 %v3777, %v3775
      %v3796 = vpack.c.b16 %v3780, %v3778
      %v3797 = vpack.c.b16 %v3781, %v3779
      %3814 = vmatpush.bf16.msra.mxu0 %v3796
      %3815 = vmatpush.bf16.msra.mxu0 %v3794
      %3816 = vmatpush.bf16.msra.mxu0 %v3792
      %3817 = vmatpush.bf16.msra.mxu0 %v3790
      %3818 = vmatpush.bf16.msra.mxu0 %v3788
      %3819 = vmatpush.bf16.msra.mxu0 %v3786
      %3820 = vmatpush.bf16.msra.mxu0 %v3784
      %3821 = vmatpush.bf16.msra.mxu0 %v3782
      %3822 = vmatmul.bf16.gmra.mxu0 %v3629
      %v3823 = vpop.f32.mrf.mxu0
      %v3824 = vadd.f32 0.0, %v3823
      %v3825 = vpop.f32.mrf.mxu0
      %v3826 = vadd.f32 0.0, %v3825
      %3827 = vmatmul.bf16.gmra.mxu0 %v3637
      %v3828 = vpop.f32.mrf.mxu0
      %v3829 = vadd.f32 0.0, %v3828
      %v3830 = vpop.f32.mrf.mxu0
      %v3831 = vadd.f32 0.0, %v3830
      %3832 = vmatmul.bf16.gmra.mxu0 %v3645
      %v3833 = vpop.f32.mrf.mxu0
      %v3834 = vadd.f32 0.0, %v3833
      %v3835 = vpop.f32.mrf.mxu0
      %v3836 = vadd.f32 0.0, %v3835
      %3837 = vmatmul.bf16.gmra.mxu0 %v3653
      %v3838 = vpop.f32.mrf.mxu0
      %v3839 = vadd.f32 0.0, %v3838
      %v3840 = vpop.f32.mrf.mxu0
      %v3841 = vadd.f32 0.0, %v3840
      %3842 = vmatmul.bf16.gmra.mxu0 %v3661
      %v3843 = vpop.f32.mrf.mxu0
      %v3844 = vadd.f32 0.0, %v3843
      %v3845 = vpop.f32.mrf.mxu0
      %v3846 = vadd.f32 0.0, %v3845
      %3847 = vmatmul.bf16.gmra.mxu0 %v3669
      %v3848 = vpop.f32.mrf.mxu0
      %v3849 = vadd.f32 0.0, %v3848
      %v3850 = vpop.f32.mrf.mxu0
      %v3851 = vadd.f32 0.0, %v3850
      %3852 = vmatmul.bf16.gmra.mxu0 %v3677
      %v3853 = vpop.f32.mrf.mxu0
      %v3854 = vadd.f32 0.0, %v3853
      %v3855 = vpop.f32.mrf.mxu0
      %v3856 = vadd.f32 0.0, %v3855
      %3857 = vmatmul.bf16.gmra.mxu0 %v3685
      %v3858 = vpop.f32.mrf.mxu0
      %v3859 = vadd.f32 0.0, %v3858
      %v3860 = vpop.f32.mrf.mxu0
      %v3861 = vadd.f32 0.0, %v3860
      %3862 = vmatmul.bf16.gmra.mxu0 %v3693
      %v3863 = vpop.f32.mrf.mxu0
      %v3864 = vadd.f32 0.0, %v3863
      %v3865 = vpop.f32.mrf.mxu0
      %v3866 = vadd.f32 0.0, %v3865
      %3867 = vmatmul.bf16.gmra.mxu0 %v3701
      %v3868 = vpop.f32.mrf.mxu0
      %v3869 = vadd.f32 0.0, %v3868
      %v3870 = vpop.f32.mrf.mxu0
      %v3871 = vadd.f32 0.0, %v3870
      %3872 = vmatmul.bf16.gmra.mxu0 %v3709
      %v3873 = vpop.f32.mrf.mxu0
      %v3874 = vadd.f32 0.0, %v3873
      %v3875 = vpop.f32.mrf.mxu0
      %v3876 = vadd.f32 0.0, %v3875
      %3877 = vmatmul.bf16.gmra.mxu0 %v3717
      %v3878 = vpop.f32.mrf.mxu0
      %v3879 = vadd.f32 0.0, %v3878
      %v3880 = vpop.f32.mrf.mxu0
      %v3881 = vadd.f32 0.0, %v3880
      %3882 = vmatmul.bf16.gmra.mxu0 %v3720
      %v3883 = vpop.f32.mrf.mxu0
      %v3884 = vadd.f32 0.0, %v3883
      %v3885 = vpop.f32.mrf.mxu0
      %3886 = vdwg.mxu0
      %3887 = vmatpush.bf16.msra.mxu0 %v3797
      %3888 = vmatpush.bf16.msra.mxu0 %v3795
      %3889 = vmatpush.bf16.msra.mxu0 %v3793
      %3890 = vmatpush.bf16.msra.mxu0 %v3791
      %3891 = vmatpush.bf16.msra.mxu0 %v3789
      %3892 = vmatpush.bf16.msra.mxu0 %v3787
      %3893 = vmatpush.bf16.msra.mxu0 %v3785
      %3894 = vmatpush.bf16.msra.mxu0 %v3783
      %3895 = vmatmul.bf16.gmra.mxu0 %v3629
      %v3896 = vpop.f32.mrf.mxu0
      %v3897 = vadd.f32 0.0, %v3896
      %v3898 = vpop.f32.mrf.mxu0
      %v3899 = vadd.f32 0.0, %v3898
      %3900 = vmatmul.bf16.gmra.mxu0 %v3637
      %v3901 = vpop.f32.mrf.mxu0
      %v3902 = vadd.f32 0.0, %v3901
      %v3903 = vpop.f32.mrf.mxu0
      %v3904 = vadd.f32 0.0, %v3903
      %3905 = vmatmul.bf16.gmra.mxu0 %v3645
      %v3906 = vpop.f32.mrf.mxu0
      %v3907 = vadd.f32 0.0, %v3906
      %v3908 = vpop.f32.mrf.mxu0
      %v3909 = vadd.f32 0.0, %v3908
      %3910 = vmatmul.bf16.gmra.mxu0 %v3653
      %v3911 = vpop.f32.mrf.mxu0
      %v3912 = vadd.f32 0.0, %v3911
      %v3913 = vpop.f32.mrf.mxu0
      %v3914 = vadd.f32 0.0, %v3913
      %3915 = vmatmul.bf16.gmra.mxu0 %v3661
      %v3916 = vpop.f32.mrf.mxu0
      %v3917 = vadd.f32 0.0, %v3916
      %v3918 = vpop.f32.mrf.mxu0
      %v3919 = vadd.f32 0.0, %v3918
      %3920 = vmatmul.bf16.gmra.mxu0 %v3669
      %v3921 = vpop.f32.mrf.mxu0
      %v3922 = vadd.f32 0.0, %v3921
      %v3923 = vpop.f32.mrf.mxu0
      %v3924 = vadd.f32 0.0, %v3923
      %3925 = vmatmul.bf16.gmra.mxu0 %v3677
      %v3926 = vpop.f32.mrf.mxu0
      %v3927 = vadd.f32 0.0, %v3926
      %v3928 = vpop.f32.mrf.mxu0
      %v3929 = vadd.f32 0.0, %v3928
      %3930 = vmatmul.bf16.gmra.mxu0 %v3685
      %v3931 = vpop.f32.mrf.mxu0
      %v3932 = vadd.f32 0.0, %v3931
      %v3933 = vpop.f32.mrf.mxu0
      %v3934 = vadd.f32 0.0, %v3933
      %3935 = vmatmul.bf16.gmra.mxu0 %v3693
      %v3936 = vpop.f32.mrf.mxu0
      %v3937 = vadd.f32 0.0, %v3936
      %v3938 = vpop.f32.mrf.mxu0
      %v3939 = vadd.f32 0.0, %v3938
      %3940 = vmatmul.bf16.gmra.mxu0 %v3701
      %v3941 = vpop.f32.mrf.mxu0
      %v3942 = vadd.f32 0.0, %v3941
      %v3943 = vpop.f32.mrf.mxu0
      %v3944 = vadd.f32 0.0, %v3943
      %3945 = vmatmul.bf16.gmra.mxu0 %v3709
      %v3946 = vpop.f32.mrf.mxu0
      %v3947 = vadd.f32 0.0, %v3946
      %v3948 = vpop.f32.mrf.mxu0
      %v3949 = vadd.f32 0.0, %v3948
      %3950 = vmatmul.bf16.gmra.mxu0 %v3717
      %v3951 = vpop.f32.mrf.mxu0
      %v3952 = vadd.f32 0.0, %v3951
      %v3953 = vpop.f32.mrf.mxu0
      %v3954 = vadd.f32 0.0, %v3953
      %3955 = vmatmul.bf16.gmra.mxu0 %v3720
      %v3956 = vpop.f32.mrf.mxu0
      %v3957 = vadd.f32 0.0, %v3956
      %v3958 = vpop.f32.mrf.mxu0
      %3959 = vdwg.mxu0
      %v3976 = vunpack.c.l.b16 %v3583
      %v3977 = vunpack.c.h.b16 %v3583
      %v3978 = vunpack.c.l.b16 %v3584
      %v3979 = vunpack.c.h.b16 %v3584
      %v3980 = vunpack.c.l.b16 %v3585
      %v3981 = vunpack.c.h.b16 %v3585
      %v3982 = vunpack.c.l.b16 %v3586
      %v3983 = vunpack.c.h.b16 %v3586
      %v3984 = vunpack.c.l.b16 %v3587
      %v3985 = vunpack.c.h.b16 %v3587
      %v3986 = vunpack.c.l.b16 %v3588
      %v3987 = vunpack.c.h.b16 %v3588
      %v3988 = vunpack.c.l.b16 %v3589
      %v3989 = vunpack.c.h.b16 %v3589
      %v3990 = vunpack.c.l.b16 %v3590
      %v3991 = vunpack.c.h.b16 %v3590
      %v3992 = vunpack.c.l.b16 %v3591
      %v3993 = vunpack.c.h.b16 %v3591
      %v3994 = vunpack.c.l.b16 %v3592
      %v3995 = vunpack.c.h.b16 %v3592
      %v3996 = vunpack.c.l.b16 %v3593
      %v3997 = vunpack.c.h.b16 %v3593
      %v3998 = vunpack.c.l.b16 %v3594
      %v3999 = vunpack.c.h.b16 %v3594
      %v4000 = vunpack.c.l.b16 %v3595
      %v4001 = vunpack.c.h.b16 %v3595
      %v4002 = vunpack.c.l.b16 %v3596
      %v4003 = vunpack.c.h.b16 %v3596
      %v4004 = vunpack.c.l.b16 %v3597
      %v4005 = vunpack.c.h.b16 %v3597
      %v4006 = vunpack.c.l.b16 %v3598
      %v4007 = vunpack.c.h.b16 %v3598
      %v4008 = vpack.c.b16 %v3978, %v3976
      %v4009 = vpack.c.b16 %v3979, %v3977
      %v4010 = vpack.c.b16 %v3982, %v3980
      %v4011 = vpack.c.b16 %v3983, %v3981
      %v4012 = vpack.c.b16 %v3986, %v3984
      %v4013 = vpack.c.b16 %v3987, %v3985
      %v4014 = vpack.c.b16 %v3990, %v3988
      %v4015 = vpack.c.b16 %v3991, %v3989
      %v4016 = vpack.c.b16 %v3994, %v3992
      %v4017 = vpack.c.b16 %v3995, %v3993
      %v4018 = vpack.c.b16 %v3998, %v3996
      %v4019 = vpack.c.b16 %v3999, %v3997
      %v4020 = vpack.c.b16 %v4002, %v4000
      %v4021 = vpack.c.b16 %v4003, %v4001
      %v4022 = vpack.c.b16 %v4006, %v4004
      %v4023 = vpack.c.b16 %v4007, %v4005
      %4040 = vmatpush.bf16.msra.mxu0 %v4022
      %4041 = vmatpush.bf16.msra.mxu0 %v4020
      %4042 = vmatpush.bf16.msra.mxu0 %v4018
      %4043 = vmatpush.bf16.msra.mxu0 %v4016
      %4044 = vmatpush.bf16.msra.mxu0 %v4014
      %4045 = vmatpush.bf16.msra.mxu0 %v4012
      %4046 = vmatpush.bf16.msra.mxu0 %v4010
      %4047 = vmatpush.bf16.msra.mxu0 %v4008
      %4048 = vmatmul.bf16.gmra.mxu0 %v3570
      %v4049 = vpop.f32.mrf.mxu0
      %v4050 = vadd.f32 %v3824, %v4049
      %v4051 = vpop.f32.mrf.mxu0
      %v4052 = vadd.f32 %v3826, %v4051
      %4053 = vmatmul.bf16.gmra.mxu0 %v3571
      %v4054 = vpop.f32.mrf.mxu0
      %v4055 = vadd.f32 %v3829, %v4054
      %v4056 = vpop.f32.mrf.mxu0
      %v4057 = vadd.f32 %v3831, %v4056
      %4058 = vmatmul.bf16.gmra.mxu0 %v3572
      %v4059 = vpop.f32.mrf.mxu0
      %v4060 = vadd.f32 %v3834, %v4059
      %v4061 = vpop.f32.mrf.mxu0
      %v4062 = vadd.f32 %v3836, %v4061
      %4063 = vmatmul.bf16.gmra.mxu0 %v3573
      %v4064 = vpop.f32.mrf.mxu0
      %v4065 = vadd.f32 %v3839, %v4064
      %v4066 = vpop.f32.mrf.mxu0
      %v4067 = vadd.f32 %v3841, %v4066
      %4068 = vmatmul.bf16.gmra.mxu0 %v3574
      %v4069 = vpop.f32.mrf.mxu0
      %v4070 = vadd.f32 %v3844, %v4069
      %v4071 = vpop.f32.mrf.mxu0
      %v4072 = vadd.f32 %v3846, %v4071
      %4073 = vmatmul.bf16.gmra.mxu0 %v3575
      %v4074 = vpop.f32.mrf.mxu0
      %v4075 = vadd.f32 %v3849, %v4074
      %v4076 = vpop.f32.mrf.mxu0
      %v4077 = vadd.f32 %v3851, %v4076
      %4078 = vmatmul.bf16.gmra.mxu0 %v3576
      %v4079 = vpop.f32.mrf.mxu0
      %v4080 = vadd.f32 %v3854, %v4079
      %v4081 = vpop.f32.mrf.mxu0
      %v4082 = vadd.f32 %v3856, %v4081
      %4083 = vmatmul.bf16.gmra.mxu0 %v3577
      %v4084 = vpop.f32.mrf.mxu0
      %v4085 = vadd.f32 %v3859, %v4084
      %v4086 = vpop.f32.mrf.mxu0
      %v4087 = vadd.f32 %v3861, %v4086
      %4088 = vmatmul.bf16.gmra.mxu0 %v3578
      %v4089 = vpop.f32.mrf.mxu0
      %v4090 = vadd.f32 %v3864, %v4089
      %v4091 = vpop.f32.mrf.mxu0
      %v4092 = vadd.f32 %v3866, %v4091
      %4093 = vmatmul.bf16.gmra.mxu0 %v3579
      %v4094 = vpop.f32.mrf.mxu0
      %v4095 = vadd.f32 %v3869, %v4094
      %v4096 = vpop.f32.mrf.mxu0
      %v4097 = vadd.f32 %v3871, %v4096
      %4098 = vmatmul.bf16.gmra.mxu0 %v3580
      %v4099 = vpop.f32.mrf.mxu0
      %v4100 = vadd.f32 %v3874, %v4099
      %v4101 = vpop.f32.mrf.mxu0
      %v4102 = vadd.f32 %v3876, %v4101
      %4103 = vmatmul.bf16.gmra.mxu0 %v3581
      %v4104 = vpop.f32.mrf.mxu0
      %v4105 = vadd.f32 %v3879, %v4104
      %v4106 = vpop.f32.mrf.mxu0
      %v4107 = vadd.f32 %v3881, %v4106
      %4108 = vmatmul.bf16.gmra.mxu0 %v3582
      %v4109 = vpop.f32.mrf.mxu0
      %v4110 = vadd.f32 %v3884, %v4109
      %v4111 = vpop.f32.mrf.mxu0
      %4112 = vdwg.mxu0
      %4113 = vmatpush.bf16.msra.mxu0 %v4023
      %4114 = vmatpush.bf16.msra.mxu0 %v4021
      %4115 = vmatpush.bf16.msra.mxu0 %v4019
      %4116 = vmatpush.bf16.msra.mxu0 %v4017
      %4117 = vmatpush.bf16.msra.mxu0 %v4015
      %4118 = vmatpush.bf16.msra.mxu0 %v4013
      %4119 = vmatpush.bf16.msra.mxu0 %v4011
      %4120 = vmatpush.bf16.msra.mxu0 %v4009
      %4121 = vmatmul.bf16.gmra.mxu0 %v3570
      %v4122 = vpop.f32.mrf.mxu0
      %v4123 = vadd.f32 %v3897, %v4122
      %v4124 = vpop.f32.mrf.mxu0
      %v4125 = vadd.f32 %v3899, %v4124
      %4126 = vmatmul.bf16.gmra.mxu0 %v3571
      %v4127 = vpop.f32.mrf.mxu0
      %v4128 = vadd.f32 %v3902, %v4127
      %v4129 = vpop.f32.mrf.mxu0
      %v4130 = vadd.f32 %v3904, %v4129
      %4131 = vmatmul.bf16.gmra.mxu0 %v3572
      %v4132 = vpop.f32.mrf.mxu0
      %v4133 = vadd.f32 %v3907, %v4132
      %v4134 = vpop.f32.mrf.mxu0
      %v4135 = vadd.f32 %v3909, %v4134
      %4136 = vmatmul.bf16.gmra.mxu0 %v3573
      %v4137 = vpop.f32.mrf.mxu0
      %v4138 = vadd.f32 %v3912, %v4137
      %v4139 = vpop.f32.mrf.mxu0
      %v4140 = vadd.f32 %v3914, %v4139
      %4141 = vmatmul.bf16.gmra.mxu0 %v3574
      %v4142 = vpop.f32.mrf.mxu0
      %v4143 = vadd.f32 %v3917, %v4142
      %v4144 = vpop.f32.mrf.mxu0
      %v4145 = vadd.f32 %v3919, %v4144
      %4146 = vmatmul.bf16.gmra.mxu0 %v3575
      %v4147 = vpop.f32.mrf.mxu0
      %v4148 = vadd.f32 %v3922, %v4147
      %v4149 = vpop.f32.mrf.mxu0
      %v4150 = vadd.f32 %v3924, %v4149
      %4151 = vmatmul.bf16.gmra.mxu0 %v3576
      %v4152 = vpop.f32.mrf.mxu0
      %v4153 = vadd.f32 %v3927, %v4152
      %v4154 = vpop.f32.mrf.mxu0
      %v4155 = vadd.f32 %v3929, %v4154
      %4156 = vmatmul.bf16.gmra.mxu0 %v3577
      %v4157 = vpop.f32.mrf.mxu0
      %v4158 = vadd.f32 %v3932, %v4157
      %v4159 = vpop.f32.mrf.mxu0
      %v4160 = vadd.f32 %v3934, %v4159
      %4161 = vmatmul.bf16.gmra.mxu0 %v3578
      %v4162 = vpop.f32.mrf.mxu0
      %v4163 = vadd.f32 %v3937, %v4162
      %v4164 = vpop.f32.mrf.mxu0
      %v4165 = vadd.f32 %v3939, %v4164
      %4166 = vmatmul.bf16.gmra.mxu0 %v3579
      %v4167 = vpop.f32.mrf.mxu0
      %v4168 = vadd.f32 %v3942, %v4167
      %v4169 = vpop.f32.mrf.mxu0
      %v4170 = vadd.f32 %v3944, %v4169
      %4171 = vmatmul.bf16.gmra.mxu0 %v3580
      %v4172 = vpop.f32.mrf.mxu0
      %v4173 = vadd.f32 %v3947, %v4172
      %v4174 = vpop.f32.mrf.mxu0
      %v4175 = vadd.f32 %v3949, %v4174
      %4176 = vmatmul.bf16.gmra.mxu0 %v3581
      %v4177 = vpop.f32.mrf.mxu0
      %v4178 = vadd.f32 %v3952, %v4177
      %v4179 = vpop.f32.mrf.mxu0
      %v4180 = vadd.f32 %v3954, %v4179
      %4181 = vmatmul.bf16.gmra.mxu0 %v3582
      %v4182 = vpop.f32.mrf.mxu0
      %v4183 = vadd.f32 %v3957, %v4182
      %v4184 = vpop.f32.mrf.mxu0
      %4185 = vdwg.mxu0
      %s4186 = scalar_lea.vmem %s5, 256
      %v4187 = vld [vmem:[%s4186] sm:$0xff]
      %v4188 = vld [vmem:[%s4186 + $0x8] sm:$0xff]
      %v4189 = vld [vmem:[%s4186 + $0x10] sm:$0xff]
      %v4190 = vld [vmem:[%s4186 + $0x18] sm:$0xff]
      %v4191 = vld [vmem:[%s4186 + $0x20] sm:$0xff]
      %v4192 = vld [vmem:[%s4186 + $0x28] sm:$0xff]
      %v4193 = vld [vmem:[%s4186 + $0x30] sm:$0xff]
      %v4194 = vld [vmem:[%s4186 + $0x38] sm:$0xff]
      %v4195 = vld [vmem:[%s4186 + $0x40] sm:$0xff]
      %v4196 = vld [vmem:[%s4186 + $0x48] sm:$0xff]
      %v4197 = vld [vmem:[%s4186 + $0x50] sm:$0xff]
      %v4198 = vld [vmem:[%s4186 + $0x58] sm:$0xff]
      %v4199 = vld [vmem:[%s4186 + $0x60] sm:$0xff]
      %v4200 = vld [vmem:[%s4186 + $0x68] sm:$0xff]
      %v4201 = vld [vmem:[%s4186 + $0x70] sm:$0xff]
      %v4202 = vld [vmem:[%s4186 + $0x78] sm:$0xff]
      %vm4216 = vcmask 1046528
      %v4217 = vrot.slane %v3570, 1
      %v4218 = vrot.slane %v3571, 1
      %v4219 = vsel %vm4216, %v4217, %v4218
      %v4220 = vrot.slane %v3572, 1
      %v4221 = vsel %vm4216, %v4218, %v4220
      %v4222 = vrot.slane %v3573, 1
      %v4223 = vsel %vm4216, %v4220, %v4222
      %v4224 = vrot.slane %v3574, 1
      %v4225 = vsel %vm4216, %v4222, %v4224
      %v4226 = vrot.slane %v3575, 1
      %v4227 = vsel %vm4216, %v4224, %v4226
      %v4228 = vrot.slane %v3576, 1
      %v4229 = vsel %vm4216, %v4226, %v4228
      %v4230 = vrot.slane %v3577, 1
      %v4231 = vsel %vm4216, %v4228, %v4230
      %v4232 = vrot.slane %v3578, 1
      %v4233 = vsel %vm4216, %v4230, %v4232
      %v4234 = vrot.slane %v3579, 1
      %v4235 = vsel %vm4216, %v4232, %v4234
      %v4236 = vrot.slane %v3580, 1
      %v4237 = vsel %vm4216, %v4234, %v4236
      %v4238 = vrot.slane %v3581, 1
      %v4239 = vsel %vm4216, %v4236, %v4238
      %v4240 = vrot.slane %v3599, 1
      %v4241 = vsel %vm4216, %v4238, %v4240
      %v4271 = vunpack.c.l.b16 %v4187
      %v4272 = vunpack.c.h.b16 %v4187
      %v4273 = vunpack.c.l.b16 %v4188
      %v4274 = vunpack.c.h.b16 %v4188
      %v4275 = vunpack.c.l.b16 %v4189
      %v4276 = vunpack.c.h.b16 %v4189
      %v4277 = vunpack.c.l.b16 %v4190
      %v4278 = vunpack.c.h.b16 %v4190
      %v4279 = vunpack.c.l.b16 %v4191
      %v4280 = vunpack.c.h.b16 %v4191
      %v4281 = vunpack.c.l.b16 %v4192
      %v4282 = vunpack.c.h.b16 %v4192
      %v4283 = vunpack.c.l.b16 %v4193
      %v4284 = vunpack.c.h.b16 %v4193
      %v4285 = vunpack.c.l.b16 %v4194
      %v4286 = vunpack.c.h.b16 %v4194
      %v4287 = vunpack.c.l.b16 %v4195
      %v4288 = vunpack.c.h.b16 %v4195
      %v4289 = vunpack.c.l.b16 %v4196
      %v4290 = vunpack.c.h.b16 %v4196
      %v4291 = vunpack.c.l.b16 %v4197
      %v4292 = vunpack.c.h.b16 %v4197
      %v4293 = vunpack.c.l.b16 %v4198
      %v4294 = vunpack.c.h.b16 %v4198
      %v4295 = vunpack.c.l.b16 %v4199
      %v4296 = vunpack.c.h.b16 %v4199
      %v4297 = vunpack.c.l.b16 %v4200
      %v4298 = vunpack.c.h.b16 %v4200
      %v4299 = vunpack.c.l.b16 %v4201
      %v4300 = vunpack.c.h.b16 %v4201
      %v4301 = vunpack.c.l.b16 %v4202
      %v4302 = vunpack.c.h.b16 %v4202
      %v4303 = vpack.c.b16 %v4273, %v4271
      %v4304 = vpack.c.b16 %v4274, %v4272
      %v4305 = vpack.c.b16 %v4277, %v4275
      %v4306 = vpack.c.b16 %v4278, %v4276
      %v4307 = vpack.c.b16 %v4281, %v4279
      %v4308 = vpack.c.b16 %v4282, %v4280
      %v4309 = vpack.c.b16 %v4285, %v4283
      %v4310 = vpack.c.b16 %v4286, %v4284
      %v4311 = vpack.c.b16 %v4289, %v4287
      %v4312 = vpack.c.b16 %v4290, %v4288
      %v4313 = vpack.c.b16 %v4293, %v4291
      %v4314 = vpack.c.b16 %v4294, %v4292
      %v4315 = vpack.c.b16 %v4297, %v4295
      %v4316 = vpack.c.b16 %v4298, %v4296
      %v4317 = vpack.c.b16 %v4301, %v4299
      %v4318 = vpack.c.b16 %v4302, %v4300
      %4335 = vmatpush.bf16.msra.mxu0 %v4317
      %4336 = vmatpush.bf16.msra.mxu0 %v4315
      %4337 = vmatpush.bf16.msra.mxu0 %v4313
      %4338 = vmatpush.bf16.msra.mxu0 %v4311
      %4339 = vmatpush.bf16.msra.mxu0 %v4309
      %4340 = vmatpush.bf16.msra.mxu0 %v4307
      %4341 = vmatpush.bf16.msra.mxu0 %v4305
      %4342 = vmatpush.bf16.msra.mxu0 %v4303
      %4343 = vmatmul.bf16.gmra.mxu0 %v4219
      %v4344 = vpop.f32.mrf.mxu0
      %v4345 = vadd.f32 0.0, %v4344
      %v4346 = vpop.f32.mrf.mxu0
      %v4347 = vadd.f32 0.0, %v4346
      %4348 = vmatmul.bf16.gmra.mxu0 %v4221
      %v4349 = vpop.f32.mrf.mxu0
      %v4350 = vadd.f32 0.0, %v4349
      %v4351 = vpop.f32.mrf.mxu0
      %v4352 = vadd.f32 0.0, %v4351
      %4353 = vmatmul.bf16.gmra.mxu0 %v4223
      %v4354 = vpop.f32.mrf.mxu0
      %v4355 = vadd.f32 0.0, %v4354
      %v4356 = vpop.f32.mrf.mxu0
      %v4357 = vadd.f32 0.0, %v4356
      %4358 = vmatmul.bf16.gmra.mxu0 %v4225
      %v4359 = vpop.f32.mrf.mxu0
      %v4360 = vadd.f32 0.0, %v4359
      %v4361 = vpop.f32.mrf.mxu0
      %v4362 = vadd.f32 0.0, %v4361
      %4363 = vmatmul.bf16.gmra.mxu0 %v4227
      %v4364 = vpop.f32.mrf.mxu0
      %v4365 = vadd.f32 0.0, %v4364
      %v4366 = vpop.f32.mrf.mxu0
      %v4367 = vadd.f32 0.0, %v4366
      %4368 = vmatmul.bf16.gmra.mxu0 %v4229
      %v4369 = vpop.f32.mrf.mxu0
      %v4370 = vadd.f32 0.0, %v4369
      %v4371 = vpop.f32.mrf.mxu0
      %v4372 = vadd.f32 0.0, %v4371
      %4373 = vmatmul.bf16.gmra.mxu0 %v4231
      %v4374 = vpop.f32.mrf.mxu0
      %v4375 = vadd.f32 0.0, %v4374
      %v4376 = vpop.f32.mrf.mxu0
      %v4377 = vadd.f32 0.0, %v4376
      %4378 = vmatmul.bf16.gmra.mxu0 %v4233
      %v4379 = vpop.f32.mrf.mxu0
      %v4380 = vadd.f32 0.0, %v4379
      %v4381 = vpop.f32.mrf.mxu0
      %v4382 = vadd.f32 0.0, %v4381
      %4383 = vmatmul.bf16.gmra.mxu0 %v4235
      %v4384 = vpop.f32.mrf.mxu0
      %v4385 = vadd.f32 0.0, %v4384
      %v4386 = vpop.f32.mrf.mxu0
      %v4387 = vadd.f32 0.0, %v4386
      %4388 = vmatmul.bf16.gmra.mxu0 %v4237
      %v4389 = vpop.f32.mrf.mxu0
      %v4390 = vadd.f32 0.0, %v4389
      %v4391 = vpop.f32.mrf.mxu0
      %v4392 = vadd.f32 0.0, %v4391
      %4393 = vmatmul.bf16.gmra.mxu0 %v4239
      %v4394 = vpop.f32.mrf.mxu0
      %v4395 = vadd.f32 0.0, %v4394
      %v4396 = vpop.f32.mrf.mxu0
      %v4397 = vadd.f32 0.0, %v4396
      %4398 = vmatmul.bf16.gmra.mxu0 %v4241
      %v4399 = vpop.f32.mrf.mxu0
      %v4400 = vadd.f32 0.0, %v4399
      %v4401 = vpop.f32.mrf.mxu0
      %v4402 = vadd.f32 0.0, %v4401
      %4403 = vmatmul.bf16.gmra.mxu0 %v4240
      %v4404 = vpop.f32.mrf.mxu0
      %v4405 = vadd.f32 0.0, %v4404
      %v4406 = vpop.f32.mrf.mxu0
      %4407 = vdwg.mxu0
      %4408 = vmatpush.bf16.msra.mxu0 %v4318
      %4409 = vmatpush.bf16.msra.mxu0 %v4316
      %4410 = vmatpush.bf16.msra.mxu0 %v4314
      %4411 = vmatpush.bf16.msra.mxu0 %v4312
      %4412 = vmatpush.bf16.msra.mxu0 %v4310
      %4413 = vmatpush.bf16.msra.mxu0 %v4308
      %4414 = vmatpush.bf16.msra.mxu0 %v4306
      %4415 = vmatpush.bf16.msra.mxu0 %v4304
      %4416 = vmatmul.bf16.gmra.mxu0 %v4219
      %v4417 = vpop.f32.mrf.mxu0
      %v4418 = vadd.f32 0.0, %v4417
      %v4419 = vpop.f32.mrf.mxu0
      %v4420 = vadd.f32 0.0, %v4419
      %4421 = vmatmul.bf16.gmra.mxu0 %v4221
      %v4422 = vpop.f32.mrf.mxu0
      %v4423 = vadd.f32 0.0, %v4422
      %v4424 = vpop.f32.mrf.mxu0
      %v4425 = vadd.f32 0.0, %v4424
      %4426 = vmatmul.bf16.gmra.mxu0 %v4223
      %v4427 = vpop.f32.mrf.mxu0
      %v4428 = vadd.f32 0.0, %v4427
      %v4429 = vpop.f32.mrf.mxu0
      %v4430 = vadd.f32 0.0, %v4429
      %4431 = vmatmul.bf16.gmra.mxu0 %v4225
      %v4432 = vpop.f32.mrf.mxu0
      %v4433 = vadd.f32 0.0, %v4432
      %v4434 = vpop.f32.mrf.mxu0
      %v4435 = vadd.f32 0.0, %v4434
      %4436 = vmatmul.bf16.gmra.mxu0 %v4227
      %v4437 = vpop.f32.mrf.mxu0
      %v4438 = vadd.f32 0.0, %v4437
      %v4439 = vpop.f32.mrf.mxu0
      %v4440 = vadd.f32 0.0, %v4439
      %4441 = vmatmul.bf16.gmra.mxu0 %v4229
      %v4442 = vpop.f32.mrf.mxu0
      %v4443 = vadd.f32 0.0, %v4442
      %v4444 = vpop.f32.mrf.mxu0
      %v4445 = vadd.f32 0.0, %v4444
      %4446 = vmatmul.bf16.gmra.mxu0 %v4231
      %v4447 = vpop.f32.mrf.mxu0
      %v4448 = vadd.f32 0.0, %v4447
      %v4449 = vpop.f32.mrf.mxu0
      %v4450 = vadd.f32 0.0, %v4449
      %4451 = vmatmul.bf16.gmra.mxu0 %v4233
      %v4452 = vpop.f32.mrf.mxu0
      %v4453 = vadd.f32 0.0, %v4452
      %v4454 = vpop.f32.mrf.mxu0
      %v4455 = vadd.f32 0.0, %v4454
      %4456 = vmatmul.bf16.gmra.mxu0 %v4235
      %v4457 = vpop.f32.mrf.mxu0
      %v4458 = vadd.f32 0.0, %v4457
      %v4459 = vpop.f32.mrf.mxu0
      %v4460 = vadd.f32 0.0, %v4459
      %4461 = vmatmul.bf16.gmra.mxu0 %v4237
      %v4462 = vpop.f32.mrf.mxu0
      %v4463 = vadd.f32 0.0, %v4462
      %v4464 = vpop.f32.mrf.mxu0
      %v4465 = vadd.f32 0.0, %v4464
      %4466 = vmatmul.bf16.gmra.mxu0 %v4239
      %v4467 = vpop.f32.mrf.mxu0
      %v4468 = vadd.f32 0.0, %v4467
      %v4469 = vpop.f32.mrf.mxu0
      %v4470 = vadd.f32 0.0, %v4469
      %4471 = vmatmul.bf16.gmra.mxu0 %v4241
      %v4472 = vpop.f32.mrf.mxu0
      %v4473 = vadd.f32 0.0, %v4472
      %v4474 = vpop.f32.mrf.mxu0
      %v4475 = vadd.f32 0.0, %v4474
      %4476 = vmatmul.bf16.gmra.mxu0 %v4240
      %v4477 = vpop.f32.mrf.mxu0
      %v4478 = vadd.f32 0.0, %v4477
      %v4479 = vpop.f32.mrf.mxu0
      %4480 = vdwg.mxu0
      %v4481 = vadd.f32 %v4050, %v4345
      %v4482 = vadd.f32 %v4123, %v4418
      %v4483 = vadd.f32 %v4052, %v4347
      %v4484 = vadd.f32 %v4125, %v4420
      %v4485 = vadd.f32 %v4055, %v4350
      %v4486 = vadd.f32 %v4128, %v4423
      %v4487 = vadd.f32 %v4057, %v4352
      %v4488 = vadd.f32 %v4130, %v4425
      %v4489 = vadd.f32 %v4060, %v4355
      %v4490 = vadd.f32 %v4133, %v4428
      %v4491 = vadd.f32 %v4062, %v4357
      %v4492 = vadd.f32 %v4135, %v4430
      %v4493 = vadd.f32 %v4065, %v4360
      %v4494 = vadd.f32 %v4138, %v4433
      %v4495 = vadd.f32 %v4067, %v4362
      %v4496 = vadd.f32 %v4140, %v4435
      %v4497 = vadd.f32 %v4070, %v4365
      %v4498 = vadd.f32 %v4143, %v4438
      %v4499 = vadd.f32 %v4072, %v4367
      %v4500 = vadd.f32 %v4145, %v4440
      %v4501 = vadd.f32 %v4075, %v4370
      %v4502 = vadd.f32 %v4148, %v4443
      %v4503 = vadd.f32 %v4077, %v4372
      %v4504 = vadd.f32 %v4150, %v4445
      %v4505 = vadd.f32 %v4080, %v4375
      %v4506 = vadd.f32 %v4153, %v4448
      %v4507 = vadd.f32 %v4082, %v4377
      %v4508 = vadd.f32 %v4155, %v4450
      %v4509 = vadd.f32 %v4085, %v4380
      %v4510 = vadd.f32 %v4158, %v4453
      %v4511 = vadd.f32 %v4087, %v4382
      %v4512 = vadd.f32 %v4160, %v4455
      %v4513 = vadd.f32 %v4090, %v4385
      %v4514 = vadd.f32 %v4163, %v4458
      %v4515 = vadd.f32 %v4092, %v4387
      %v4516 = vadd.f32 %v4165, %v4460
      %v4517 = vadd.f32 %v4095, %v4390
      %v4518 = vadd.f32 %v4168, %v4463
      %v4519 = vadd.f32 %v4097, %v4392
      %v4520 = vadd.f32 %v4170, %v4465
      %v4521 = vadd.f32 %v4100, %v4395
      %v4522 = vadd.f32 %v4173, %v4468
      %v4523 = vadd.f32 %v4102, %v4397
      %v4524 = vadd.f32 %v4175, %v4470
      %v4525 = vadd.f32 %v4105, %v4400
      %v4526 = vadd.f32 %v4178, %v4473
      %v4527 = vadd.f32 %v4107, %v4402
      %v4528 = vadd.f32 %v4180, %v4475
      %v4529 = vadd.f32 %v4110, %v4405
      %v4530 = vadd.f32 %v4183, %v4478
      %v4531 = vpack.c.bf16 %v3561, %v3561
      %s4532 = scalar_lea.vmem %s5, 384
      %v4533 = vld [vmem:[%s4532] sm:$0xff]
      %v4534 = vld [vmem:[%s4532 + $0x8] sm:$0xff]
      %v4535 = vld [vmem:[%s4532 + $0x10] sm:$0xff]
      %v4536 = vld [vmem:[%s4532 + $0x18] sm:$0xff]
      %v4537 = vld [vmem:[%s4532 + $0x20] sm:$0xff]
      %v4538 = vld [vmem:[%s4532 + $0x28] sm:$0xff]
      %v4539 = vld [vmem:[%s4532 + $0x30] sm:$0xff]
      %v4540 = vld [vmem:[%s4532 + $0x38] sm:$0xff]
      %v4541 = vld [vmem:[%s4532 + $0x40] sm:$0xff]
      %v4542 = vld [vmem:[%s4532 + $0x48] sm:$0xff]
      %v4543 = vld [vmem:[%s4532 + $0x50] sm:$0xff]
      %v4544 = vld [vmem:[%s4532 + $0x58] sm:$0xff]
      %v4545 = vld [vmem:[%s4532 + $0x60] sm:$0xff]
      %v4546 = vld [vmem:[%s4532 + $0x68] sm:$0xff]
      %v4547 = vld [vmem:[%s4532 + $0x70] sm:$0xff]
      %v4548 = vld [vmem:[%s4532 + $0x78] sm:$0xff]
      %v4565 = vunpack.c.l.b16 %v4533
      %v4566 = vunpack.c.h.b16 %v4533
      %v4567 = vunpack.c.l.b16 %v4534
      %v4568 = vunpack.c.h.b16 %v4534
      %v4569 = vunpack.c.l.b16 %v4535
      %v4570 = vunpack.c.h.b16 %v4535
      %v4571 = vunpack.c.l.b16 %v4536
      %v4572 = vunpack.c.h.b16 %v4536
      %v4573 = vunpack.c.l.b16 %v4537
      %v4574 = vunpack.c.h.b16 %v4537
      %v4575 = vunpack.c.l.b16 %v4538
      %v4576 = vunpack.c.h.b16 %v4538
      %v4577 = vunpack.c.l.b16 %v4539
      %v4578 = vunpack.c.h.b16 %v4539
      %v4579 = vunpack.c.l.b16 %v4540
      %v4580 = vunpack.c.h.b16 %v4540
      %v4581 = vunpack.c.l.b16 %v4541
      %v4582 = vunpack.c.h.b16 %v4541
      %v4583 = vunpack.c.l.b16 %v4542
      %v4584 = vunpack.c.h.b16 %v4542
      %v4585 = vunpack.c.l.b16 %v4543
      %v4586 = vunpack.c.h.b16 %v4543
      %v4587 = vunpack.c.l.b16 %v4544
      %v4588 = vunpack.c.h.b16 %v4544
      %v4589 = vunpack.c.l.b16 %v4545
      %v4590 = vunpack.c.h.b16 %v4545
      %v4591 = vunpack.c.l.b16 %v4546
      %v4592 = vunpack.c.h.b16 %v4546
      %v4593 = vunpack.c.l.b16 %v4547
      %v4594 = vunpack.c.h.b16 %v4547
      %v4595 = vunpack.c.l.b16 %v4548
      %v4596 = vunpack.c.h.b16 %v4548
      %v4597 = vpack.c.b16 %v4567, %v4565
      %v4598 = vpack.c.b16 %v4568, %v4566
      %v4599 = vpack.c.b16 %v4571, %v4569
      %v4600 = vpack.c.b16 %v4572, %v4570
      %v4601 = vpack.c.b16 %v4575, %v4573
      %v4602 = vpack.c.b16 %v4576, %v4574
      %v4603 = vpack.c.b16 %v4579, %v4577
      %v4604 = vpack.c.b16 %v4580, %v4578
      %v4605 = vpack.c.b16 %v4583, %v4581
      %v4606 = vpack.c.b16 %v4584, %v4582
      %v4607 = vpack.c.b16 %v4587, %v4585
      %v4608 = vpack.c.b16 %v4588, %v4586
      %v4609 = vpack.c.b16 %v4591, %v4589
      %v4610 = vpack.c.b16 %v4592, %v4590
      %v4611 = vpack.c.b16 %v4595, %v4593
      %v4612 = vpack.c.b16 %v4596, %v4594
      %4629 = vmatpush.bf16.msra.mxu0 %v4611
      %4630 = vmatpush.bf16.msra.mxu0 %v4609
      %4631 = vmatpush.bf16.msra.mxu0 %v4607
      %4632 = vmatpush.bf16.msra.mxu0 %v4605
      %4633 = vmatpush.bf16.msra.mxu0 %v4603
      %4634 = vmatpush.bf16.msra.mxu0 %v4601
      %4635 = vmatpush.bf16.msra.mxu0 %v4599
      %4636 = vmatpush.bf16.msra.mxu0 %v4597
      %4637 = vmatmul.bf16.gmra.mxu0 %v3571
      %v4638 = vpop.f32.mrf.mxu0
      %v4639 = vadd.f32 0.0, %v4638
      %v4640 = vpop.f32.mrf.mxu0
      %v4641 = vadd.f32 0.0, %v4640
      %4642 = vmatmul.bf16.gmra.mxu0 %v3572
      %v4643 = vpop.f32.mrf.mxu0
      %v4644 = vadd.f32 0.0, %v4643
      %v4645 = vpop.f32.mrf.mxu0
      %v4646 = vadd.f32 0.0, %v4645
      %4647 = vmatmul.bf16.gmra.mxu0 %v3573
      %v4648 = vpop.f32.mrf.mxu0
      %v4649 = vadd.f32 0.0, %v4648
      %v4650 = vpop.f32.mrf.mxu0
      %v4651 = vadd.f32 0.0, %v4650
      %4652 = vmatmul.bf16.gmra.mxu0 %v3574
      %v4653 = vpop.f32.mrf.mxu0
      %v4654 = vadd.f32 0.0, %v4653
      %v4655 = vpop.f32.mrf.mxu0
      %v4656 = vadd.f32 0.0, %v4655
      %4657 = vmatmul.bf16.gmra.mxu0 %v3575
      %v4658 = vpop.f32.mrf.mxu0
      %v4659 = vadd.f32 0.0, %v4658
      %v4660 = vpop.f32.mrf.mxu0
      %v4661 = vadd.f32 0.0, %v4660
      %4662 = vmatmul.bf16.gmra.mxu0 %v3576
      %v4663 = vpop.f32.mrf.mxu0
      %v4664 = vadd.f32 0.0, %v4663
      %v4665 = vpop.f32.mrf.mxu0
      %v4666 = vadd.f32 0.0, %v4665
      %4667 = vmatmul.bf16.gmra.mxu0 %v3577
      %v4668 = vpop.f32.mrf.mxu0
      %v4669 = vadd.f32 0.0, %v4668
      %v4670 = vpop.f32.mrf.mxu0
      %v4671 = vadd.f32 0.0, %v4670
      %4672 = vmatmul.bf16.gmra.mxu0 %v3578
      %v4673 = vpop.f32.mrf.mxu0
      %v4674 = vadd.f32 0.0, %v4673
      %v4675 = vpop.f32.mrf.mxu0
      %v4676 = vadd.f32 0.0, %v4675
      %4677 = vmatmul.bf16.gmra.mxu0 %v3579
      %v4678 = vpop.f32.mrf.mxu0
      %v4679 = vadd.f32 0.0, %v4678
      %v4680 = vpop.f32.mrf.mxu0
      %v4681 = vadd.f32 0.0, %v4680
      %4682 = vmatmul.bf16.gmra.mxu0 %v3580
      %v4683 = vpop.f32.mrf.mxu0
      %v4684 = vadd.f32 0.0, %v4683
      %v4685 = vpop.f32.mrf.mxu0
      %v4686 = vadd.f32 0.0, %v4685
      %4687 = vmatmul.bf16.gmra.mxu0 %v3581
      %v4688 = vpop.f32.mrf.mxu0
      %v4689 = vadd.f32 0.0, %v4688
      %v4690 = vpop.f32.mrf.mxu0
      %v4691 = vadd.f32 0.0, %v4690
      %4692 = vmatmul.bf16.gmra.mxu0 %v3599
      %v4693 = vpop.f32.mrf.mxu0
      %v4694 = vadd.f32 0.0, %v4693
      %v4695 = vpop.f32.mrf.mxu0
      %v4696 = vadd.f32 0.0, %v4695
      %4697 = vmatmul.bf16.gmra.mxu0 %v4531
      %v4698 = vpop.f32.mrf.mxu0
      %v4699 = vadd.f32 0.0, %v4698
      %v4700 = vpop.f32.mrf.mxu0
      %4701 = vdwg.mxu0
      %4702 = vmatpush.bf16.msra.mxu0 %v4612
      %4703 = vmatpush.bf16.msra.mxu0 %v4610
      %4704 = vmatpush.bf16.msra.mxu0 %v4608
      %4705 = vmatpush.bf16.msra.mxu0 %v4606
      %4706 = vmatpush.bf16.msra.mxu0 %v4604
      %4707 = vmatpush.bf16.msra.mxu0 %v4602
      %4708 = vmatpush.bf16.msra.mxu0 %v4600
      %4709 = vmatpush.bf16.msra.mxu0 %v4598
      %4710 = vmatmul.bf16.gmra.mxu0 %v3571
      %v4711 = vpop.f32.mrf.mxu0
      %v4712 = vadd.f32 0.0, %v4711
      %v4713 = vpop.f32.mrf.mxu0
      %v4714 = vadd.f32 0.0, %v4713
      %4715 = vmatmul.bf16.gmra.mxu0 %v3572
      %v4716 = vpop.f32.mrf.mxu0
      %v4717 = vadd.f32 0.0, %v4716
      %v4718 = vpop.f32.mrf.mxu0
      %v4719 = vadd.f32 0.0, %v4718
      %4720 = vmatmul.bf16.gmra.mxu0 %v3573
      %v4721 = vpop.f32.mrf.mxu0
      %v4722 = vadd.f32 0.0, %v4721
      %v4723 = vpop.f32.mrf.mxu0
      %v4724 = vadd.f32 0.0, %v4723
      %4725 = vmatmul.bf16.gmra.mxu0 %v3574
      %v4726 = vpop.f32.mrf.mxu0
      %v4727 = vadd.f32 0.0, %v4726
      %v4728 = vpop.f32.mrf.mxu0
      %v4729 = vadd.f32 0.0, %v4728
      %4730 = vmatmul.bf16.gmra.mxu0 %v3575
      %v4731 = vpop.f32.mrf.mxu0
      %v4732 = vadd.f32 0.0, %v4731
      %v4733 = vpop.f32.mrf.mxu0
      %v4734 = vadd.f32 0.0, %v4733
      %4735 = vmatmul.bf16.gmra.mxu0 %v3576
      %v4736 = vpop.f32.mrf.mxu0
      %v4737 = vadd.f32 0.0, %v4736
      %v4738 = vpop.f32.mrf.mxu0
      %v4739 = vadd.f32 0.0, %v4738
      %4740 = vmatmul.bf16.gmra.mxu0 %v3577
      %v4741 = vpop.f32.mrf.mxu0
      %v4742 = vadd.f32 0.0, %v4741
      %v4743 = vpop.f32.mrf.mxu0
      %v4744 = vadd.f32 0.0, %v4743
      %4745 = vmatmul.bf16.gmra.mxu0 %v3578
      %v4746 = vpop.f32.mrf.mxu0
      %v4747 = vadd.f32 0.0, %v4746
      %v4748 = vpop.f32.mrf.mxu0
      %v4749 = vadd.f32 0.0, %v4748
      %4750 = vmatmul.bf16.gmra.mxu0 %v3579
      %v4751 = vpop.f32.mrf.mxu0
      %v4752 = vadd.f32 0.0, %v4751
      %v4753 = vpop.f32.mrf.mxu0
      %v4754 = vadd.f32 0.0, %v4753
      %4755 = vmatmul.bf16.gmra.mxu0 %v3580
      %v4756 = vpop.f32.mrf.mxu0
      %v4757 = vadd.f32 0.0, %v4756
      %v4758 = vpop.f32.mrf.mxu0
      %v4759 = vadd.f32 0.0, %v4758
      %4760 = vmatmul.bf16.gmra.mxu0 %v3581
      %v4761 = vpop.f32.mrf.mxu0
      %v4762 = vadd.f32 0.0, %v4761
      %v4763 = vpop.f32.mrf.mxu0
      %v4764 = vadd.f32 0.0, %v4763
      %4765 = vmatmul.bf16.gmra.mxu0 %v3599
      %v4766 = vpop.f32.mrf.mxu0
      %v4767 = vadd.f32 0.0, %v4766
      %v4768 = vpop.f32.mrf.mxu0
      %v4769 = vadd.f32 0.0, %v4768
      %4770 = vmatmul.bf16.gmra.mxu0 %v4531
      %v4771 = vpop.f32.mrf.mxu0
      %v4772 = vadd.f32 0.0, %v4771
      %v4773 = vpop.f32.mrf.mxu0
      %4774 = vdwg.mxu0
      %v4775 = vadd.f32 %v4481, %v4639
      %v4776 = vadd.f32 %v4482, %v4712
      %v4777 = vadd.f32 %v4483, %v4641
      %v4778 = vadd.f32 %v4484, %v4714
      %v4779 = vadd.f32 %v4485, %v4644
      %v4780 = vadd.f32 %v4486, %v4717
      %v4781 = vadd.f32 %v4487, %v4646
      %v4782 = vadd.f32 %v4488, %v4719
      %v4783 = vadd.f32 %v4489, %v4649
      %v4784 = vadd.f32 %v4490, %v4722
      %v4785 = vadd.f32 %v4491, %v4651
      %v4786 = vadd.f32 %v4492, %v4724
      %v4787 = vadd.f32 %v4493, %v4654
      %v4788 = vadd.f32 %v4494, %v4727
      %v4789 = vadd.f32 %v4495, %v4656
      %v4790 = vadd.f32 %v4496, %v4729
      %v4791 = vadd.f32 %v4497, %v4659
      %v4792 = vadd.f32 %v4498, %v4732
      %v4793 = vadd.f32 %v4499, %v4661
      %v4794 = vadd.f32 %v4500, %v4734
      %v4795 = vadd.f32 %v4501, %v4664
      %v4796 = vadd.f32 %v4502, %v4737
      %v4797 = vadd.f32 %v4503, %v4666
      %v4798 = vadd.f32 %v4504, %v4739
      %v4799 = vadd.f32 %v4505, %v4669
      %v4800 = vadd.f32 %v4506, %v4742
      %v4801 = vadd.f32 %v4507, %v4671
      %v4802 = vadd.f32 %v4508, %v4744
      %v4803 = vadd.f32 %v4509, %v4674
      %v4804 = vadd.f32 %v4510, %v4747
      %v4805 = vadd.f32 %v4511, %v4676
      %v4806 = vadd.f32 %v4512, %v4749
      %v4807 = vadd.f32 %v4513, %v4679
      %v4808 = vadd.f32 %v4514, %v4752
      %v4809 = vadd.f32 %v4515, %v4681
      %v4810 = vadd.f32 %v4516, %v4754
      %v4811 = vadd.f32 %v4517, %v4684
      %v4812 = vadd.f32 %v4518, %v4757
      %v4813 = vadd.f32 %v4519, %v4686
      %v4814 = vadd.f32 %v4520, %v4759
      %v4815 = vadd.f32 %v4521, %v4689
      %v4816 = vadd.f32 %v4522, %v4762
      %v4817 = vadd.f32 %v4523, %v4691
      %v4818 = vadd.f32 %v4524, %v4764
      %v4819 = vadd.f32 %v4525, %v4694
      %v4820 = vadd.f32 %v4526, %v4767
      %v4821 = vadd.f32 %v4527, %v4696
      %v4822 = vadd.f32 %v4528, %v4769
      %v4823 = vadd.f32 %v4529, %v4699
      %v4824 = vadd.f32 %v4530, %v4772
      %v4825 = vpack.c.bf16 %v3563, %v3561
      %s4826 = scalar_lea.vmem %s5, 512
      %v4827 = vld [vmem:[%s4826] sm:$0xff]
      %v4828 = vld [vmem:[%s4826 + $0x8] sm:$0xff]
      %v4829 = vld [vmem:[%s4826 + $0x10] sm:$0xff]
      %v4830 = vld [vmem:[%s4826 + $0x18] sm:$0xff]
      %v4831 = vld [vmem:[%s4826 + $0x20] sm:$0xff]
      %v4832 = vld [vmem:[%s4826 + $0x28] sm:$0xff]
      %v4833 = vld [vmem:[%s4826 + $0x30] sm:$0xff]
      %v4834 = vld [vmem:[%s4826 + $0x38] sm:$0xff]
      %v4835 = vld [vmem:[%s4826 + $0x40] sm:$0xff]
      %v4836 = vld [vmem:[%s4826 + $0x48] sm:$0xff]
      %v4837 = vld [vmem:[%s4826 + $0x50] sm:$0xff]
      %v4838 = vld [vmem:[%s4826 + $0x58] sm:$0xff]
      %v4839 = vld [vmem:[%s4826 + $0x60] sm:$0xff]
      %v4840 = vld [vmem:[%s4826 + $0x68] sm:$0xff]
      %v4841 = vld [vmem:[%s4826 + $0x70] sm:$0xff]
      %v4842 = vld [vmem:[%s4826 + $0x78] sm:$0xff]
      %v4844 = vshll.u32 %v4825, 16
      %v4846 = vrot.slane %v4844, 1
      %v4847 = vsel %vm3617, %v3720, %v4846
      %v4848 = vshrl.u32 %v4825, 16
      %v4850 = vor.u32 %v4848, %v4846
      %v4869 = vunpack.c.l.b16 %v4827
      %v4870 = vunpack.c.h.b16 %v4827
      %v4871 = vunpack.c.l.b16 %v4828
      %v4872 = vunpack.c.h.b16 %v4828
      %v4873 = vunpack.c.l.b16 %v4829
      %v4874 = vunpack.c.h.b16 %v4829
      %v4875 = vunpack.c.l.b16 %v4830
      %v4876 = vunpack.c.h.b16 %v4830
      %v4877 = vunpack.c.l.b16 %v4831
      %v4878 = vunpack.c.h.b16 %v4831
      %v4879 = vunpack.c.l.b16 %v4832
      %v4880 = vunpack.c.h.b16 %v4832
      %v4881 = vunpack.c.l.b16 %v4833
      %v4882 = vunpack.c.h.b16 %v4833
      %v4883 = vunpack.c.l.b16 %v4834
      %v4884 = vunpack.c.h.b16 %v4834
      %v4885 = vunpack.c.l.b16 %v4835
      %v4886 = vunpack.c.h.b16 %v4835
      %v4887 = vunpack.c.l.b16 %v4836
      %v4888 = vunpack.c.h.b16 %v4836
      %v4889 = vunpack.c.l.b16 %v4837
      %v4890 = vunpack.c.h.b16 %v4837
      %v4891 = vunpack.c.l.b16 %v4838
      %v4892 = vunpack.c.h.b16 %v4838
      %v4893 = vunpack.c.l.b16 %v4839
      %v4894 = vunpack.c.h.b16 %v4839
      %v4895 = vunpack.c.l.b16 %v4840
      %v4896 = vunpack.c.h.b16 %v4840
      %v4897 = vunpack.c.l.b16 %v4841
      %v4898 = vunpack.c.h.b16 %v4841
      %v4899 = vunpack.c.l.b16 %v4842
      %v4900 = vunpack.c.h.b16 %v4842
      %v4901 = vpack.c.b16 %v4871, %v4869
      %v4902 = vpack.c.b16 %v4872, %v4870
      %v4903 = vpack.c.b16 %v4875, %v4873
      %v4904 = vpack.c.b16 %v4876, %v4874
      %v4905 = vpack.c.b16 %v4879, %v4877
      %v4906 = vpack.c.b16 %v4880, %v4878
      %v4907 = vpack.c.b16 %v4883, %v4881
      %v4908 = vpack.c.b16 %v4884, %v4882
      %v4909 = vpack.c.b16 %v4887, %v4885
      %v4910 = vpack.c.b16 %v4888, %v4886
      %v4911 = vpack.c.b16 %v4891, %v4889
      %v4912 = vpack.c.b16 %v4892, %v4890
      %v4913 = vpack.c.b16 %v4895, %v4893
      %v4914 = vpack.c.b16 %v4896, %v4894
      %v4915 = vpack.c.b16 %v4899, %v4897
      %v4916 = vpack.c.b16 %v4900, %v4898
      %4933 = vmatpush.bf16.msra.mxu0 %v4915
      %4934 = vmatpush.bf16.msra.mxu0 %v4913
      %4935 = vmatpush.bf16.msra.mxu0 %v4911
      %4936 = vmatpush.bf16.msra.mxu0 %v4909
      %4937 = vmatpush.bf16.msra.mxu0 %v4907
      %4938 = vmatpush.bf16.msra.mxu0 %v4905
      %4939 = vmatpush.bf16.msra.mxu0 %v4903
      %4940 = vmatpush.bf16.msra.mxu0 %v4901
      %4941 = vmatmul.bf16.gmra.mxu0 %v3637
      %v4942 = vpop.f32.mrf.mxu0
      %v4943 = vadd.f32 0.0, %v4942
      %v4944 = vpop.f32.mrf.mxu0
      %v4945 = vadd.f32 0.0, %v4944
      %4946 = vmatmul.bf16.gmra.mxu0 %v3645
      %v4947 = vpop.f32.mrf.mxu0
      %v4948 = vadd.f32 0.0, %v4947
      %v4949 = vpop.f32.mrf.mxu0
      %v4950 = vadd.f32 0.0, %v4949
      %4951 = vmatmul.bf16.gmra.mxu0 %v3653
      %v4952 = vpop.f32.mrf.mxu0
      %v4953 = vadd.f32 0.0, %v4952
      %v4954 = vpop.f32.mrf.mxu0
      %v4955 = vadd.f32 0.0, %v4954
      %4956 = vmatmul.bf16.gmra.mxu0 %v3661
      %v4957 = vpop.f32.mrf.mxu0
      %v4958 = vadd.f32 0.0, %v4957
      %v4959 = vpop.f32.mrf.mxu0
      %v4960 = vadd.f32 0.0, %v4959
      %4961 = vmatmul.bf16.gmra.mxu0 %v3669
      %v4962 = vpop.f32.mrf.mxu0
      %v4963 = vadd.f32 0.0, %v4962
      %v4964 = vpop.f32.mrf.mxu0
      %v4965 = vadd.f32 0.0, %v4964
      %4966 = vmatmul.bf16.gmra.mxu0 %v3677
      %v4967 = vpop.f32.mrf.mxu0
      %v4968 = vadd.f32 0.0, %v4967
      %v4969 = vpop.f32.mrf.mxu0
      %v4970 = vadd.f32 0.0, %v4969
      %4971 = vmatmul.bf16.gmra.mxu0 %v3685
      %v4972 = vpop.f32.mrf.mxu0
      %v4973 = vadd.f32 0.0, %v4972
      %v4974 = vpop.f32.mrf.mxu0
      %v4975 = vadd.f32 0.0, %v4974
      %4976 = vmatmul.bf16.gmra.mxu0 %v3693
      %v4977 = vpop.f32.mrf.mxu0
      %v4978 = vadd.f32 0.0, %v4977
      %v4979 = vpop.f32.mrf.mxu0
      %v4980 = vadd.f32 0.0, %v4979
      %4981 = vmatmul.bf16.gmra.mxu0 %v3701
      %v4982 = vpop.f32.mrf.mxu0
      %v4983 = vadd.f32 0.0, %v4982
      %v4984 = vpop.f32.mrf.mxu0
      %v4985 = vadd.f32 0.0, %v4984
      %4986 = vmatmul.bf16.gmra.mxu0 %v3709
      %v4987 = vpop.f32.mrf.mxu0
      %v4988 = vadd.f32 0.0, %v4987
      %v4989 = vpop.f32.mrf.mxu0
      %v4990 = vadd.f32 0.0, %v4989
      %4991 = vmatmul.bf16.gmra.mxu0 %v3717
      %v4992 = vpop.f32.mrf.mxu0
      %v4993 = vadd.f32 0.0, %v4992
      %v4994 = vpop.f32.mrf.mxu0
      %v4995 = vadd.f32 0.0, %v4994
      %4996 = vmatmul.bf16.gmra.mxu0 %v4847
      %v4997 = vpop.f32.mrf.mxu0
      %v4998 = vadd.f32 0.0, %v4997
      %v4999 = vpop.f32.mrf.mxu0
      %v5000 = vadd.f32 0.0, %v4999
      %5001 = vmatmul.bf16.gmra.mxu0 %v4850
      %v5002 = vpop.f32.mrf.mxu0
      %v5003 = vadd.f32 0.0, %v5002
      %v5004 = vpop.f32.mrf.mxu0
      %5005 = vdwg.mxu0
      %5006 = vmatpush.bf16.msra.mxu0 %v4916
      %5007 = vmatpush.bf16.msra.mxu0 %v4914
      %5008 = vmatpush.bf16.msra.mxu0 %v4912
      %5009 = vmatpush.bf16.msra.mxu0 %v4910
      %5010 = vmatpush.bf16.msra.mxu0 %v4908
      %5011 = vmatpush.bf16.msra.mxu0 %v4906
      %5012 = vmatpush.bf16.msra.mxu0 %v4904
      %5013 = vmatpush.bf16.msra.mxu0 %v4902
      %5014 = vmatmul.bf16.gmra.mxu0 %v3637
      %v5015 = vpop.f32.mrf.mxu0
      %v5016 = vadd.f32 0.0, %v5015
      %v5017 = vpop.f32.mrf.mxu0
      %v5018 = vadd.f32 0.0, %v5017
      %5019 = vmatmul.bf16.gmra.mxu0 %v3645
      %v5020 = vpop.f32.mrf.mxu0
      %v5021 = vadd.f32 0.0, %v5020
      %v5022 = vpop.f32.mrf.mxu0
      %v5023 = vadd.f32 0.0, %v5022
      %5024 = vmatmul.bf16.gmra.mxu0 %v3653
      %v5025 = vpop.f32.mrf.mxu0
      %v5026 = vadd.f32 0.0, %v5025
      %v5027 = vpop.f32.mrf.mxu0
      %v5028 = vadd.f32 0.0, %v5027
      %5029 = vmatmul.bf16.gmra.mxu0 %v3661
      %v5030 = vpop.f32.mrf.mxu0
      %v5031 = vadd.f32 0.0, %v5030
      %v5032 = vpop.f32.mrf.mxu0
      %v5033 = vadd.f32 0.0, %v5032
      %5034 = vmatmul.bf16.gmra.mxu0 %v3669
      %v5035 = vpop.f32.mrf.mxu0
      %v5036 = vadd.f32 0.0, %v5035
      %v5037 = vpop.f32.mrf.mxu0
      %v5038 = vadd.f32 0.0, %v5037
      %5039 = vmatmul.bf16.gmra.mxu0 %v3677
      %v5040 = vpop.f32.mrf.mxu0
      %v5041 = vadd.f32 0.0, %v5040
      %v5042 = vpop.f32.mrf.mxu0
      %v5043 = vadd.f32 0.0, %v5042
      %5044 = vmatmul.bf16.gmra.mxu0 %v3685
      %v5045 = vpop.f32.mrf.mxu0
      %v5046 = vadd.f32 0.0, %v5045
      %v5047 = vpop.f32.mrf.mxu0
      %v5048 = vadd.f32 0.0, %v5047
      %5049 = vmatmul.bf16.gmra.mxu0 %v3693
      %v5050 = vpop.f32.mrf.mxu0
      %v5051 = vadd.f32 0.0, %v5050
      %v5052 = vpop.f32.mrf.mxu0
      %v5053 = vadd.f32 0.0, %v5052
      %5054 = vmatmul.bf16.gmra.mxu0 %v3701
      %v5055 = vpop.f32.mrf.mxu0
      %v5056 = vadd.f32 0.0, %v5055
      %v5057 = vpop.f32.mrf.mxu0
      %v5058 = vadd.f32 0.0, %v5057
      %5059 = vmatmul.bf16.gmra.mxu0 %v3709
      %v5060 = vpop.f32.mrf.mxu0
      %v5061 = vadd.f32 0.0, %v5060
      %v5062 = vpop.f32.mrf.mxu0
      %v5063 = vadd.f32 0.0, %v5062
      %5064 = vmatmul.bf16.gmra.mxu0 %v3717
      %v5065 = vpop.f32.mrf.mxu0
      %v5066 = vadd.f32 0.0, %v5065
      %v5067 = vpop.f32.mrf.mxu0
      %v5068 = vadd.f32 0.0, %v5067
      %5069 = vmatmul.bf16.gmra.mxu0 %v4847
      %v5070 = vpop.f32.mrf.mxu0
      %v5071 = vadd.f32 0.0, %v5070
      %v5072 = vpop.f32.mrf.mxu0
      %v5073 = vadd.f32 0.0, %v5072
      %5074 = vmatmul.bf16.gmra.mxu0 %v4850
      %v5075 = vpop.f32.mrf.mxu0
      %v5076 = vadd.f32 0.0, %v5075
      %v5077 = vpop.f32.mrf.mxu0
      %5078 = vdwg.mxu0
      %v5079 = vadd.f32 %v4775, %v4943
      %v5080 = vadd.f32 %v4776, %v5016
      %v5081 = vadd.f32 %v4777, %v4945
      %v5082 = vadd.f32 %v4778, %v5018
      %v5083 = vadd.f32 %v4779, %v4948
      %v5084 = vadd.f32 %v4780, %v5021
      %v5085 = vadd.f32 %v4781, %v4950
      %v5086 = vadd.f32 %v4782, %v5023
      %v5087 = vadd.f32 %v4783, %v4953
      %v5088 = vadd.f32 %v4784, %v5026
      %v5089 = vadd.f32 %v4785, %v4955
      %v5090 = vadd.f32 %v4786, %v5028
      %v5091 = vadd.f32 %v4787, %v4958
      %v5092 = vadd.f32 %v4788, %v5031
      %v5093 = vadd.f32 %v4789, %v4960
      %v5094 = vadd.f32 %v4790, %v5033
      %v5095 = vadd.f32 %v4791, %v4963
      %v5096 = vadd.f32 %v4792, %v5036
      %v5097 = vadd.f32 %v4793, %v4965
      %v5098 = vadd.f32 %v4794, %v5038
      %v5099 = vadd.f32 %v4795, %v4968
      %v5100 = vadd.f32 %v4796, %v5041
      %v5101 = vadd.f32 %v4797, %v4970
      %v5102 = vadd.f32 %v4798, %v5043
      %v5103 = vadd.f32 %v4799, %v4973
      %v5104 = vadd.f32 %v4800, %v5046
      %v5105 = vadd.f32 %v4801, %v4975
      %v5106 = vadd.f32 %v4802, %v5048
      %v5107 = vadd.f32 %v4803, %v4978
      %v5108 = vadd.f32 %v4804, %v5051
      %v5109 = vadd.f32 %v4805, %v4980
      %v5110 = vadd.f32 %v4806, %v5053
      %v5111 = vadd.f32 %v4807, %v4983
      %v5112 = vadd.f32 %v4808, %v5056
      %v5113 = vadd.f32 %v4809, %v4985
      %v5114 = vadd.f32 %v4810, %v5058
      %v5115 = vadd.f32 %v4811, %v4988
      %v5116 = vadd.f32 %v4812, %v5061
      %v5117 = vadd.f32 %v4813, %v4990
      %v5118 = vadd.f32 %v4814, %v5063
      %v5119 = vadd.f32 %v4815, %v4993
      %v5120 = vadd.f32 %v4816, %v5066
      %v5121 = vadd.f32 %v4817, %v4995
      %v5122 = vadd.f32 %v4818, %v5068
      %v5123 = vadd.f32 %v4819, %v4998
      %v5124 = vadd.f32 %v4820, %v5071
      %v5125 = vadd.f32 %v4821, %v5000
      %v5126 = vadd.f32 %v4822, %v5073
      %v5127 = vadd.f32 %v4823, %v5003
      %v5128 = vadd.f32 %v4824, %v5076
      %s5129 = scalar_lea.vmem %s5, 640
      %v5130 = vld [vmem:[%s5129] sm:$0xff]
      %v5131 = vld [vmem:[%s5129 + $0x8] sm:$0xff]
      %v5132 = vld [vmem:[%s5129 + $0x10] sm:$0xff]
      %v5133 = vld [vmem:[%s5129 + $0x18] sm:$0xff]
      %v5134 = vld [vmem:[%s5129 + $0x20] sm:$0xff]
      %v5135 = vld [vmem:[%s5129 + $0x28] sm:$0xff]
      %v5136 = vld [vmem:[%s5129 + $0x30] sm:$0xff]
      %v5137 = vld [vmem:[%s5129 + $0x38] sm:$0xff]
      %v5138 = vld [vmem:[%s5129 + $0x40] sm:$0xff]
      %v5139 = vld [vmem:[%s5129 + $0x48] sm:$0xff]
      %v5140 = vld [vmem:[%s5129 + $0x50] sm:$0xff]
      %v5141 = vld [vmem:[%s5129 + $0x58] sm:$0xff]
      %v5142 = vld [vmem:[%s5129 + $0x60] sm:$0xff]
      %v5143 = vld [vmem:[%s5129 + $0x68] sm:$0xff]
      %v5144 = vld [vmem:[%s5129 + $0x70] sm:$0xff]
      %v5145 = vld [vmem:[%s5129 + $0x78] sm:$0xff]
      %v5147 = vrot.slane %v4825, 1
      %v5148 = vsel %vm4216, %v4240, %v5147
      %v5167 = vunpack.c.l.b16 %v5130
      %v5168 = vunpack.c.h.b16 %v5130
      %v5169 = vunpack.c.l.b16 %v5131
      %v5170 = vunpack.c.h.b16 %v5131
      %v5171 = vunpack.c.l.b16 %v5132
      %v5172 = vunpack.c.h.b16 %v5132
      %v5173 = vunpack.c.l.b16 %v5133
      %v5174 = vunpack.c.h.b16 %v5133
      %v5175 = vunpack.c.l.b16 %v5134
      %v5176 = vunpack.c.h.b16 %v5134
      %v5177 = vunpack.c.l.b16 %v5135
      %v5178 = vunpack.c.h.b16 %v5135
      %v5179 = vunpack.c.l.b16 %v5136
      %v5180 = vunpack.c.h.b16 %v5136
      %v5181 = vunpack.c.l.b16 %v5137
      %v5182 = vunpack.c.h.b16 %v5137
      %v5183 = vunpack.c.l.b16 %v5138
      %v5184 = vunpack.c.h.b16 %v5138
      %v5185 = vunpack.c.l.b16 %v5139
      %v5186 = vunpack.c.h.b16 %v5139
      %v5187 = vunpack.c.l.b16 %v5140
      %v5188 = vunpack.c.h.b16 %v5140
      %v5189 = vunpack.c.l.b16 %v5141
      %v5190 = vunpack.c.h.b16 %v5141
      %v5191 = vunpack.c.l.b16 %v5142
      %v5192 = vunpack.c.h.b16 %v5142
      %v5193 = vunpack.c.l.b16 %v5143
      %v5194 = vunpack.c.h.b16 %v5143
      %v5195 = vunpack.c.l.b16 %v5144
      %v5196 = vunpack.c.h.b16 %v5144
      %v5197 = vunpack.c.l.b16 %v5145
      %v5198 = vunpack.c.h.b16 %v5145
      %v5199 = vpack.c.b16 %v5169, %v5167
      %v5200 = vpack.c.b16 %v5170, %v5168
      %v5201 = vpack.c.b16 %v5173, %v5171
      %v5202 = vpack.c.b16 %v5174, %v5172
      %v5203 = vpack.c.b16 %v5177, %v5175
      %v5204 = vpack.c.b16 %v5178, %v5176
      %v5205 = vpack.c.b16 %v5181, %v5179
      %v5206 = vpack.c.b16 %v5182, %v5180
      %v5207 = vpack.c.b16 %v5185, %v5183
      %v5208 = vpack.c.b16 %v5186, %v5184
      %v5209 = vpack.c.b16 %v5189, %v5187
      %v5210 = vpack.c.b16 %v5190, %v5188
      %v5211 = vpack.c.b16 %v5193, %v5191
      %v5212 = vpack.c.b16 %v5194, %v5192
      %v5213 = vpack.c.b16 %v5197, %v5195
      %v5214 = vpack.c.b16 %v5198, %v5196
      %5231 = vmatpush.bf16.msra.mxu0 %v5213
      %5232 = vmatpush.bf16.msra.mxu0 %v5211
      %5233 = vmatpush.bf16.msra.mxu0 %v5209
      %5234 = vmatpush.bf16.msra.mxu0 %v5207
      %5235 = vmatpush.bf16.msra.mxu0 %v5205
      %5236 = vmatpush.bf16.msra.mxu0 %v5203
      %5237 = vmatpush.bf16.msra.mxu0 %v5201
      %5238 = vmatpush.bf16.msra.mxu0 %v5199
      %5239 = vmatmul.bf16.gmra.mxu0 %v4221
      %v5240 = vpop.f32.mrf.mxu0
      %v5241 = vadd.f32 0.0, %v5240
      %v5242 = vpop.f32.mrf.mxu0
      %v5243 = vadd.f32 0.0, %v5242
      %5244 = vmatmul.bf16.gmra.mxu0 %v4223
      %v5245 = vpop.f32.mrf.mxu0
      %v5246 = vadd.f32 0.0, %v5245
      %v5247 = vpop.f32.mrf.mxu0
      %v5248 = vadd.f32 0.0, %v5247
      %5249 = vmatmul.bf16.gmra.mxu0 %v4225
      %v5250 = vpop.f32.mrf.mxu0
      %v5251 = vadd.f32 0.0, %v5250
      %v5252 = vpop.f32.mrf.mxu0
      %v5253 = vadd.f32 0.0, %v5252
      %5254 = vmatmul.bf16.gmra.mxu0 %v4227
      %v5255 = vpop.f32.mrf.mxu0
      %v5256 = vadd.f32 0.0, %v5255
      %v5257 = vpop.f32.mrf.mxu0
      %v5258 = vadd.f32 0.0, %v5257
      %5259 = vmatmul.bf16.gmra.mxu0 %v4229
      %v5260 = vpop.f32.mrf.mxu0
      %v5261 = vadd.f32 0.0, %v5260
      %v5262 = vpop.f32.mrf.mxu0
      %v5263 = vadd.f32 0.0, %v5262
      %5264 = vmatmul.bf16.gmra.mxu0 %v4231
      %v5265 = vpop.f32.mrf.mxu0
      %v5266 = vadd.f32 0.0, %v5265
      %v5267 = vpop.f32.mrf.mxu0
      %v5268 = vadd.f32 0.0, %v5267
      %5269 = vmatmul.bf16.gmra.mxu0 %v4233
      %v5270 = vpop.f32.mrf.mxu0
      %v5271 = vadd.f32 0.0, %v5270
      %v5272 = vpop.f32.mrf.mxu0
      %v5273 = vadd.f32 0.0, %v5272
      %5274 = vmatmul.bf16.gmra.mxu0 %v4235
      %v5275 = vpop.f32.mrf.mxu0
      %v5276 = vadd.f32 0.0, %v5275
      %v5277 = vpop.f32.mrf.mxu0
      %v5278 = vadd.f32 0.0, %v5277
      %5279 = vmatmul.bf16.gmra.mxu0 %v4237
      %v5280 = vpop.f32.mrf.mxu0
      %v5281 = vadd.f32 0.0, %v5280
      %v5282 = vpop.f32.mrf.mxu0
      %v5283 = vadd.f32 0.0, %v5282
      %5284 = vmatmul.bf16.gmra.mxu0 %v4239
      %v5285 = vpop.f32.mrf.mxu0
      %v5286 = vadd.f32 0.0, %v5285
      %v5287 = vpop.f32.mrf.mxu0
      %v5288 = vadd.f32 0.0, %v5287
      %5289 = vmatmul.bf16.gmra.mxu0 %v4241
      %v5290 = vpop.f32.mrf.mxu0
      %v5291 = vadd.f32 0.0, %v5290
      %v5292 = vpop.f32.mrf.mxu0
      %v5293 = vadd.f32 0.0, %v5292
      %5294 = vmatmul.bf16.gmra.mxu0 %v5148
      %v5295 = vpop.f32.mrf.mxu0
      %v5296 = vadd.f32 0.0, %v5295
      %v5297 = vpop.f32.mrf.mxu0
      %v5298 = vadd.f32 0.0, %v5297
      %5299 = vmatmul.bf16.gmra.mxu0 %v5147
      %v5300 = vpop.f32.mrf.mxu0
      %v5301 = vadd.f32 0.0, %v5300
      %v5302 = vpop.f32.mrf.mxu0
      %5303 = vdwg.mxu0
      %5304 = vmatpush.bf16.msra.mxu0 %v5214
      %5305 = vmatpush.bf16.msra.mxu0 %v5212
      %5306 = vmatpush.bf16.msra.mxu0 %v5210
      %5307 = vmatpush.bf16.msra.mxu0 %v5208
      %5308 = vmatpush.bf16.msra.mxu0 %v5206
      %5309 = vmatpush.bf16.msra.mxu0 %v5204
      %5310 = vmatpush.bf16.msra.mxu0 %v5202
      %5311 = vmatpush.bf16.msra.mxu0 %v5200
      %5312 = vmatmul.bf16.gmra.mxu0 %v4221
      %v5313 = vpop.f32.mrf.mxu0
      %v5314 = vadd.f32 0.0, %v5313
      %v5315 = vpop.f32.mrf.mxu0
      %v5316 = vadd.f32 0.0, %v5315
      %5317 = vmatmul.bf16.gmra.mxu0 %v4223
      %v5318 = vpop.f32.mrf.mxu0
      %v5319 = vadd.f32 0.0, %v5318
      %v5320 = vpop.f32.mrf.mxu0
      %v5321 = vadd.f32 0.0, %v5320
      %5322 = vmatmul.bf16.gmra.mxu0 %v4225
      %v5323 = vpop.f32.mrf.mxu0
      %v5324 = vadd.f32 0.0, %v5323
      %v5325 = vpop.f32.mrf.mxu0
      %v5326 = vadd.f32 0.0, %v5325
      %5327 = vmatmul.bf16.gmra.mxu0 %v4227
      %v5328 = vpop.f32.mrf.mxu0
      %v5329 = vadd.f32 0.0, %v5328
      %v5330 = vpop.f32.mrf.mxu0
      %v5331 = vadd.f32 0.0, %v5330
      %5332 = vmatmul.bf16.gmra.mxu0 %v4229
      %v5333 = vpop.f32.mrf.mxu0
      %v5334 = vadd.f32 0.0, %v5333
      %v5335 = vpop.f32.mrf.mxu0
      %v5336 = vadd.f32 0.0, %v5335
      %5337 = vmatmul.bf16.gmra.mxu0 %v4231
      %v5338 = vpop.f32.mrf.mxu0
      %v5339 = vadd.f32 0.0, %v5338
      %v5340 = vpop.f32.mrf.mxu0
      %v5341 = vadd.f32 0.0, %v5340
      %5342 = vmatmul.bf16.gmra.mxu0 %v4233
      %v5343 = vpop.f32.mrf.mxu0
      %v5344 = vadd.f32 0.0, %v5343
      %v5345 = vpop.f32.mrf.mxu0
      %v5346 = vadd.f32 0.0, %v5345
      %5347 = vmatmul.bf16.gmra.mxu0 %v4235
      %v5348 = vpop.f32.mrf.mxu0
      %v5349 = vadd.f32 0.0, %v5348
      %v5350 = vpop.f32.mrf.mxu0
      %v5351 = vadd.f32 0.0, %v5350
      %5352 = vmatmul.bf16.gmra.mxu0 %v4237
      %v5353 = vpop.f32.mrf.mxu0
      %v5354 = vadd.f32 0.0, %v5353
      %v5355 = vpop.f32.mrf.mxu0
      %v5356 = vadd.f32 0.0, %v5355
      %5357 = vmatmul.bf16.gmra.mxu0 %v4239
      %v5358 = vpop.f32.mrf.mxu0
      %v5359 = vadd.f32 0.0, %v5358
      %v5360 = vpop.f32.mrf.mxu0
      %v5361 = vadd.f32 0.0, %v5360
      %5362 = vmatmul.bf16.gmra.mxu0 %v4241
      %v5363 = vpop.f32.mrf.mxu0
      %v5364 = vadd.f32 0.0, %v5363
      %v5365 = vpop.f32.mrf.mxu0
      %v5366 = vadd.f32 0.0, %v5365
      %5367 = vmatmul.bf16.gmra.mxu0 %v5148
      %v5368 = vpop.f32.mrf.mxu0
      %v5369 = vadd.f32 0.0, %v5368
      %v5370 = vpop.f32.mrf.mxu0
      %v5371 = vadd.f32 0.0, %v5370
      %5372 = vmatmul.bf16.gmra.mxu0 %v5147
      %v5373 = vpop.f32.mrf.mxu0
      %v5374 = vadd.f32 0.0, %v5373
      %v5375 = vpop.f32.mrf.mxu0
      %5376 = vdwg.mxu0
      %v5377 = vadd.f32 %v5079, %v5241
      %v5378 = vadd.f32 %v5080, %v5314
      %v5379 = vadd.f32 %v5081, %v5243
      %v5380 = vadd.f32 %v5082, %v5316
      %v5381 = vadd.f32 %v5083, %v5246
      %v5382 = vadd.f32 %v5084, %v5319
      %v5383 = vadd.f32 %v5085, %v5248
      %v5384 = vadd.f32 %v5086, %v5321
      %v5385 = vadd.f32 %v5087, %v5251
      %v5386 = vadd.f32 %v5088, %v5324
      %v5387 = vadd.f32 %v5089, %v5253
      %v5388 = vadd.f32 %v5090, %v5326
      %v5389 = vadd.f32 %v5091, %v5256
      %v5390 = vadd.f32 %v5092, %v5329
      %v5391 = vadd.f32 %v5093, %v5258
      %v5392 = vadd.f32 %v5094, %v5331
      %v5393 = vadd.f32 %v5095, %v5261
      %v5394 = vadd.f32 %v5096, %v5334
      %v5395 = vadd.f32 %v5097, %v5263
      %v5396 = vadd.f32 %v5098, %v5336
      %v5397 = vadd.f32 %v5099, %v5266
      %v5398 = vadd.f32 %v5100, %v5339
      %v5399 = vadd.f32 %v5101, %v5268
      %v5400 = vadd.f32 %v5102, %v5341
      %v5401 = vadd.f32 %v5103, %v5271
      %v5402 = vadd.f32 %v5104, %v5344
      %v5403 = vadd.f32 %v5105, %v5273
      %v5404 = vadd.f32 %v5106, %v5346
      %v5405 = vadd.f32 %v5107, %v5276
      %v5406 = vadd.f32 %v5108, %v5349
      %v5407 = vadd.f32 %v5109, %v5278
      %v5408 = vadd.f32 %v5110, %v5351
      %v5409 = vadd.f32 %v5111, %v5281
      %v5410 = vadd.f32 %v5112, %v5354
      %v5411 = vadd.f32 %v5113, %v5283
      %v5412 = vadd.f32 %v5114, %v5356
      %v5413 = vadd.f32 %v5115, %v5286
      %v5414 = vadd.f32 %v5116, %v5359
      %v5415 = vadd.f32 %v5117, %v5288
      %v5416 = vadd.f32 %v5118, %v5361
      %v5417 = vadd.f32 %v5119, %v5291
      %v5418 = vadd.f32 %v5120, %v5364
      %v5419 = vadd.f32 %v5121, %v5293
      %v5420 = vadd.f32 %v5122, %v5366
      %v5421 = vadd.f32 %v5123, %v5296
      %v5422 = vadd.f32 %v5124, %v5369
      %v5423 = vadd.f32 %v5125, %v5298
      %v5424 = vadd.f32 %v5126, %v5371
      %v5425 = vadd.f32 %v5127, %v5301
      %v5426 = vadd.f32 %v5128, %v5374
      %v5427 = vpack.c.bf16 %v3566, %v3566
      %s5428 = scalar_lea.vmem %s5, 768
      %v5429 = vld [vmem:[%s5428] sm:$0xff]
      %v5430 = vld [vmem:[%s5428 + $0x8] sm:$0xff]
      %v5431 = vld [vmem:[%s5428 + $0x10] sm:$0xff]
      %v5432 = vld [vmem:[%s5428 + $0x18] sm:$0xff]
      %v5433 = vld [vmem:[%s5428 + $0x20] sm:$0xff]
      %v5434 = vld [vmem:[%s5428 + $0x28] sm:$0xff]
      %v5435 = vld [vmem:[%s5428 + $0x30] sm:$0xff]
      %v5436 = vld [vmem:[%s5428 + $0x38] sm:$0xff]
      %v5437 = vld [vmem:[%s5428 + $0x40] sm:$0xff]
      %v5438 = vld [vmem:[%s5428 + $0x48] sm:$0xff]
      %v5439 = vld [vmem:[%s5428 + $0x50] sm:$0xff]
      %v5440 = vld [vmem:[%s5428 + $0x58] sm:$0xff]
      %v5441 = vld [vmem:[%s5428 + $0x60] sm:$0xff]
      %v5442 = vld [vmem:[%s5428 + $0x68] sm:$0xff]
      %v5443 = vld [vmem:[%s5428 + $0x70] sm:$0xff]
      %v5444 = vld [vmem:[%s5428 + $0x78] sm:$0xff]
      %v5461 = vunpack.c.l.b16 %v5429
      %v5462 = vunpack.c.h.b16 %v5429
      %v5463 = vunpack.c.l.b16 %v5430
      %v5464 = vunpack.c.h.b16 %v5430
      %v5465 = vunpack.c.l.b16 %v5431
      %v5466 = vunpack.c.h.b16 %v5431
      %v5467 = vunpack.c.l.b16 %v5432
      %v5468 = vunpack.c.h.b16 %v5432
      %v5469 = vunpack.c.l.b16 %v5433
      %v5470 = vunpack.c.h.b16 %v5433
      %v5471 = vunpack.c.l.b16 %v5434
      %v5472 = vunpack.c.h.b16 %v5434
      %v5473 = vunpack.c.l.b16 %v5435
      %v5474 = vunpack.c.h.b16 %v5435
      %v5475 = vunpack.c.l.b16 %v5436
      %v5476 = vunpack.c.h.b16 %v5436
      %v5477 = vunpack.c.l.b16 %v5437
      %v5478 = vunpack.c.h.b16 %v5437
      %v5479 = vunpack.c.l.b16 %v5438
      %v5480 = vunpack.c.h.b16 %v5438
      %v5481 = vunpack.c.l.b16 %v5439
      %v5482 = vunpack.c.h.b16 %v5439
      %v5483 = vunpack.c.l.b16 %v5440
      %v5484 = vunpack.c.h.b16 %v5440
      %v5485 = vunpack.c.l.b16 %v5441
      %v5486 = vunpack.c.h.b16 %v5441
      %v5487 = vunpack.c.l.b16 %v5442
      %v5488 = vunpack.c.h.b16 %v5442
      %v5489 = vunpack.c.l.b16 %v5443
      %v5490 = vunpack.c.h.b16 %v5443
      %v5491 = vunpack.c.l.b16 %v5444
      %v5492 = vunpack.c.h.b16 %v5444
      %v5493 = vpack.c.b16 %v5463, %v5461
      %v5494 = vpack.c.b16 %v5464, %v5462
      %v5495 = vpack.c.b16 %v5467, %v5465
      %v5496 = vpack.c.b16 %v5468, %v5466
      %v5497 = vpack.c.b16 %v5471, %v5469
      %v5498 = vpack.c.b16 %v5472, %v5470
      %v5499 = vpack.c.b16 %v5475, %v5473
      %v5500 = vpack.c.b16 %v5476, %v5474
      %v5501 = vpack.c.b16 %v5479, %v5477
      %v5502 = vpack.c.b16 %v5480, %v5478
      %v5503 = vpack.c.b16 %v5483, %v5481
      %v5504 = vpack.c.b16 %v5484, %v5482
      %v5505 = vpack.c.b16 %v5487, %v5485
      %v5506 = vpack.c.b16 %v5488, %v5486
      %v5507 = vpack.c.b16 %v5491, %v5489
      %v5508 = vpack.c.b16 %v5492, %v5490
      %5525 = vmatpush.bf16.msra.mxu0 %v5507
      %5526 = vmatpush.bf16.msra.mxu0 %v5505
      %5527 = vmatpush.bf16.msra.mxu0 %v5503
      %5528 = vmatpush.bf16.msra.mxu0 %v5501
      %5529 = vmatpush.bf16.msra.mxu0 %v5499
      %5530 = vmatpush.bf16.msra.mxu0 %v5497
      %5531 = vmatpush.bf16.msra.mxu0 %v5495
      %5532 = vmatpush.bf16.msra.mxu0 %v5493
      %5533 = vmatmul.bf16.gmra.mxu0 %v3572
      %v5534 = vpop.f32.mrf.mxu0
      %v5535 = vadd.f32 0.0, %v5534
      %v5536 = vpop.f32.mrf.mxu0
      %v5537 = vadd.f32 0.0, %v5536
      %5538 = vmatmul.bf16.gmra.mxu0 %v3573
      %v5539 = vpop.f32.mrf.mxu0
      %v5540 = vadd.f32 0.0, %v5539
      %v5541 = vpop.f32.mrf.mxu0
      %v5542 = vadd.f32 0.0, %v5541
      %5543 = vmatmul.bf16.gmra.mxu0 %v3574
      %v5544 = vpop.f32.mrf.mxu0
      %v5545 = vadd.f32 0.0, %v5544
      %v5546 = vpop.f32.mrf.mxu0
      %v5547 = vadd.f32 0.0, %v5546
      %5548 = vmatmul.bf16.gmra.mxu0 %v3575
      %v5549 = vpop.f32.mrf.mxu0
      %v5550 = vadd.f32 0.0, %v5549
      %v5551 = vpop.f32.mrf.mxu0
      %v5552 = vadd.f32 0.0, %v5551
      %5553 = vmatmul.bf16.gmra.mxu0 %v3576
      %v5554 = vpop.f32.mrf.mxu0
      %v5555 = vadd.f32 0.0, %v5554
      %v5556 = vpop.f32.mrf.mxu0
      %v5557 = vadd.f32 0.0, %v5556
      %5558 = vmatmul.bf16.gmra.mxu0 %v3577
      %v5559 = vpop.f32.mrf.mxu0
      %v5560 = vadd.f32 0.0, %v5559
      %v5561 = vpop.f32.mrf.mxu0
      %v5562 = vadd.f32 0.0, %v5561
      %5563 = vmatmul.bf16.gmra.mxu0 %v3578
      %v5564 = vpop.f32.mrf.mxu0
      %v5565 = vadd.f32 0.0, %v5564
      %v5566 = vpop.f32.mrf.mxu0
      %v5567 = vadd.f32 0.0, %v5566
      %5568 = vmatmul.bf16.gmra.mxu0 %v3579
      %v5569 = vpop.f32.mrf.mxu0
      %v5570 = vadd.f32 0.0, %v5569
      %v5571 = vpop.f32.mrf.mxu0
      %v5572 = vadd.f32 0.0, %v5571
      %5573 = vmatmul.bf16.gmra.mxu0 %v3580
      %v5574 = vpop.f32.mrf.mxu0
      %v5575 = vadd.f32 0.0, %v5574
      %v5576 = vpop.f32.mrf.mxu0
      %v5577 = vadd.f32 0.0, %v5576
      %5578 = vmatmul.bf16.gmra.mxu0 %v3581
      %v5579 = vpop.f32.mrf.mxu0
      %v5580 = vadd.f32 0.0, %v5579
      %v5581 = vpop.f32.mrf.mxu0
      %v5582 = vadd.f32 0.0, %v5581
      %5583 = vmatmul.bf16.gmra.mxu0 %v3599
      %v5584 = vpop.f32.mrf.mxu0
      %v5585 = vadd.f32 0.0, %v5584
      %v5586 = vpop.f32.mrf.mxu0
      %v5587 = vadd.f32 0.0, %v5586
      %5588 = vmatmul.bf16.gmra.mxu0 %v4825
      %v5589 = vpop.f32.mrf.mxu0
      %v5590 = vadd.f32 0.0, %v5589
      %v5591 = vpop.f32.mrf.mxu0
      %v5592 = vadd.f32 0.0, %v5591
      %5593 = vmatmul.bf16.gmra.mxu0 %v5427
      %v5594 = vpop.f32.mrf.mxu0
      %v5595 = vadd.f32 0.0, %v5594
      %v5596 = vpop.f32.mrf.mxu0
      %5597 = vdwg.mxu0
      %5598 = vmatpush.bf16.msra.mxu0 %v5508
      %5599 = vmatpush.bf16.msra.mxu0 %v5506
      %5600 = vmatpush.bf16.msra.mxu0 %v5504
      %5601 = vmatpush.bf16.msra.mxu0 %v5502
      %5602 = vmatpush.bf16.msra.mxu0 %v5500
      %5603 = vmatpush.bf16.msra.mxu0 %v5498
      %5604 = vmatpush.bf16.msra.mxu0 %v5496
      %5605 = vmatpush.bf16.msra.mxu0 %v5494
      %5606 = vmatmul.bf16.gmra.mxu0 %v3572
      %v5607 = vpop.f32.mrf.mxu0
      %v5608 = vadd.f32 0.0, %v5607
      %v5609 = vpop.f32.mrf.mxu0
      %v5610 = vadd.f32 0.0, %v5609
      %5611 = vmatmul.bf16.gmra.mxu0 %v3573
      %v5612 = vpop.f32.mrf.mxu0
      %v5613 = vadd.f32 0.0, %v5612
      %v5614 = vpop.f32.mrf.mxu0
      %v5615 = vadd.f32 0.0, %v5614
      %5616 = vmatmul.bf16.gmra.mxu0 %v3574
      %v5617 = vpop.f32.mrf.mxu0
      %v5618 = vadd.f32 0.0, %v5617
      %v5619 = vpop.f32.mrf.mxu0
      %v5620 = vadd.f32 0.0, %v5619
      %5621 = vmatmul.bf16.gmra.mxu0 %v3575
      %v5622 = vpop.f32.mrf.mxu0
      %v5623 = vadd.f32 0.0, %v5622
      %v5624 = vpop.f32.mrf.mxu0
      %v5625 = vadd.f32 0.0, %v5624
      %5626 = vmatmul.bf16.gmra.mxu0 %v3576
      %v5627 = vpop.f32.mrf.mxu0
      %v5628 = vadd.f32 0.0, %v5627
      %v5629 = vpop.f32.mrf.mxu0
      %v5630 = vadd.f32 0.0, %v5629
      %5631 = vmatmul.bf16.gmra.mxu0 %v3577
      %v5632 = vpop.f32.mrf.mxu0
      %v5633 = vadd.f32 0.0, %v5632
      %v5634 = vpop.f32.mrf.mxu0
      %v5635 = vadd.f32 0.0, %v5634
      %5636 = vmatmul.bf16.gmra.mxu0 %v3578
      %v5637 = vpop.f32.mrf.mxu0
      %v5638 = vadd.f32 0.0, %v5637
      %v5639 = vpop.f32.mrf.mxu0
      %v5640 = vadd.f32 0.0, %v5639
      %5641 = vmatmul.bf16.gmra.mxu0 %v3579
      %v5642 = vpop.f32.mrf.mxu0
      %v5643 = vadd.f32 0.0, %v5642
      %v5644 = vpop.f32.mrf.mxu0
      %v5645 = vadd.f32 0.0, %v5644
      %5646 = vmatmul.bf16.gmra.mxu0 %v3580
      %v5647 = vpop.f32.mrf.mxu0
      %v5648 = vadd.f32 0.0, %v5647
      %v5649 = vpop.f32.mrf.mxu0
      %v5650 = vadd.f32 0.0, %v5649
      %5651 = vmatmul.bf16.gmra.mxu0 %v3581
      %v5652 = vpop.f32.mrf.mxu0
      %v5653 = vadd.f32 0.0, %v5652
      %v5654 = vpop.f32.mrf.mxu0
      %v5655 = vadd.f32 0.0, %v5654
      %5656 = vmatmul.bf16.gmra.mxu0 %v3599
      %v5657 = vpop.f32.mrf.mxu0
      %v5658 = vadd.f32 0.0, %v5657
      %v5659 = vpop.f32.mrf.mxu0
      %v5660 = vadd.f32 0.0, %v5659
      %5661 = vmatmul.bf16.gmra.mxu0 %v4825
      %v5662 = vpop.f32.mrf.mxu0
      %v5663 = vadd.f32 0.0, %v5662
      %v5664 = vpop.f32.mrf.mxu0
      %v5665 = vadd.f32 0.0, %v5664
      %5666 = vmatmul.bf16.gmra.mxu0 %v5427
      %v5667 = vpop.f32.mrf.mxu0
      %v5668 = vadd.f32 0.0, %v5667
      %v5669 = vpop.f32.mrf.mxu0
      %5670 = vdwg.mxu0
      %v5671 = vadd.f32 %v5377, %v5535
      %v5672 = vadd.f32 %v5378, %v5608
      %v5673 = vadd.f32 %v5379, %v5537
      %v5674 = vadd.f32 %v5380, %v5610
      %v5675 = vadd.f32 %v5381, %v5540
      %v5676 = vadd.f32 %v5382, %v5613
      %v5677 = vadd.f32 %v5383, %v5542
      %v5678 = vadd.f32 %v5384, %v5615
      %v5679 = vadd.f32 %v5385, %v5545
      %v5680 = vadd.f32 %v5386, %v5618
      %v5681 = vadd.f32 %v5387, %v5547
      %v5682 = vadd.f32 %v5388, %v5620
      %v5683 = vadd.f32 %v5389, %v5550
      %v5684 = vadd.f32 %v5390, %v5623
      %v5685 = vadd.f32 %v5391, %v5552
      %v5686 = vadd.f32 %v5392, %v5625
      %v5687 = vadd.f32 %v5393, %v5555
      %v5688 = vadd.f32 %v5394, %v5628
      %v5689 = vadd.f32 %v5395, %v5557
      %v5690 = vadd.f32 %v5396, %v5630
      %v5691 = vadd.f32 %v5397, %v5560
      %v5692 = vadd.f32 %v5398, %v5633
      %v5693 = vadd.f32 %v5399, %v5562
      %v5694 = vadd.f32 %v5400, %v5635
      %v5695 = vadd.f32 %v5401, %v5565
      %v5696 = vadd.f32 %v5402, %v5638
      %v5697 = vadd.f32 %v5403, %v5567
      %v5698 = vadd.f32 %v5404, %v5640
      %v5699 = vadd.f32 %v5405, %v5570
      %v5700 = vadd.f32 %v5406, %v5643
      %v5701 = vadd.f32 %v5407, %v5572
      %v5702 = vadd.f32 %v5408, %v5645
      %v5703 = vadd.f32 %v5409, %v5575
      %v5704 = vadd.f32 %v5410, %v5648
      %v5705 = vadd.f32 %v5411, %v5577
      %v5706 = vadd.f32 %v5412, %v5650
      %v5707 = vadd.f32 %v5413, %v5580
      %v5708 = vadd.f32 %v5414, %v5653
      %v5709 = vadd.f32 %v5415, %v5582
      %v5710 = vadd.f32 %v5416, %v5655
      %v5711 = vadd.f32 %v5417, %v5585
      %v5712 = vadd.f32 %v5418, %v5658
      %v5713 = vadd.f32 %v5419, %v5587
      %v5714 = vadd.f32 %v5420, %v5660
      %v5715 = vadd.f32 %v5421, %v5590
      %v5716 = vadd.f32 %v5422, %v5663
      %v5717 = vadd.f32 %v5423, %v5592
      %v5718 = vadd.f32 %v5424, %v5665
      %v5719 = vadd.f32 %v5425, %v5595
      %v5720 = vadd.f32 %v5426, %v5668
      %v5721 = vpack.c.bf16 %v3568, %v3566
      %s5722 = scalar_lea.vmem %s5, 896
      %v5723 = vld [vmem:[%s5722] sm:$0xff]
      %v5724 = vld [vmem:[%s5722 + $0x8] sm:$0xff]
      %v5725 = vld [vmem:[%s5722 + $0x10] sm:$0xff]
      %v5726 = vld [vmem:[%s5722 + $0x18] sm:$0xff]
      %v5727 = vld [vmem:[%s5722 + $0x20] sm:$0xff]
      %v5728 = vld [vmem:[%s5722 + $0x28] sm:$0xff]
      %v5729 = vld [vmem:[%s5722 + $0x30] sm:$0xff]
      %v5730 = vld [vmem:[%s5722 + $0x38] sm:$0xff]
      %v5731 = vld [vmem:[%s5722 + $0x40] sm:$0xff]
      %v5732 = vld [vmem:[%s5722 + $0x48] sm:$0xff]
      %v5733 = vld [vmem:[%s5722 + $0x50] sm:$0xff]
      %v5734 = vld [vmem:[%s5722 + $0x58] sm:$0xff]
      %v5735 = vld [vmem:[%s5722 + $0x60] sm:$0xff]
      %v5736 = vld [vmem:[%s5722 + $0x68] sm:$0xff]
      %v5737 = vld [vmem:[%s5722 + $0x70] sm:$0xff]
      %v5738 = vld [vmem:[%s5722 + $0x78] sm:$0xff]
      %v5740 = vshll.u32 %v5721, 16
      %v5742 = vrot.slane %v5740, 1
      %v5743 = vsel %vm3617, %v4850, %v5742
      %v5744 = vshrl.u32 %v5721, 16
      %v5746 = vor.u32 %v5744, %v5742
      %v5765 = vunpack.c.l.b16 %v5723
      %v5766 = vunpack.c.h.b16 %v5723
      %v5767 = vunpack.c.l.b16 %v5724
      %v5768 = vunpack.c.h.b16 %v5724
      %v5769 = vunpack.c.l.b16 %v5725
      %v5770 = vunpack.c.h.b16 %v5725
      %v5771 = vunpack.c.l.b16 %v5726
      %v5772 = vunpack.c.h.b16 %v5726
      %v5773 = vunpack.c.l.b16 %v5727
      %v5774 = vunpack.c.h.b16 %v5727
      %v5775 = vunpack.c.l.b16 %v5728
      %v5776 = vunpack.c.h.b16 %v5728
      %v5777 = vunpack.c.l.b16 %v5729
      %v5778 = vunpack.c.h.b16 %v5729
      %v5779 = vunpack.c.l.b16 %v5730
      %v5780 = vunpack.c.h.b16 %v5730
      %v5781 = vunpack.c.l.b16 %v5731
      %v5782 = vunpack.c.h.b16 %v5731
      %v5783 = vunpack.c.l.b16 %v5732
      %v5784 = vunpack.c.h.b16 %v5732
      %v5785 = vunpack.c.l.b16 %v5733
      %v5786 = vunpack.c.h.b16 %v5733
      %v5787 = vunpack.c.l.b16 %v5734
      %v5788 = vunpack.c.h.b16 %v5734
      %v5789 = vunpack.c.l.b16 %v5735
      %v5790 = vunpack.c.h.b16 %v5735
      %v5791 = vunpack.c.l.b16 %v5736
      %v5792 = vunpack.c.h.b16 %v5736
      %v5793 = vunpack.c.l.b16 %v5737
      %v5794 = vunpack.c.h.b16 %v5737
      %v5795 = vunpack.c.l.b16 %v5738
      %v5796 = vunpack.c.h.b16 %v5738
      %v5797 = vpack.c.b16 %v5767, %v5765
      %v5798 = vpack.c.b16 %v5768, %v5766
      %v5799 = vpack.c.b16 %v5771, %v5769
      %v5800 = vpack.c.b16 %v5772, %v5770
      %v5801 = vpack.c.b16 %v5775, %v5773
      %v5802 = vpack.c.b16 %v5776, %v5774
      %v5803 = vpack.c.b16 %v5779, %v5777
      %v5804 = vpack.c.b16 %v5780, %v5778
      %v5805 = vpack.c.b16 %v5783, %v5781
      %v5806 = vpack.c.b16 %v5784, %v5782
      %v5807 = vpack.c.b16 %v5787, %v5785
      %v5808 = vpack.c.b16 %v5788, %v5786
      %v5809 = vpack.c.b16 %v5791, %v5789
      %v5810 = vpack.c.b16 %v5792, %v5790
      %v5811 = vpack.c.b16 %v5795, %v5793
      %v5812 = vpack.c.b16 %v5796, %v5794
      %5829 = vmatpush.bf16.msra.mxu0 %v5811
      %5830 = vmatpush.bf16.msra.mxu0 %v5809
      %5831 = vmatpush.bf16.msra.mxu0 %v5807
      %5832 = vmatpush.bf16.msra.mxu0 %v5805
      %5833 = vmatpush.bf16.msra.mxu0 %v5803
      %5834 = vmatpush.bf16.msra.mxu0 %v5801
      %5835 = vmatpush.bf16.msra.mxu0 %v5799
      %5836 = vmatpush.bf16.msra.mxu0 %v5797
      %5837 = vmatmul.bf16.gmra.mxu0 %v3645
      %v5838 = vpop.f32.mrf.mxu0
      %v5839 = vadd.f32 0.0, %v5838
      %v5840 = vpop.f32.mrf.mxu0
      %v5841 = vadd.f32 0.0, %v5840
      %5842 = vmatmul.bf16.gmra.mxu0 %v3653
      %v5843 = vpop.f32.mrf.mxu0
      %v5844 = vadd.f32 0.0, %v5843
      %v5845 = vpop.f32.mrf.mxu0
      %v5846 = vadd.f32 0.0, %v5845
      %5847 = vmatmul.bf16.gmra.mxu0 %v3661
      %v5848 = vpop.f32.mrf.mxu0
      %v5849 = vadd.f32 0.0, %v5848
      %v5850 = vpop.f32.mrf.mxu0
      %v5851 = vadd.f32 0.0, %v5850
      %5852 = vmatmul.bf16.gmra.mxu0 %v3669
      %v5853 = vpop.f32.mrf.mxu0
      %v5854 = vadd.f32 0.0, %v5853
      %v5855 = vpop.f32.mrf.mxu0
      %v5856 = vadd.f32 0.0, %v5855
      %5857 = vmatmul.bf16.gmra.mxu0 %v3677
      %v5858 = vpop.f32.mrf.mxu0
      %v5859 = vadd.f32 0.0, %v5858
      %v5860 = vpop.f32.mrf.mxu0
      %v5861 = vadd.f32 0.0, %v5860
      %5862 = vmatmul.bf16.gmra.mxu0 %v3685
      %v5863 = vpop.f32.mrf.mxu0
      %v5864 = vadd.f32 0.0, %v5863
      %v5865 = vpop.f32.mrf.mxu0
      %v5866 = vadd.f32 0.0, %v5865
      %5867 = vmatmul.bf16.gmra.mxu0 %v3693
      %v5868 = vpop.f32.mrf.mxu0
      %v5869 = vadd.f32 0.0, %v5868
      %v5870 = vpop.f32.mrf.mxu0
      %v5871 = vadd.f32 0.0, %v5870
      %5872 = vmatmul.bf16.gmra.mxu0 %v3701
      %v5873 = vpop.f32.mrf.mxu0
      %v5874 = vadd.f32 0.0, %v5873
      %v5875 = vpop.f32.mrf.mxu0
      %v5876 = vadd.f32 0.0, %v5875
      %5877 = vmatmul.bf16.gmra.mxu0 %v3709
      %v5878 = vpop.f32.mrf.mxu0
      %v5879 = vadd.f32 0.0, %v5878
      %v5880 = vpop.f32.mrf.mxu0
      %v5881 = vadd.f32 0.0, %v5880
      %5882 = vmatmul.bf16.gmra.mxu0 %v3717
      %v5883 = vpop.f32.mrf.mxu0
      %v5884 = vadd.f32 0.0, %v5883
      %v5885 = vpop.f32.mrf.mxu0
      %v5886 = vadd.f32 0.0, %v5885
      %5887 = vmatmul.bf16.gmra.mxu0 %v4847
      %v5888 = vpop.f32.mrf.mxu0
      %v5889 = vadd.f32 0.0, %v5888
      %v5890 = vpop.f32.mrf.mxu0
      %v5891 = vadd.f32 0.0, %v5890
      %5892 = vmatmul.bf16.gmra.mxu0 %v5743
      %v5893 = vpop.f32.mrf.mxu0
      %v5894 = vadd.f32 0.0, %v5893
      %v5895 = vpop.f32.mrf.mxu0
      %v5896 = vadd.f32 0.0, %v5895
      %5897 = vmatmul.bf16.gmra.mxu0 %v5746
      %v5898 = vpop.f32.mrf.mxu0
      %v5899 = vadd.f32 0.0, %v5898
      %v5900 = vpop.f32.mrf.mxu0
      %5901 = vdwg.mxu0
      %5902 = vmatpush.bf16.msra.mxu0 %v5812
      %5903 = vmatpush.bf16.msra.mxu0 %v5810
      %5904 = vmatpush.bf16.msra.mxu0 %v5808
      %5905 = vmatpush.bf16.msra.mxu0 %v5806
      %5906 = vmatpush.bf16.msra.mxu0 %v5804
      %5907 = vmatpush.bf16.msra.mxu0 %v5802
      %5908 = vmatpush.bf16.msra.mxu0 %v5800
      %5909 = vmatpush.bf16.msra.mxu0 %v5798
      %5910 = vmatmul.bf16.gmra.mxu0 %v3645
      %v5911 = vpop.f32.mrf.mxu0
      %v5912 = vadd.f32 0.0, %v5911
      %v5913 = vpop.f32.mrf.mxu0
      %v5914 = vadd.f32 0.0, %v5913
      %5915 = vmatmul.bf16.gmra.mxu0 %v3653
      %v5916 = vpop.f32.mrf.mxu0
      %v5917 = vadd.f32 0.0, %v5916
      %v5918 = vpop.f32.mrf.mxu0
      %v5919 = vadd.f32 0.0, %v5918
      %5920 = vmatmul.bf16.gmra.mxu0 %v3661
      %v5921 = vpop.f32.mrf.mxu0
      %v5922 = vadd.f32 0.0, %v5921
      %v5923 = vpop.f32.mrf.mxu0
      %v5924 = vadd.f32 0.0, %v5923
      %5925 = vmatmul.bf16.gmra.mxu0 %v3669
      %v5926 = vpop.f32.mrf.mxu0
      %v5927 = vadd.f32 0.0, %v5926
      %v5928 = vpop.f32.mrf.mxu0
      %v5929 = vadd.f32 0.0, %v5928
      %5930 = vmatmul.bf16.gmra.mxu0 %v3677
      %v5931 = vpop.f32.mrf.mxu0
      %v5932 = vadd.f32 0.0, %v5931
      %v5933 = vpop.f32.mrf.mxu0
      %v5934 = vadd.f32 0.0, %v5933
      %5935 = vmatmul.bf16.gmra.mxu0 %v3685
      %v5936 = vpop.f32.mrf.mxu0
      %v5937 = vadd.f32 0.0, %v5936
      %v5938 = vpop.f32.mrf.mxu0
      %v5939 = vadd.f32 0.0, %v5938
      %5940 = vmatmul.bf16.gmra.mxu0 %v3693
      %v5941 = vpop.f32.mrf.mxu0
      %v5942 = vadd.f32 0.0, %v5941
      %v5943 = vpop.f32.mrf.mxu0
      %v5944 = vadd.f32 0.0, %v5943
      %5945 = vmatmul.bf16.gmra.mxu0 %v3701
      %v5946 = vpop.f32.mrf.mxu0
      %v5947 = vadd.f32 0.0, %v5946
      %v5948 = vpop.f32.mrf.mxu0
      %v5949 = vadd.f32 0.0, %v5948
      %5950 = vmatmul.bf16.gmra.mxu0 %v3709
      %v5951 = vpop.f32.mrf.mxu0
      %v5952 = vadd.f32 0.0, %v5951
      %v5953 = vpop.f32.mrf.mxu0
      %v5954 = vadd.f32 0.0, %v5953
      %5955 = vmatmul.bf16.gmra.mxu0 %v3717
      %v5956 = vpop.f32.mrf.mxu0
      %v5957 = vadd.f32 0.0, %v5956
      %v5958 = vpop.f32.mrf.mxu0
      %v5959 = vadd.f32 0.0, %v5958
      %5960 = vmatmul.bf16.gmra.mxu0 %v4847
      %v5961 = vpop.f32.mrf.mxu0
      %v5962 = vadd.f32 0.0, %v5961
      %v5963 = vpop.f32.mrf.mxu0
      %v5964 = vadd.f32 0.0, %v5963
      %5965 = vmatmul.bf16.gmra.mxu0 %v5743
      %v5966 = vpop.f32.mrf.mxu0
      %v5967 = vadd.f32 0.0, %v5966
      %v5968 = vpop.f32.mrf.mxu0
      %v5969 = vadd.f32 0.0, %v5968
      %5970 = vmatmul.bf16.gmra.mxu0 %v5746
      %v5971 = vpop.f32.mrf.mxu0
      %v5972 = vadd.f32 0.0, %v5971
      %v5973 = vpop.f32.mrf.mxu0
      %5974 = vdwg.mxu0
      %v5975 = vadd.f32 %v5671, %v5839
      %v5976 = vadd.f32 %v5672, %v5912
      %v5977 = vadd.f32 %v5673, %v5841
      %v5978 = vadd.f32 %v5674, %v5914
      %v5979 = vadd.f32 %v5675, %v5844
      %v5980 = vadd.f32 %v5676, %v5917
      %v5981 = vadd.f32 %v5677, %v5846
      %v5982 = vadd.f32 %v5678, %v5919
      %v5983 = vadd.f32 %v5679, %v5849
      %v5984 = vadd.f32 %v5680, %v5922
      %v5985 = vadd.f32 %v5681, %v5851
      %v5986 = vadd.f32 %v5682, %v5924
      %v5987 = vadd.f32 %v5683, %v5854
      %v5988 = vadd.f32 %v5684, %v5927
      %v5989 = vadd.f32 %v5685, %v5856
      %v5990 = vadd.f32 %v5686, %v5929
      %v5991 = vadd.f32 %v5687, %v5859
      %v5992 = vadd.f32 %v5688, %v5932
      %v5993 = vadd.f32 %v5689, %v5861
      %v5994 = vadd.f32 %v5690, %v5934
      %v5995 = vadd.f32 %v5691, %v5864
      %v5996 = vadd.f32 %v5692, %v5937
      %v5997 = vadd.f32 %v5693, %v5866
      %v5998 = vadd.f32 %v5694, %v5939
      %v5999 = vadd.f32 %v5695, %v5869
      %v6000 = vadd.f32 %v5696, %v5942
      %v6001 = vadd.f32 %v5697, %v5871
      %v6002 = vadd.f32 %v5698, %v5944
      %v6003 = vadd.f32 %v5699, %v5874
      %v6004 = vadd.f32 %v5700, %v5947
      %v6005 = vadd.f32 %v5701, %v5876
      %v6006 = vadd.f32 %v5702, %v5949
      %v6007 = vadd.f32 %v5703, %v5879
      %v6008 = vadd.f32 %v5704, %v5952
      %v6009 = vadd.f32 %v5705, %v5881
      %v6010 = vadd.f32 %v5706, %v5954
      %v6011 = vadd.f32 %v5707, %v5884
      %v6012 = vadd.f32 %v5708, %v5957
      %v6013 = vadd.f32 %v5709, %v5886
      %v6014 = vadd.f32 %v5710, %v5959
      %v6015 = vadd.f32 %v5711, %v5889
      %v6016 = vadd.f32 %v5712, %v5962
      %v6017 = vadd.f32 %v5713, %v5891
      %v6018 = vadd.f32 %v5714, %v5964
      %v6019 = vadd.f32 %v5715, %v5894
      %v6020 = vadd.f32 %v5716, %v5967
      %v6021 = vadd.f32 %v5717, %v5896
      %v6022 = vadd.f32 %v5718, %v5969
      %v6023 = vadd.f32 %v5719, %v5899
      %v6024 = vadd.f32 %v5720, %v5972
      %s6025 = scalar_lea.vmem %s5, 1024
      %v6026 = vld [vmem:[%s6025] sm:$0xff]
      %v6027 = vld [vmem:[%s6025 + $0x8] sm:$0xff]
      %v6028 = vld [vmem:[%s6025 + $0x10] sm:$0xff]
      %v6029 = vld [vmem:[%s6025 + $0x18] sm:$0xff]
      %v6030 = vld [vmem:[%s6025 + $0x20] sm:$0xff]
      %v6031 = vld [vmem:[%s6025 + $0x28] sm:$0xff]
      %v6032 = vld [vmem:[%s6025 + $0x30] sm:$0xff]
      %v6033 = vld [vmem:[%s6025 + $0x38] sm:$0xff]
      %v6034 = vld [vmem:[%s6025 + $0x40] sm:$0xff]
      %v6035 = vld [vmem:[%s6025 + $0x48] sm:$0xff]
      %v6036 = vld [vmem:[%s6025 + $0x50] sm:$0xff]
      %v6037 = vld [vmem:[%s6025 + $0x58] sm:$0xff]
      %v6038 = vld [vmem:[%s6025 + $0x60] sm:$0xff]
      %v6039 = vld [vmem:[%s6025 + $0x68] sm:$0xff]
      %v6040 = vld [vmem:[%s6025 + $0x70] sm:$0xff]
      %v6041 = vld [vmem:[%s6025 + $0x78] sm:$0xff]
      %v6043 = vrot.slane %v5721, 1
      %v6044 = vsel %vm4216, %v5147, %v6043
      %v6063 = vunpack.c.l.b16 %v6026
      %v6064 = vunpack.c.h.b16 %v6026
      %v6065 = vunpack.c.l.b16 %v6027
      %v6066 = vunpack.c.h.b16 %v6027
      %v6067 = vunpack.c.l.b16 %v6028
      %v6068 = vunpack.c.h.b16 %v6028
      %v6069 = vunpack.c.l.b16 %v6029
      %v6070 = vunpack.c.h.b16 %v6029
      %v6071 = vunpack.c.l.b16 %v6030
      %v6072 = vunpack.c.h.b16 %v6030
      %v6073 = vunpack.c.l.b16 %v6031
      %v6074 = vunpack.c.h.b16 %v6031
      %v6075 = vunpack.c.l.b16 %v6032
      %v6076 = vunpack.c.h.b16 %v6032
      %v6077 = vunpack.c.l.b16 %v6033
      %v6078 = vunpack.c.h.b16 %v6033
      %v6079 = vunpack.c.l.b16 %v6034
      %v6080 = vunpack.c.h.b16 %v6034
      %v6081 = vunpack.c.l.b16 %v6035
      %v6082 = vunpack.c.h.b16 %v6035
      %v6083 = vunpack.c.l.b16 %v6036
      %v6084 = vunpack.c.h.b16 %v6036
      %v6085 = vunpack.c.l.b16 %v6037
      %v6086 = vunpack.c.h.b16 %v6037
      %v6087 = vunpack.c.l.b16 %v6038
      %v6088 = vunpack.c.h.b16 %v6038
      %v6089 = vunpack.c.l.b16 %v6039
      %v6090 = vunpack.c.h.b16 %v6039
      %v6091 = vunpack.c.l.b16 %v6040
      %v6092 = vunpack.c.h.b16 %v6040
      %v6093 = vunpack.c.l.b16 %v6041
      %v6094 = vunpack.c.h.b16 %v6041
      %v6095 = vpack.c.b16 %v6065, %v6063
      %v6096 = vpack.c.b16 %v6066, %v6064
      %v6097 = vpack.c.b16 %v6069, %v6067
      %v6098 = vpack.c.b16 %v6070, %v6068
      %v6099 = vpack.c.b16 %v6073, %v6071
      %v6100 = vpack.c.b16 %v6074, %v6072
      %v6101 = vpack.c.b16 %v6077, %v6075
      %v6102 = vpack.c.b16 %v6078, %v6076
      %v6103 = vpack.c.b16 %v6081, %v6079
      %v6104 = vpack.c.b16 %v6082, %v6080
      %v6105 = vpack.c.b16 %v6085, %v6083
      %v6106 = vpack.c.b16 %v6086, %v6084
      %v6107 = vpack.c.b16 %v6089, %v6087
      %v6108 = vpack.c.b16 %v6090, %v6088
      %v6109 = vpack.c.b16 %v6093, %v6091
      %v6110 = vpack.c.b16 %v6094, %v6092
      %6127 = vmatpush.bf16.msra.mxu0 %v6109
      %6128 = vmatpush.bf16.msra.mxu0 %v6107
      %6129 = vmatpush.bf16.msra.mxu0 %v6105
      %6130 = vmatpush.bf16.msra.mxu0 %v6103
      %6131 = vmatpush.bf16.msra.mxu0 %v6101
      %6132 = vmatpush.bf16.msra.mxu0 %v6099
      %6133 = vmatpush.bf16.msra.mxu0 %v6097
      %6134 = vmatpush.bf16.msra.mxu0 %v6095
      %6135 = vmatmul.bf16.gmra.mxu0 %v4223
      %v6136 = vpop.f32.mrf.mxu0
      %v6137 = vadd.f32 0.0, %v6136
      %v6138 = vpop.f32.mrf.mxu0
      %v6139 = vadd.f32 0.0, %v6138
      %6140 = vmatmul.bf16.gmra.mxu0 %v4225
      %v6141 = vpop.f32.mrf.mxu0
      %v6142 = vadd.f32 0.0, %v6141
      %v6143 = vpop.f32.mrf.mxu0
      %v6144 = vadd.f32 0.0, %v6143
      %6145 = vmatmul.bf16.gmra.mxu0 %v4227
      %v6146 = vpop.f32.mrf.mxu0
      %v6147 = vadd.f32 0.0, %v6146
      %v6148 = vpop.f32.mrf.mxu0
      %v6149 = vadd.f32 0.0, %v6148
      %6150 = vmatmul.bf16.gmra.mxu0 %v4229
      %v6151 = vpop.f32.mrf.mxu0
      %v6152 = vadd.f32 0.0, %v6151
      %v6153 = vpop.f32.mrf.mxu0
      %v6154 = vadd.f32 0.0, %v6153
      %6155 = vmatmul.bf16.gmra.mxu0 %v4231
      %v6156 = vpop.f32.mrf.mxu0
      %v6157 = vadd.f32 0.0, %v6156
      %v6158 = vpop.f32.mrf.mxu0
      %v6159 = vadd.f32 0.0, %v6158
      %6160 = vmatmul.bf16.gmra.mxu0 %v4233
      %v6161 = vpop.f32.mrf.mxu0
      %v6162 = vadd.f32 0.0, %v6161
      %v6163 = vpop.f32.mrf.mxu0
      %v6164 = vadd.f32 0.0, %v6163
      %6165 = vmatmul.bf16.gmra.mxu0 %v4235
      %v6166 = vpop.f32.mrf.mxu0
      %v6167 = vadd.f32 0.0, %v6166
      %v6168 = vpop.f32.mrf.mxu0
      %v6169 = vadd.f32 0.0, %v6168
      %6170 = vmatmul.bf16.gmra.mxu0 %v4237
      %v6171 = vpop.f32.mrf.mxu0
      %v6172 = vadd.f32 0.0, %v6171
      %v6173 = vpop.f32.mrf.mxu0
      %v6174 = vadd.f32 0.0, %v6173
      %6175 = vmatmul.bf16.gmra.mxu0 %v4239
      %v6176 = vpop.f32.mrf.mxu0
      %v6177 = vadd.f32 0.0, %v6176
      %v6178 = vpop.f32.mrf.mxu0
      %v6179 = vadd.f32 0.0, %v6178
      %6180 = vmatmul.bf16.gmra.mxu0 %v4241
      %v6181 = vpop.f32.mrf.mxu0
      %v6182 = vadd.f32 0.0, %v6181
      %v6183 = vpop.f32.mrf.mxu0
      %v6184 = vadd.f32 0.0, %v6183
      %6185 = vmatmul.bf16.gmra.mxu0 %v5148
      %v6186 = vpop.f32.mrf.mxu0
      %v6187 = vadd.f32 0.0, %v6186
      %v6188 = vpop.f32.mrf.mxu0
      %v6189 = vadd.f32 0.0, %v6188
      %6190 = vmatmul.bf16.gmra.mxu0 %v6044
      %v6191 = vpop.f32.mrf.mxu0
      %v6192 = vadd.f32 0.0, %v6191
      %v6193 = vpop.f32.mrf.mxu0
      %v6194 = vadd.f32 0.0, %v6193
      %6195 = vmatmul.bf16.gmra.mxu0 %v6043
      %v6196 = vpop.f32.mrf.mxu0
      %v6197 = vadd.f32 0.0, %v6196
      %v6198 = vpop.f32.mrf.mxu0
      %6199 = vdwg.mxu0
      %6200 = vmatpush.bf16.msra.mxu0 %v6110
      %6201 = vmatpush.bf16.msra.mxu0 %v6108
      %6202 = vmatpush.bf16.msra.mxu0 %v6106
      %6203 = vmatpush.bf16.msra.mxu0 %v6104
      %6204 = vmatpush.bf16.msra.mxu0 %v6102
      %6205 = vmatpush.bf16.msra.mxu0 %v6100
      %6206 = vmatpush.bf16.msra.mxu0 %v6098
      %6207 = vmatpush.bf16.msra.mxu0 %v6096
      %6208 = vmatmul.bf16.gmra.mxu0 %v4223
      %v6209 = vpop.f32.mrf.mxu0
      %v6210 = vadd.f32 0.0, %v6209
      %v6211 = vpop.f32.mrf.mxu0
      %v6212 = vadd.f32 0.0, %v6211
      %6213 = vmatmul.bf16.gmra.mxu0 %v4225
      %v6214 = vpop.f32.mrf.mxu0
      %v6215 = vadd.f32 0.0, %v6214
      %v6216 = vpop.f32.mrf.mxu0
      %v6217 = vadd.f32 0.0, %v6216
      %6218 = vmatmul.bf16.gmra.mxu0 %v4227
      %v6219 = vpop.f32.mrf.mxu0
      %v6220 = vadd.f32 0.0, %v6219
      %v6221 = vpop.f32.mrf.mxu0
      %v6222 = vadd.f32 0.0, %v6221
      %6223 = vmatmul.bf16.gmra.mxu0 %v4229
      %v6224 = vpop.f32.mrf.mxu0
      %v6225 = vadd.f32 0.0, %v6224
      %v6226 = vpop.f32.mrf.mxu0
      %v6227 = vadd.f32 0.0, %v6226
      %6228 = vmatmul.bf16.gmra.mxu0 %v4231
      %v6229 = vpop.f32.mrf.mxu0
      %v6230 = vadd.f32 0.0, %v6229
      %v6231 = vpop.f32.mrf.mxu0
      %v6232 = vadd.f32 0.0, %v6231
      %6233 = vmatmul.bf16.gmra.mxu0 %v4233
      %v6234 = vpop.f32.mrf.mxu0
      %v6235 = vadd.f32 0.0, %v6234
      %v6236 = vpop.f32.mrf.mxu0
      %v6237 = vadd.f32 0.0, %v6236
      %6238 = vmatmul.bf16.gmra.mxu0 %v4235
      %v6239 = vpop.f32.mrf.mxu0
      %v6240 = vadd.f32 0.0, %v6239
      %v6241 = vpop.f32.mrf.mxu0
      %v6242 = vadd.f32 0.0, %v6241
      %6243 = vmatmul.bf16.gmra.mxu0 %v4237
      %v6244 = vpop.f32.mrf.mxu0
      %v6245 = vadd.f32 0.0, %v6244
      %v6246 = vpop.f32.mrf.mxu0
      %v6247 = vadd.f32 0.0, %v6246
      %6248 = vmatmul.bf16.gmra.mxu0 %v4239
      %v6249 = vpop.f32.mrf.mxu0
      %v6250 = vadd.f32 0.0, %v6249
      %v6251 = vpop.f32.mrf.mxu0
      %v6252 = vadd.f32 0.0, %v6251
      %6253 = vmatmul.bf16.gmra.mxu0 %v4241
      %v6254 = vpop.f32.mrf.mxu0
      %v6255 = vadd.f32 0.0, %v6254
      %v6256 = vpop.f32.mrf.mxu0
      %v6257 = vadd.f32 0.0, %v6256
      %6258 = vmatmul.bf16.gmra.mxu0 %v5148
      %v6259 = vpop.f32.mrf.mxu0
      %v6260 = vadd.f32 0.0, %v6259
      %v6261 = vpop.f32.mrf.mxu0
      %v6262 = vadd.f32 0.0, %v6261
      %6263 = vmatmul.bf16.gmra.mxu0 %v6044
      %v6264 = vpop.f32.mrf.mxu0
      %v6265 = vadd.f32 0.0, %v6264
      %v6266 = vpop.f32.mrf.mxu0
      %v6267 = vadd.f32 0.0, %v6266
      %6268 = vmatmul.bf16.gmra.mxu0 %v6043
      %v6269 = vpop.f32.mrf.mxu0
      %v6270 = vadd.f32 0.0, %v6269
      %v6271 = vpop.f32.mrf.mxu0
      %6272 = vdwg.mxu0
      %v6273 = vadd.f32 %v5975, %v6137
      %v6274 = vadd.f32 %v5976, %v6210
      %v6275 = vadd.f32 %v5977, %v6139
      %v6276 = vadd.f32 %v5978, %v6212
      %v6277 = vadd.f32 %v5979, %v6142
      %v6278 = vadd.f32 %v5980, %v6215
      %v6279 = vadd.f32 %v5981, %v6144
      %v6280 = vadd.f32 %v5982, %v6217
      %v6281 = vadd.f32 %v5983, %v6147
      %v6282 = vadd.f32 %v5984, %v6220
      %v6283 = vadd.f32 %v5985, %v6149
      %v6284 = vadd.f32 %v5986, %v6222
      %v6285 = vadd.f32 %v5987, %v6152
      %v6286 = vadd.f32 %v5988, %v6225
      %v6287 = vadd.f32 %v5989, %v6154
      %v6288 = vadd.f32 %v5990, %v6227
      %v6289 = vadd.f32 %v5991, %v6157
      %v6290 = vadd.f32 %v5992, %v6230
      %v6291 = vadd.f32 %v5993, %v6159
      %v6292 = vadd.f32 %v5994, %v6232
      %v6293 = vadd.f32 %v5995, %v6162
      %v6294 = vadd.f32 %v5996, %v6235
      %v6295 = vadd.f32 %v5997, %v6164
      %v6296 = vadd.f32 %v5998, %v6237
      %v6297 = vadd.f32 %v5999, %v6167
      %v6298 = vadd.f32 %v6000, %v6240
      %v6299 = vadd.f32 %v6001, %v6169
      %v6300 = vadd.f32 %v6002, %v6242
      %v6301 = vadd.f32 %v6003, %v6172
      %v6302 = vadd.f32 %v6004, %v6245
      %v6303 = vadd.f32 %v6005, %v6174
      %v6304 = vadd.f32 %v6006, %v6247
      %v6305 = vadd.f32 %v6007, %v6177
      %v6306 = vadd.f32 %v6008, %v6250
      %v6307 = vadd.f32 %v6009, %v6179
      %v6308 = vadd.f32 %v6010, %v6252
      %v6309 = vadd.f32 %v6011, %v6182
      %v6310 = vadd.f32 %v6012, %v6255
      %v6311 = vadd.f32 %v6013, %v6184
      %v6312 = vadd.f32 %v6014, %v6257
      %v6313 = vadd.f32 %v6015, %v6187
      %v6314 = vadd.f32 %v6016, %v6260
      %v6315 = vadd.f32 %v6017, %v6189
      %v6316 = vadd.f32 %v6018, %v6262
      %v6317 = vadd.f32 %v6019, %v6192
      %v6318 = vadd.f32 %v6020, %v6265
      %v6319 = vadd.f32 %v6021, %v6194
      %v6320 = vadd.f32 %v6022, %v6267
      %v6321 = vadd.f32 %v6023, %v6197
      %v6322 = vadd.f32 %v6024, %v6270
      %v6323 = vld [vmem:[%s6] sm:$0x3]
      %v6325 = vperm.slane %v6323, 0
      %v6326 = vperm.slane %v6323, 1
      %v6329 = vmul.f32 %v6273, %v6325
      %v6330 = vmul.f32 %v6274, %v6326
      %v6331 = vmul.f32 %v6275, %v6325
      %v6332 = vmul.f32 %v6276, %v6326
      %v6333 = vmul.f32 %v6277, %v6325
      %v6334 = vmul.f32 %v6278, %v6326
      %v6335 = vmul.f32 %v6279, %v6325
      %v6336 = vmul.f32 %v6280, %v6326
      %v6337 = vmul.f32 %v6281, %v6325
      %v6338 = vmul.f32 %v6282, %v6326
      %v6339 = vmul.f32 %v6283, %v6325
      %v6340 = vmul.f32 %v6284, %v6326
      %v6341 = vmul.f32 %v6285, %v6325
      %v6342 = vmul.f32 %v6286, %v6326
      %v6343 = vmul.f32 %v6287, %v6325
      %v6344 = vmul.f32 %v6288, %v6326
      %v6345 = vmul.f32 %v6289, %v6325
      %v6346 = vmul.f32 %v6290, %v6326
      %v6347 = vmul.f32 %v6291, %v6325
      %v6348 = vmul.f32 %v6292, %v6326
      %v6349 = vmul.f32 %v6293, %v6325
      %v6350 = vmul.f32 %v6294, %v6326
      %v6351 = vmul.f32 %v6295, %v6325
      %v6352 = vmul.f32 %v6296, %v6326
      %v6353 = vmul.f32 %v6297, %v6325
      %v6354 = vmul.f32 %v6298, %v6326
      %v6355 = vmul.f32 %v6299, %v6325
      %v6356 = vmul.f32 %v6300, %v6326
      %v6357 = vmul.f32 %v6301, %v6325
      %v6358 = vmul.f32 %v6302, %v6326
      %v6359 = vmul.f32 %v6303, %v6325
      %v6360 = vmul.f32 %v6304, %v6326
      %v6361 = vmul.f32 %v6305, %v6325
      %v6362 = vmul.f32 %v6306, %v6326
      %v6363 = vmul.f32 %v6307, %v6325
      %v6364 = vmul.f32 %v6308, %v6326
      %v6365 = vmul.f32 %v6309, %v6325
      %v6366 = vmul.f32 %v6310, %v6326
      %v6367 = vmul.f32 %v6311, %v6325
      %v6368 = vmul.f32 %v6312, %v6326
      %v6369 = vmul.f32 %v6313, %v6325
      %v6370 = vmul.f32 %v6314, %v6326
      %v6371 = vmul.f32 %v6315, %v6325
      %v6372 = vmul.f32 %v6316, %v6326
      %v6373 = vmul.f32 %v6317, %v6325
      %v6374 = vmul.f32 %v6318, %v6326
      %v6375 = vmul.f32 %v6319, %v6325
      %v6376 = vmul.f32 %v6320, %v6326
      %v6377 = vmul.f32 %v6321, %v6325
      %v6378 = vmul.f32 %v6322, %v6326
      %v6379 = vld [vmem:[%s7] sm:$0x3]
      %v6381 = vperm.slane %v6379, 0
      %v6382 = vperm.slane %v6379, 1
      %v6385 = vadd.f32 %v6329, %v6381
      %v6386 = vadd.f32 %v6330, %v6382
      %v6387 = vadd.f32 %v6331, %v6381
      %v6388 = vadd.f32 %v6332, %v6382
      %v6389 = vadd.f32 %v6333, %v6381
      %v6390 = vadd.f32 %v6334, %v6382
      %v6391 = vadd.f32 %v6335, %v6381
      %v6392 = vadd.f32 %v6336, %v6382
      %v6393 = vadd.f32 %v6337, %v6381
      %v6394 = vadd.f32 %v6338, %v6382
      %v6395 = vadd.f32 %v6339, %v6381
      %v6396 = vadd.f32 %v6340, %v6382
      %v6397 = vadd.f32 %v6341, %v6381
      %v6398 = vadd.f32 %v6342, %v6382
      %v6399 = vadd.f32 %v6343, %v6381
      %v6400 = vadd.f32 %v6344, %v6382
      %v6401 = vadd.f32 %v6345, %v6381
      %v6402 = vadd.f32 %v6346, %v6382
      %v6403 = vadd.f32 %v6347, %v6381
      %v6404 = vadd.f32 %v6348, %v6382
      %v6405 = vadd.f32 %v6349, %v6381
      %v6406 = vadd.f32 %v6350, %v6382
      %v6407 = vadd.f32 %v6351, %v6381
      %v6408 = vadd.f32 %v6352, %v6382
      %v6409 = vadd.f32 %v6353, %v6381
      %v6410 = vadd.f32 %v6354, %v6382
      %v6411 = vadd.f32 %v6355, %v6381
      %v6412 = vadd.f32 %v6356, %v6382
      %v6413 = vadd.f32 %v6357, %v6381
      %v6414 = vadd.f32 %v6358, %v6382
      %v6415 = vadd.f32 %v6359, %v6381
      %v6416 = vadd.f32 %v6360, %v6382
      %v6417 = vadd.f32 %v6361, %v6381
      %v6418 = vadd.f32 %v6362, %v6382
      %v6419 = vadd.f32 %v6363, %v6381
      %v6420 = vadd.f32 %v6364, %v6382
      %v6421 = vadd.f32 %v6365, %v6381
      %v6422 = vadd.f32 %v6366, %v6382
      %v6423 = vadd.f32 %v6367, %v6381
      %v6424 = vadd.f32 %v6368, %v6382
      %v6425 = vadd.f32 %v6369, %v6381
      %v6426 = vadd.f32 %v6370, %v6382
      %v6427 = vadd.f32 %v6371, %v6381
      %v6428 = vadd.f32 %v6372, %v6382
      %v6429 = vadd.f32 %v6373, %v6381
      %v6430 = vadd.f32 %v6374, %v6382
      %v6431 = vadd.f32 %v6375, %v6381
      %v6432 = vadd.f32 %v6376, %v6382
      %v6433 = vadd.f32 %v6377, %v6381
      %v6434 = vadd.f32 %v6378, %v6382
      %v6435 = vmax.f32 %v6385, 0.0
      %v6436 = vmax.f32 %v6386, 0.0
      %v6437 = vmax.f32 %v6387, 0.0
      %v6438 = vmax.f32 %v6388, 0.0
      %v6439 = vmax.f32 %v6389, 0.0
      %v6440 = vmax.f32 %v6390, 0.0
      %v6441 = vmax.f32 %v6391, 0.0
      %v6442 = vmax.f32 %v6392, 0.0
      %v6443 = vmax.f32 %v6393, 0.0
      %v6444 = vmax.f32 %v6394, 0.0
      %v6445 = vmax.f32 %v6395, 0.0
      %v6446 = vmax.f32 %v6396, 0.0
      %v6447 = vmax.f32 %v6397, 0.0
      %v6448 = vmax.f32 %v6398, 0.0
      %v6449 = vmax.f32 %v6399, 0.0
      %v6450 = vmax.f32 %v6400, 0.0
      %v6451 = vmax.f32 %v6401, 0.0
      %v6452 = vmax.f32 %v6402, 0.0
      %v6453 = vmax.f32 %v6403, 0.0
      %v6454 = vmax.f32 %v6404, 0.0
      %v6455 = vmax.f32 %v6405, 0.0
      %v6456 = vmax.f32 %v6406, 0.0
      %v6457 = vmax.f32 %v6407, 0.0
      %v6458 = vmax.f32 %v6408, 0.0
      %v6459 = vmax.f32 %v6409, 0.0
      %v6460 = vmax.f32 %v6410, 0.0
      %v6461 = vmax.f32 %v6411, 0.0
      %v6462 = vmax.f32 %v6412, 0.0
      %v6463 = vmax.f32 %v6413, 0.0
      %v6464 = vmax.f32 %v6414, 0.0
      %v6465 = vmax.f32 %v6415, 0.0
      %v6466 = vmax.f32 %v6416, 0.0
      %v6467 = vmax.f32 %v6417, 0.0
      %v6468 = vmax.f32 %v6418, 0.0
      %v6469 = vmax.f32 %v6419, 0.0
      %v6470 = vmax.f32 %v6420, 0.0
      %v6471 = vmax.f32 %v6421, 0.0
      %v6472 = vmax.f32 %v6422, 0.0
      %v6473 = vmax.f32 %v6423, 0.0
      %v6474 = vmax.f32 %v6424, 0.0
      %v6475 = vmax.f32 %v6425, 0.0
      %v6476 = vmax.f32 %v6426, 0.0
      %v6477 = vmax.f32 %v6427, 0.0
      %v6478 = vmax.f32 %v6428, 0.0
      %v6479 = vmax.f32 %v6429, 0.0
      %v6480 = vmax.f32 %v6430, 0.0
      %v6481 = vmax.f32 %v6431, 0.0
      %v6482 = vmax.f32 %v6432, 0.0
      %v6483 = vmax.f32 %v6433, 0.0
      %v6484 = vmax.f32 %v6434, 0.0
      %v6531 = vrot.slane %v6435, 1
      %v6532 = vrot.slane %v6437, 1
      %v6533 = vsel %vm1675, %v6531, %v6532
      %v6534 = vrot.slane %v6436, 1
      %v6535 = vrot.slane %v6438, 1
      %v6536 = vsel %vm1675, %v6534, %v6535
      %v6537 = vrot.slane %v6439, 1
      %v6538 = vsel %vm1675, %v6532, %v6537
      %v6539 = vrot.slane %v6440, 1
      %v6540 = vsel %vm1675, %v6535, %v6539
      %v6541 = vrot.slane %v6441, 1
      %v6542 = vsel %vm1675, %v6537, %v6541
      %v6543 = vrot.slane %v6442, 1
      %v6544 = vsel %vm1675, %v6539, %v6543
      %v6545 = vrot.slane %v6443, 1
      %v6546 = vsel %vm1675, %v6541, %v6545
      %v6547 = vrot.slane %v6444, 1
      %v6548 = vsel %vm1675, %v6543, %v6547
      %v6549 = vrot.slane %v6445, 1
      %v6550 = vsel %vm1675, %v6545, %v6549
      %v6551 = vrot.slane %v6446, 1
      %v6552 = vsel %vm1675, %v6547, %v6551
      %v6553 = vrot.slane %v6447, 1
      %v6554 = vsel %vm1675, %v6549, %v6553
      %v6555 = vrot.slane %v6448, 1
      %v6556 = vsel %vm1675, %v6551, %v6555
      %v6557 = vrot.slane %v6449, 1
      %v6558 = vsel %vm1675, %v6553, %v6557
      %v6559 = vrot.slane %v6450, 1
      %v6560 = vsel %vm1675, %v6555, %v6559
      %v6561 = vrot.slane %v6451, 1
      %v6562 = vsel %vm1675, %v6557, %v6561
      %v6563 = vrot.slane %v6452, 1
      %v6564 = vsel %vm1675, %v6559, %v6563
      %v6565 = vrot.slane %v6453, 1
      %v6566 = vsel %vm1675, %v6561, %v6565
      %v6567 = vrot.slane %v6454, 1
      %v6568 = vsel %vm1675, %v6563, %v6567
      %v6569 = vrot.slane %v6455, 1
      %v6570 = vsel %vm1675, %v6565, %v6569
      %v6571 = vrot.slane %v6456, 1
      %v6572 = vsel %vm1675, %v6567, %v6571
      %v6573 = vrot.slane %v6457, 1
      %v6574 = vsel %vm1675, %v6569, %v6573
      %v6575 = vrot.slane %v6458, 1
      %v6576 = vsel %vm1675, %v6571, %v6575
      %v6577 = vrot.slane %v6459, 1
      %v6578 = vsel %vm1675, %v6573, %v6577
      %v6579 = vrot.slane %v6460, 1
      %v6580 = vsel %vm1675, %v6575, %v6579
      %v6581 = vrot.slane %v6461, 1
      %v6582 = vsel %vm1675, %v6577, %v6581
      %v6583 = vrot.slane %v6462, 1
      %v6584 = vsel %vm1675, %v6579, %v6583
      %v6585 = vrot.slane %v6463, 1
      %v6586 = vsel %vm1675, %v6581, %v6585
      %v6587 = vrot.slane %v6464, 1
      %v6588 = vsel %vm1675, %v6583, %v6587
      %v6589 = vrot.slane %v6465, 1
      %v6590 = vsel %vm1675, %v6585, %v6589
      %v6591 = vrot.slane %v6466, 1
      %v6592 = vsel %vm1675, %v6587, %v6591
      %v6593 = vrot.slane %v6467, 1
      %v6594 = vsel %vm1675, %v6589, %v6593
      %v6595 = vrot.slane %v6468, 1
      %v6596 = vsel %vm1675, %v6591, %v6595
      %v6597 = vrot.slane %v6469, 1
      %v6598 = vsel %vm1675, %v6593, %v6597
      %v6599 = vrot.slane %v6470, 1
      %v6600 = vsel %vm1675, %v6595, %v6599
      %v6601 = vrot.slane %v6471, 1
      %v6602 = vsel %vm1675, %v6597, %v6601
      %v6603 = vrot.slane %v6472, 1
      %v6604 = vsel %vm1675, %v6599, %v6603
      %v6605 = vrot.slane %v6473, 1
      %v6606 = vsel %vm1675, %v6601, %v6605
      %v6607 = vrot.slane %v6474, 1
      %v6608 = vsel %vm1675, %v6603, %v6607
      %v6609 = vrot.slane %v6475, 1
      %v6610 = vsel %vm1675, %v6605, %v6609
      %v6611 = vrot.slane %v6476, 1
      %v6612 = vsel %vm1675, %v6607, %v6611
      %v6613 = vrot.slane %v6477, 1
      %v6614 = vsel %vm1675, %v6609, %v6613
      %v6615 = vrot.slane %v6478, 1
      %v6616 = vsel %vm1675, %v6611, %v6615
      %v6617 = vrot.slane %v6479, 1
      %v6618 = vsel %vm1675, %v6613, %v6617
      %v6619 = vrot.slane %v6480, 1
      %v6620 = vsel %vm1675, %v6615, %v6619
      %v6665 = vmax.f32 %v6435, %v6533
      %v6666 = vmax.f32 %v6436, %v6536
      %v6667 = vmax.f32 %v6437, %v6538
      %v6668 = vmax.f32 %v6438, %v6540
      %v6669 = vmax.f32 %v6439, %v6542
      %v6670 = vmax.f32 %v6440, %v6544
      %v6671 = vmax.f32 %v6441, %v6546
      %v6672 = vmax.f32 %v6442, %v6548
      %v6673 = vmax.f32 %v6443, %v6550
      %v6674 = vmax.f32 %v6444, %v6552
      %v6675 = vmax.f32 %v6445, %v6554
      %v6676 = vmax.f32 %v6446, %v6556
      %v6677 = vmax.f32 %v6447, %v6558
      %v6678 = vmax.f32 %v6448, %v6560
      %v6679 = vmax.f32 %v6449, %v6562
      %v6680 = vmax.f32 %v6450, %v6564
      %v6681 = vmax.f32 %v6451, %v6566
      %v6682 = vmax.f32 %v6452, %v6568
      %v6683 = vmax.f32 %v6453, %v6570
      %v6684 = vmax.f32 %v6454, %v6572
      %v6685 = vmax.f32 %v6455, %v6574
      %v6686 = vmax.f32 %v6456, %v6576
      %v6687 = vmax.f32 %v6457, %v6578
      %v6688 = vmax.f32 %v6458, %v6580
      %v6689 = vmax.f32 %v6459, %v6582
      %v6690 = vmax.f32 %v6460, %v6584
      %v6691 = vmax.f32 %v6461, %v6586
      %v6692 = vmax.f32 %v6462, %v6588
      %v6693 = vmax.f32 %v6463, %v6590
      %v6694 = vmax.f32 %v6464, %v6592
      %v6695 = vmax.f32 %v6465, %v6594
      %v6696 = vmax.f32 %v6466, %v6596
      %v6697 = vmax.f32 %v6467, %v6598
      %v6698 = vmax.f32 %v6468, %v6600
      %v6699 = vmax.f32 %v6469, %v6602
      %v6700 = vmax.f32 %v6470, %v6604
      %v6701 = vmax.f32 %v6471, %v6606
      %v6702 = vmax.f32 %v6472, %v6608
      %v6703 = vmax.f32 %v6473, %v6610
      %v6704 = vmax.f32 %v6474, %v6612
      %v6705 = vmax.f32 %v6475, %v6614
      %v6706 = vmax.f32 %v6476, %v6616
      %v6707 = vmax.f32 %v6477, %v6618
      %v6708 = vmax.f32 %v6478, %v6620
      %v6713 = vrot.slane %v6481, 1
      %v6714 = vsel %vm1675, %v6617, %v6713
      %v6715 = vrot.slane %v6482, 1
      %v6716 = vsel %vm1675, %v6619, %v6715
      %v6717 = vrot.slane %v6483, 1
      %v6718 = vsel %vm1675, %v6713, %v6717
      %v6719 = vrot.slane %v6484, 1
      %v6720 = vsel %vm1675, %v6715, %v6719
      %v6725 = vmax.f32 %v6479, %v6714
      %v6726 = vmax.f32 %v6480, %v6716
      %v6727 = vmax.f32 %v6481, %v6718
      %v6728 = vmax.f32 %v6482, %v6720
      %v6729 = vmax.f32 %v6665, %v6669
      %v6730 = vmax.f32 %v6666, %v6670
      %v6731 = vmax.f32 %v6667, %v6671
      %v6732 = vmax.f32 %v6668, %v6672
      %v6733 = vmax.f32 %v6669, %v6673
      %v6734 = vmax.f32 %v6670, %v6674
      %v6735 = vmax.f32 %v6671, %v6675
      %v6736 = vmax.f32 %v6672, %v6676
      %v6737 = vmax.f32 %v6673, %v6677
      %v6738 = vmax.f32 %v6674, %v6678
      %v6739 = vmax.f32 %v6675, %v6679
      %v6740 = vmax.f32 %v6676, %v6680
      %v6741 = vmax.f32 %v6677, %v6681
      %v6742 = vmax.f32 %v6678, %v6682
      %v6743 = vmax.f32 %v6679, %v6683
      %v6744 = vmax.f32 %v6680, %v6684
      %v6745 = vmax.f32 %v6681, %v6685
      %v6746 = vmax.f32 %v6682, %v6686
      %v6747 = vmax.f32 %v6683, %v6687
      %v6748 = vmax.f32 %v6684, %v6688
      %v6749 = vmax.f32 %v6685, %v6689
      %v6750 = vmax.f32 %v6686, %v6690
      %v6751 = vmax.f32 %v6687, %v6691
      %v6752 = vmax.f32 %v6688, %v6692
      %v6753 = vmax.f32 %v6689, %v6693
      %v6754 = vmax.f32 %v6690, %v6694
      %v6755 = vmax.f32 %v6691, %v6695
      %v6756 = vmax.f32 %v6692, %v6696
      %v6757 = vmax.f32 %v6693, %v6697
      %v6758 = vmax.f32 %v6694, %v6698
      %v6759 = vmax.f32 %v6695, %v6699
      %v6760 = vmax.f32 %v6696, %v6700
      %v6761 = vmax.f32 %v6697, %v6701
      %v6762 = vmax.f32 %v6698, %v6702
      %v6763 = vmax.f32 %v6699, %v6703
      %v6764 = vmax.f32 %v6700, %v6704
      %v6765 = vmax.f32 %v6701, %v6705
      %v6766 = vmax.f32 %v6702, %v6706
      %v6767 = vmax.f32 %v6703, %v6707
      %v6768 = vmax.f32 %v6704, %v6708
      %v6769 = vmax.f32 %v6705, %v6725
      %v6770 = vmax.f32 %v6706, %v6726
      %v6771 = vmax.f32 %v6707, %v6727
      %v6772 = vmax.f32 %v6708, %v6728
      %v6773 = vld [vmem:[%s8] sm:$0xff]
      %v6774 = vld [vmem:[%s8 + $0x8] sm:$0xff]
      %v6775 = vld [vmem:[%s8 + $0x10] sm:$0xff]
      %v6776 = vld [vmem:[%s8 + $0x18] sm:$0xff]
      %v6777 = vld [vmem:[%s8 + $0x20] sm:$0x33]
      %v6778 = vpack.c.bf16 %v6731, %v6729
      %v6779 = vpack.c.bf16 %v6732, %v6730
      %v6780 = vpack.c.bf16 %v6735, %v6733
      %v6781 = vpack.c.bf16 %v6736, %v6734
      %v6782 = vpack.c.bf16 %v6739, %v6737
      %v6783 = vpack.c.bf16 %v6740, %v6738
      %v6784 = vpack.c.bf16 %v6743, %v6741
      %v6785 = vpack.c.bf16 %v6744, %v6742
      %v6786 = vpack.c.bf16 %v6747, %v6745
      %v6787 = vpack.c.bf16 %v6748, %v6746
      %v6788 = vpack.c.bf16 %v6751, %v6749
      %v6789 = vpack.c.bf16 %v6752, %v6750
      %v6790 = vpack.c.bf16 %v6755, %v6753
      %v6791 = vpack.c.bf16 %v6756, %v6754
      %v6792 = vpack.c.bf16 %v6759, %v6757
      %v6793 = vpack.c.bf16 %v6760, %v6758
      %v6794 = vpack.c.bf16 %v6763, %v6761
      %v6795 = vpack.c.bf16 %v6764, %v6762
      %v6796 = vpack.c.bf16 %v6767, %v6765
      %v6797 = vpack.c.bf16 %v6768, %v6766
      %v6798 = vpack.c.bf16 %v6771, %v6769
      %v6799 = vpack.c.bf16 %v6772, %v6770
      %v6805 = vunpack.c.l.b16 %v6773
      %v6806 = vunpack.c.h.b16 %v6773
      %v6807 = vunpack.c.l.b16 %v6774
      %v6808 = vunpack.c.h.b16 %v6774
      %v6809 = vunpack.c.l.b16 %v6775
      %v6810 = vunpack.c.h.b16 %v6775
      %v6811 = vunpack.c.l.b16 %v6776
      %v6812 = vunpack.c.h.b16 %v6776
      %v6813 = vunpack.c.l.b16 %v6777
      %v6814 = vunpack.c.h.b16 %v6777
      %v6815 = vpack.c.b16 %v6807, %v6805
      %v6816 = vpack.c.b16 %v6808, %v6806
      %v6817 = vpack.c.b16 %v6811, %v6809
      %v6818 = vpack.c.b16 %v6812, %v6810
      %v6819 = vpack.c.b16 %v6813, %v6813
      %v6820 = vpack.c.b16 %v6814, %v6814
      %vm6824 = vcmask 392192
      %v6826 = vsel %vm6824, %v6816, 0
      %v6829 = vsel %vm6824, %v6818, 0
      %v6832 = vsel %vm6824, %v6820, 0
      %6834 = vmatpush.bf16.msra.mxu0 %v6792
      %6835 = vmatpush.bf16.msra.mxu0 %v6790
      %6836 = vmatpush.bf16.msra.mxu0 %v6788
      %6837 = vmatpush.bf16.msra.mxu0 %v6786
      %6838 = vmatpush.bf16.msra.mxu0 %v6784
      %6839 = vmatpush.bf16.msra.mxu0 %v6782
      %6840 = vmatpush.bf16.msra.mxu0 %v6780
      %6841 = vmatpush.bf16.msra.mxu0 %v6778
      %6842 = vmatmul.bf16.gmra.mxu0 %v6815
      %v6843 = vpop.f32.mrf.mxu0
      %v6844 = vadd.f32 0.0, %v6843
      %v6845 = vpop.f32.mrf.mxu0
      %v6846 = vadd.f32 0.0, %v6845
      %6847 = vmatmul.bf16.gmra.mxu0 %v6817
      %v6848 = vpop.f32.mrf.mxu0
      %v6849 = vadd.f32 0.0, %v6848
      %v6850 = vpop.f32.mrf.mxu0
      %v6851 = vadd.f32 0.0, %v6850
      %6852 = vmatmul.bf16.gmra.mxu0 %v6819
      %v6853 = vpop.f32.mrf.mxu0
      %v6854 = vadd.f32 0.0, %v6853
      %v6855 = vpop.f32.mrf.mxu0
      %6856 = vdwg.mxu0
      %6857 = vmatpush.bf16.msra.mxu0 0
      %6858 = vmatpush.bf16.msra.mxu0 0
      %6859 = vmatpush.bf16.msra.mxu0 0
      %6860 = vmatpush.bf16.msra.mxu0 0
      %6861 = vmatpush.bf16.msra.mxu0 0
      %6862 = vmatpush.bf16.msra.mxu0 %v6798
      %6863 = vmatpush.bf16.msra.mxu0 %v6796
      %6864 = vmatpush.bf16.msra.mxu0 %v6794
      %6865 = vmatmul.bf16.gmra.mxu0 %v6826
      %v6866 = vpop.f32.mrf.mxu0
      %v6867 = vadd.f32 %v6844, %v6866
      %v6868 = vpop.f32.mrf.mxu0
      %v6869 = vadd.f32 %v6846, %v6868
      %6870 = vmatmul.bf16.gmra.mxu0 %v6829
      %v6871 = vpop.f32.mrf.mxu0
      %v6872 = vadd.f32 %v6849, %v6871
      %v6873 = vpop.f32.mrf.mxu0
      %v6874 = vadd.f32 %v6851, %v6873
      %6875 = vmatmul.bf16.gmra.mxu0 %v6832
      %v6876 = vpop.f32.mrf.mxu0
      %v6877 = vadd.f32 %v6854, %v6876
      %v6878 = vpop.f32.mrf.mxu0
      %6879 = vdwg.mxu0
      %6880 = vmatpush.bf16.msra.mxu0 %v6793
      %6881 = vmatpush.bf16.msra.mxu0 %v6791
      %6882 = vmatpush.bf16.msra.mxu0 %v6789
      %6883 = vmatpush.bf16.msra.mxu0 %v6787
      %6884 = vmatpush.bf16.msra.mxu0 %v6785
      %6885 = vmatpush.bf16.msra.mxu0 %v6783
      %6886 = vmatpush.bf16.msra.mxu0 %v6781
      %6887 = vmatpush.bf16.msra.mxu0 %v6779
      %6888 = vmatmul.bf16.gmra.mxu0 %v6815
      %v6889 = vpop.f32.mrf.mxu0
      %v6890 = vadd.f32 0.0, %v6889
      %v6891 = vpop.f32.mrf.mxu0
      %v6892 = vadd.f32 0.0, %v6891
      %6893 = vmatmul.bf16.gmra.mxu0 %v6817
      %v6894 = vpop.f32.mrf.mxu0
      %v6895 = vadd.f32 0.0, %v6894
      %v6896 = vpop.f32.mrf.mxu0
      %v6897 = vadd.f32 0.0, %v6896
      %6898 = vmatmul.bf16.gmra.mxu0 %v6819
      %v6899 = vpop.f32.mrf.mxu0
      %v6900 = vadd.f32 0.0, %v6899
      %v6901 = vpop.f32.mrf.mxu0
      %6902 = vdwg.mxu0
      %6903 = vmatpush.bf16.msra.mxu0 0
      %6904 = vmatpush.bf16.msra.mxu0 0
      %6905 = vmatpush.bf16.msra.mxu0 0
      %6906 = vmatpush.bf16.msra.mxu0 0
      %6907 = vmatpush.bf16.msra.mxu0 0
      %6908 = vmatpush.bf16.msra.mxu0 %v6799
      %6909 = vmatpush.bf16.msra.mxu0 %v6797
      %6910 = vmatpush.bf16.msra.mxu0 %v6795
      %6911 = vmatmul.bf16.gmra.mxu0 %v6826
      %v6912 = vpop.f32.mrf.mxu0
      %v6913 = vadd.f32 %v6890, %v6912
      %v6914 = vpop.f32.mrf.mxu0
      %v6915 = vadd.f32 %v6892, %v6914
      %6916 = vmatmul.bf16.gmra.mxu0 %v6829
      %v6917 = vpop.f32.mrf.mxu0
      %v6918 = vadd.f32 %v6895, %v6917
      %v6919 = vpop.f32.mrf.mxu0
      %v6920 = vadd.f32 %v6897, %v6919
      %6921 = vmatmul.bf16.gmra.mxu0 %v6832
      %v6922 = vpop.f32.mrf.mxu0
      %v6923 = vadd.f32 %v6900, %v6922
      %v6924 = vpop.f32.mrf.mxu0
      %6925 = vdwg.mxu0
      %v6926 = vpack.c.bf16 %v6913, %v6867
      %v6927 = vpack.c.bf16 %v6915, %v6869
      %v6928 = vpack.c.bf16 %v6918, %v6872
      %v6929 = vpack.c.bf16 %v6920, %v6874
      %v6930 = vpack.c.bf16 %v6923, %v6877
      %6931 = vst [vmem:[%s332] sm:$0xff] %v6926
      %6932 = vst [vmem:[%s332 + $0x8] sm:$0xff] %v6927
      %6933 = vst [vmem:[%s332 + $0x10] sm:$0xff] %v6928
      %6934 = vst [vmem:[%s332 + $0x18] sm:$0xff] %v6929
      %6935 = vst [vmem:[%s332 + $0x20] sm:$0x33] %v6930
      %p6936 = scmp.lt.s32.totalorder %s20, 1
      %s6937 = scalar_select %p6936, %s20, 1
      %s6938 = smul.addr %s6937, 10
      %s6939 = smul.addr %s6938, 4
      %s6940 = scalar_lea.vmem %s9, %s6939
      // Predicated region
      $region57: #{pallas_forward.2} parent=55 // pred_check
        %p6941 = pneg %p232
      $region58: #{pallas_forward.2} parent=55 // pred_check_branch
        %6943 = sbr.rel (%p6941) target = $region60
      $region59: #{pallas_forward.2} parent=55 // pred_region
        _
      $region60: #{pallas_forward.2} parent=55 // pred_fallthru
        _
    $region56: #{pallas_forward.2} parent=5 // pred_fallthru
      _
    %p6944 = scmp.le.s32.totalorder 2, %s15
    // Predicated region
    $region61: #{pallas_forward.2} parent=5 // pred_check
      %p6945 = pneg %p6944
    $region62: #{pallas_forward.2} parent=5 // pred_check_branch
      %6947 = sbr.rel (%p6945) target = $region64
    $region63: #{pallas_forward.2} parent=5 // pred_region
      %s6948 = ssub.s32 %s15, 2
      // Predicated region
      $region65: #{pallas_forward.2} parent=63 // pred_check
        %p6949 = pneg %p238
      $region66: #{pallas_forward.2} parent=63 // pred_check_branch
        %6951 = sbr.rel (%p6949) target = $region68
      $region67: #{pallas_forward.2} parent=63 // pred_region
        %p6952 = scmp.lt.s32.totalorder %s21, 1
        %s6953 = scalar_select %p6952, %s21, 1
        %s6954 = smul.addr %s6953, 10
        %s6955 = smul.addr %s6954, 4
        %s6956 = scalar_lea.vmem %s9, %s6955
      $region68: #{pallas_forward.2} parent=63 // pred_fallthru
        _
    $region64: #{pallas_forward.2} parent=5 // pred_fallthru
      _
  $region6: #{pallas_forward.2} parent=0 // loop_footer
    %s19 = sadd.s32 1, %s15
  $region7: #{pallas_forward.2} parent=0 // loop_footer_branch
    %14 = sbr.rel target = $region3
  $region8: #{pallas_forward.2} parent=0 // loop_exit
    _

// kernel: pallas_forward.3
$region0: #{pallas_forward.3}
  #allocation0 [shape = 'u32[]', space=smem, size = 0x4, offset = 0x4, fixed_abs, tag = 'smem constant byte address 0x4 - core index']
  #allocation1 [shape = 'u32[72,128]{1,0:T(1,128)}', space=vmem, size = 0x9000, scoped, tag = 'internal scratch']
  %s0 = inlined_call_operand.vmem [shape: bf16[8,2304], index: 0, kind: input, shape index: {}]
  %s1 = inlined_call_operand.vmem [shape: bf16[2304,640], index: 1, kind: input, shape index: {}]
  %s2 = inlined_call_operand.vmem [shape: f32[1,640], index: 2, kind: input, shape index: {}]
  %s3 = inlined_call_operand.hbm [shape: f32[8,640], index: 3, kind: output, shape index: {}]
  %s4 = sld [smem:[#allocation0]]
  $region22: #{pallas_forward.3} parent=0
    _
  %s6 = ssub.s32 1, %s4
  %s7 = scalar_select 0, %s6, %s4
  $region1: #{pallas_forward.3} parent=0
    #allocation2 [shape = 'u8[20480]{0}', space=vmem, size = 0x5000, scoped, tag = 'output window, operand 0, single buffered']
    #allocation3 [shape = 's32[1]{0}', space=sflag, size = 0x4, scoped, tag = 'scoped memory for pallas_forward.3']
    %8 = vsyncpa [#allocation3], 0
    // Predicated region
    $region2: #{pallas_forward.3} parent=1 // pred_check
      _
    $region3: #{pallas_forward.3} parent=1 // pred_check_branch
      %10 = sbr.rel (0) target = $region5
    $region4: #{pallas_forward.3} parent=1 // pred_region
      _
    $region5: #{pallas_forward.3} parent=1 // pred_fallthru
      _
    // Predicated region
    $region6: #{pallas_forward.3} parent=1 // pred_check
      _
    $region7: #{pallas_forward.3} parent=1 // pred_check_branch
      %12 = sbr.rel (0) target = $region9
    $region8: #{pallas_forward.3} parent=1 // pred_region
      _
    $region9: #{pallas_forward.3} parent=1 // pred_fallthru
      _
    // Predicated region
    $region10: #{pallas_forward.3} parent=1 // pred_check
      _
    $region11: #{pallas_forward.3} parent=1 // pred_check_branch
      %14 = sbr.rel (0) target = $region13
    $region12: #{pallas_forward.3} parent=1 // pred_region
      _
    $region13: #{pallas_forward.3} parent=1 // pred_fallthru
      _
    %v15 = vld [vmem:[%s0] sm:$0xff]
    %v16 = vld [vmem:[%s0 + $0x8] sm:$0xff]
    %v17 = vld [vmem:[%s0 + $0x10] sm:$0xff]
    %v18 = vld [vmem:[%s0 + $0x18] sm:$0xff]
    %v19 = vld [vmem:[%s0 + $0x20] sm:$0xff]
    %v20 = vld [vmem:[%s0 + $0x28] sm:$0xff]
    %v21 = vld [vmem:[%s0 + $0x30] sm:$0xff]
    %v22 = vld [vmem:[%s0 + $0x38] sm:$0xff]
    %v23 = vld [vmem:[%s0 + $0x40] sm:$0xff]
    %v24 = vld [vmem:[%s1] sm:$0xff]
    %v25 = vld [vmem:[%s1 + $0x8] sm:$0xff]
    %v26 = vld [vmem:[%s1 + $0x10] sm:$0xf]
    %v27 = vld [vmem:[%s1 + $0x14] sm:$0xff]
    %v28 = vld [vmem:[%s1 + $0x1c] sm:$0xff]
    %v29 = vld [vmem:[%s1 + $0x24] sm:$0xf]
    %v30 = vld [vmem:[%s1 + $0x28] sm:$0xff]
    %v31 = vld [vmem:[%s1 + $0x30] sm:$0xff]
    %v32 = vld [vmem:[%s1 + $0x38] sm:$0xf]
    %v33 = vld [vmem:[%s1 + $0x3c] sm:$0xff]
    %v34 = vld [vmem:[%s1 + $0x44] sm:$0xff]
    %v35 = vld [vmem:[%s1 + $0x4c] sm:$0xf]
    %v36 = vld [vmem:[%s1 + $0x50] sm:$0xff]
    %v37 = vld [vmem:[%s1 + $0x58] sm:$0xff]
    %v38 = vld [vmem:[%s1 + $0x60] sm:$0xf]
    %v39 = vld [vmem:[%s1 + $0x64] sm:$0xff]
    %v40 = vld [vmem:[%s1 + $0x6c] sm:$0xff]
    %v41 = vld [vmem:[%s1 + $0x74] sm:$0xf]
    %v42 = vld [vmem:[%s1 + $0x78] sm:$0xff]
    %v43 = vld [vmem:[%s1 + $0x80] sm:$0xff]
    %v44 = vld [vmem:[%s1 + $0x88] sm:$0xf]
    %v45 = vld [vmem:[%s1 + $0x8c] sm:$0xff]
    %v46 = vld [vmem:[%s1 + $0x94] sm:$0xff]
    %v47 = vld [vmem:[%s1 + $0x9c] sm:$0xf]
    %v48 = vld [vmem:[%s1 + $0xa0] sm:$0xff]
    %v49 = vld [vmem:[%s1 + $0xa8] sm:$0xff]
    %v50 = vld [vmem:[%s1 + $0xb0] sm:$0xf]
    %v51 = vld [vmem:[%s1 + $0xb4] sm:$0xff]
    %v52 = vld [vmem:[%s1 + $0xbc] sm:$0xff]
    %v53 = vld [vmem:[%s1 + $0xc4] sm:$0xf]
    %v54 = vld [vmem:[%s1 + $0xc8] sm:$0xff]
    %v55 = vld [vmem:[%s1 + $0xd0] sm:$0xff]
    %v56 = vld [vmem:[%s1 + $0xd8] sm:$0xf]
    %v57 = vld [vmem:[%s1 + $0xdc] sm:$0xff]
    %v58 = vld [vmem:[%s1 + $0xe4] sm:$0xff]
    %v59 = vld [vmem:[%s1 + $0xec] sm:$0xf]
    %v60 = vld [vmem:[%s1 + $0xf0] sm:$0xff]
    %v61 = vld [vmem:[%s1 + $0xf8] sm:$0xff]
    %v62 = vld [vmem:[%s1 + $0x100] sm:$0xf]
    %v63 = vld [vmem:[%s1 + $0x104] sm:$0xff]
    %v64 = vld [vmem:[%s1 + $0x10c] sm:$0xff]
    %v65 = vld [vmem:[%s1 + $0x114] sm:$0xf]
    %v66 = vld [vmem:[%s1 + $0x118] sm:$0xff]
    %v67 = vld [vmem:[%s1 + $0x120] sm:$0xff]
    %v68 = vld [vmem:[%s1 + $0x128] sm:$0xf]
    %v69 = vld [vmem:[%s1 + $0x12c] sm:$0xff]
    %v70 = vld [vmem:[%s1 + $0x134] sm:$0xff]
    %v71 = vld [vmem:[%s1 + $0x13c] sm:$0xf]
    %v72 = vld [vmem:[%s1 + $0x140] sm:$0xff]
    %v73 = vld [vmem:[%s1 + $0x148] sm:$0xff]
    %v74 = vld [vmem:[%s1 + $0x150] sm:$0xf]
    %v75 = vld [vmem:[%s1 + $0x154] sm:$0xff]
    %v76 = vld [vmem:[%s1 + $0x15c] sm:$0xff]
    %v77 = vld [vmem:[%s1 + $0x164] sm:$0xf]
    %v78 = vld [vmem:[%s1 + $0x168] sm:$0xff]
    %v79 = vld [vmem:[%s1 + $0x170] sm:$0xff]
    %v80 = vld [vmem:[%s1 + $0x178] sm:$0xf]
    %v81 = vld [vmem:[%s1 + $0x17c] sm:$0xff]
    %v82 = vld [vmem:[%s1 + $0x184] sm:$0xff]
    %v83 = vld [vmem:[%s1 + $0x18c] sm:$0xf]
    %v84 = vld [vmem:[%s1 + $0x190] sm:$0xff]
    %v85 = vld [vmem:[%s1 + $0x198] sm:$0xff]
    %v86 = vld [vmem:[%s1 + $0x1a0] sm:$0xf]
    %v87 = vld [vmem:[%s1 + $0x1a4] sm:$0xff]
    %v88 = vld [vmem:[%s1 + $0x1ac] sm:$0xff]
    %v89 = vld [vmem:[%s1 + $0x1b4] sm:$0xf]
    %v90 = vld [vmem:[%s1 + $0x1b8] sm:$0xff]
    %v91 = vld [vmem:[%s1 + $0x1c0] sm:$0xff]
    %v92 = vld [vmem:[%s1 + $0x1c8] sm:$0xf]
    %v93 = vld [vmem:[%s1 + $0x1cc] sm:$0xff]
    %v94 = vld [vmem:[%s1 + $0x1d4] sm:$0xff]
    %v95 = vld [vmem:[%s1 + $0x1dc] sm:$0xf]
    %v96 = vld [vmem:[%s1 + $0x1e0] sm:$0xff]
    %v97 = vld [vmem:[%s1 + $0x1e8] sm:$0xff]
    %v98 = vld [vmem:[%s1 + $0x1f0] sm:$0xf]
    %v99 = vld [vmem:[%s1 + $0x1f4] sm:$0xff]
    %v100 = vld [vmem:[%s1 + $0x1fc] sm:$0xff]
    %v101 = vld [vmem:[%s1 + $0x204] sm:$0xf]
    %v102 = vld [vmem:[%s1 + $0x208] sm:$0xff]
    %v103 = vld [vmem:[%s1 + $0x210] sm:$0xff]
    %v104 = vld [vmem:[%s1 + $0x218] sm:$0xf]
    %v105 = vld [vmem:[%s1 + $0x21c] sm:$0xff]
    %v106 = vld [vmem:[%s1 + $0x224] sm:$0xff]
    %v107 = vld [vmem:[%s1 + $0x22c] sm:$0xf]
    %v108 = vld [vmem:[%s1 + $0x230] sm:$0xff]
    %v109 = vld [vmem:[%s1 + $0x238] sm:$0xff]
    %v110 = vld [vmem:[%s1 + $0x240] sm:$0xf]
    %v111 = vld [vmem:[%s1 + $0x244] sm:$0xff]
    %v112 = vld [vmem:[%s1 + $0x24c] sm:$0xff]
    %v113 = vld [vmem:[%s1 + $0x254] sm:$0xf]
    %v114 = vld [vmem:[%s1 + $0x258] sm:$0xff]
    %v115 = vld [vmem:[%s1 + $0x260] sm:$0xff]
    %v116 = vld [vmem:[%s1 + $0x268] sm:$0xf]
    %v117 = vld [vmem:[%s1 + $0x26c] sm:$0xff]
    %v118 = vld [vmem:[%s1 + $0x274] sm:$0xff]
    %v119 = vld [vmem:[%s1 + $0x27c] sm:$0xf]
    %v120 = vld [vmem:[%s1 + $0x280] sm:$0xff]
    %v121 = vld [vmem:[%s1 + $0x288] sm:$0xff]
    %v122 = vld [vmem:[%s1 + $0x290] sm:$0xf]
    %v123 = vld [vmem:[%s1 + $0x294] sm:$0xff]
    %v124 = vld [vmem:[%s1 + $0x29c] sm:$0xff]
    %v125 = vld [vmem:[%s1 + $0x2a4] sm:$0xf]
    %v126 = vld [vmem:[%s1 + $0x2a8] sm:$0xff]
    %v127 = vld [vmem:[%s1 + $0x2b0] sm:$0xff]
    %v128 = vld [vmem:[%s1 + $0x2b8] sm:$0xf]
    %v129 = vld [vmem:[%s1 + $0x2bc] sm:$0xff]
    %v130 = vld [vmem:[%s1 + $0x2c4] sm:$0xff]
    %v131 = vld [vmem:[%s1 + $0x2cc] sm:$0xf]
    %v132 = vld [vmem:[%s1 + $0x2d0] sm:$0xff]
    %v133 = vld [vmem:[%s1 + $0x2d8] sm:$0xff]
    %v134 = vld [vmem:[%s1 + $0x2e0] sm:$0xf]
    %v135 = vld [vmem:[%s1 + $0x2e4] sm:$0xff]
    %v136 = vld [vmem:[%s1 + $0x2ec] sm:$0xff]
    %v137 = vld [vmem:[%s1 + $0x2f4] sm:$0xf]
    %v138 = vld [vmem:[%s1 + $0x2f8] sm:$0xff]
    %v139 = vld [vmem:[%s1 + $0x300] sm:$0xff]
    %v140 = vld [vmem:[%s1 + $0x308] sm:$0xf]
    %v141 = vld [vmem:[%s1 + $0x30c] sm:$0xff]
    %v142 = vld [vmem:[%s1 + $0x314] sm:$0xff]
    %v143 = vld [vmem:[%s1 + $0x31c] sm:$0xf]
    %v144 = vld [vmem:[%s1 + $0x320] sm:$0xff]
    %v145 = vld [vmem:[%s1 + $0x328] sm:$0xff]
    %v146 = vld [vmem:[%s1 + $0x330] sm:$0xf]
    %v147 = vld [vmem:[%s1 + $0x334] sm:$0xff]
    %v148 = vld [vmem:[%s1 + $0x33c] sm:$0xff]
    %v149 = vld [vmem:[%s1 + $0x344] sm:$0xf]
    %v150 = vld [vmem:[%s1 + $0x348] sm:$0xff]
    %v151 = vld [vmem:[%s1 + $0x350] sm:$0xff]
    %v152 = vld [vmem:[%s1 + $0x358] sm:$0xf]
    %v153 = vld [vmem:[%s1 + $0x35c] sm:$0xff]
    %v154 = vld [vmem:[%s1 + $0x364] sm:$0xff]
    %v155 = vld [vmem:[%s1 + $0x36c] sm:$0xf]
    %v156 = vld [vmem:[%s1 + $0x370] sm:$0xff]
    %v157 = vld [vmem:[%s1 + $0x378] sm:$0xff]
    %v158 = vld [vmem:[%s1 + $0x380] sm:$0xf]
    %v159 = vld [vmem:[%s1 + $0x384] sm:$0xff]
    %v160 = vld [vmem:[%s1 + $0x38c] sm:$0xff]
    %v161 = vld [vmem:[%s1 + $0x394] sm:$0xf]
    %v162 = vld [vmem:[%s1 + $0x398] sm:$0xff]
    %v163 = vld [vmem:[%s1 + $0x3a0] sm:$0xff]
    %v164 = vld [vmem:[%s1 + $0x3a8] sm:$0xf]
    %v165 = vld [vmem:[%s1 + $0x3ac] sm:$0xff]
    %v166 = vld [vmem:[%s1 + $0x3b4] sm:$0xff]
    %v167 = vld [vmem:[%s1 + $0x3bc] sm:$0xf]
    %v168 = vld [vmem:[%s1 + $0x3c0] sm:$0xff]
    %v169 = vld [vmem:[%s1 + $0x3c8] sm:$0xff]
    %v170 = vld [vmem:[%s1 + $0x3d0] sm:$0xf]
    %v171 = vld [vmem:[%s1 + $0x3d4] sm:$0xff]
    %v172 = vld [vmem:[%s1 + $0x3dc] sm:$0xff]
    %v173 = vld [vmem:[%s1 + $0x3e4] sm:$0xf]
    %v174 = vld [vmem:[%s1 + $0x3e8] sm:$0xff]
    %v175 = vld [vmem:[%s1 + $0x3f0] sm:$0xff]
    %v176 = vld [vmem:[%s1 + $0x3f8] sm:$0xf]
    %v177 = vld [vmem:[%s1 + $0x3fc] sm:$0xff]
    %v178 = vld [vmem:[%s1 + $0x404] sm:$0xff]
    %v179 = vld [vmem:[%s1 + $0x40c] sm:$0xf]
    %v180 = vld [vmem:[%s1 + $0x410] sm:$0xff]
    %v181 = vld [vmem:[%s1 + $0x418] sm:$0xff]
    %v182 = vld [vmem:[%s1 + $0x420] sm:$0xf]
    %v183 = vld [vmem:[%s1 + $0x424] sm:$0xff]
    %v184 = vld [vmem:[%s1 + $0x42c] sm:$0xff]
    %v185 = vld [vmem:[%s1 + $0x434] sm:$0xf]
    %v186 = vld [vmem:[%s1 + $0x438] sm:$0xff]
    %v187 = vld [vmem:[%s1 + $0x440] sm:$0xff]
    %v188 = vld [vmem:[%s1 + $0x448] sm:$0xf]
    %v189 = vld [vmem:[%s1 + $0x44c] sm:$0xff]
    %v190 = vld [vmem:[%s1 + $0x454] sm:$0xff]
    %v191 = vld [vmem:[%s1 + $0x45c] sm:$0xf]
    %v192 = vld [vmem:[%s1 + $0x460] sm:$0xff]
    %v193 = vld [vmem:[%s1 + $0x468] sm:$0xff]
    %v194 = vld [vmem:[%s1 + $0x470] sm:$0xf]
    %v195 = vld [vmem:[%s1 + $0x474] sm:$0xff]
    %v196 = vld [vmem:[%s1 + $0x47c] sm:$0xff]
    %v197 = vld [vmem:[%s1 + $0x484] sm:$0xf]
    %v198 = vld [vmem:[%s1 + $0x488] sm:$0xff]
    %v199 = vld [vmem:[%s1 + $0x490] sm:$0xff]
    %v200 = vld [vmem:[%s1 + $0x498] sm:$0xf]
    %v201 = vld [vmem:[%s1 + $0x49c] sm:$0xff]
    %v202 = vld [vmem:[%s1 + $0x4a4] sm:$0xff]
    %v203 = vld [vmem:[%s1 + $0x4ac] sm:$0xf]
    %v204 = vld [vmem:[%s1 + $0x4b0] sm:$0xff]
    %v205 = vld [vmem:[%s1 + $0x4b8] sm:$0xff]
    %v206 = vld [vmem:[%s1 + $0x4c0] sm:$0xf]
    %v207 = vld [vmem:[%s1 + $0x4c4] sm:$0xff]
    %v208 = vld [vmem:[%s1 + $0x4cc] sm:$0xff]
    %v209 = vld [vmem:[%s1 + $0x4d4] sm:$0xf]
    %v210 = vld [vmem:[%s1 + $0x4d8] sm:$0xff]
    %v211 = vld [vmem:[%s1 + $0x4e0] sm:$0xff]
    %v212 = vld [vmem:[%s1 + $0x4e8] sm:$0xf]
    %v213 = vld [vmem:[%s1 + $0x4ec] sm:$0xff]
    %v214 = vld [vmem:[%s1 + $0x4f4] sm:$0xff]
    %v215 = vld [vmem:[%s1 + $0x4fc] sm:$0xf]
    %v216 = vld [vmem:[%s1 + $0x500] sm:$0xff]
    %v217 = vld [vmem:[%s1 + $0x508] sm:$0xff]
    %v218 = vld [vmem:[%s1 + $0x510] sm:$0xf]
    %v219 = vld [vmem:[%s1 + $0x514] sm:$0xff]
    %v220 = vld [vmem:[%s1 + $0x51c] sm:$0xff]
    %v221 = vld [vmem:[%s1 + $0x524] sm:$0xf]
    %v222 = vld [vmem:[%s1 + $0x528] sm:$0xff]
    %v223 = vld [vmem:[%s1 + $0x530] sm:$0xff]
    %v224 = vld [vmem:[%s1 + $0x538] sm:$0xf]
    %v225 = vld [vmem:[%s1 + $0x53c] sm:$0xff]
    %v226 = vld [vmem:[%s1 + $0x544] sm:$0xff]
    %v227 = vld [vmem:[%s1 + $0x54c] sm:$0xf]
    %v228 = vld [vmem:[%s1 + $0x550] sm:$0xff]
    %v229 = vld [vmem:[%s1 + $0x558] sm:$0xff]
    %v230 = vld [vmem:[%s1 + $0x560] sm:$0xf]
    %v231 = vld [vmem:[%s1 + $0x564] sm:$0xff]
    %v232 = vld [vmem:[%s1 + $0x56c] sm:$0xff]
    %v233 = vld [vmem:[%s1 + $0x574] sm:$0xf]
    %v234 = vld [vmem:[%s1 + $0x578] sm:$0xff]
    %v235 = vld [vmem:[%s1 + $0x580] sm:$0xff]
    %v236 = vld [vmem:[%s1 + $0x588] sm:$0xf]
    %v237 = vld [vmem:[%s1 + $0x58c] sm:$0xff]
    %v238 = vld [vmem:[%s1 + $0x594] sm:$0xff]
    %v239 = vld [vmem:[%s1 + $0x59c] sm:$0xf]
    %v240 = vld [vmem:[%s1 + $0x5a0] sm:$0xff]
    %v241 = vld [vmem:[%s1 + $0x5a8] sm:$0xff]
    %v242 = vld [vmem:[%s1 + $0x5b0] sm:$0xf]
    %v243 = vld [vmem:[%s1 + $0x5b4] sm:$0xff]
    %v244 = vld [vmem:[%s1 + $0x5bc] sm:$0xff]
    %v245 = vld [vmem:[%s1 + $0x5c4] sm:$0xf]
    %v246 = vld [vmem:[%s1 + $0x5c8] sm:$0xff]
    %v247 = vld [vmem:[%s1 + $0x5d0] sm:$0xff]
    %v248 = vld [vmem:[%s1 + $0x5d8] sm:$0xf]
    %v249 = vld [vmem:[%s1 + $0x5dc] sm:$0xff]
    %v250 = vld [vmem:[%s1 + $0x5e4] sm:$0xff]
    %v251 = vld [vmem:[%s1 + $0x5ec] sm:$0xf]
    %v252 = vld [vmem:[%s1 + $0x5f0] sm:$0xff]
    %v253 = vld [vmem:[%s1 + $0x5f8] sm:$0xff]
    %v254 = vld [vmem:[%s1 + $0x600] sm:$0xf]
    %v255 = vld [vmem:[%s1 + $0x604] sm:$0xff]
    %v256 = vld [vmem:[%s1 + $0x60c] sm:$0xff]
    %v257 = vld [vmem:[%s1 + $0x614] sm:$0xf]
    %v258 = vld [vmem:[%s1 + $0x618] sm:$0xff]
    %v259 = vld [vmem:[%s1 + $0x620] sm:$0xff]
    %v260 = vld [vmem:[%s1 + $0x628] sm:$0xf]
    %v261 = vld [vmem:[%s1 + $0x62c] sm:$0xff]
    %v262 = vld [vmem:[%s1 + $0x634] sm:$0xff]
    %v263 = vld [vmem:[%s1 + $0x63c] sm:$0xf]
    %v264 = vld [vmem:[%s1 + $0x640] sm:$0xff]
    %v265 = vld [vmem:[%s1 + $0x648] sm:$0xff]
    %v266 = vld [vmem:[%s1 + $0x650] sm:$0xf]
    %v267 = vld [vmem:[%s1 + $0x654] sm:$0xff]
    %v268 = vld [vmem:[%s1 + $0x65c] sm:$0xff]
    %v269 = vld [vmem:[%s1 + $0x664] sm:$0xf]
    %v270 = vld [vmem:[%s1 + $0x668] sm:$0xff]
    %v271 = vld [vmem:[%s1 + $0x670] sm:$0xff]
    %v272 = vld [vmem:[%s1 + $0x678] sm:$0xf]
    %v273 = vld [vmem:[%s1 + $0x67c] sm:$0xff]
    %v274 = vld [vmem:[%s1 + $0x684] sm:$0xff]
    %v275 = vld [vmem:[%s1 + $0x68c] sm:$0xf]
    %v276 = vld [vmem:[%s1 + $0x690] sm:$0xff]
    %v277 = vld [vmem:[%s1 + $0x698] sm:$0xff]
    %v278 = vld [vmem:[%s1 + $0x6a0] sm:$0xf]
    %v279 = vld [vmem:[%s1 + $0x6a4] sm:$0xff]
    %v280 = vld [vmem:[%s1 + $0x6ac] sm:$0xff]
    %v281 = vld [vmem:[%s1 + $0x6b4] sm:$0xf]
    %v282 = vld [vmem:[%s1 + $0x6b8] sm:$0xff]
    %v283 = vld [vmem:[%s1 + $0x6c0] sm:$0xff]
    %v284 = vld [vmem:[%s1 + $0x6c8] sm:$0xf]
    %v285 = vld [vmem:[%s1 + $0x6cc] sm:$0xff]
    %v286 = vld [vmem:[%s1 + $0x6d4] sm:$0xff]
    %v287 = vld [vmem:[%s1 + $0x6dc] sm:$0xf]
    %v288 = vld [vmem:[%s1 + $0x6e0] sm:$0xff]
    %v289 = vld [vmem:[%s1 + $0x6e8] sm:$0xff]
    %v290 = vld [vmem:[%s1 + $0x6f0] sm:$0xf]
    %v291 = vld [vmem:[%s1 + $0x6f4] sm:$0xff]
    %v292 = vld [vmem:[%s1 + $0x6fc] sm:$0xff]
    %v293 = vld [vmem:[%s1 + $0x704] sm:$0xf]
    %v294 = vld [vmem:[%s1 + $0x708] sm:$0xff]
    %v295 = vld [vmem:[%s1 + $0x710] sm:$0xff]
    %v296 = vld [vmem:[%s1 + $0x718] sm:$0xf]
    %v297 = vld [vmem:[%s1 + $0x71c] sm:$0xff]
    %v298 = vld [vmem:[%s1 + $0x724] sm:$0xff]
    %v299 = vld [vmem:[%s1 + $0x72c] sm:$0xf]
    %v300 = vld [vmem:[%s1 + $0x730] sm:$0xff]
    %v301 = vld [vmem:[%s1 + $0x738] sm:$0xff]
    %v302 = vld [vmem:[%s1 + $0x740] sm:$0xf]
    %v303 = vld [vmem:[%s1 + $0x744] sm:$0xff]
    %v304 = vld [vmem:[%s1 + $0x74c] sm:$0xff]
    %v305 = vld [vmem:[%s1 + $0x754] sm:$0xf]
    %v306 = vld [vmem:[%s1 + $0x758] sm:$0xff]
    %v307 = vld [vmem:[%s1 + $0x760] sm:$0xff]
    %v308 = vld [vmem:[%s1 + $0x768] sm:$0xf]
    %v309 = vld [vmem:[%s1 + $0x76c] sm:$0xff]
    %v310 = vld [vmem:[%s1 + $0x774] sm:$0xff]
    %v311 = vld [vmem:[%s1 + $0x77c] sm:$0xf]
    %v312 = vld [vmem:[%s1 + $0x780] sm:$0xff]
    %v313 = vld [vmem:[%s1 + $0x788] sm:$0xff]
    %v314 = vld [vmem:[%s1 + $0x790] sm:$0xf]
    %v315 = vld [vmem:[%s1 + $0x794] sm:$0xff]
    %v316 = vld [vmem:[%s1 + $0x79c] sm:$0xff]
    %v317 = vld [vmem:[%s1 + $0x7a4] sm:$0xf]
    %v318 = vld [vmem:[%s1 + $0x7a8] sm:$0xff]
    %v319 = vld [vmem:[%s1 + $0x7b0] sm:$0xff]
    %v320 = vld [vmem:[%s1 + $0x7b8] sm:$0xf]
    %v321 = vld [vmem:[%s1 + $0x7bc] sm:$0xff]
    %v322 = vld [vmem:[%s1 + $0x7c4] sm:$0xff]
    %v323 = vld [vmem:[%s1 + $0x7cc] sm:$0xf]
    %v324 = vld [vmem:[%s1 + $0x7d0] sm:$0xff]
    %v325 = vld [vmem:[%s1 + $0x7d8] sm:$0xff]
    %v326 = vld [vmem:[%s1 + $0x7e0] sm:$0xf]
    %v327 = vld [vmem:[%s1 + $0x7e4] sm:$0xff]
    %v328 = vld [vmem:[%s1 + $0x7ec] sm:$0xff]
    %v329 = vld [vmem:[%s1 + $0x7f4] sm:$0xf]
    %v330 = vld [vmem:[%s1 + $0x7f8] sm:$0xff]
    %v331 = vld [vmem:[%s1 + $0x800] sm:$0xff]
    %v332 = vld [vmem:[%s1 + $0x808] sm:$0xf]
    %v333 = vld [vmem:[%s1 + $0x80c] sm:$0xff]
    %v334 = vld [vmem:[%s1 + $0x814] sm:$0xff]
    %v335 = vld [vmem:[%s1 + $0x81c] sm:$0xf]
    %v336 = vld [vmem:[%s1 + $0x820] sm:$0xff]
    %v337 = vld [vmem:[%s1 + $0x828] sm:$0xff]
    %v338 = vld [vmem:[%s1 + $0x830] sm:$0xf]
    %v339 = vld [vmem:[%s1 + $0x834] sm:$0xff]
    %v340 = vld [vmem:[%s1 + $0x83c] sm:$0xff]
    %v341 = vld [vmem:[%s1 + $0x844] sm:$0xf]
    %v342 = vld [vmem:[%s1 + $0x848] sm:$0xff]
    %v343 = vld [vmem:[%s1 + $0x850] sm:$0xff]
    %v344 = vld [vmem:[%s1 + $0x858] sm:$0xf]
    %v345 = vld [vmem:[%s1 + $0x85c] sm:$0xff]
    %v346 = vld [vmem:[%s1 + $0x864] sm:$0xff]
    %v347 = vld [vmem:[%s1 + $0x86c] sm:$0xf]
    %v348 = vld [vmem:[%s1 + $0x870] sm:$0xff]
    %v349 = vld [vmem:[%s1 + $0x878] sm:$0xff]
    %v350 = vld [vmem:[%s1 + $0x880] sm:$0xf]
    %v351 = vld [vmem:[%s1 + $0x884] sm:$0xff]
    %v352 = vld [vmem:[%s1 + $0x88c] sm:$0xff]
    %v353 = vld [vmem:[%s1 + $0x894] sm:$0xf]
    %v354 = vld [vmem:[%s1 + $0x898] sm:$0xff]
    %v355 = vld [vmem:[%s1 + $0x8a0] sm:$0xff]
    %v356 = vld [vmem:[%s1 + $0x8a8] sm:$0xf]
    %v357 = vld [vmem:[%s1 + $0x8ac] sm:$0xff]
    %v358 = vld [vmem:[%s1 + $0x8b4] sm:$0xff]
    %v359 = vld [vmem:[%s1 + $0x8bc] sm:$0xf]
    %v360 = vld [vmem:[%s1 + $0x8c0] sm:$0xff]
    %v361 = vld [vmem:[%s1 + $0x8c8] sm:$0xff]
    %v362 = vld [vmem:[%s1 + $0x8d0] sm:$0xf]
    %v363 = vld [vmem:[%s1 + $0x8d4] sm:$0xff]
    %v364 = vld [vmem:[%s1 + $0x8dc] sm:$0xff]
    %v365 = vld [vmem:[%s1 + $0x8e4] sm:$0xf]
    %v366 = vld [vmem:[%s1 + $0x8e8] sm:$0xff]
    %v367 = vld [vmem:[%s1 + $0x8f0] sm:$0xff]
    %v368 = vld [vmem:[%s1 + $0x8f8] sm:$0xf]
    %v369 = vld [vmem:[%s1 + $0x8fc] sm:$0xff]
    %v370 = vld [vmem:[%s1 + $0x904] sm:$0xff]
    %v371 = vld [vmem:[%s1 + $0x90c] sm:$0xf]
    %v372 = vld [vmem:[%s1 + $0x910] sm:$0xff]
    %v373 = vld [vmem:[%s1 + $0x918] sm:$0xff]
    %v374 = vld [vmem:[%s1 + $0x920] sm:$0xf]
    %v375 = vld [vmem:[%s1 + $0x924] sm:$0xff]
    %v376 = vld [vmem:[%s1 + $0x92c] sm:$0xff]
    %v377 = vld [vmem:[%s1 + $0x934] sm:$0xf]
    %v378 = vld [vmem:[%s1 + $0x938] sm:$0xff]
    %v379 = vld [vmem:[%s1 + $0x940] sm:$0xff]
    %v380 = vld [vmem:[%s1 + $0x948] sm:$0xf]
    %v381 = vld [vmem:[%s1 + $0x94c] sm:$0xff]
    %v382 = vld [vmem:[%s1 + $0x954] sm:$0xff]
    %v383 = vld [vmem:[%s1 + $0x95c] sm:$0xf]
    %v384 = vld [vmem:[%s1 + $0x960] sm:$0xff]
    %v385 = vld [vmem:[%s1 + $0x968] sm:$0xff]
    %v386 = vld [vmem:[%s1 + $0x970] sm:$0xf]
    %v387 = vld [vmem:[%s1 + $0x974] sm:$0xff]
    %v388 = vld [vmem:[%s1 + $0x97c] sm:$0xff]
    %v389 = vld [vmem:[%s1 + $0x984] sm:$0xf]
    %v390 = vld [vmem:[%s1 + $0x988] sm:$0xff]
    %v391 = vld [vmem:[%s1 + $0x990] sm:$0xff]
    %v392 = vld [vmem:[%s1 + $0x998] sm:$0xf]
    %v393 = vld [vmem:[%s1 + $0x99c] sm:$0xff]
    %v394 = vld [vmem:[%s1 + $0x9a4] sm:$0xff]
    %v395 = vld [vmem:[%s1 + $0x9ac] sm:$0xf]
    %v396 = vld [vmem:[%s1 + $0x9b0] sm:$0xff]
    %v397 = vld [vmem:[%s1 + $0x9b8] sm:$0xff]
    %v398 = vld [vmem:[%s1 + $0x9c0] sm:$0xf]
    %v399 = vld [vmem:[%s1 + $0x9c4] sm:$0xff]
    %v400 = vld [vmem:[%s1 + $0x9cc] sm:$0xff]
    %v401 = vld [vmem:[%s1 + $0x9d4] sm:$0xf]
    %v402 = vld [vmem:[%s1 + $0x9d8] sm:$0xff]
    %v403 = vld [vmem:[%s1 + $0x9e0] sm:$0xff]
    %v404 = vld [vmem:[%s1 + $0x9e8] sm:$0xf]
    %v405 = vld [vmem:[%s1 + $0x9ec] sm:$0xff]
    %v406 = vld [vmem:[%s1 + $0x9f4] sm:$0xff]
    %v407 = vld [vmem:[%s1 + $0x9fc] sm:$0xf]
    %v408 = vld [vmem:[%s1 + $0xa00] sm:$0xff]
    %v409 = vld [vmem:[%s1 + $0xa08] sm:$0xff]
    %v410 = vld [vmem:[%s1 + $0xa10] sm:$0xf]
    %v411 = vld [vmem:[%s1 + $0xa14] sm:$0xff]
    %v412 = vld [vmem:[%s1 + $0xa1c] sm:$0xff]
    %v413 = vld [vmem:[%s1 + $0xa24] sm:$0xf]
    %v414 = vld [vmem:[%s1 + $0xa28] sm:$0xff]
    %v415 = vld [vmem:[%s1 + $0xa30] sm:$0xff]
    %v416 = vld [vmem:[%s1 + $0xa38] sm:$0xf]
    %v417 = vld [vmem:[%s1 + $0xa3c] sm:$0xff]
    %v418 = vld [vmem:[%s1 + $0xa44] sm:$0xff]
    %v419 = vld [vmem:[%s1 + $0xa4c] sm:$0xf]
    %v420 = vld [vmem:[%s1 + $0xa50] sm:$0xff]
    %v421 = vld [vmem:[%s1 + $0xa58] sm:$0xff]
    %v422 = vld [vmem:[%s1 + $0xa60] sm:$0xf]
    %v423 = vld [vmem:[%s1 + $0xa64] sm:$0xff]
    %v424 = vld [vmem:[%s1 + $0xa6c] sm:$0xff]
    %v425 = vld [vmem:[%s1 + $0xa74] sm:$0xf]
    %v426 = vld [vmem:[%s1 + $0xa78] sm:$0xff]
    %v427 = vld [vmem:[%s1 + $0xa80] sm:$0xff]
    %v428 = vld [vmem:[%s1 + $0xa88] sm:$0xf]
    %v429 = vld [vmem:[%s1 + $0xa8c] sm:$0xff]
    %v430 = vld [vmem:[%s1 + $0xa94] sm:$0xff]
    %v431 = vld [vmem:[%s1 + $0xa9c] sm:$0xf]
    %v432 = vld [vmem:[%s1 + $0xaa0] sm:$0xff]
    %v433 = vld [vmem:[%s1 + $0xaa8] sm:$0xff]
    %v434 = vld [vmem:[%s1 + $0xab0] sm:$0xf]
    %v435 = vld [vmem:[%s1 + $0xab4] sm:$0xff]
    %v436 = vld [vmem:[%s1 + $0xabc] sm:$0xff]
    %v437 = vld [vmem:[%s1 + $0xac4] sm:$0xf]
    %v438 = vld [vmem:[%s1 + $0xac8] sm:$0xff]
    %v439 = vld [vmem:[%s1 + $0xad0] sm:$0xff]
    %v440 = vld [vmem:[%s1 + $0xad8] sm:$0xf]
    %v441 = vld [vmem:[%s1 + $0xadc] sm:$0xff]
    %v442 = vld [vmem:[%s1 + $0xae4] sm:$0xff]
    %v443 = vld [vmem:[%s1 + $0xaec] sm:$0xf]
    %v444 = vld [vmem:[%s1 + $0xaf0] sm:$0xff]
    %v445 = vld [vmem:[%s1 + $0xaf8] sm:$0xff]
    %v446 = vld [vmem:[%s1 + $0xb00] sm:$0xf]
    %v447 = vld [vmem:[%s1 + $0xb04] sm:$0xff]
    %v448 = vld [vmem:[%s1 + $0xb0c] sm:$0xff]
    %v449 = vld [vmem:[%s1 + $0xb14] sm:$0xf]
    %v450 = vld [vmem:[%s1 + $0xb18] sm:$0xff]
    %v451 = vld [vmem:[%s1 + $0xb20] sm:$0xff]
    %v452 = vld [vmem:[%s1 + $0xb28] sm:$0xf]
    %v453 = vld [vmem:[%s1 + $0xb2c] sm:$0xff]
    %v454 = vld [vmem:[%s1 + $0xb34] sm:$0xff]
    %v455 = vld [vmem:[%s1 + $0xb3c] sm:$0xf]
    %v456 = vld [vmem:[%s1 + $0xb40] sm:$0xff]
    %v457 = vld [vmem:[%s1 + $0xb48] sm:$0xff]
    %v458 = vld [vmem:[%s1 + $0xb50] sm:$0xf]
    %v459 = vld [vmem:[%s1 + $0xb54] sm:$0xff]
    %v460 = vld [vmem:[%s1 + $0xb5c] sm:$0xff]
    %v461 = vld [vmem:[%s1 + $0xb64] sm:$0xf]
    %v462 = vld [vmem:[%s1 + $0xb68] sm:$0xff]
    %v463 = vld [vmem:[%s1 + $0xb70] sm:$0xff]
    %v464 = vld [vmem:[%s1 + $0xb78] sm:$0xf]
    %v465 = vld [vmem:[%s1 + $0xb7c] sm:$0xff]
    %v466 = vld [vmem:[%s1 + $0xb84] sm:$0xff]
    %v467 = vld [vmem:[%s1 + $0xb8c] sm:$0xf]
    %v468 = vld [vmem:[%s1 + $0xb90] sm:$0xff]
    %v469 = vld [vmem:[%s1 + $0xb98] sm:$0xff]
    %v470 = vld [vmem:[%s1 + $0xba0] sm:$0xf]
    %v471 = vld [vmem:[%s1 + $0xba4] sm:$0xff]
    %v472 = vld [vmem:[%s1 + $0xbac] sm:$0xff]
    %v473 = vld [vmem:[%s1 + $0xbb4] sm:$0xf]
    %v474 = vld [vmem:[%s1 + $0xbb8] sm:$0xff]
    %v475 = vld [vmem:[%s1 + $0xbc0] sm:$0xff]
    %v476 = vld [vmem:[%s1 + $0xbc8] sm:$0xf]
    %v477 = vld [vmem:[%s1 + $0xbcc] sm:$0xff]
    %v478 = vld [vmem:[%s1 + $0xbd4] sm:$0xff]
    %v479 = vld [vmem:[%s1 + $0xbdc] sm:$0xf]
    %v480 = vld [vmem:[%s1 + $0xbe0] sm:$0xff]
    %v481 = vld [vmem:[%s1 + $0xbe8] sm:$0xff]
    %v482 = vld [vmem:[%s1 + $0xbf0] sm:$0xf]
    %v483 = vld [vmem:[%s1 + $0xbf4] sm:$0xff]
    %v484 = vld [vmem:[%s1 + $0xbfc] sm:$0xff]
    %v485 = vld [vmem:[%s1 + $0xc04] sm:$0xf]
    %v486 = vld [vmem:[%s1 + $0xc08] sm:$0xff]
    %v487 = vld [vmem:[%s1 + $0xc10] sm:$0xff]
    %v488 = vld [vmem:[%s1 + $0xc18] sm:$0xf]
    %v489 = vld [vmem:[%s1 + $0xc1c] sm:$0xff]
    %v490 = vld [vmem:[%s1 + $0xc24] sm:$0xff]
    %v491 = vld [vmem:[%s1 + $0xc2c] sm:$0xf]
    %v492 = vld [vmem:[%s1 + $0xc30] sm:$0xff]
    %v493 = vld [vmem:[%s1 + $0xc38] sm:$0xff]
    %v494 = vld [vmem:[%s1 + $0xc40] sm:$0xf]
    %v495 = vld [vmem:[%s1 + $0xc44] sm:$0xff]
    %v496 = vld [vmem:[%s1 + $0xc4c] sm:$0xff]
    %v497 = vld [vmem:[%s1 + $0xc54] sm:$0xf]
    %v498 = vld [vmem:[%s1 + $0xc58] sm:$0xff]
    %v499 = vld [vmem:[%s1 + $0xc60] sm:$0xff]
    %v500 = vld [vmem:[%s1 + $0xc68] sm:$0xf]
    %v501 = vld [vmem:[%s1 + $0xc6c] sm:$0xff]
    %v502 = vld [vmem:[%s1 + $0xc74] sm:$0xff]
    %v503 = vld [vmem:[%s1 + $0xc7c] sm:$0xf]
    %v504 = vld [vmem:[%s1 + $0xc80] sm:$0xff]
    %v505 = vld [vmem:[%s1 + $0xc88] sm:$0xff]
    %v506 = vld [vmem:[%s1 + $0xc90] sm:$0xf]
    %v507 = vld [vmem:[%s1 + $0xc94] sm:$0xff]
    %v508 = vld [vmem:[%s1 + $0xc9c] sm:$0xff]
    %v509 = vld [vmem:[%s1 + $0xca4] sm:$0xf]
    %v510 = vld [vmem:[%s1 + $0xca8] sm:$0xff]
    %v511 = vld [vmem:[%s1 + $0xcb0] sm:$0xff]
    %v512 = vld [vmem:[%s1 + $0xcb8] sm:$0xf]
    %v513 = vld [vmem:[%s1 + $0xcbc] sm:$0xff]
    %v514 = vld [vmem:[%s1 + $0xcc4] sm:$0xff]
    %v515 = vld [vmem:[%s1 + $0xccc] sm:$0xf]
    %v516 = vld [vmem:[%s1 + $0xcd0] sm:$0xff]
    %v517 = vld [vmem:[%s1 + $0xcd8] sm:$0xff]
    %v518 = vld [vmem:[%s1 + $0xce0] sm:$0xf]
    %v519 = vld [vmem:[%s1 + $0xce4] sm:$0xff]
    %v520 = vld [vmem:[%s1 + $0xcec] sm:$0xff]
    %v521 = vld [vmem:[%s1 + $0xcf4] sm:$0xf]
    %v522 = vld [vmem:[%s1 + $0xcf8] sm:$0xff]
    %v523 = vld [vmem:[%s1 + $0xd00] sm:$0xff]
    %v524 = vld [vmem:[%s1 + $0xd08] sm:$0xf]
    %v525 = vld [vmem:[%s1 + $0xd0c] sm:$0xff]
    %v526 = vld [vmem:[%s1 + $0xd14] sm:$0xff]
    %v527 = vld [vmem:[%s1 + $0xd1c] sm:$0xf]
    %v528 = vld [vmem:[%s1 + $0xd20] sm:$0xff]
    %v529 = vld [vmem:[%s1 + $0xd28] sm:$0xff]
    %v530 = vld [vmem:[%s1 + $0xd30] sm:$0xf]
    %v531 = vld [vmem:[%s1 + $0xd34] sm:$0xff]
    %v532 = vld [vmem:[%s1 + $0xd3c] sm:$0xff]
    %v533 = vld [vmem:[%s1 + $0xd44] sm:$0xf]
    %v534 = vld [vmem:[%s1 + $0xd48] sm:$0xff]
    %v535 = vld [vmem:[%s1 + $0xd50] sm:$0xff]
    %v536 = vld [vmem:[%s1 + $0xd58] sm:$0xf]
    %v537 = vld [vmem:[%s1 + $0xd5c] sm:$0xff]
    %v538 = vld [vmem:[%s1 + $0xd64] sm:$0xff]
    %v539 = vld [vmem:[%s1 + $0xd6c] sm:$0xf]
    %v540 = vld [vmem:[%s1 + $0xd70] sm:$0xff]
    %v541 = vld [vmem:[%s1 + $0xd78] sm:$0xff]
    %v542 = vld [vmem:[%s1 + $0xd80] sm:$0xf]
    %v543 = vld [vmem:[%s1 + $0xd84] sm:$0xff]
    %v544 = vld [vmem:[%s1 + $0xd8c] sm:$0xff]
    %v545 = vld [vmem:[%s1 + $0xd94] sm:$0xf]
    %v546 = vld [vmem:[%s1 + $0xd98] sm:$0xff]
    %v547 = vld [vmem:[%s1 + $0xda0] sm:$0xff]
    %v548 = vld [vmem:[%s1 + $0xda8] sm:$0xf]
    %v549 = vld [vmem:[%s1 + $0xdac] sm:$0xff]
    %v550 = vld [vmem:[%s1 + $0xdb4] sm:$0xff]
    %v551 = vld [vmem:[%s1 + $0xdbc] sm:$0xf]
    %v552 = vld [vmem:[%s1 + $0xdc0] sm:$0xff]
    %v553 = vld [vmem:[%s1 + $0xdc8] sm:$0xff]
    %v554 = vld [vmem:[%s1 + $0xdd0] sm:$0xf]
    %v555 = vld [vmem:[%s1 + $0xdd4] sm:$0xff]
    %v556 = vld [vmem:[%s1 + $0xddc] sm:$0xff]
    %v557 = vld [vmem:[%s1 + $0xde4] sm:$0xf]
    %v558 = vld [vmem:[%s1 + $0xde8] sm:$0xff]
    %v559 = vld [vmem:[%s1 + $0xdf0] sm:$0xff]
    %v560 = vld [vmem:[%s1 + $0xdf8] sm:$0xf]
    %v561 = vld [vmem:[%s1 + $0xdfc] sm:$0xff]
    %v562 = vld [vmem:[%s1 + $0xe04] sm:$0xff]
    %v563 = vld [vmem:[%s1 + $0xe0c] sm:$0xf]
    %v564 = vld [vmem:[%s1 + $0xe10] sm:$0xff]
    %v565 = vld [vmem:[%s1 + $0xe18] sm:$0xff]
    %v566 = vld [vmem:[%s1 + $0xe20] sm:$0xf]
    %v567 = vld [vmem:[%s1 + $0xe24] sm:$0xff]
    %v568 = vld [vmem:[%s1 + $0xe2c] sm:$0xff]
    %v569 = vld [vmem:[%s1 + $0xe34] sm:$0xf]
    %v570 = vld [vmem:[%s1 + $0xe38] sm:$0xff]
    %v571 = vld [vmem:[%s1 + $0xe40] sm:$0xff]
    %v572 = vld [vmem:[%s1 + $0xe48] sm:$0xf]
    %v573 = vld [vmem:[%s1 + $0xe4c] sm:$0xff]
    %v574 = vld [vmem:[%s1 + $0xe54] sm:$0xff]
    %v575 = vld [vmem:[%s1 + $0xe5c] sm:$0xf]
    %v576 = vld [vmem:[%s1 + $0xe60] sm:$0xff]
    %v577 = vld [vmem:[%s1 + $0xe68] sm:$0xff]
    %v578 = vld [vmem:[%s1 + $0xe70] sm:$0xf]
    %v579 = vld [vmem:[%s1 + $0xe74] sm:$0xff]
    %v580 = vld [vmem:[%s1 + $0xe7c] sm:$0xff]
    %v581 = vld [vmem:[%s1 + $0xe84] sm:$0xf]
    %v582 = vld [vmem:[%s1 + $0xe88] sm:$0xff]
    %v583 = vld [vmem:[%s1 + $0xe90] sm:$0xff]
    %v584 = vld [vmem:[%s1 + $0xe98] sm:$0xf]
    %v585 = vld [vmem:[%s1 + $0xe9c] sm:$0xff]
    %v586 = vld [vmem:[%s1 + $0xea4] sm:$0xff]
    %v587 = vld [vmem:[%s1 + $0xeac] sm:$0xf]
    %v588 = vld [vmem:[%s1 + $0xeb0] sm:$0xff]
    %v589 = vld [vmem:[%s1 + $0xeb8] sm:$0xff]
    %v590 = vld [vmem:[%s1 + $0xec0] sm:$0xf]
    %v591 = vld [vmem:[%s1 + $0xec4] sm:$0xff]
    %v592 = vld [vmem:[%s1 + $0xecc] sm:$0xff]
    %v593 = vld [vmem:[%s1 + $0xed4] sm:$0xf]
    %v594 = vld [vmem:[%s1 + $0xed8] sm:$0xff]
    %v595 = vld [vmem:[%s1 + $0xee0] sm:$0xff]
    %v596 = vld [vmem:[%s1 + $0xee8] sm:$0xf]
    %v597 = vld [vmem:[%s1 + $0xeec] sm:$0xff]
    %v598 = vld [vmem:[%s1 + $0xef4] sm:$0xff]
    %v599 = vld [vmem:[%s1 + $0xefc] sm:$0xf]
    %v600 = vld [vmem:[%s1 + $0xf00] sm:$0xff]
    %v601 = vld [vmem:[%s1 + $0xf08] sm:$0xff]
    %v602 = vld [vmem:[%s1 + $0xf10] sm:$0xf]
    %v603 = vld [vmem:[%s1 + $0xf14] sm:$0xff]
    %v604 = vld [vmem:[%s1 + $0xf1c] sm:$0xff]
    %v605 = vld [vmem:[%s1 + $0xf24] sm:$0xf]
    %v606 = vld [vmem:[%s1 + $0xf28] sm:$0xff]
    %v607 = vld [vmem:[%s1 + $0xf30] sm:$0xff]
    %v608 = vld [vmem:[%s1 + $0xf38] sm:$0xf]
    %v609 = vld [vmem:[%s1 + $0xf3c] sm:$0xff]
    %v610 = vld [vmem:[%s1 + $0xf44] sm:$0xff]
    %v611 = vld [vmem:[%s1 + $0xf4c] sm:$0xf]
    %v612 = vld [vmem:[%s1 + $0xf50] sm:$0xff]
    %v613 = vld [vmem:[%s1 + $0xf58] sm:$0xff]
    %v614 = vld [vmem:[%s1 + $0xf60] sm:$0xf]
    %v615 = vld [vmem:[%s1 + $0xf64] sm:$0xff]
    %v616 = vld [vmem:[%s1 + $0xf6c] sm:$0xff]
    %v617 = vld [vmem:[%s1 + $0xf74] sm:$0xf]
    %v618 = vld [vmem:[%s1 + $0xf78] sm:$0xff]
    %v619 = vld [vmem:[%s1 + $0xf80] sm:$0xff]
    %v620 = vld [vmem:[%s1 + $0xf88] sm:$0xf]
    %v621 = vld [vmem:[%s1 + $0xf8c] sm:$0xff]
    %v622 = vld [vmem:[%s1 + $0xf94] sm:$0xff]
    %v623 = vld [vmem:[%s1 + $0xf9c] sm:$0xf]
    %v624 = vld [vmem:[%s1 + $0xfa0] sm:$0xff]
    %v625 = vld [vmem:[%s1 + $0xfa8] sm:$0xff]
    %v626 = vld [vmem:[%s1 + $0xfb0] sm:$0xf]
    %v627 = vld [vmem:[%s1 + $0xfb4] sm:$0xff]
    %v628 = vld [vmem:[%s1 + $0xfbc] sm:$0xff]
    %v629 = vld [vmem:[%s1 + $0xfc4] sm:$0xf]
    %v630 = vld [vmem:[%s1 + $0xfc8] sm:$0xff]
    %v631 = vld [vmem:[%s1 + $0xfd0] sm:$0xff]
    %v632 = vld [vmem:[%s1 + $0xfd8] sm:$0xf]
    %v633 = vld [vmem:[%s1 + $0xfdc] sm:$0xff]
    %v634 = vld [vmem:[%s1 + $0xfe4] sm:$0xff]
    %v635 = vld [vmem:[%s1 + $0xfec] sm:$0xf]
    %v636 = vld [vmem:[%s1 + $0xff0] sm:$0xff]
    %v637 = vld [vmem:[%s1 + $0xff8] sm:$0xff]
    %v638 = vld [vmem:[%s1 + $0x1000] sm:$0xf]
    %v639 = vld [vmem:[%s1 + $0x1004] sm:$0xff]
    %v640 = vld [vmem:[%s1 + $0x100c] sm:$0xff]
    %v641 = vld [vmem:[%s1 + $0x1014] sm:$0xf]
    %v642 = vld [vmem:[%s1 + $0x1018] sm:$0xff]
    %v643 = vld [vmem:[%s1 + $0x1020] sm:$0xff]
    %v644 = vld [vmem:[%s1 + $0x1028] sm:$0xf]
    %v645 = vld [vmem:[%s1 + $0x102c] sm:$0xff]
    %v646 = vld [vmem:[%s1 + $0x1034] sm:$0xff]
    %v647 = vld [vmem:[%s1 + $0x103c] sm:$0xf]
    %v648 = vld [vmem:[%s1 + $0x1040] sm:$0xff]
    %v649 = vld [vmem:[%s1 + $0x1048] sm:$0xff]
    %v650 = vld [vmem:[%s1 + $0x1050] sm:$0xf]
    %v651 = vld [vmem:[%s1 + $0x1054] sm:$0xff]
    %v652 = vld [vmem:[%s1 + $0x105c] sm:$0xff]
    %v653 = vld [vmem:[%s1 + $0x1064] sm:$0xf]
    %v654 = vld [vmem:[%s1 + $0x1068] sm:$0xff]
    %v655 = vld [vmem:[%s1 + $0x1070] sm:$0xff]
    %v656 = vld [vmem:[%s1 + $0x1078] sm:$0xf]
    %v657 = vld [vmem:[%s1 + $0x107c] sm:$0xff]
    %v658 = vld [vmem:[%s1 + $0x1084] sm:$0xff]
    %v659 = vld [vmem:[%s1 + $0x108c] sm:$0xf]
    %v660 = vld [vmem:[%s1 + $0x1090] sm:$0xff]
    %v661 = vld [vmem:[%s1 + $0x1098] sm:$0xff]
    %v662 = vld [vmem:[%s1 + $0x10a0] sm:$0xf]
    %v663 = vld [vmem:[%s1 + $0x10a4] sm:$0xff]
    %v664 = vld [vmem:[%s1 + $0x10ac] sm:$0xff]
    %v665 = vld [vmem:[%s1 + $0x10b4] sm:$0xf]
    %v666 = vld [vmem:[%s1 + $0x10b8] sm:$0xff]
    %v667 = vld [vmem:[%s1 + $0x10c0] sm:$0xff]
    %v668 = vld [vmem:[%s1 + $0x10c8] sm:$0xf]
    %v669 = vld [vmem:[%s1 + $0x10cc] sm:$0xff]
    %v670 = vld [vmem:[%s1 + $0x10d4] sm:$0xff]
    %v671 = vld [vmem:[%s1 + $0x10dc] sm:$0xf]
    %v672 = vld [vmem:[%s1 + $0x10e0] sm:$0xff]
    %v673 = vld [vmem:[%s1 + $0x10e8] sm:$0xff]
    %v674 = vld [vmem:[%s1 + $0x10f0] sm:$0xf]
    %v675 = vld [vmem:[%s1 + $0x10f4] sm:$0xff]
    %v676 = vld [vmem:[%s1 + $0x10fc] sm:$0xff]
    %v677 = vld [vmem:[%s1 + $0x1104] sm:$0xf]
    %v678 = vld [vmem:[%s1 + $0x1108] sm:$0xff]
    %v679 = vld [vmem:[%s1 + $0x1110] sm:$0xff]
    %v680 = vld [vmem:[%s1 + $0x1118] sm:$0xf]
    %v681 = vld [vmem:[%s1 + $0x111c] sm:$0xff]
    %v682 = vld [vmem:[%s1 + $0x1124] sm:$0xff]
    %v683 = vld [vmem:[%s1 + $0x112c] sm:$0xf]
    %v684 = vld [vmem:[%s1 + $0x1130] sm:$0xff]
    %v685 = vld [vmem:[%s1 + $0x1138] sm:$0xff]
    %v686 = vld [vmem:[%s1 + $0x1140] sm:$0xf]
    %v687 = vld [vmem:[%s1 + $0x1144] sm:$0xff]
    %v688 = vld [vmem:[%s1 + $0x114c] sm:$0xff]
    %v689 = vld [vmem:[%s1 + $0x1154] sm:$0xf]
    %v690 = vld [vmem:[%s1 + $0x1158] sm:$0xff]
    %v691 = vld [vmem:[%s1 + $0x1160] sm:$0xff]
    %v692 = vld [vmem:[%s1 + $0x1168] sm:$0xf]
    %v693 = vld [vmem:[%s1 + $0x116c] sm:$0xff]
    %v694 = vld [vmem:[%s1 + $0x1174] sm:$0xff]
    %v695 = vld [vmem:[%s1 + $0x117c] sm:$0xf]
    %v696 = vld [vmem:[%s1 + $0x1180] sm:$0xff]
    %v697 = vld [vmem:[%s1 + $0x1188] sm:$0xff]
    %v698 = vld [vmem:[%s1 + $0x1190] sm:$0xf]
    %v699 = vld [vmem:[%s1 + $0x1194] sm:$0xff]
    %v700 = vld [vmem:[%s1 + $0x119c] sm:$0xff]
    %v701 = vld [vmem:[%s1 + $0x11a4] sm:$0xf]
    %v702 = vld [vmem:[%s1 + $0x11a8] sm:$0xff]
    %v703 = vld [vmem:[%s1 + $0x11b0] sm:$0xff]
    %v704 = vld [vmem:[%s1 + $0x11b8] sm:$0xf]
    %v705 = vld [vmem:[%s1 + $0x11bc] sm:$0xff]
    %v706 = vld [vmem:[%s1 + $0x11c4] sm:$0xff]
    %v707 = vld [vmem:[%s1 + $0x11cc] sm:$0xf]
    %v708 = vld [vmem:[%s1 + $0x11d0] sm:$0xff]
    %v709 = vld [vmem:[%s1 + $0x11d8] sm:$0xff]
    %v710 = vld [vmem:[%s1 + $0x11e0] sm:$0xf]
    %v711 = vld [vmem:[%s1 + $0x11e4] sm:$0xff]
    %v712 = vld [vmem:[%s1 + $0x11ec] sm:$0xff]
    %v713 = vld [vmem:[%s1 + $0x11f4] sm:$0xf]
    %v714 = vld [vmem:[%s1 + $0x11f8] sm:$0xff]
    %v715 = vld [vmem:[%s1 + $0x1200] sm:$0xff]
    %v716 = vld [vmem:[%s1 + $0x1208] sm:$0xf]
    %v717 = vld [vmem:[%s1 + $0x120c] sm:$0xff]
    %v718 = vld [vmem:[%s1 + $0x1214] sm:$0xff]
    %v719 = vld [vmem:[%s1 + $0x121c] sm:$0xf]
    %v720 = vld [vmem:[%s1 + $0x1220] sm:$0xff]
    %v721 = vld [vmem:[%s1 + $0x1228] sm:$0xff]
    %v722 = vld [vmem:[%s1 + $0x1230] sm:$0xf]
    %v723 = vld [vmem:[%s1 + $0x1234] sm:$0xff]
    %v724 = vld [vmem:[%s1 + $0x123c] sm:$0xff]
    %v725 = vld [vmem:[%s1 + $0x1244] sm:$0xf]
    %v726 = vld [vmem:[%s1 + $0x1248] sm:$0xff]
    %v727 = vld [vmem:[%s1 + $0x1250] sm:$0xff]
    %v728 = vld [vmem:[%s1 + $0x1258] sm:$0xf]
    %v729 = vld [vmem:[%s1 + $0x125c] sm:$0xff]
    %v730 = vld [vmem:[%s1 + $0x1264] sm:$0xff]
    %v731 = vld [vmem:[%s1 + $0x126c] sm:$0xf]
    %v732 = vld [vmem:[%s1 + $0x1270] sm:$0xff]
    %v733 = vld [vmem:[%s1 + $0x1278] sm:$0xff]
    %v734 = vld [vmem:[%s1 + $0x1280] sm:$0xf]
    %v735 = vld [vmem:[%s1 + $0x1284] sm:$0xff]
    %v736 = vld [vmem:[%s1 + $0x128c] sm:$0xff]
    %v737 = vld [vmem:[%s1 + $0x1294] sm:$0xf]
    %v738 = vld [vmem:[%s1 + $0x1298] sm:$0xff]
    %v739 = vld [vmem:[%s1 + $0x12a0] sm:$0xff]
    %v740 = vld [vmem:[%s1 + $0x12a8] sm:$0xf]
    %v741 = vld [vmem:[%s1 + $0x12ac] sm:$0xff]
    %v742 = vld [vmem:[%s1 + $0x12b4] sm:$0xff]
    %v743 = vld [vmem:[%s1 + $0x12bc] sm:$0xf]
    %v744 = vld [vmem:[%s1 + $0x12c0] sm:$0xff]
    %v745 = vld [vmem:[%s1 + $0x12c8] sm:$0xff]
    %v746 = vld [vmem:[%s1 + $0x12d0] sm:$0xf]
    %v747 = vld [vmem:[%s1 + $0x12d4] sm:$0xff]
    %v748 = vld [vmem:[%s1 + $0x12dc] sm:$0xff]
    %v749 = vld [vmem:[%s1 + $0x12e4] sm:$0xf]
    %v750 = vld [vmem:[%s1 + $0x12e8] sm:$0xff]
    %v751 = vld [vmem:[%s1 + $0x12f0] sm:$0xff]
    %v752 = vld [vmem:[%s1 + $0x12f8] sm:$0xf]
    %v753 = vld [vmem:[%s1 + $0x12fc] sm:$0xff]
    %v754 = vld [vmem:[%s1 + $0x1304] sm:$0xff]
    %v755 = vld [vmem:[%s1 + $0x130c] sm:$0xf]
    %v756 = vld [vmem:[%s1 + $0x1310] sm:$0xff]
    %v757 = vld [vmem:[%s1 + $0x1318] sm:$0xff]
    %v758 = vld [vmem:[%s1 + $0x1320] sm:$0xf]
    %v759 = vld [vmem:[%s1 + $0x1324] sm:$0xff]
    %v760 = vld [vmem:[%s1 + $0x132c] sm:$0xff]
    %v761 = vld [vmem:[%s1 + $0x1334] sm:$0xf]
    %v762 = vld [vmem:[%s1 + $0x1338] sm:$0xff]
    %v763 = vld [vmem:[%s1 + $0x1340] sm:$0xff]
    %v764 = vld [vmem:[%s1 + $0x1348] sm:$0xf]
    %v765 = vld [vmem:[%s1 + $0x134c] sm:$0xff]
    %v766 = vld [vmem:[%s1 + $0x1354] sm:$0xff]
    %v767 = vld [vmem:[%s1 + $0x135c] sm:$0xf]
    %v768 = vld [vmem:[%s1 + $0x1360] sm:$0xff]
    %v769 = vld [vmem:[%s1 + $0x1368] sm:$0xff]
    %v770 = vld [vmem:[%s1 + $0x1370] sm:$0xf]
    %v771 = vld [vmem:[%s1 + $0x1374] sm:$0xff]
    %v772 = vld [vmem:[%s1 + $0x137c] sm:$0xff]
    %v773 = vld [vmem:[%s1 + $0x1384] sm:$0xf]
    %v774 = vld [vmem:[%s1 + $0x1388] sm:$0xff]
    %v775 = vld [vmem:[%s1 + $0x1390] sm:$0xff]
    %v776 = vld [vmem:[%s1 + $0x1398] sm:$0xf]
    %v777 = vld [vmem:[%s1 + $0x139c] sm:$0xff]
    %v778 = vld [vmem:[%s1 + $0x13a4] sm:$0xff]
    %v779 = vld [vmem:[%s1 + $0x13ac] sm:$0xf]
    %v780 = vld [vmem:[%s1 + $0x13b0] sm:$0xff]
    %v781 = vld [vmem:[%s1 + $0x13b8] sm:$0xff]
    %v782 = vld [vmem:[%s1 + $0x13c0] sm:$0xf]
    %v783 = vld [vmem:[%s1 + $0x13c4] sm:$0xff]
    %v784 = vld [vmem:[%s1 + $0x13cc] sm:$0xff]
    %v785 = vld [vmem:[%s1 + $0x13d4] sm:$0xf]
    %v786 = vld [vmem:[%s1 + $0x13d8] sm:$0xff]
    %v787 = vld [vmem:[%s1 + $0x13e0] sm:$0xff]
    %v788 = vld [vmem:[%s1 + $0x13e8] sm:$0xf]
    %v789 = vld [vmem:[%s1 + $0x13ec] sm:$0xff]
    %v790 = vld [vmem:[%s1 + $0x13f4] sm:$0xff]
    %v791 = vld [vmem:[%s1 + $0x13fc] sm:$0xf]
    %v792 = vld [vmem:[%s1 + $0x1400] sm:$0xff]
    %v793 = vld [vmem:[%s1 + $0x1408] sm:$0xff]
    %v794 = vld [vmem:[%s1 + $0x1410] sm:$0xf]
    %v795 = vld [vmem:[%s1 + $0x1414] sm:$0xff]
    %v796 = vld [vmem:[%s1 + $0x141c] sm:$0xff]
    %v797 = vld [vmem:[%s1 + $0x1424] sm:$0xf]
    %v798 = vld [vmem:[%s1 + $0x1428] sm:$0xff]
    %v799 = vld [vmem:[%s1 + $0x1430] sm:$0xff]
    %v800 = vld [vmem:[%s1 + $0x1438] sm:$0xf]
    %v801 = vld [vmem:[%s1 + $0x143c] sm:$0xff]
    %v802 = vld [vmem:[%s1 + $0x1444] sm:$0xff]
    %v803 = vld [vmem:[%s1 + $0x144c] sm:$0xf]
    %v804 = vld [vmem:[%s1 + $0x1450] sm:$0xff]
    %v805 = vld [vmem:[%s1 + $0x1458] sm:$0xff]
    %v806 = vld [vmem:[%s1 + $0x1460] sm:$0xf]
    %v807 = vld [vmem:[%s1 + $0x1464] sm:$0xff]
    %v808 = vld [vmem:[%s1 + $0x146c] sm:$0xff]
    %v809 = vld [vmem:[%s1 + $0x1474] sm:$0xf]
    %v810 = vld [vmem:[%s1 + $0x1478] sm:$0xff]
    %v811 = vld [vmem:[%s1 + $0x1480] sm:$0xff]
    %v812 = vld [vmem:[%s1 + $0x1488] sm:$0xf]
    %v813 = vld [vmem:[%s1 + $0x148c] sm:$0xff]
    %v814 = vld [vmem:[%s1 + $0x1494] sm:$0xff]
    %v815 = vld [vmem:[%s1 + $0x149c] sm:$0xf]
    %v816 = vld [vmem:[%s1 + $0x14a0] sm:$0xff]
    %v817 = vld [vmem:[%s1 + $0x14a8] sm:$0xff]
    %v818 = vld [vmem:[%s1 + $0x14b0] sm:$0xf]
    %v819 = vld [vmem:[%s1 + $0x14b4] sm:$0xff]
    %v820 = vld [vmem:[%s1 + $0x14bc] sm:$0xff]
    %v821 = vld [vmem:[%s1 + $0x14c4] sm:$0xf]
    %v822 = vld [vmem:[%s1 + $0x14c8] sm:$0xff]
    %v823 = vld [vmem:[%s1 + $0x14d0] sm:$0xff]
    %v824 = vld [vmem:[%s1 + $0x14d8] sm:$0xf]
    %v825 = vld [vmem:[%s1 + $0x14dc] sm:$0xff]
    %v826 = vld [vmem:[%s1 + $0x14e4] sm:$0xff]
    %v827 = vld [vmem:[%s1 + $0x14ec] sm:$0xf]
    %v828 = vld [vmem:[%s1 + $0x14f0] sm:$0xff]
    %v829 = vld [vmem:[%s1 + $0x14f8] sm:$0xff]
    %v830 = vld [vmem:[%s1 + $0x1500] sm:$0xf]
    %v831 = vld [vmem:[%s1 + $0x1504] sm:$0xff]
    %v832 = vld [vmem:[%s1 + $0x150c] sm:$0xff]
    %v833 = vld [vmem:[%s1 + $0x1514] sm:$0xf]
    %v834 = vld [vmem:[%s1 + $0x1518] sm:$0xff]
    %v835 = vld [vmem:[%s1 + $0x1520] sm:$0xff]
    %v836 = vld [vmem:[%s1 + $0x1528] sm:$0xf]
    %v837 = vld [vmem:[%s1 + $0x152c] sm:$0xff]
    %v838 = vld [vmem:[%s1 + $0x1534] sm:$0xff]
    %v839 = vld [vmem:[%s1 + $0x153c] sm:$0xf]
    %v840 = vld [vmem:[%s1 + $0x1540] sm:$0xff]
    %v841 = vld [vmem:[%s1 + $0x1548] sm:$0xff]
    %v842 = vld [vmem:[%s1 + $0x1550] sm:$0xf]
    %v843 = vld [vmem:[%s1 + $0x1554] sm:$0xff]
    %v844 = vld [vmem:[%s1 + $0x155c] sm:$0xff]
    %v845 = vld [vmem:[%s1 + $0x1564] sm:$0xf]
    %v846 = vld [vmem:[%s1 + $0x1568] sm:$0xff]
    %v847 = vld [vmem:[%s1 + $0x1570] sm:$0xff]
    %v848 = vld [vmem:[%s1 + $0x1578] sm:$0xf]
    %v849 = vld [vmem:[%s1 + $0x157c] sm:$0xff]
    %v850 = vld [vmem:[%s1 + $0x1584] sm:$0xff]
    %v851 = vld [vmem:[%s1 + $0x158c] sm:$0xf]
    %v852 = vld [vmem:[%s1 + $0x1590] sm:$0xff]
    %v853 = vld [vmem:[%s1 + $0x1598] sm:$0xff]
    %v854 = vld [vmem:[%s1 + $0x15a0] sm:$0xf]
    %v855 = vld [vmem:[%s1 + $0x15a4] sm:$0xff]
    %v856 = vld [vmem:[%s1 + $0x15ac] sm:$0xff]
    %v857 = vld [vmem:[%s1 + $0x15b4] sm:$0xf]
    %v858 = vld [vmem:[%s1 + $0x15b8] sm:$0xff]
    %v859 = vld [vmem:[%s1 + $0x15c0] sm:$0xff]
    %v860 = vld [vmem:[%s1 + $0x15c8] sm:$0xf]
    %v861 = vld [vmem:[%s1 + $0x15cc] sm:$0xff]
    %v862 = vld [vmem:[%s1 + $0x15d4] sm:$0xff]
    %v863 = vld [vmem:[%s1 + $0x15dc] sm:$0xf]
    %v864 = vld [vmem:[%s1 + $0x15e0] sm:$0xff]
    %v865 = vld [vmem:[%s1 + $0x15e8] sm:$0xff]
    %v866 = vld [vmem:[%s1 + $0x15f0] sm:$0xf]
    %v867 = vld [vmem:[%s1 + $0x15f4] sm:$0xff]
    %v868 = vld [vmem:[%s1 + $0x15fc] sm:$0xff]
    %v869 = vld [vmem:[%s1 + $0x1604] sm:$0xf]
    %v870 = vld [vmem:[%s1 + $0x1608] sm:$0xff]
    %v871 = vld [vmem:[%s1 + $0x1610] sm:$0xff]
    %v872 = vld [vmem:[%s1 + $0x1618] sm:$0xf]
    %v873 = vld [vmem:[%s1 + $0x161c] sm:$0xff]
    %v874 = vld [vmem:[%s1 + $0x1624] sm:$0xff]
    %v875 = vld [vmem:[%s1 + $0x162c] sm:$0xf]
    %v876 = vld [vmem:[%s1 + $0x1630] sm:$0xff]
    %v877 = vld [vmem:[%s1 + $0x1638] sm:$0xff]
    %v878 = vld [vmem:[%s1 + $0x1640] sm:$0xf]
    %v879 = vld [vmem:[%s1 + $0x1644] sm:$0xff]
    %v880 = vld [vmem:[%s1 + $0x164c] sm:$0xff]
    %v881 = vld [vmem:[%s1 + $0x1654] sm:$0xf]
    %v882 = vld [vmem:[%s1 + $0x1658] sm:$0xff]
    %v883 = vld [vmem:[%s1 + $0x1660] sm:$0xff]
    %v884 = vld [vmem:[%s1 + $0x1668] sm:$0xf]
    %v885 = vld [vmem:[%s1 + $0x166c] sm:$0xff]
    %v886 = vld [vmem:[%s1 + $0x1674] sm:$0xff]
    %v887 = vld [vmem:[%s1 + $0x167c] sm:$0xf]
    %v888 = vld [vmem:[%s2] sm:$0x1f]
    %v890 = vperm.slane %v888, 0
    %v891 = vperm.slane %v888, 1
    %v892 = vperm.slane %v888, 2
    %v893 = vperm.slane %v888, 3
    %v894 = vperm.slane %v888, 4
    %v909 = vunpack.c.l.b16 %v15
    %v910 = vunpack.c.h.b16 %v15
    %v911 = vunpack.c.l.b16 %v16
    %v912 = vunpack.c.h.b16 %v16
    %v913 = vunpack.c.l.b16 %v17
    %v914 = vunpack.c.h.b16 %v17
    %v915 = vunpack.c.l.b16 %v18
    %v916 = vunpack.c.h.b16 %v18
    %v917 = vunpack.c.l.b16 %v19
    %v918 = vunpack.c.h.b16 %v19
    %v919 = vunpack.c.l.b16 %v20
    %v920 = vunpack.c.h.b16 %v20
    %v921 = vunpack.c.l.b16 %v21
    %v922 = vunpack.c.h.b16 %v21
    %v923 = vunpack.c.l.b16 %v22
    %v924 = vunpack.c.h.b16 %v22
    %v925 = vunpack.c.l.b16 %v23
    %v926 = vunpack.c.h.b16 %v23
    %v927 = vpack.c.b16 %v909, %v909
    %v928 = vpack.c.b16 %v910, %v910
    %v929 = vpack.c.b16 %v911, %v911
    %v930 = vpack.c.b16 %v912, %v912
    %v931 = vpack.c.b16 %v913, %v913
    %v932 = vpack.c.b16 %v914, %v914
    %v933 = vpack.c.b16 %v915, %v915
    %v934 = vpack.c.b16 %v916, %v916
    %v935 = vpack.c.b16 %v917, %v917
    %v936 = vpack.c.b16 %v918, %v918
    %v937 = vpack.c.b16 %v919, %v919
    %v938 = vpack.c.b16 %v920, %v920
    %v939 = vpack.c.b16 %v921, %v921
    %v940 = vpack.c.b16 %v922, %v922
    %v941 = vpack.c.b16 %v923, %v923
    %v942 = vpack.c.b16 %v924, %v924
    %v943 = vpack.c.b16 %v925, %v925
    %v944 = vpack.c.b16 %v926, %v926
    %v1827 = vunpack.c.l.b16 %v24
    %v1828 = vunpack.c.h.b16 %v24
    %v1829 = vunpack.c.l.b16 %v25
    %v1830 = vunpack.c.h.b16 %v25
    %v1831 = vunpack.c.l.b16 %v26
    %v1832 = vunpack.c.l.b16 %v27
    %v1833 = vunpack.c.h.b16 %v27
    %v1834 = vunpack.c.l.b16 %v28
    %v1835 = vunpack.c.h.b16 %v28
    %v1836 = vunpack.c.l.b16 %v29
    %v1837 = vunpack.c.l.b16 %v30
    %v1838 = vunpack.c.h.b16 %v30
    %v1839 = vunpack.c.l.b16 %v31
    %v1840 = vunpack.c.h.b16 %v31
    %v1841 = vunpack.c.l.b16 %v32
    %v1842 = vunpack.c.l.b16 %v33
    %v1843 = vunpack.c.h.b16 %v33
    %v1844 = vunpack.c.l.b16 %v34
    %v1845 = vunpack.c.h.b16 %v34
    %v1846 = vunpack.c.l.b16 %v35
    %v1847 = vunpack.c.l.b16 %v36
    %v1848 = vunpack.c.h.b16 %v36
    %v1849 = vunpack.c.l.b16 %v37
    %v1850 = vunpack.c.h.b16 %v37
    %v1851 = vunpack.c.l.b16 %v38
    %v1852 = vunpack.c.l.b16 %v39
    %v1853 = vunpack.c.h.b16 %v39
    %v1854 = vunpack.c.l.b16 %v40
    %v1855 = vunpack.c.h.b16 %v40
    %v1856 = vunpack.c.l.b16 %v41
    %v1857 = vunpack.c.l.b16 %v42
    %v1858 = vunpack.c.h.b16 %v42
    %v1859 = vunpack.c.l.b16 %v43
    %v1860 = vunpack.c.h.b16 %v43
    %v1861 = vunpack.c.l.b16 %v44
    %v1862 = vunpack.c.l.b16 %v45
    %v1863 = vunpack.c.h.b16 %v45
    %v1864 = vunpack.c.l.b16 %v46
    %v1865 = vunpack.c.h.b16 %v46
    %v1866 = vunpack.c.l.b16 %v47
    %v1867 = vunpack.c.l.b16 %v48
    %v1868 = vunpack.c.h.b16 %v48
    %v1869 = vunpack.c.l.b16 %v49
    %v1870 = vunpack.c.h.b16 %v49
    %v1871 = vunpack.c.l.b16 %v50
    %v1872 = vunpack.c.l.b16 %v51
    %v1873 = vunpack.c.h.b16 %v51
    %v1874 = vunpack.c.l.b16 %v52
    %v1875 = vunpack.c.h.b16 %v52
    %v1876 = vunpack.c.l.b16 %v53
    %v1877 = vunpack.c.l.b16 %v54
    %v1878 = vunpack.c.h.b16 %v54
    %v1879 = vunpack.c.l.b16 %v55
    %v1880 = vunpack.c.h.b16 %v55
    %v1881 = vunpack.c.l.b16 %v56
    %v1882 = vunpack.c.l.b16 %v57
    %v1883 = vunpack.c.h.b16 %v57
    %v1884 = vunpack.c.l.b16 %v58
    %v1885 = vunpack.c.h.b16 %v58
    %v1886 = vunpack.c.l.b16 %v59
    %v1887 = vunpack.c.l.b16 %v60
    %v1888 = vunpack.c.h.b16 %v60
    %v1889 = vunpack.c.l.b16 %v61
    %v1890 = vunpack.c.h.b16 %v61
    %v1891 = vunpack.c.l.b16 %v62
    %v1892 = vunpack.c.l.b16 %v63
    %v1893 = vunpack.c.h.b16 %v63
    %v1894 = vunpack.c.l.b16 %v64
    %v1895 = vunpack.c.h.b16 %v64
    %v1896 = vunpack.c.l.b16 %v65
    %v1897 = vunpack.c.l.b16 %v66
    %v1898 = vunpack.c.h.b16 %v66
    %v1899 = vunpack.c.l.b16 %v67
    %v1900 = vunpack.c.h.b16 %v67
    %v1901 = vunpack.c.l.b16 %v68
    %v1902 = vunpack.c.l.b16 %v69
    %v1903 = vunpack.c.h.b16 %v69
    %v1904 = vunpack.c.l.b16 %v70
    %v1905 = vunpack.c.h.b16 %v70
    %v1906 = vunpack.c.l.b16 %v71
    %v1907 = vunpack.c.l.b16 %v72
    %v1908 = vunpack.c.h.b16 %v72
    %v1909 = vunpack.c.l.b16 %v73
    %v1910 = vunpack.c.h.b16 %v73
    %v1911 = vunpack.c.l.b16 %v74
    %v1912 = vunpack.c.l.b16 %v75
    %v1913 = vunpack.c.h.b16 %v75
    %v1914 = vunpack.c.l.b16 %v76
    %v1915 = vunpack.c.h.b16 %v76
    %v1916 = vunpack.c.l.b16 %v77
    %v1917 = vunpack.c.l.b16 %v78
    %v1918 = vunpack.c.h.b16 %v78
    %v1919 = vunpack.c.l.b16 %v79
    %v1920 = vunpack.c.h.b16 %v79
    %v1921 = vunpack.c.l.b16 %v80
    %v1922 = vunpack.c.l.b16 %v81
    %v1923 = vunpack.c.h.b16 %v81
    %v1924 = vunpack.c.l.b16 %v82
    %v1925 = vunpack.c.h.b16 %v82
    %v1926 = vunpack.c.l.b16 %v83
    %v1927 = vunpack.c.l.b16 %v84
    %v1928 = vunpack.c.h.b16 %v84
    %v1929 = vunpack.c.l.b16 %v85
    %v1930 = vunpack.c.h.b16 %v85
    %v1931 = vunpack.c.l.b16 %v86
    %v1932 = vunpack.c.l.b16 %v87
    %v1933 = vunpack.c.h.b16 %v87
    %v1934 = vunpack.c.l.b16 %v88
    %v1935 = vunpack.c.h.b16 %v88
    %v1936 = vunpack.c.l.b16 %v89
    %v1937 = vunpack.c.l.b16 %v90
    %v1938 = vunpack.c.h.b16 %v90
    %v1939 = vunpack.c.l.b16 %v91
    %v1940 = vunpack.c.h.b16 %v91
    %v1941 = vunpack.c.l.b16 %v92
    %v1942 = vunpack.c.l.b16 %v93
    %v1943 = vunpack.c.h.b16 %v93
    %v1944 = vunpack.c.l.b16 %v94
    %v1945 = vunpack.c.h.b16 %v94
    %v1946 = vunpack.c.l.b16 %v95
    %v1947 = vunpack.c.l.b16 %v96
    %v1948 = vunpack.c.h.b16 %v96
    %v1949 = vunpack.c.l.b16 %v97
    %v1950 = vunpack.c.h.b16 %v97
    %v1951 = vunpack.c.l.b16 %v98
    %v1952 = vunpack.c.l.b16 %v99
    %v1953 = vunpack.c.h.b16 %v99
    %v1954 = vunpack.c.l.b16 %v100
    %v1955 = vunpack.c.h.b16 %v100
    %v1956 = vunpack.c.l.b16 %v101
    %v1957 = vunpack.c.l.b16 %v102
    %v1958 = vunpack.c.h.b16 %v102
    %v1959 = vunpack.c.l.b16 %v103
    %v1960 = vunpack.c.h.b16 %v103
    %v1961 = vunpack.c.l.b16 %v104
    %v1962 = vunpack.c.l.b16 %v105
    %v1963 = vunpack.c.h.b16 %v105
    %v1964 = vunpack.c.l.b16 %v106
    %v1965 = vunpack.c.h.b16 %v106
    %v1966 = vunpack.c.l.b16 %v107
    %v1967 = vunpack.c.l.b16 %v108
    %v1968 = vunpack.c.h.b16 %v108
    %v1969 = vunpack.c.l.b16 %v109
    %v1970 = vunpack.c.h.b16 %v109
    %v1971 = vunpack.c.l.b16 %v110
    %v1972 = vunpack.c.l.b16 %v111
    %v1973 = vunpack.c.h.b16 %v111
    %v1974 = vunpack.c.l.b16 %v112
    %v1975 = vunpack.c.h.b16 %v112
    %v1976 = vunpack.c.l.b16 %v113
    %v1977 = vunpack.c.l.b16 %v114
    %v1978 = vunpack.c.h.b16 %v114
    %v1979 = vunpack.c.l.b16 %v115
    %v1980 = vunpack.c.h.b16 %v115
    %v1981 = vunpack.c.l.b16 %v116
    %v1982 = vunpack.c.l.b16 %v117
    %v1983 = vunpack.c.h.b16 %v117
    %v1984 = vunpack.c.l.b16 %v118
    %v1985 = vunpack.c.h.b16 %v118
    %v1986 = vunpack.c.l.b16 %v119
    %v1987 = vunpack.c.l.b16 %v120
    %v1988 = vunpack.c.h.b16 %v120
    %v1989 = vunpack.c.l.b16 %v121
    %v1990 = vunpack.c.h.b16 %v121
    %v1991 = vunpack.c.l.b16 %v122
    %v1992 = vunpack.c.l.b16 %v123
    %v1993 = vunpack.c.h.b16 %v123
    %v1994 = vunpack.c.l.b16 %v124
    %v1995 = vunpack.c.h.b16 %v124
    %v1996 = vunpack.c.l.b16 %v125
    %v1997 = vunpack.c.l.b16 %v126
    %v1998 = vunpack.c.h.b16 %v126
    %v1999 = vunpack.c.l.b16 %v127
    %v2000 = vunpack.c.h.b16 %v127
    %v2001 = vunpack.c.l.b16 %v128
    %v2002 = vunpack.c.l.b16 %v129
    %v2003 = vunpack.c.h.b16 %v129
    %v2004 = vunpack.c.l.b16 %v130
    %v2005 = vunpack.c.h.b16 %v130
    %v2006 = vunpack.c.l.b16 %v131
    %v2007 = vunpack.c.l.b16 %v132
    %v2008 = vunpack.c.h.b16 %v132
    %v2009 = vunpack.c.l.b16 %v133
    %v2010 = vunpack.c.h.b16 %v133
    %v2011 = vunpack.c.l.b16 %v134
    %v2012 = vunpack.c.l.b16 %v135
    %v2013 = vunpack.c.h.b16 %v135
    %v2014 = vunpack.c.l.b16 %v136
    %v2015 = vunpack.c.h.b16 %v136
    %v2016 = vunpack.c.l.b16 %v137
    %v2017 = vunpack.c.l.b16 %v138
    %v2018 = vunpack.c.h.b16 %v138
    %v2019 = vunpack.c.l.b16 %v139
    %v2020 = vunpack.c.h.b16 %v139
    %v2021 = vunpack.c.l.b16 %v140
    %v2022 = vunpack.c.l.b16 %v141
    %v2023 = vunpack.c.h.b16 %v141
    %v2024 = vunpack.c.l.b16 %v142
    %v2025 = vunpack.c.h.b16 %v142
    %v2026 = vunpack.c.l.b16 %v143
    %v2027 = vunpack.c.l.b16 %v144
    %v2028 = vunpack.c.h.b16 %v144
    %v2029 = vunpack.c.l.b16 %v145
    %v2030 = vunpack.c.h.b16 %v145
    %v2031 = vunpack.c.l.b16 %v146
    %v2032 = vunpack.c.l.b16 %v147
    %v2033 = vunpack.c.h.b16 %v147
    %v2034 = vunpack.c.l.b16 %v148
    %v2035 = vunpack.c.h.b16 %v148
    %v2036 = vunpack.c.l.b16 %v149
    %v2037 = vunpack.c.l.b16 %v150
    %v2038 = vunpack.c.h.b16 %v150
    %v2039 = vunpack.c.l.b16 %v151
    %v2040 = vunpack.c.h.b16 %v151
    %v2041 = vunpack.c.l.b16 %v152
    %v2042 = vunpack.c.l.b16 %v153
    %v2043 = vunpack.c.h.b16 %v153
    %v2044 = vunpack.c.l.b16 %v154
    %v2045 = vunpack.c.h.b16 %v154
    %v2046 = vunpack.c.l.b16 %v155
    %v2047 = vunpack.c.l.b16 %v156
    %v2048 = vunpack.c.h.b16 %v156
    %v2049 = vunpack.c.l.b16 %v157
    %v2050 = vunpack.c.h.b16 %v157
    %v2051 = vunpack.c.l.b16 %v158
    %v2052 = vunpack.c.l.b16 %v159
    %v2053 = vunpack.c.h.b16 %v159
    %v2054 = vunpack.c.l.b16 %v160
    %v2055 = vunpack.c.h.b16 %v160
    %v2056 = vunpack.c.l.b16 %v161
    %v2057 = vunpack.c.l.b16 %v162
    %v2058 = vunpack.c.h.b16 %v162
    %v2059 = vunpack.c.l.b16 %v163
    %v2060 = vunpack.c.h.b16 %v163
    %v2061 = vunpack.c.l.b16 %v164
    %v2062 = vunpack.c.l.b16 %v165
    %v2063 = vunpack.c.h.b16 %v165
    %v2064 = vunpack.c.l.b16 %v166
    %v2065 = vunpack.c.h.b16 %v166
    %v2066 = vunpack.c.l.b16 %v167
    %v2067 = vunpack.c.l.b16 %v168
    %v2068 = vunpack.c.h.b16 %v168
    %v2069 = vunpack.c.l.b16 %v169
    %v2070 = vunpack.c.h.b16 %v169
    %v2071 = vunpack.c.l.b16 %v170
    %v2072 = vunpack.c.l.b16 %v171
    %v2073 = vunpack.c.h.b16 %v171
    %v2074 = vunpack.c.l.b16 %v172
    %v2075 = vunpack.c.h.b16 %v172
    %v2076 = vunpack.c.l.b16 %v173
    %v2077 = vunpack.c.l.b16 %v174
    %v2078 = vunpack.c.h.b16 %v174
    %v2079 = vunpack.c.l.b16 %v175
    %v2080 = vunpack.c.h.b16 %v175
    %v2081 = vunpack.c.l.b16 %v176
    %v2082 = vunpack.c.l.b16 %v177
    %v2083 = vunpack.c.h.b16 %v177
    %v2084 = vunpack.c.l.b16 %v178
    %v2085 = vunpack.c.h.b16 %v178
    %v2086 = vunpack.c.l.b16 %v179
    %v2087 = vunpack.c.l.b16 %v180
    %v2088 = vunpack.c.h.b16 %v180
    %v2089 = vunpack.c.l.b16 %v181
    %v2090 = vunpack.c.h.b16 %v181
    %v2091 = vunpack.c.l.b16 %v182
    %v2092 = vunpack.c.l.b16 %v183
    %v2093 = vunpack.c.h.b16 %v183
    %v2094 = vunpack.c.l.b16 %v184
    %v2095 = vunpack.c.h.b16 %v184
    %v2096 = vunpack.c.l.b16 %v185
    %v2097 = vunpack.c.l.b16 %v186
    %v2098 = vunpack.c.h.b16 %v186
    %v2099 = vunpack.c.l.b16 %v187
    %v2100 = vunpack.c.h.b16 %v187
    %v2101 = vunpack.c.l.b16 %v188
    %v2102 = vunpack.c.l.b16 %v189
    %v2103 = vunpack.c.h.b16 %v189
    %v2104 = vunpack.c.l.b16 %v190
    %v2105 = vunpack.c.h.b16 %v190
    %v2106 = vunpack.c.l.b16 %v191
    %v2107 = vunpack.c.l.b16 %v192
    %v2108 = vunpack.c.h.b16 %v192
    %v2109 = vunpack.c.l.b16 %v193
    %v2110 = vunpack.c.h.b16 %v193
    %v2111 = vunpack.c.l.b16 %v194
    %v2112 = vunpack.c.l.b16 %v195
    %v2113 = vunpack.c.h.b16 %v195
    %v2114 = vunpack.c.l.b16 %v196
    %v2115 = vunpack.c.h.b16 %v196
    %v2116 = vunpack.c.l.b16 %v197
    %v2117 = vunpack.c.l.b16 %v198
    %v2118 = vunpack.c.h.b16 %v198
    %v2119 = vunpack.c.l.b16 %v199
    %v2120 = vunpack.c.h.b16 %v199
    %v2121 = vunpack.c.l.b16 %v200
    %v2122 = vunpack.c.l.b16 %v201
    %v2123 = vunpack.c.h.b16 %v201
    %v2124 = vunpack.c.l.b16 %v202
    %v2125 = vunpack.c.h.b16 %v202
    %v2126 = vunpack.c.l.b16 %v203
    %v2127 = vunpack.c.l.b16 %v204
    %v2128 = vunpack.c.h.b16 %v204
    %v2129 = vunpack.c.l.b16 %v205
    %v2130 = vunpack.c.h.b16 %v205
    %v2131 = vunpack.c.l.b16 %v206
    %v2132 = vunpack.c.l.b16 %v207
    %v2133 = vunpack.c.h.b16 %v207
    %v2134 = vunpack.c.l.b16 %v208
    %v2135 = vunpack.c.h.b16 %v208
    %v2136 = vunpack.c.l.b16 %v209
    %v2137 = vunpack.c.l.b16 %v210
    %v2138 = vunpack.c.h.b16 %v210
    %v2139 = vunpack.c.l.b16 %v211
    %v2140 = vunpack.c.h.b16 %v211
    %v2141 = vunpack.c.l.b16 %v212
    %v2142 = vunpack.c.l.b16 %v213
    %v2143 = vunpack.c.h.b16 %v213
    %v2144 = vunpack.c.l.b16 %v214
    %v2145 = vunpack.c.h.b16 %v214
    %v2146 = vunpack.c.l.b16 %v215
    %v2147 = vunpack.c.l.b16 %v216
    %v2148 = vunpack.c.h.b16 %v216
    %v2149 = vunpack.c.l.b16 %v217
    %v2150 = vunpack.c.h.b16 %v217
    %v2151 = vunpack.c.l.b16 %v218
    %v2152 = vunpack.c.l.b16 %v219
    %v2153 = vunpack.c.h.b16 %v219
    %v2154 = vunpack.c.l.b16 %v220
    %v2155 = vunpack.c.h.b16 %v220
    %v2156 = vunpack.c.l.b16 %v221
    %v2157 = vunpack.c.l.b16 %v222
    %v2158 = vunpack.c.h.b16 %v222
    %v2159 = vunpack.c.l.b16 %v223
    %v2160 = vunpack.c.h.b16 %v223
    %v2161 = vunpack.c.l.b16 %v224
    %v2162 = vunpack.c.l.b16 %v225
    %v2163 = vunpack.c.h.b16 %v225
    %v2164 = vunpack.c.l.b16 %v226
    %v2165 = vunpack.c.h.b16 %v226
    %v2166 = vunpack.c.l.b16 %v227
    %v2167 = vunpack.c.l.b16 %v228
    %v2168 = vunpack.c.h.b16 %v228
    %v2169 = vunpack.c.l.b16 %v229
    %v2170 = vunpack.c.h.b16 %v229
    %v2171 = vunpack.c.l.b16 %v230
    %v2172 = vunpack.c.l.b16 %v231
    %v2173 = vunpack.c.h.b16 %v231
    %v2174 = vunpack.c.l.b16 %v232
    %v2175 = vunpack.c.h.b16 %v232
    %v2176 = vunpack.c.l.b16 %v233
    %v2177 = vunpack.c.l.b16 %v234
    %v2178 = vunpack.c.h.b16 %v234
    %v2179 = vunpack.c.l.b16 %v235
    %v2180 = vunpack.c.h.b16 %v235
    %v2181 = vunpack.c.l.b16 %v236
    %v2182 = vunpack.c.l.b16 %v237
    %v2183 = vunpack.c.h.b16 %v237
    %v2184 = vunpack.c.l.b16 %v238
    %v2185 = vunpack.c.h.b16 %v238
    %v2186 = vunpack.c.l.b16 %v239
    %v2187 = vunpack.c.l.b16 %v240
    %v2188 = vunpack.c.h.b16 %v240
    %v2189 = vunpack.c.l.b16 %v241
    %v2190 = vunpack.c.h.b16 %v241
    %v2191 = vunpack.c.l.b16 %v242
    %v2192 = vunpack.c.l.b16 %v243
    %v2193 = vunpack.c.h.b16 %v243
    %v2194 = vunpack.c.l.b16 %v244
    %v2195 = vunpack.c.h.b16 %v244
    %v2196 = vunpack.c.l.b16 %v245
    %v2197 = vunpack.c.l.b16 %v246
    %v2198 = vunpack.c.h.b16 %v246
    %v2199 = vunpack.c.l.b16 %v247
    %v2200 = vunpack.c.h.b16 %v247
    %v2201 = vunpack.c.l.b16 %v248
    %v2202 = vunpack.c.l.b16 %v249
    %v2203 = vunpack.c.h.b16 %v249
    %v2204 = vunpack.c.l.b16 %v250
    %v2205 = vunpack.c.h.b16 %v250
    %v2206 = vunpack.c.l.b16 %v251
    %v2207 = vunpack.c.l.b16 %v252
    %v2208 = vunpack.c.h.b16 %v252
    %v2209 = vunpack.c.l.b16 %v253
    %v2210 = vunpack.c.h.b16 %v253
    %v2211 = vunpack.c.l.b16 %v254
    %v2212 = vunpack.c.l.b16 %v255
    %v2213 = vunpack.c.h.b16 %v255
    %v2214 = vunpack.c.l.b16 %v256
    %v2215 = vunpack.c.h.b16 %v256
    %v2216 = vunpack.c.l.b16 %v257
    %v2217 = vunpack.c.l.b16 %v258
    %v2218 = vunpack.c.h.b16 %v258
    %v2219 = vunpack.c.l.b16 %v259
    %v2220 = vunpack.c.h.b16 %v259
    %v2221 = vunpack.c.l.b16 %v260
    %v2222 = vunpack.c.l.b16 %v261
    %v2223 = vunpack.c.h.b16 %v261
    %v2224 = vunpack.c.l.b16 %v262
    %v2225 = vunpack.c.h.b16 %v262
    %v2226 = vunpack.c.l.b16 %v263
    %v2227 = vunpack.c.l.b16 %v264
    %v2228 = vunpack.c.h.b16 %v264
    %v2229 = vunpack.c.l.b16 %v265
    %v2230 = vunpack.c.h.b16 %v265
    %v2231 = vunpack.c.l.b16 %v266
    %v2232 = vunpack.c.l.b16 %v267
    %v2233 = vunpack.c.h.b16 %v267
    %v2234 = vunpack.c.l.b16 %v268
    %v2235 = vunpack.c.h.b16 %v268
    %v2236 = vunpack.c.l.b16 %v269
    %v2237 = vunpack.c.l.b16 %v270
    %v2238 = vunpack.c.h.b16 %v270
    %v2239 = vunpack.c.l.b16 %v271
    %v2240 = vunpack.c.h.b16 %v271
    %v2241 = vunpack.c.l.b16 %v272
    %v2242 = vunpack.c.l.b16 %v273
    %v2243 = vunpack.c.h.b16 %v273
    %v2244 = vunpack.c.l.b16 %v274
    %v2245 = vunpack.c.h.b16 %v274
    %v2246 = vunpack.c.l.b16 %v275
    %v2247 = vunpack.c.l.b16 %v276
    %v2248 = vunpack.c.h.b16 %v276
    %v2249 = vunpack.c.l.b16 %v277
    %v2250 = vunpack.c.h.b16 %v277
    %v2251 = vunpack.c.l.b16 %v278
    %v2252 = vunpack.c.l.b16 %v279
    %v2253 = vunpack.c.h.b16 %v279
    %v2254 = vunpack.c.l.b16 %v280
    %v2255 = vunpack.c.h.b16 %v280
    %v2256 = vunpack.c.l.b16 %v281
    %v2257 = vunpack.c.l.b16 %v282
    %v2258 = vunpack.c.h.b16 %v282
    %v2259 = vunpack.c.l.b16 %v283
    %v2260 = vunpack.c.h.b16 %v283
    %v2261 = vunpack.c.l.b16 %v284
    %v2262 = vunpack.c.l.b16 %v285
    %v2263 = vunpack.c.h.b16 %v285
    %v2264 = vunpack.c.l.b16 %v286
    %v2265 = vunpack.c.h.b16 %v286
    %v2266 = vunpack.c.l.b16 %v287
    %v2267 = vunpack.c.l.b16 %v288
    %v2268 = vunpack.c.h.b16 %v288
    %v2269 = vunpack.c.l.b16 %v289
    %v2270 = vunpack.c.h.b16 %v289
    %v2271 = vunpack.c.l.b16 %v290
    %v2272 = vunpack.c.l.b16 %v291
    %v2273 = vunpack.c.h.b16 %v291
    %v2274 = vunpack.c.l.b16 %v292
    %v2275 = vunpack.c.h.b16 %v292
    %v2276 = vunpack.c.l.b16 %v293
    %v2277 = vunpack.c.l.b16 %v294
    %v2278 = vunpack.c.h.b16 %v294
    %v2279 = vunpack.c.l.b16 %v295
    %v2280 = vunpack.c.h.b16 %v295
    %v2281 = vunpack.c.l.b16 %v296
    %v2282 = vunpack.c.l.b16 %v297
    %v2283 = vunpack.c.h.b16 %v297
    %v2284 = vunpack.c.l.b16 %v298
    %v2285 = vunpack.c.h.b16 %v298
    %v2286 = vunpack.c.l.b16 %v299
    %v2287 = vunpack.c.l.b16 %v300
    %v2288 = vunpack.c.h.b16 %v300
    %v2289 = vunpack.c.l.b16 %v301
    %v2290 = vunpack.c.h.b16 %v301
    %v2291 = vunpack.c.l.b16 %v302
    %v2292 = vunpack.c.l.b16 %v303
    %v2293 = vunpack.c.h.b16 %v303
    %v2294 = vunpack.c.l.b16 %v304
    %v2295 = vunpack.c.h.b16 %v304
    %v2296 = vunpack.c.l.b16 %v305
    %v2297 = vunpack.c.l.b16 %v306
    %v2298 = vunpack.c.h.b16 %v306
    %v2299 = vunpack.c.l.b16 %v307
    %v2300 = vunpack.c.h.b16 %v307
    %v2301 = vunpack.c.l.b16 %v308
    %v2302 = vunpack.c.l.b16 %v309
    %v2303 = vunpack.c.h.b16 %v309
    %v2304 = vunpack.c.l.b16 %v310
    %v2305 = vunpack.c.h.b16 %v310
    %v2306 = vunpack.c.l.b16 %v311
    %v2307 = vunpack.c.l.b16 %v312
    %v2308 = vunpack.c.h.b16 %v312
    %v2309 = vunpack.c.l.b16 %v313
    %v2310 = vunpack.c.h.b16 %v313
    %v2311 = vunpack.c.l.b16 %v314
    %v2312 = vunpack.c.l.b16 %v315
    %v2313 = vunpack.c.h.b16 %v315
    %v2314 = vunpack.c.l.b16 %v316
    %v2315 = vunpack.c.h.b16 %v316
    %v2316 = vunpack.c.l.b16 %v317
    %v2317 = vunpack.c.l.b16 %v318
    %v2318 = vunpack.c.h.b16 %v318
    %v2319 = vunpack.c.l.b16 %v319
    %v2320 = vunpack.c.h.b16 %v319
    %v2321 = vunpack.c.l.b16 %v320
    %v2322 = vunpack.c.l.b16 %v321
    %v2323 = vunpack.c.h.b16 %v321
    %v2324 = vunpack.c.l.b16 %v322
    %v2325 = vunpack.c.h.b16 %v322
    %v2326 = vunpack.c.l.b16 %v323
    %v2327 = vunpack.c.l.b16 %v324
    %v2328 = vunpack.c.h.b16 %v324
    %v2329 = vunpack.c.l.b16 %v325
    %v2330 = vunpack.c.h.b16 %v325
    %v2331 = vunpack.c.l.b16 %v326
    %v2332 = vunpack.c.l.b16 %v327
    %v2333 = vunpack.c.h.b16 %v327
    %v2334 = vunpack.c.l.b16 %v328
    %v2335 = vunpack.c.h.b16 %v328
    %v2336 = vunpack.c.l.b16 %v329
    %v2337 = vunpack.c.l.b16 %v330
    %v2338 = vunpack.c.h.b16 %v330
    %v2339 = vunpack.c.l.b16 %v331
    %v2340 = vunpack.c.h.b16 %v331
    %v2341 = vunpack.c.l.b16 %v332
    %v2342 = vunpack.c.l.b16 %v333
    %v2343 = vunpack.c.h.b16 %v333
    %v2344 = vunpack.c.l.b16 %v334
    %v2345 = vunpack.c.h.b16 %v334
    %v2346 = vunpack.c.l.b16 %v335
    %v2347 = vunpack.c.l.b16 %v336
    %v2348 = vunpack.c.h.b16 %v336
    %v2349 = vunpack.c.l.b16 %v337
    %v2350 = vunpack.c.h.b16 %v337
    %v2351 = vunpack.c.l.b16 %v338
    %v2352 = vunpack.c.l.b16 %v339
    %v2353 = vunpack.c.h.b16 %v339
    %v2354 = vunpack.c.l.b16 %v340
    %v2355 = vunpack.c.h.b16 %v340
    %v2356 = vunpack.c.l.b16 %v341
    %v2357 = vunpack.c.l.b16 %v342
    %v2358 = vunpack.c.h.b16 %v342
    %v2359 = vunpack.c.l.b16 %v343
    %v2360 = vunpack.c.h.b16 %v343
    %v2361 = vunpack.c.l.b16 %v344
    %v2362 = vunpack.c.l.b16 %v345
    %v2363 = vunpack.c.h.b16 %v345
    %v2364 = vunpack.c.l.b16 %v346
    %v2365 = vunpack.c.h.b16 %v346
    %v2366 = vunpack.c.l.b16 %v347
    %v2367 = vunpack.c.l.b16 %v348
    %v2368 = vunpack.c.h.b16 %v348
    %v2369 = vunpack.c.l.b16 %v349
    %v2370 = vunpack.c.h.b16 %v349
    %v2371 = vunpack.c.l.b16 %v350
    %v2372 = vunpack.c.l.b16 %v351
    %v2373 = vunpack.c.h.b16 %v351
    %v2374 = vunpack.c.l.b16 %v352
    %v2375 = vunpack.c.h.b16 %v352
    %v2376 = vunpack.c.l.b16 %v353
    %v2377 = vunpack.c.l.b16 %v354
    %v2378 = vunpack.c.h.b16 %v354
    %v2379 = vunpack.c.l.b16 %v355
    %v2380 = vunpack.c.h.b16 %v355
    %v2381 = vunpack.c.l.b16 %v356
    %v2382 = vunpack.c.l.b16 %v357
    %v2383 = vunpack.c.h.b16 %v357
    %v2384 = vunpack.c.l.b16 %v358
    %v2385 = vunpack.c.h.b16 %v358
    %v2386 = vunpack.c.l.b16 %v359
    %v2387 = vunpack.c.l.b16 %v360
    %v2388 = vunpack.c.h.b16 %v360
    %v2389 = vunpack.c.l.b16 %v361
    %v2390 = vunpack.c.h.b16 %v361
    %v2391 = vunpack.c.l.b16 %v362
    %v2392 = vunpack.c.l.b16 %v363
    %v2393 = vunpack.c.h.b16 %v363
    %v2394 = vunpack.c.l.b16 %v364
    %v2395 = vunpack.c.h.b16 %v364
    %v2396 = vunpack.c.l.b16 %v365
    %v2397 = vunpack.c.l.b16 %v366
    %v2398 = vunpack.c.h.b16 %v366
    %v2399 = vunpack.c.l.b16 %v367
    %v2400 = vunpack.c.h.b16 %v367
    %v2401 = vunpack.c.l.b16 %v368
    %v2402 = vunpack.c.l.b16 %v369
    %v2403 = vunpack.c.h.b16 %v369
    %v2404 = vunpack.c.l.b16 %v370
    %v2405 = vunpack.c.h.b16 %v370
    %v2406 = vunpack.c.l.b16 %v371
    %v2407 = vunpack.c.l.b16 %v372
    %v2408 = vunpack.c.h.b16 %v372
    %v2409 = vunpack.c.l.b16 %v373
    %v2410 = vunpack.c.h.b16 %v373
    %v2411 = vunpack.c.l.b16 %v374
    %v2412 = vunpack.c.l.b16 %v375
    %v2413 = vunpack.c.h.b16 %v375
    %v2414 = vunpack.c.l.b16 %v376
    %v2415 = vunpack.c.h.b16 %v376
    %v2416 = vunpack.c.l.b16 %v377
    %v2417 = vunpack.c.l.b16 %v378
    %v2418 = vunpack.c.h.b16 %v378
    %v2419 = vunpack.c.l.b16 %v379
    %v2420 = vunpack.c.h.b16 %v379
    %v2421 = vunpack.c.l.b16 %v380
    %v2422 = vunpack.c.l.b16 %v381
    %v2423 = vunpack.c.h.b16 %v381
    %v2424 = vunpack.c.l.b16 %v382
    %v2425 = vunpack.c.h.b16 %v382
    %v2426 = vunpack.c.l.b16 %v383
    %v2427 = vunpack.c.l.b16 %v384
    %v2428 = vunpack.c.h.b16 %v384
    %v2429 = vunpack.c.l.b16 %v385
    %v2430 = vunpack.c.h.b16 %v385
    %v2431 = vunpack.c.l.b16 %v386
    %v2432 = vunpack.c.l.b16 %v387
    %v2433 = vunpack.c.h.b16 %v387
    %v2434 = vunpack.c.l.b16 %v388
    %v2435 = vunpack.c.h.b16 %v388
    %v2436 = vunpack.c.l.b16 %v389
    %v2437 = vunpack.c.l.b16 %v390
    %v2438 = vunpack.c.h.b16 %v390
    %v2439 = vunpack.c.l.b16 %v391
    %v2440 = vunpack.c.h.b16 %v391
    %v2441 = vunpack.c.l.b16 %v392
    %v2442 = vunpack.c.l.b16 %v393
    %v2443 = vunpack.c.h.b16 %v393
    %v2444 = vunpack.c.l.b16 %v394
    %v2445 = vunpack.c.h.b16 %v394
    %v2446 = vunpack.c.l.b16 %v395
    %v2447 = vunpack.c.l.b16 %v396
    %v2448 = vunpack.c.h.b16 %v396
    %v2449 = vunpack.c.l.b16 %v397
    %v2450 = vunpack.c.h.b16 %v397
    %v2451 = vunpack.c.l.b16 %v398
    %v2452 = vunpack.c.l.b16 %v399
    %v2453 = vunpack.c.h.b16 %v399
    %v2454 = vunpack.c.l.b16 %v400
    %v2455 = vunpack.c.h.b16 %v400
    %v2456 = vunpack.c.l.b16 %v401
    %v2457 = vunpack.c.l.b16 %v402
    %v2458 = vunpack.c.h.b16 %v402
    %v2459 = vunpack.c.l.b16 %v403
    %v2460 = vunpack.c.h.b16 %v403
    %v2461 = vunpack.c.l.b16 %v404
    %v2462 = vunpack.c.l.b16 %v405
    %v2463 = vunpack.c.h.b16 %v405
    %v2464 = vunpack.c.l.b16 %v406
    %v2465 = vunpack.c.h.b16 %v406
    %v2466 = vunpack.c.l.b16 %v407
    %v2467 = vunpack.c.l.b16 %v408
    %v2468 = vunpack.c.h.b16 %v408
    %v2469 = vunpack.c.l.b16 %v409
    %v2470 = vunpack.c.h.b16 %v409
    %v2471 = vunpack.c.l.b16 %v410
    %v2472 = vunpack.c.l.b16 %v411
    %v2473 = vunpack.c.h.b16 %v411
    %v2474 = vunpack.c.l.b16 %v412
    %v2475 = vunpack.c.h.b16 %v412
    %v2476 = vunpack.c.l.b16 %v413
    %v2477 = vunpack.c.l.b16 %v414
    %v2478 = vunpack.c.h.b16 %v414
    %v2479 = vunpack.c.l.b16 %v415
    %v2480 = vunpack.c.h.b16 %v415
    %v2481 = vunpack.c.l.b16 %v416
    %v2482 = vunpack.c.l.b16 %v417
    %v2483 = vunpack.c.h.b16 %v417
    %v2484 = vunpack.c.l.b16 %v418
    %v2485 = vunpack.c.h.b16 %v418
    %v2486 = vunpack.c.l.b16 %v419
    %v2487 = vunpack.c.l.b16 %v420
    %v2488 = vunpack.c.h.b16 %v420
    %v2489 = vunpack.c.l.b16 %v421
    %v2490 = vunpack.c.h.b16 %v421
    %v2491 = vunpack.c.l.b16 %v422
    %v2492 = vunpack.c.l.b16 %v423
    %v2493 = vunpack.c.h.b16 %v423
    %v2494 = vunpack.c.l.b16 %v424
    %v2495 = vunpack.c.h.b16 %v424
    %v2496 = vunpack.c.l.b16 %v425
    %v2497 = vunpack.c.l.b16 %v426
    %v2498 = vunpack.c.h.b16 %v426
    %v2499 = vunpack.c.l.b16 %v427
    %v2500 = vunpack.c.h.b16 %v427
    %v2501 = vunpack.c.l.b16 %v428
    %v2502 = vunpack.c.l.b16 %v429
    %v2503 = vunpack.c.h.b16 %v429
    %v2504 = vunpack.c.l.b16 %v430
    %v2505 = vunpack.c.h.b16 %v430
    %v2506 = vunpack.c.l.b16 %v431
    %v2507 = vunpack.c.l.b16 %v432
    %v2508 = vunpack.c.h.b16 %v432
    %v2509 = vunpack.c.l.b16 %v433
    %v2510 = vunpack.c.h.b16 %v433
    %v2511 = vunpack.c.l.b16 %v434
    %v2512 = vunpack.c.l.b16 %v435
    %v2513 = vunpack.c.h.b16 %v435
    %v2514 = vunpack.c.l.b16 %v436
    %v2515 = vunpack.c.h.b16 %v436
    %v2516 = vunpack.c.l.b16 %v437
    %v2517 = vunpack.c.l.b16 %v438
    %v2518 = vunpack.c.h.b16 %v438
    %v2519 = vunpack.c.l.b16 %v439
    %v2520 = vunpack.c.h.b16 %v439
    %v2521 = vunpack.c.l.b16 %v440
    %v2522 = vunpack.c.l.b16 %v441
    %v2523 = vunpack.c.h.b16 %v441
    %v2524 = vunpack.c.l.b16 %v442
    %v2525 = vunpack.c.h.b16 %v442
    %v2526 = vunpack.c.l.b16 %v443
    %v2527 = vunpack.c.l.b16 %v444
    %v2528 = vunpack.c.h.b16 %v444
    %v2529 = vunpack.c.l.b16 %v445
    %v2530 = vunpack.c.h.b16 %v445
    %v2531 = vunpack.c.l.b16 %v446
    %v2532 = vunpack.c.l.b16 %v447
    %v2533 = vunpack.c.h.b16 %v447
    %v2534 = vunpack.c.l.b16 %v448
    %v2535 = vunpack.c.h.b16 %v448
    %v2536 = vunpack.c.l.b16 %v449
    %v2537 = vunpack.c.l.b16 %v450
    %v2538 = vunpack.c.h.b16 %v450
    %v2539 = vunpack.c.l.b16 %v451
    %v2540 = vunpack.c.h.b16 %v451
    %v2541 = vunpack.c.l.b16 %v452
    %v2542 = vunpack.c.l.b16 %v453
    %v2543 = vunpack.c.h.b16 %v453
    %v2544 = vunpack.c.l.b16 %v454
    %v2545 = vunpack.c.h.b16 %v454
    %v2546 = vunpack.c.l.b16 %v455
    %v2547 = vunpack.c.l.b16 %v456
    %v2548 = vunpack.c.h.b16 %v456
    %v2549 = vunpack.c.l.b16 %v457
    %v2550 = vunpack.c.h.b16 %v457
    %v2551 = vunpack.c.l.b16 %v458
    %v2552 = vunpack.c.l.b16 %v459
    %v2553 = vunpack.c.h.b16 %v459
    %v2554 = vunpack.c.l.b16 %v460
    %v2555 = vunpack.c.h.b16 %v460
    %v2556 = vunpack.c.l.b16 %v461
    %v2557 = vunpack.c.l.b16 %v462
    %v2558 = vunpack.c.h.b16 %v462
    %v2559 = vunpack.c.l.b16 %v463
    %v2560 = vunpack.c.h.b16 %v463
    %v2561 = vunpack.c.l.b16 %v464
    %v2562 = vunpack.c.l.b16 %v465
    %v2563 = vunpack.c.h.b16 %v465
    %v2564 = vunpack.c.l.b16 %v466
    %v2565 = vunpack.c.h.b16 %v466
    %v2566 = vunpack.c.l.b16 %v467
    %v2567 = vunpack.c.l.b16 %v468
    %v2568 = vunpack.c.h.b16 %v468
    %v2569 = vunpack.c.l.b16 %v469
    %v2570 = vunpack.c.h.b16 %v469
    %v2571 = vunpack.c.l.b16 %v470
    %v2572 = vunpack.c.l.b16 %v471
    %v2573 = vunpack.c.h.b16 %v471
    %v2574 = vunpack.c.l.b16 %v472
    %v2575 = vunpack.c.h.b16 %v472
    %v2576 = vunpack.c.l.b16 %v473
    %v2577 = vunpack.c.l.b16 %v474
    %v2578 = vunpack.c.h.b16 %v474
    %v2579 = vunpack.c.l.b16 %v475
    %v2580 = vunpack.c.h.b16 %v475
    %v2581 = vunpack.c.l.b16 %v476
    %v2582 = vunpack.c.l.b16 %v477
    %v2583 = vunpack.c.h.b16 %v477
    %v2584 = vunpack.c.l.b16 %v478
    %v2585 = vunpack.c.h.b16 %v478
    %v2586 = vunpack.c.l.b16 %v479
    %v2587 = vunpack.c.l.b16 %v480
    %v2588 = vunpack.c.h.b16 %v480
    %v2589 = vunpack.c.l.b16 %v481
    %v2590 = vunpack.c.h.b16 %v481
    %v2591 = vunpack.c.l.b16 %v482
    %v2592 = vunpack.c.l.b16 %v483
    %v2593 = vunpack.c.h.b16 %v483
    %v2594 = vunpack.c.l.b16 %v484
    %v2595 = vunpack.c.h.b16 %v484
    %v2596 = vunpack.c.l.b16 %v485
    %v2597 = vunpack.c.l.b16 %v486
    %v2598 = vunpack.c.h.b16 %v486
    %v2599 = vunpack.c.l.b16 %v487
    %v2600 = vunpack.c.h.b16 %v487
    %v2601 = vunpack.c.l.b16 %v488
    %v2602 = vunpack.c.l.b16 %v489
    %v2603 = vunpack.c.h.b16 %v489
    %v2604 = vunpack.c.l.b16 %v490
    %v2605 = vunpack.c.h.b16 %v490
    %v2606 = vunpack.c.l.b16 %v491
    %v2607 = vunpack.c.l.b16 %v492
    %v2608 = vunpack.c.h.b16 %v492
    %v2609 = vunpack.c.l.b16 %v493
    %v2610 = vunpack.c.h.b16 %v493
    %v2611 = vunpack.c.l.b16 %v494
    %v2612 = vunpack.c.l.b16 %v495
    %v2613 = vunpack.c.h.b16 %v495
    %v2614 = vunpack.c.l.b16 %v496
    %v2615 = vunpack.c.h.b16 %v496
    %v2616 = vunpack.c.l.b16 %v497
    %v2617 = vunpack.c.l.b16 %v498
    %v2618 = vunpack.c.h.b16 %v498
    %v2619 = vunpack.c.l.b16 %v499
    %v2620 = vunpack.c.h.b16 %v499
    %v2621 = vunpack.c.l.b16 %v500
    %v2622 = vunpack.c.l.b16 %v501
    %v2623 = vunpack.c.h.b16 %v501
    %v2624 = vunpack.c.l.b16 %v502
    %v2625 = vunpack.c.h.b16 %v502
    %v2626 = vunpack.c.l.b16 %v503
    %v2627 = vunpack.c.l.b16 %v504
    %v2628 = vunpack.c.h.b16 %v504
    %v2629 = vunpack.c.l.b16 %v505
    %v2630 = vunpack.c.h.b16 %v505
    %v2631 = vunpack.c.l.b16 %v506
    %v2632 = vunpack.c.l.b16 %v507
    %v2633 = vunpack.c.h.b16 %v507
    %v2634 = vunpack.c.l.b16 %v508
    %v2635 = vunpack.c.h.b16 %v508
    %v2636 = vunpack.c.l.b16 %v509
    %v2637 = vunpack.c.l.b16 %v510
    %v2638 = vunpack.c.h.b16 %v510
    %v2639 = vunpack.c.l.b16 %v511
    %v2640 = vunpack.c.h.b16 %v511
    %v2641 = vunpack.c.l.b16 %v512
    %v2642 = vunpack.c.l.b16 %v513
    %v2643 = vunpack.c.h.b16 %v513
    %v2644 = vunpack.c.l.b16 %v514
    %v2645 = vunpack.c.h.b16 %v514
    %v2646 = vunpack.c.l.b16 %v515
    %v2647 = vunpack.c.l.b16 %v516
    %v2648 = vunpack.c.h.b16 %v516
    %v2649 = vunpack.c.l.b16 %v517
    %v2650 = vunpack.c.h.b16 %v517
    %v2651 = vunpack.c.l.b16 %v518
    %v2652 = vunpack.c.l.b16 %v519
    %v2653 = vunpack.c.h.b16 %v519
    %v2654 = vunpack.c.l.b16 %v520
    %v2655 = vunpack.c.h.b16 %v520
    %v2656 = vunpack.c.l.b16 %v521
    %v2657 = vunpack.c.l.b16 %v522
    %v2658 = vunpack.c.h.b16 %v522
    %v2659 = vunpack.c.l.b16 %v523
    %v2660 = vunpack.c.h.b16 %v523
    %v2661 = vunpack.c.l.b16 %v524
    %v2662 = vunpack.c.l.b16 %v525
    %v2663 = vunpack.c.h.b16 %v525
    %v2664 = vunpack.c.l.b16 %v526
    %v2665 = vunpack.c.h.b16 %v526
    %v2666 = vunpack.c.l.b16 %v527
    %v2667 = vunpack.c.l.b16 %v528
    %v2668 = vunpack.c.h.b16 %v528
    %v2669 = vunpack.c.l.b16 %v529
    %v2670 = vunpack.c.h.b16 %v529
    %v2671 = vunpack.c.l.b16 %v530
    %v2672 = vunpack.c.l.b16 %v531
    %v2673 = vunpack.c.h.b16 %v531
    %v2674 = vunpack.c.l.b16 %v532
    %v2675 = vunpack.c.h.b16 %v532
    %v2676 = vunpack.c.l.b16 %v533
    %v2677 = vunpack.c.l.b16 %v534
    %v2678 = vunpack.c.h.b16 %v534
    %v2679 = vunpack.c.l.b16 %v535
    %v2680 = vunpack.c.h.b16 %v535
    %v2681 = vunpack.c.l.b16 %v536
    %v2682 = vunpack.c.l.b16 %v537
    %v2683 = vunpack.c.h.b16 %v537
    %v2684 = vunpack.c.l.b16 %v538
    %v2685 = vunpack.c.h.b16 %v538
    %v2686 = vunpack.c.l.b16 %v539
    %v2687 = vunpack.c.l.b16 %v540
    %v2688 = vunpack.c.h.b16 %v540
    %v2689 = vunpack.c.l.b16 %v541
    %v2690 = vunpack.c.h.b16 %v541
    %v2691 = vunpack.c.l.b16 %v542
    %v2692 = vunpack.c.l.b16 %v543
    %v2693 = vunpack.c.h.b16 %v543
    %v2694 = vunpack.c.l.b16 %v544
    %v2695 = vunpack.c.h.b16 %v544
    %v2696 = vunpack.c.l.b16 %v545
    %v2697 = vunpack.c.l.b16 %v546
    %v2698 = vunpack.c.h.b16 %v546
    %v2699 = vunpack.c.l.b16 %v547
    %v2700 = vunpack.c.h.b16 %v547
    %v2701 = vunpack.c.l.b16 %v548
    %v2702 = vunpack.c.l.b16 %v549
    %v2703 = vunpack.c.h.b16 %v549
    %v2704 = vunpack.c.l.b16 %v550
    %v2705 = vunpack.c.h.b16 %v550
    %v2706 = vunpack.c.l.b16 %v551
    %v2707 = vunpack.c.l.b16 %v552
    %v2708 = vunpack.c.h.b16 %v552
    %v2709 = vunpack.c.l.b16 %v553
    %v2710 = vunpack.c.h.b16 %v553
    %v2711 = vunpack.c.l.b16 %v554
    %v2712 = vunpack.c.l.b16 %v555
    %v2713 = vunpack.c.h.b16 %v555
    %v2714 = vunpack.c.l.b16 %v556
    %v2715 = vunpack.c.h.b16 %v556
    %v2716 = vunpack.c.l.b16 %v557
    %v2717 = vunpack.c.l.b16 %v558
    %v2718 = vunpack.c.h.b16 %v558
    %v2719 = vunpack.c.l.b16 %v559
    %v2720 = vunpack.c.h.b16 %v559
    %v2721 = vunpack.c.l.b16 %v560
    %v2722 = vunpack.c.l.b16 %v561
    %v2723 = vunpack.c.h.b16 %v561
    %v2724 = vunpack.c.l.b16 %v562
    %v2725 = vunpack.c.h.b16 %v562
    %v2726 = vunpack.c.l.b16 %v563
    %v2727 = vunpack.c.l.b16 %v564
    %v2728 = vunpack.c.h.b16 %v564
    %v2729 = vunpack.c.l.b16 %v565
    %v2730 = vunpack.c.h.b16 %v565
    %v2731 = vunpack.c.l.b16 %v566
    %v2732 = vunpack.c.l.b16 %v567
    %v2733 = vunpack.c.h.b16 %v567
    %v2734 = vunpack.c.l.b16 %v568
    %v2735 = vunpack.c.h.b16 %v568
    %v2736 = vunpack.c.l.b16 %v569
    %v2737 = vunpack.c.l.b16 %v570
    %v2738 = vunpack.c.h.b16 %v570
    %v2739 = vunpack.c.l.b16 %v571
    %v2740 = vunpack.c.h.b16 %v571
    %v2741 = vunpack.c.l.b16 %v572
    %v2742 = vunpack.c.l.b16 %v573
    %v2743 = vunpack.c.h.b16 %v573
    %v2744 = vunpack.c.l.b16 %v574
    %v2745 = vunpack.c.h.b16 %v574
    %v2746 = vunpack.c.l.b16 %v575
    %v2747 = vunpack.c.l.b16 %v576
    %v2748 = vunpack.c.h.b16 %v576
    %v2749 = vunpack.c.l.b16 %v577
    %v2750 = vunpack.c.h.b16 %v577
    %v2751 = vunpack.c.l.b16 %v578
    %v2752 = vunpack.c.l.b16 %v579
    %v2753 = vunpack.c.h.b16 %v579
    %v2754 = vunpack.c.l.b16 %v580
    %v2755 = vunpack.c.h.b16 %v580
    %v2756 = vunpack.c.l.b16 %v581
    %v2757 = vunpack.c.l.b16 %v582
    %v2758 = vunpack.c.h.b16 %v582
    %v2759 = vunpack.c.l.b16 %v583
    %v2760 = vunpack.c.h.b16 %v583
    %v2761 = vunpack.c.l.b16 %v584
    %v2762 = vunpack.c.l.b16 %v585
    %v2763 = vunpack.c.h.b16 %v585
    %v2764 = vunpack.c.l.b16 %v586
    %v2765 = vunpack.c.h.b16 %v586
    %v2766 = vunpack.c.l.b16 %v587
    %v2767 = vunpack.c.l.b16 %v588
    %v2768 = vunpack.c.h.b16 %v588
    %v2769 = vunpack.c.l.b16 %v589
    %v2770 = vunpack.c.h.b16 %v589
    %v2771 = vunpack.c.l.b16 %v590
    %v2772 = vunpack.c.l.b16 %v591
    %v2773 = vunpack.c.h.b16 %v591
    %v2774 = vunpack.c.l.b16 %v592
    %v2775 = vunpack.c.h.b16 %v592
    %v2776 = vunpack.c.l.b16 %v593
    %v2777 = vunpack.c.l.b16 %v594
    %v2778 = vunpack.c.h.b16 %v594
    %v2779 = vunpack.c.l.b16 %v595
    %v2780 = vunpack.c.h.b16 %v595
    %v2781 = vunpack.c.l.b16 %v596
    %v2782 = vunpack.c.l.b16 %v597
    %v2783 = vunpack.c.h.b16 %v597
    %v2784 = vunpack.c.l.b16 %v598
    %v2785 = vunpack.c.h.b16 %v598
    %v2786 = vunpack.c.l.b16 %v599
    %v2787 = vunpack.c.l.b16 %v600
    %v2788 = vunpack.c.h.b16 %v600
    %v2789 = vunpack.c.l.b16 %v601
    %v2790 = vunpack.c.h.b16 %v601
    %v2791 = vunpack.c.l.b16 %v602
    %v2792 = vunpack.c.l.b16 %v603
    %v2793 = vunpack.c.h.b16 %v603
    %v2794 = vunpack.c.l.b16 %v604
    %v2795 = vunpack.c.h.b16 %v604
    %v2796 = vunpack.c.l.b16 %v605
    %v2797 = vunpack.c.l.b16 %v606
    %v2798 = vunpack.c.h.b16 %v606
    %v2799 = vunpack.c.l.b16 %v607
    %v2800 = vunpack.c.h.b16 %v607
    %v2801 = vunpack.c.l.b16 %v608
    %v2802 = vunpack.c.l.b16 %v609
    %v2803 = vunpack.c.h.b16 %v609
    %v2804 = vunpack.c.l.b16 %v610
    %v2805 = vunpack.c.h.b16 %v610
    %v2806 = vunpack.c.l.b16 %v611
    %v2807 = vunpack.c.l.b16 %v612
    %v2808 = vunpack.c.h.b16 %v612
    %v2809 = vunpack.c.l.b16 %v613
    %v2810 = vunpack.c.h.b16 %v613
    %v2811 = vunpack.c.l.b16 %v614
    %v2812 = vunpack.c.l.b16 %v615
    %v2813 = vunpack.c.h.b16 %v615
    %v2814 = vunpack.c.l.b16 %v616
    %v2815 = vunpack.c.h.b16 %v616
    %v2816 = vunpack.c.l.b16 %v617
    %v2817 = vunpack.c.l.b16 %v618
    %v2818 = vunpack.c.h.b16 %v618
    %v2819 = vunpack.c.l.b16 %v619
    %v2820 = vunpack.c.h.b16 %v619
    %v2821 = vunpack.c.l.b16 %v620
    %v2822 = vunpack.c.l.b16 %v621
    %v2823 = vunpack.c.h.b16 %v621
    %v2824 = vunpack.c.l.b16 %v622
    %v2825 = vunpack.c.h.b16 %v622
    %v2826 = vunpack.c.l.b16 %v623
    %v2827 = vunpack.c.l.b16 %v624
    %v2828 = vunpack.c.h.b16 %v624
    %v2829 = vunpack.c.l.b16 %v625
    %v2830 = vunpack.c.h.b16 %v625
    %v2831 = vunpack.c.l.b16 %v626
    %v2832 = vunpack.c.l.b16 %v627
    %v2833 = vunpack.c.h.b16 %v627
    %v2834 = vunpack.c.l.b16 %v628
    %v2835 = vunpack.c.h.b16 %v628
    %v2836 = vunpack.c.l.b16 %v629
    %v2837 = vunpack.c.l.b16 %v630
    %v2838 = vunpack.c.h.b16 %v630
    %v2839 = vunpack.c.l.b16 %v631
    %v2840 = vunpack.c.h.b16 %v631
    %v2841 = vunpack.c.l.b16 %v632
    %v2842 = vunpack.c.l.b16 %v633
    %v2843 = vunpack.c.h.b16 %v633
    %v2844 = vunpack.c.l.b16 %v634
    %v2845 = vunpack.c.h.b16 %v634
    %v2846 = vunpack.c.l.b16 %v635
    %v2847 = vunpack.c.l.b16 %v636
    %v2848 = vunpack.c.h.b16 %v636
    %v2849 = vunpack.c.l.b16 %v637
    %v2850 = vunpack.c.h.b16 %v637
    %v2851 = vunpack.c.l.b16 %v638
    %v2852 = vunpack.c.l.b16 %v639
    %v2853 = vunpack.c.h.b16 %v639
    %v2854 = vunpack.c.l.b16 %v640
    %v2855 = vunpack.c.h.b16 %v640
    %v2856 = vunpack.c.l.b16 %v641
    %v2857 = vunpack.c.l.b16 %v642
    %v2858 = vunpack.c.h.b16 %v642
    %v2859 = vunpack.c.l.b16 %v643
    %v2860 = vunpack.c.h.b16 %v643
    %v2861 = vunpack.c.l.b16 %v644
    %v2862 = vunpack.c.l.b16 %v645
    %v2863 = vunpack.c.h.b16 %v645
    %v2864 = vunpack.c.l.b16 %v646
    %v2865 = vunpack.c.h.b16 %v646
    %v2866 = vunpack.c.l.b16 %v647
    %v2867 = vunpack.c.l.b16 %v648
    %v2868 = vunpack.c.h.b16 %v648
    %v2869 = vunpack.c.l.b16 %v649
    %v2870 = vunpack.c.h.b16 %v649
    %v2871 = vunpack.c.l.b16 %v650
    %v2872 = vunpack.c.l.b16 %v651
    %v2873 = vunpack.c.h.b16 %v651
    %v2874 = vunpack.c.l.b16 %v652
    %v2875 = vunpack.c.h.b16 %v652
    %v2876 = vunpack.c.l.b16 %v653
    %v2877 = vunpack.c.l.b16 %v654
    %v2878 = vunpack.c.h.b16 %v654
    %v2879 = vunpack.c.l.b16 %v655
    %v2880 = vunpack.c.h.b16 %v655
    %v2881 = vunpack.c.l.b16 %v656
    %v2882 = vunpack.c.l.b16 %v657
    %v2883 = vunpack.c.h.b16 %v657
    %v2884 = vunpack.c.l.b16 %v658
    %v2885 = vunpack.c.h.b16 %v658
    %v2886 = vunpack.c.l.b16 %v659
    %v2887 = vunpack.c.l.b16 %v660
    %v2888 = vunpack.c.h.b16 %v660
    %v2889 = vunpack.c.l.b16 %v661
    %v2890 = vunpack.c.h.b16 %v661
    %v2891 = vunpack.c.l.b16 %v662
    %v2892 = vunpack.c.l.b16 %v663
    %v2893 = vunpack.c.h.b16 %v663
    %v2894 = vunpack.c.l.b16 %v664
    %v2895 = vunpack.c.h.b16 %v664
    %v2896 = vunpack.c.l.b16 %v665
    %v2897 = vunpack.c.l.b16 %v666
    %v2898 = vunpack.c.h.b16 %v666
    %v2899 = vunpack.c.l.b16 %v667
    %v2900 = vunpack.c.h.b16 %v667
    %v2901 = vunpack.c.l.b16 %v668
    %v2902 = vunpack.c.l.b16 %v669
    %v2903 = vunpack.c.h.b16 %v669
    %v2904 = vunpack.c.l.b16 %v670
    %v2905 = vunpack.c.h.b16 %v670
    %v2906 = vunpack.c.l.b16 %v671
    %v2907 = vunpack.c.l.b16 %v672
    %v2908 = vunpack.c.h.b16 %v672
    %v2909 = vunpack.c.l.b16 %v673
    %v2910 = vunpack.c.h.b16 %v673
    %v2911 = vunpack.c.l.b16 %v674
    %v2912 = vunpack.c.l.b16 %v675
    %v2913 = vunpack.c.h.b16 %v675
    %v2914 = vunpack.c.l.b16 %v676
    %v2915 = vunpack.c.h.b16 %v676
    %v2916 = vunpack.c.l.b16 %v677
    %v2917 = vunpack.c.l.b16 %v678
    %v2918 = vunpack.c.h.b16 %v678
    %v2919 = vunpack.c.l.b16 %v679
    %v2920 = vunpack.c.h.b16 %v679
    %v2921 = vunpack.c.l.b16 %v680
    %v2922 = vunpack.c.l.b16 %v681
    %v2923 = vunpack.c.h.b16 %v681
    %v2924 = vunpack.c.l.b16 %v682
    %v2925 = vunpack.c.h.b16 %v682
    %v2926 = vunpack.c.l.b16 %v683
    %v2927 = vunpack.c.l.b16 %v684
    %v2928 = vunpack.c.h.b16 %v684
    %v2929 = vunpack.c.l.b16 %v685
    %v2930 = vunpack.c.h.b16 %v685
    %v2931 = vunpack.c.l.b16 %v686
    %v2932 = vunpack.c.l.b16 %v687
    %v2933 = vunpack.c.h.b16 %v687
    %v2934 = vunpack.c.l.b16 %v688
    %v2935 = vunpack.c.h.b16 %v688
    %v2936 = vunpack.c.l.b16 %v689
    %v2937 = vunpack.c.l.b16 %v690
    %v2938 = vunpack.c.h.b16 %v690
    %v2939 = vunpack.c.l.b16 %v691
    %v2940 = vunpack.c.h.b16 %v691
    %v2941 = vunpack.c.l.b16 %v692
    %v2942 = vunpack.c.l.b16 %v693
    %v2943 = vunpack.c.h.b16 %v693
    %v2944 = vunpack.c.l.b16 %v694
    %v2945 = vunpack.c.h.b16 %v694
    %v2946 = vunpack.c.l.b16 %v695
    %v2947 = vunpack.c.l.b16 %v696
    %v2948 = vunpack.c.h.b16 %v696
    %v2949 = vunpack.c.l.b16 %v697
    %v2950 = vunpack.c.h.b16 %v697
    %v2951 = vunpack.c.l.b16 %v698
    %v2952 = vunpack.c.l.b16 %v699
    %v2953 = vunpack.c.h.b16 %v699
    %v2954 = vunpack.c.l.b16 %v700
    %v2955 = vunpack.c.h.b16 %v700
    %v2956 = vunpack.c.l.b16 %v701
    %v2957 = vunpack.c.l.b16 %v702
    %v2958 = vunpack.c.h.b16 %v702
    %v2959 = vunpack.c.l.b16 %v703
    %v2960 = vunpack.c.h.b16 %v703
    %v2961 = vunpack.c.l.b16 %v704
    %v2962 = vunpack.c.l.b16 %v705
    %v2963 = vunpack.c.h.b16 %v705
    %v2964 = vunpack.c.l.b16 %v706
    %v2965 = vunpack.c.h.b16 %v706
    %v2966 = vunpack.c.l.b16 %v707
    %v2967 = vunpack.c.l.b16 %v708
    %v2968 = vunpack.c.h.b16 %v708
    %v2969 = vunpack.c.l.b16 %v709
    %v2970 = vunpack.c.h.b16 %v709
    %v2971 = vunpack.c.l.b16 %v710
    %v2972 = vunpack.c.l.b16 %v711
    %v2973 = vunpack.c.h.b16 %v711
    %v2974 = vunpack.c.l.b16 %v712
    %v2975 = vunpack.c.h.b16 %v712
    %v2976 = vunpack.c.l.b16 %v713
    %v2977 = vunpack.c.l.b16 %v714
    %v2978 = vunpack.c.h.b16 %v714
    %v2979 = vunpack.c.l.b16 %v715
    %v2980 = vunpack.c.h.b16 %v715
    %v2981 = vunpack.c.l.b16 %v716
    %v2982 = vunpack.c.l.b16 %v717
    %v2983 = vunpack.c.h.b16 %v717
    %v2984 = vunpack.c.l.b16 %v718
    %v2985 = vunpack.c.h.b16 %v718
    %v2986 = vunpack.c.l.b16 %v719
    %v2987 = vunpack.c.l.b16 %v720
    %v2988 = vunpack.c.h.b16 %v720
    %v2989 = vunpack.c.l.b16 %v721
    %v2990 = vunpack.c.h.b16 %v721
    %v2991 = vunpack.c.l.b16 %v722
    %v2992 = vunpack.c.l.b16 %v723
    %v2993 = vunpack.c.h.b16 %v723
    %v2994 = vunpack.c.l.b16 %v724
    %v2995 = vunpack.c.h.b16 %v724
    %v2996 = vunpack.c.l.b16 %v725
    %v2997 = vunpack.c.l.b16 %v726
    %v2998 = vunpack.c.h.b16 %v726
    %v2999 = vunpack.c.l.b16 %v727
    %v3000 = vunpack.c.h.b16 %v727
    %v3001 = vunpack.c.l.b16 %v728
    %v3002 = vunpack.c.l.b16 %v729
    %v3003 = vunpack.c.h.b16 %v729
    %v3004 = vunpack.c.l.b16 %v730
    %v3005 = vunpack.c.h.b16 %v730
    %v3006 = vunpack.c.l.b16 %v731
    %v3007 = vunpack.c.l.b16 %v732
    %v3008 = vunpack.c.h.b16 %v732
    %v3009 = vunpack.c.l.b16 %v733
    %v3010 = vunpack.c.h.b16 %v733
    %v3011 = vunpack.c.l.b16 %v734
    %v3012 = vunpack.c.l.b16 %v735
    %v3013 = vunpack.c.h.b16 %v735
    %v3014 = vunpack.c.l.b16 %v736
    %v3015 = vunpack.c.h.b16 %v736
    %v3016 = vunpack.c.l.b16 %v737
    %v3017 = vunpack.c.l.b16 %v738
    %v3018 = vunpack.c.h.b16 %v738
    %v3019 = vunpack.c.l.b16 %v739
    %v3020 = vunpack.c.h.b16 %v739
    %v3021 = vunpack.c.l.b16 %v740
    %v3022 = vunpack.c.l.b16 %v741
    %v3023 = vunpack.c.h.b16 %v741
    %v3024 = vunpack.c.l.b16 %v742
    %v3025 = vunpack.c.h.b16 %v742
    %v3026 = vunpack.c.l.b16 %v743
    %v3027 = vunpack.c.l.b16 %v744
    %v3028 = vunpack.c.h.b16 %v744
    %v3029 = vunpack.c.l.b16 %v745
    %v3030 = vunpack.c.h.b16 %v745
    %v3031 = vunpack.c.l.b16 %v746
    %v3032 = vunpack.c.l.b16 %v747
    %v3033 = vunpack.c.h.b16 %v747
    %v3034 = vunpack.c.l.b16 %v748
    %v3035 = vunpack.c.h.b16 %v748
    %v3036 = vunpack.c.l.b16 %v749
    %v3037 = vunpack.c.l.b16 %v750
    %v3038 = vunpack.c.h.b16 %v750
    %v3039 = vunpack.c.l.b16 %v751
    %v3040 = vunpack.c.h.b16 %v751
    %v3041 = vunpack.c.l.b16 %v752
    %v3042 = vunpack.c.l.b16 %v753
    %v3043 = vunpack.c.h.b16 %v753
    %v3044 = vunpack.c.l.b16 %v754
    %v3045 = vunpack.c.h.b16 %v754
    %v3046 = vunpack.c.l.b16 %v755
    %v3047 = vunpack.c.l.b16 %v756
    %v3048 = vunpack.c.h.b16 %v756
    %v3049 = vunpack.c.l.b16 %v757
    %v3050 = vunpack.c.h.b16 %v757
    %v3051 = vunpack.c.l.b16 %v758
    %v3052 = vunpack.c.l.b16 %v759
    %v3053 = vunpack.c.h.b16 %v759
    %v3054 = vunpack.c.l.b16 %v760
    %v3055 = vunpack.c.h.b16 %v760
    %v3056 = vunpack.c.l.b16 %v761
    %v3057 = vunpack.c.l.b16 %v762
    %v3058 = vunpack.c.h.b16 %v762
    %v3059 = vunpack.c.l.b16 %v763
    %v3060 = vunpack.c.h.b16 %v763
    %v3061 = vunpack.c.l.b16 %v764
    %v3062 = vunpack.c.l.b16 %v765
    %v3063 = vunpack.c.h.b16 %v765
    %v3064 = vunpack.c.l.b16 %v766
    %v3065 = vunpack.c.h.b16 %v766
    %v3066 = vunpack.c.l.b16 %v767
    %v3067 = vunpack.c.l.b16 %v768
    %v3068 = vunpack.c.h.b16 %v768
    %v3069 = vunpack.c.l.b16 %v769
    %v3070 = vunpack.c.h.b16 %v769
    %v3071 = vunpack.c.l.b16 %v770
    %v3072 = vunpack.c.l.b16 %v771
    %v3073 = vunpack.c.h.b16 %v771
    %v3074 = vunpack.c.l.b16 %v772
    %v3075 = vunpack.c.h.b16 %v772
    %v3076 = vunpack.c.l.b16 %v773
    %v3077 = vunpack.c.l.b16 %v774
    %v3078 = vunpack.c.h.b16 %v774
    %v3079 = vunpack.c.l.b16 %v775
    %v3080 = vunpack.c.h.b16 %v775
    %v3081 = vunpack.c.l.b16 %v776
    %v3082 = vunpack.c.l.b16 %v777
    %v3083 = vunpack.c.h.b16 %v777
    %v3084 = vunpack.c.l.b16 %v778
    %v3085 = vunpack.c.h.b16 %v778
    %v3086 = vunpack.c.l.b16 %v779
    %v3087 = vunpack.c.l.b16 %v780
    %v3088 = vunpack.c.h.b16 %v780
    %v3089 = vunpack.c.l.b16 %v781
    %v3090 = vunpack.c.h.b16 %v781
    %v3091 = vunpack.c.l.b16 %v782
    %v3092 = vunpack.c.l.b16 %v783
    %v3093 = vunpack.c.h.b16 %v783
    %v3094 = vunpack.c.l.b16 %v784
    %v3095 = vunpack.c.h.b16 %v784
    %v3096 = vunpack.c.l.b16 %v785
    %v3097 = vunpack.c.l.b16 %v786
    %v3098 = vunpack.c.h.b16 %v786
    %v3099 = vunpack.c.l.b16 %v787
    %v3100 = vunpack.c.h.b16 %v787
    %v3101 = vunpack.c.l.b16 %v788
    %v3102 = vunpack.c.l.b16 %v789
    %v3103 = vunpack.c.h.b16 %v789
    %v3104 = vunpack.c.l.b16 %v790
    %v3105 = vunpack.c.h.b16 %v790
    %v3106 = vunpack.c.l.b16 %v791
    %v3107 = vunpack.c.l.b16 %v792
    %v3108 = vunpack.c.h.b16 %v792
    %v3109 = vunpack.c.l.b16 %v793
    %v3110 = vunpack.c.h.b16 %v793
    %v3111 = vunpack.c.l.b16 %v794
    %v3112 = vunpack.c.l.b16 %v795
    %v3113 = vunpack.c.h.b16 %v795
    %v3114 = vunpack.c.l.b16 %v796
    %v3115 = vunpack.c.h.b16 %v796
    %v3116 = vunpack.c.l.b16 %v797
    %v3117 = vunpack.c.l.b16 %v798
    %v3118 = vunpack.c.h.b16 %v798
    %v3119 = vunpack.c.l.b16 %v799
    %v3120 = vunpack.c.h.b16 %v799
    %v3121 = vunpack.c.l.b16 %v800
    %v3122 = vunpack.c.l.b16 %v801
    %v3123 = vunpack.c.h.b16 %v801
    %v3124 = vunpack.c.l.b16 %v802
    %v3125 = vunpack.c.h.b16 %v802
    %v3126 = vunpack.c.l.b16 %v803
    %v3127 = vunpack.c.l.b16 %v804
    %v3128 = vunpack.c.h.b16 %v804
    %v3129 = vunpack.c.l.b16 %v805
    %v3130 = vunpack.c.h.b16 %v805
    %v3131 = vunpack.c.l.b16 %v806
    %v3132 = vunpack.c.l.b16 %v807
    %v3133 = vunpack.c.h.b16 %v807
    %v3134 = vunpack.c.l.b16 %v808
    %v3135 = vunpack.c.h.b16 %v808
    %v3136 = vunpack.c.l.b16 %v809
    %v3137 = vunpack.c.l.b16 %v810
    %v3138 = vunpack.c.h.b16 %v810
    %v3139 = vunpack.c.l.b16 %v811
    %v3140 = vunpack.c.h.b16 %v811
    %v3141 = vunpack.c.l.b16 %v812
    %v3142 = vunpack.c.l.b16 %v813
    %v3143 = vunpack.c.h.b16 %v813
    %v3144 = vunpack.c.l.b16 %v814
    %v3145 = vunpack.c.h.b16 %v814
    %v3146 = vunpack.c.l.b16 %v815
    %v3147 = vunpack.c.l.b16 %v816
    %v3148 = vunpack.c.h.b16 %v816
    %v3149 = vunpack.c.l.b16 %v817
    %v3150 = vunpack.c.h.b16 %v817
    %v3151 = vunpack.c.l.b16 %v818
    %v3152 = vunpack.c.l.b16 %v819
    %v3153 = vunpack.c.h.b16 %v819
    %v3154 = vunpack.c.l.b16 %v820
    %v3155 = vunpack.c.h.b16 %v820
    %v3156 = vunpack.c.l.b16 %v821
    %v3157 = vunpack.c.l.b16 %v822
    %v3158 = vunpack.c.h.b16 %v822
    %v3159 = vunpack.c.l.b16 %v823
    %v3160 = vunpack.c.h.b16 %v823
    %v3161 = vunpack.c.l.b16 %v824
    %v3162 = vunpack.c.l.b16 %v825
    %v3163 = vunpack.c.h.b16 %v825
    %v3164 = vunpack.c.l.b16 %v826
    %v3165 = vunpack.c.h.b16 %v826
    %v3166 = vunpack.c.l.b16 %v827
    %v3167 = vunpack.c.l.b16 %v828
    %v3168 = vunpack.c.h.b16 %v828
    %v3169 = vunpack.c.l.b16 %v829
    %v3170 = vunpack.c.h.b16 %v829
    %v3171 = vunpack.c.l.b16 %v830
    %v3172 = vunpack.c.l.b16 %v831
    %v3173 = vunpack.c.h.b16 %v831
    %v3174 = vunpack.c.l.b16 %v832
    %v3175 = vunpack.c.h.b16 %v832
    %v3176 = vunpack.c.l.b16 %v833
    %v3177 = vunpack.c.l.b16 %v834
    %v3178 = vunpack.c.h.b16 %v834
    %v3179 = vunpack.c.l.b16 %v835
    %v3180 = vunpack.c.h.b16 %v835
    %v3181 = vunpack.c.l.b16 %v836
    %v3182 = vunpack.c.l.b16 %v837
    %v3183 = vunpack.c.h.b16 %v837
    %v3184 = vunpack.c.l.b16 %v838
    %v3185 = vunpack.c.h.b16 %v838
    %v3186 = vunpack.c.l.b16 %v839
    %v3187 = vunpack.c.l.b16 %v840
    %v3188 = vunpack.c.h.b16 %v840
    %v3189 = vunpack.c.l.b16 %v841
    %v3190 = vunpack.c.h.b16 %v841
    %v3191 = vunpack.c.l.b16 %v842
    %v3192 = vunpack.c.l.b16 %v843
    %v3193 = vunpack.c.h.b16 %v843
    %v3194 = vunpack.c.l.b16 %v844
    %v3195 = vunpack.c.h.b16 %v844
    %v3196 = vunpack.c.l.b16 %v845
    %v3197 = vunpack.c.l.b16 %v846
    %v3198 = vunpack.c.h.b16 %v846
    %v3199 = vunpack.c.l.b16 %v847
    %v3200 = vunpack.c.h.b16 %v847
    %v3201 = vunpack.c.l.b16 %v848
    %v3202 = vunpack.c.l.b16 %v849
    %v3203 = vunpack.c.h.b16 %v849
    %v3204 = vunpack.c.l.b16 %v850
    %v3205 = vunpack.c.h.b16 %v850
    %v3206 = vunpack.c.l.b16 %v851
    %v3207 = vunpack.c.l.b16 %v852
    %v3208 = vunpack.c.h.b16 %v852
    %v3209 = vunpack.c.l.b16 %v853
    %v3210 = vunpack.c.h.b16 %v853
    %v3211 = vunpack.c.l.b16 %v854
    %v3212 = vunpack.c.l.b16 %v855
    %v3213 = vunpack.c.h.b16 %v855
    %v3214 = vunpack.c.l.b16 %v856
    %v3215 = vunpack.c.h.b16 %v856
    %v3216 = vunpack.c.l.b16 %v857
    %v3217 = vunpack.c.l.b16 %v858
    %v3218 = vunpack.c.h.b16 %v858
    %v3219 = vunpack.c.l.b16 %v859
    %v3220 = vunpack.c.h.b16 %v859
    %v3221 = vunpack.c.l.b16 %v860
    %v3222 = vunpack.c.l.b16 %v861
    %v3223 = vunpack.c.h.b16 %v861
    %v3224 = vunpack.c.l.b16 %v862
    %v3225 = vunpack.c.h.b16 %v862
    %v3226 = vunpack.c.l.b16 %v863
    %v3227 = vunpack.c.l.b16 %v864
    %v3228 = vunpack.c.h.b16 %v864
    %v3229 = vunpack.c.l.b16 %v865
    %v3230 = vunpack.c.h.b16 %v865
    %v3231 = vunpack.c.l.b16 %v866
    %v3232 = vunpack.c.l.b16 %v867
    %v3233 = vunpack.c.h.b16 %v867
    %v3234 = vunpack.c.l.b16 %v868
    %v3235 = vunpack.c.h.b16 %v868
    %v3236 = vunpack.c.l.b16 %v869
    %v3237 = vunpack.c.l.b16 %v870
    %v3238 = vunpack.c.h.b16 %v870
    %v3239 = vunpack.c.l.b16 %v871
    %v3240 = vunpack.c.h.b16 %v871
    %v3241 = vunpack.c.l.b16 %v872
    %v3242 = vunpack.c.l.b16 %v873
    %v3243 = vunpack.c.h.b16 %v873
    %v3244 = vunpack.c.l.b16 %v874
    %v3245 = vunpack.c.h.b16 %v874
    %v3246 = vunpack.c.l.b16 %v875
    %v3247 = vunpack.c.l.b16 %v876
    %v3248 = vunpack.c.h.b16 %v876
    %v3249 = vunpack.c.l.b16 %v877
    %v3250 = vunpack.c.h.b16 %v877
    %v3251 = vunpack.c.l.b16 %v878
    %v3252 = vunpack.c.l.b16 %v879
    %v3253 = vunpack.c.h.b16 %v879
    %v3254 = vunpack.c.l.b16 %v880
    %v3255 = vunpack.c.h.b16 %v880
    %v3256 = vunpack.c.l.b16 %v881
    %v3257 = vunpack.c.l.b16 %v882
    %v3258 = vunpack.c.h.b16 %v882
    %v3259 = vunpack.c.l.b16 %v883
    %v3260 = vunpack.c.h.b16 %v883
    %v3261 = vunpack.c.l.b16 %v884
    %v3262 = vunpack.c.l.b16 %v885
    %v3263 = vunpack.c.h.b16 %v885
    %v3264 = vunpack.c.l.b16 %v886
    %v3265 = vunpack.c.h.b16 %v886
    %v3266 = vunpack.c.l.b16 %v887
    %v3267 = vpack.c.b16 %v1832, %v1827
    %v3268 = vpack.c.b16 %v1833, %v1828
    %v3269 = vpack.c.b16 %v1834, %v1829
    %v3270 = vpack.c.b16 %v1835, %v1830
    %v3271 = vpack.c.b16 %v1836, %v1831
    %v3272 = vpack.c.b16 %v1842, %v1837
    %v3273 = vpack.c.b16 %v1843, %v1838
    %v3274 = vpack.c.b16 %v1844, %v1839
    %v3275 = vpack.c.b16 %v1845, %v1840
    %v3276 = vpack.c.b16 %v1846, %v1841
    %v3277 = vpack.c.b16 %v1852, %v1847
    %v3278 = vpack.c.b16 %v1853, %v1848
    %v3279 = vpack.c.b16 %v1854, %v1849
    %v3280 = vpack.c.b16 %v1855, %v1850
    %v3281 = vpack.c.b16 %v1856, %v1851
    %v3282 = vpack.c.b16 %v1862, %v1857
    %v3283 = vpack.c.b16 %v1863, %v1858
    %v3284 = vpack.c.b16 %v1864, %v1859
    %v3285 = vpack.c.b16 %v1865, %v1860
    %v3286 = vpack.c.b16 %v1866, %v1861
    %v3287 = vpack.c.b16 %v1872, %v1867
    %v3288 = vpack.c.b16 %v1873, %v1868
    %v3289 = vpack.c.b16 %v1874, %v1869
    %v3290 = vpack.c.b16 %v1875, %v1870
    %v3291 = vpack.c.b16 %v1876, %v1871
    %v3292 = vpack.c.b16 %v1882, %v1877
    %v3293 = vpack.c.b16 %v1883, %v1878
    %v3294 = vpack.c.b16 %v1884, %v1879
    %v3295 = vpack.c.b16 %v1885, %v1880
    %v3296 = vpack.c.b16 %v1886, %v1881
    %v3297 = vpack.c.b16 %v1892, %v1887
    %v3298 = vpack.c.b16 %v1893, %v1888
    %v3299 = vpack.c.b16 %v1894, %v1889
    %v3300 = vpack.c.b16 %v1895, %v1890
    %v3301 = vpack.c.b16 %v1896, %v1891
    %v3302 = vpack.c.b16 %v1902, %v1897
    %v3303 = vpack.c.b16 %v1903, %v1898
    %v3304 = vpack.c.b16 %v1904, %v1899
    %v3305 = vpack.c.b16 %v1905, %v1900
    %v3306 = vpack.c.b16 %v1906, %v1901
    %v3307 = vpack.c.b16 %v1912, %v1907
    %v3308 = vpack.c.b16 %v1913, %v1908
    %v3309 = vpack.c.b16 %v1914, %v1909
    %v3310 = vpack.c.b16 %v1915, %v1910
    %v3311 = vpack.c.b16 %v1916, %v1911
    %v3312 = vpack.c.b16 %v1922, %v1917
    %v3313 = vpack.c.b16 %v1923, %v1918
    %v3314 = vpack.c.b16 %v1924, %v1919
    %v3315 = vpack.c.b16 %v1925, %v1920
    %v3316 = vpack.c.b16 %v1926, %v1921
    %v3317 = vpack.c.b16 %v1932, %v1927
    %v3318 = vpack.c.b16 %v1933, %v1928
    %v3319 = vpack.c.b16 %v1934, %v1929
    %v3320 = vpack.c.b16 %v1935, %v1930
    %v3321 = vpack.c.b16 %v1936, %v1931
    %v3322 = vpack.c.b16 %v1942, %v1937
    %v3323 = vpack.c.b16 %v1943, %v1938
    %v3324 = vpack.c.b16 %v1944, %v1939
    %v3325 = vpack.c.b16 %v1945, %v1940
    %v3326 = vpack.c.b16 %v1946, %v1941
    %v3327 = vpack.c.b16 %v1952, %v1947
    %v3328 = vpack.c.b16 %v1953, %v1948
    %v3329 = vpack.c.b16 %v1954, %v1949
    %v3330 = vpack.c.b16 %v1955, %v1950
    %v3331 = vpack.c.b16 %v1956, %v1951
    %v3332 = vpack.c.b16 %v1962, %v1957
    %v3333 = vpack.c.b16 %v1963, %v1958
    %v3334 = vpack.c.b16 %v1964, %v1959
    %v3335 = vpack.c.b16 %v1965, %v1960
    %v3336 = vpack.c.b16 %v1966, %v1961
    %v3337 = vpack.c.b16 %v1972, %v1967
    %v3338 = vpack.c.b16 %v1973, %v1968
    %v3339 = vpack.c.b16 %v1974, %v1969
    %v3340 = vpack.c.b16 %v1975, %v1970
    %v3341 = vpack.c.b16 %v1976, %v1971
    %v3342 = vpack.c.b16 %v1982, %v1977
    %v3343 = vpack.c.b16 %v1983, %v1978
    %v3344 = vpack.c.b16 %v1984, %v1979
    %v3345 = vpack.c.b16 %v1985, %v1980
    %v3346 = vpack.c.b16 %v1986, %v1981
    %v3347 = vpack.c.b16 %v1992, %v1987
    %v3348 = vpack.c.b16 %v1993, %v1988
    %v3349 = vpack.c.b16 %v1994, %v1989
    %v3350 = vpack.c.b16 %v1995, %v1990
    %v3351 = vpack.c.b16 %v1996, %v1991
    %v3352 = vpack.c.b16 %v2002, %v1997
    %v3353 = vpack.c.b16 %v2003, %v1998
    %v3354 = vpack.c.b16 %v2004, %v1999
    %v3355 = vpack.c.b16 %v2005, %v2000
    %v3356 = vpack.c.b16 %v2006, %v2001
    %v3357 = vpack.c.b16 %v2012, %v2007
    %v3358 = vpack.c.b16 %v2013, %v2008
    %v3359 = vpack.c.b16 %v2014, %v2009
    %v3360 = vpack.c.b16 %v2015, %v2010
    %v3361 = vpack.c.b16 %v2016, %v2011
    %v3362 = vpack.c.b16 %v2022, %v2017
    %v3363 = vpack.c.b16 %v2023, %v2018
    %v3364 = vpack.c.b16 %v2024, %v2019
    %v3365 = vpack.c.b16 %v2025, %v2020
    %v3366 = vpack.c.b16 %v2026, %v2021
    %v3367 = vpack.c.b16 %v2032, %v2027
    %v3368 = vpack.c.b16 %v2033, %v2028
    %v3369 = vpack.c.b16 %v2034, %v2029
    %v3370 = vpack.c.b16 %v2035, %v2030
    %v3371 = vpack.c.b16 %v2036, %v2031
    %v3372 = vpack.c.b16 %v2042, %v2037
    %v3373 = vpack.c.b16 %v2043, %v2038
    %v3374 = vpack.c.b16 %v2044, %v2039
    %v3375 = vpack.c.b16 %v2045, %v2040
    %v3376 = vpack.c.b16 %v2046, %v2041
    %v3377 = vpack.c.b16 %v2052, %v2047
    %v3378 = vpack.c.b16 %v2053, %v2048
    %v3379 = vpack.c.b16 %v2054, %v2049
    %v3380 = vpack.c.b16 %v2055, %v2050
    %v3381 = vpack.c.b16 %v2056, %v2051
    %v3382 = vpack.c.b16 %v2062, %v2057
    %v3383 = vpack.c.b16 %v2063, %v2058
    %v3384 = vpack.c.b16 %v2064, %v2059
    %v3385 = vpack.c.b16 %v2065, %v2060
    %v3386 = vpack.c.b16 %v2066, %v2061
    %v3387 = vpack.c.b16 %v2072, %v2067
    %v3388 = vpack.c.b16 %v2073, %v2068
    %v3389 = vpack.c.b16 %v2074, %v2069
    %v3390 = vpack.c.b16 %v2075, %v2070
    %v3391 = vpack.c.b16 %v2076, %v2071
    %v3392 = vpack.c.b16 %v2082, %v2077
    %v3393 = vpack.c.b16 %v2083, %v2078
    %v3394 = vpack.c.b16 %v2084, %v2079
    %v3395 = vpack.c.b16 %v2085, %v2080
    %v3396 = vpack.c.b16 %v2086, %v2081
    %v3397 = vpack.c.b16 %v2092, %v2087
    %v3398 = vpack.c.b16 %v2093, %v2088
    %v3399 = vpack.c.b16 %v2094, %v2089
    %v3400 = vpack.c.b16 %v2095, %v2090
    %v3401 = vpack.c.b16 %v2096, %v2091
    %v3402 = vpack.c.b16 %v2102, %v2097
    %v3403 = vpack.c.b16 %v2103, %v2098
    %v3404 = vpack.c.b16 %v2104, %v2099
    %v3405 = vpack.c.b16 %v2105, %v2100
    %v3406 = vpack.c.b16 %v2106, %v2101
    %v3407 = vpack.c.b16 %v2112, %v2107
    %v3408 = vpack.c.b16 %v2113, %v2108
    %v3409 = vpack.c.b16 %v2114, %v2109
    %v3410 = vpack.c.b16 %v2115, %v2110
    %v3411 = vpack.c.b16 %v2116, %v2111
    %v3412 = vpack.c.b16 %v2122, %v2117
    %v3413 = vpack.c.b16 %v2123, %v2118
    %v3414 = vpack.c.b16 %v2124, %v2119
    %v3415 = vpack.c.b16 %v2125, %v2120
    %v3416 = vpack.c.b16 %v2126, %v2121
    %v3417 = vpack.c.b16 %v2132, %v2127
    %v3418 = vpack.c.b16 %v2133, %v2128
    %v3419 = vpack.c.b16 %v2134, %v2129
    %v3420 = vpack.c.b16 %v2135, %v2130
    %v3421 = vpack.c.b16 %v2136, %v2131
    %v3422 = vpack.c.b16 %v2142, %v2137
    %v3423 = vpack.c.b16 %v2143, %v2138
    %v3424 = vpack.c.b16 %v2144, %v2139
    %v3425 = vpack.c.b16 %v2145, %v2140
    %v3426 = vpack.c.b16 %v2146, %v2141
    %v3427 = vpack.c.b16 %v2152, %v2147
    %v3428 = vpack.c.b16 %v2153, %v2148
    %v3429 = vpack.c.b16 %v2154, %v2149
    %v3430 = vpack.c.b16 %v2155, %v2150
    %v3431 = vpack.c.b16 %v2156, %v2151
    %v3432 = vpack.c.b16 %v2162, %v2157
    %v3433 = vpack.c.b16 %v2163, %v2158
    %v3434 = vpack.c.b16 %v2164, %v2159
    %v3435 = vpack.c.b16 %v2165, %v2160
    %v3436 = vpack.c.b16 %v2166, %v2161
    %v3437 = vpack.c.b16 %v2172, %v2167
    %v3438 = vpack.c.b16 %v2173, %v2168
    %v3439 = vpack.c.b16 %v2174, %v2169
    %v3440 = vpack.c.b16 %v2175, %v2170
    %v3441 = vpack.c.b16 %v2176, %v2171
    %v3442 = vpack.c.b16 %v2182, %v2177
    %v3443 = vpack.c.b16 %v2183, %v2178
    %v3444 = vpack.c.b16 %v2184, %v2179
    %v3445 = vpack.c.b16 %v2185, %v2180
    %v3446 = vpack.c.b16 %v2186, %v2181
    %v3447 = vpack.c.b16 %v2192, %v2187
    %v3448 = vpack.c.b16 %v2193, %v2188
    %v3449 = vpack.c.b16 %v2194, %v2189
    %v3450 = vpack.c.b16 %v2195, %v2190
    %v3451 = vpack.c.b16 %v2196, %v2191
    %v3452 = vpack.c.b16 %v2202, %v2197
    %v3453 = vpack.c.b16 %v2203, %v2198
    %v3454 = vpack.c.b16 %v2204, %v2199
    %v3455 = vpack.c.b16 %v2205, %v2200
    %v3456 = vpack.c.b16 %v2206, %v2201
    %v3457 = vpack.c.b16 %v2212, %v2207
    %v3458 = vpack.c.b16 %v2213, %v2208
    %v3459 = vpack.c.b16 %v2214, %v2209
    %v3460 = vpack.c.b16 %v2215, %v2210
    %v3461 = vpack.c.b16 %v2216, %v2211
    %v3462 = vpack.c.b16 %v2222, %v2217
    %v3463 = vpack.c.b16 %v2223, %v2218
    %v3464 = vpack.c.b16 %v2224, %v2219
    %v3465 = vpack.c.b16 %v2225, %v2220
    %v3466 = vpack.c.b16 %v2226, %v2221
    %v3467 = vpack.c.b16 %v2232, %v2227
    %v3468 = vpack.c.b16 %v2233, %v2228
    %v3469 = vpack.c.b16 %v2234, %v2229
    %v3470 = vpack.c.b16 %v2235, %v2230
    %v3471 = vpack.c.b16 %v2236, %v2231
    %v3472 = vpack.c.b16 %v2242, %v2237
    %v3473 = vpack.c.b16 %v2243, %v2238
    %v3474 = vpack.c.b16 %v2244, %v2239
    %v3475 = vpack.c.b16 %v2245, %v2240
    %v3476 = vpack.c.b16 %v2246, %v2241
    %v3477 = vpack.c.b16 %v2252, %v2247
    %v3478 = vpack.c.b16 %v2253, %v2248
    %v3479 = vpack.c.b16 %v2254, %v2249
    %v3480 = vpack.c.b16 %v2255, %v2250
    %v3481 = vpack.c.b16 %v2256, %v2251
    %v3482 = vpack.c.b16 %v2262, %v2257
    %v3483 = vpack.c.b16 %v2263, %v2258
    %v3484 = vpack.c.b16 %v2264, %v2259
    %v3485 = vpack.c.b16 %v2265, %v2260
    %v3486 = vpack.c.b16 %v2266, %v2261
    %v3487 = vpack.c.b16 %v2272, %v2267
    %v3488 = vpack.c.b16 %v2273, %v2268
    %v3489 = vpack.c.b16 %v2274, %v2269
    %v3490 = vpack.c.b16 %v2275, %v2270
    %v3491 = vpack.c.b16 %v2276, %v2271
    %v3492 = vpack.c.b16 %v2282, %v2277
    %v3493 = vpack.c.b16 %v2283, %v2278
    %v3494 = vpack.c.b16 %v2284, %v2279
    %v3495 = vpack.c.b16 %v2285, %v2280
    %v3496 = vpack.c.b16 %v2286, %v2281
    %v3497 = vpack.c.b16 %v2292, %v2287
    %v3498 = vpack.c.b16 %v2293, %v2288
    %v3499 = vpack.c.b16 %v2294, %v2289
    %v3500 = vpack.c.b16 %v2295, %v2290
    %v3501 = vpack.c.b16 %v2296, %v2291
    %v3502 = vpack.c.b16 %v2302, %v2297
    %v3503 = vpack.c.b16 %v2303, %v2298
    %v3504 = vpack.c.b16 %v2304, %v2299
    %v3505 = vpack.c.b16 %v2305, %v2300
    %v3506 = vpack.c.b16 %v2306, %v2301
    %v3507 = vpack.c.b16 %v2312, %v2307
    %v3508 = vpack.c.b16 %v2313, %v2308
    %v3509 = vpack.c.b16 %v2314, %v2309
    %v3510 = vpack.c.b16 %v2315, %v2310
    %v3511 = vpack.c.b16 %v2316, %v2311
    %v3512 = vpack.c.b16 %v2322, %v2317
    %v3513 = vpack.c.b16 %v2323, %v2318
    %v3514 = vpack.c.b16 %v2324, %v2319
    %v3515 = vpack.c.b16 %v2325, %v2320
    %v3516 = vpack.c.b16 %v2326, %v2321
    %v3517 = vpack.c.b16 %v2332, %v2327
    %v3518 = vpack.c.b16 %v2333, %v2328
    %v3519 = vpack.c.b16 %v2334, %v2329
    %v3520 = vpack.c.b16 %v2335, %v2330
    %v3521 = vpack.c.b16 %v2336, %v2331
    %v3522 = vpack.c.b16 %v2342, %v2337
    %v3523 = vpack.c.b16 %v2343, %v2338
    %v3524 = vpack.c.b16 %v2344, %v2339
    %v3525 = vpack.c.b16 %v2345, %v2340
    %v3526 = vpack.c.b16 %v2346, %v2341
    %v3527 = vpack.c.b16 %v2352, %v2347
    %v3528 = vpack.c.b16 %v2353, %v2348
    %v3529 = vpack.c.b16 %v2354, %v2349
    %v3530 = vpack.c.b16 %v2355, %v2350
    %v3531 = vpack.c.b16 %v2356, %v2351
    %v3532 = vpack.c.b16 %v2362, %v2357
    %v3533 = vpack.c.b16 %v2363, %v2358
    %v3534 = vpack.c.b16 %v2364, %v2359
    %v3535 = vpack.c.b16 %v2365, %v2360
    %v3536 = vpack.c.b16 %v2366, %v2361
    %v3537 = vpack.c.b16 %v2372, %v2367
    %v3538 = vpack.c.b16 %v2373, %v2368
    %v3539 = vpack.c.b16 %v2374, %v2369
    %v3540 = vpack.c.b16 %v2375, %v2370
    %v3541 = vpack.c.b16 %v2376, %v2371
    %v3542 = vpack.c.b16 %v2382, %v2377
    %v3543 = vpack.c.b16 %v2383, %v2378
    %v3544 = vpack.c.b16 %v2384, %v2379
    %v3545 = vpack.c.b16 %v2385, %v2380
    %v3546 = vpack.c.b16 %v2386, %v2381
    %v3547 = vpack.c.b16 %v2392, %v2387
    %v3548 = vpack.c.b16 %v2393, %v2388
    %v3549 = vpack.c.b16 %v2394, %v2389
    %v3550 = vpack.c.b16 %v2395, %v2390
    %v3551 = vpack.c.b16 %v2396, %v2391
    %v3552 = vpack.c.b16 %v2402, %v2397
    %v3553 = vpack.c.b16 %v2403, %v2398
    %v3554 = vpack.c.b16 %v2404, %v2399
    %v3555 = vpack.c.b16 %v2405, %v2400
    %v3556 = vpack.c.b16 %v2406, %v2401
    %v3557 = vpack.c.b16 %v2412, %v2407
    %v3558 = vpack.c.b16 %v2413, %v2408
    %v3559 = vpack.c.b16 %v2414, %v2409
    %v3560 = vpack.c.b16 %v2415, %v2410
    %v3561 = vpack.c.b16 %v2416, %v2411
    %v3562 = vpack.c.b16 %v2422, %v2417
    %v3563 = vpack.c.b16 %v2423, %v2418
    %v3564 = vpack.c.b16 %v2424, %v2419
    %v3565 = vpack.c.b16 %v2425, %v2420
    %v3566 = vpack.c.b16 %v2426, %v2421
    %v3567 = vpack.c.b16 %v2432, %v2427
    %v3568 = vpack.c.b16 %v2433, %v2428
    %v3569 = vpack.c.b16 %v2434, %v2429
    %v3570 = vpack.c.b16 %v2435, %v2430
    %v3571 = vpack.c.b16 %v2436, %v2431
    %v3572 = vpack.c.b16 %v2442, %v2437
    %v3573 = vpack.c.b16 %v2443, %v2438
    %v3574 = vpack.c.b16 %v2444, %v2439
    %v3575 = vpack.c.b16 %v2445, %v2440
    %v3576 = vpack.c.b16 %v2446, %v2441
    %v3577 = vpack.c.b16 %v2452, %v2447
    %v3578 = vpack.c.b16 %v2453, %v2448
    %v3579 = vpack.c.b16 %v2454, %v2449
    %v3580 = vpack.c.b16 %v2455, %v2450
    %v3581 = vpack.c.b16 %v2456, %v2451
    %v3582 = vpack.c.b16 %v2462, %v2457
    %v3583 = vpack.c.b16 %v2463, %v2458
    %v3584 = vpack.c.b16 %v2464, %v2459
    %v3585 = vpack.c.b16 %v2465, %v2460
    %v3586 = vpack.c.b16 %v2466, %v2461
    %v3587 = vpack.c.b16 %v2472, %v2467
    %v3588 = vpack.c.b16 %v2473, %v2468
    %v3589 = vpack.c.b16 %v2474, %v2469
    %v3590 = vpack.c.b16 %v2475, %v2470
    %v3591 = vpack.c.b16 %v2476, %v2471
    %v3592 = vpack.c.b16 %v2482, %v2477
    %v3593 = vpack.c.b16 %v2483, %v2478
    %v3594 = vpack.c.b16 %v2484, %v2479
    %v3595 = vpack.c.b16 %v2485, %v2480
    %v3596 = vpack.c.b16 %v2486, %v2481
    %v3597 = vpack.c.b16 %v2492, %v2487
    %v3598 = vpack.c.b16 %v2493, %v2488
    %v3599 = vpack.c.b16 %v2494, %v2489
    %v3600 = vpack.c.b16 %v2495, %v2490
    %v3601 = vpack.c.b16 %v2496, %v2491
    %v3602 = vpack.c.b16 %v2502, %v2497
    %v3603 = vpack.c.b16 %v2503, %v2498
    %v3604 = vpack.c.b16 %v2504, %v2499
    %v3605 = vpack.c.b16 %v2505, %v2500
    %v3606 = vpack.c.b16 %v2506, %v2501
    %v3607 = vpack.c.b16 %v2512, %v2507
    %v3608 = vpack.c.b16 %v2513, %v2508
    %v3609 = vpack.c.b16 %v2514, %v2509
    %v3610 = vpack.c.b16 %v2515, %v2510
    %v3611 = vpack.c.b16 %v2516, %v2511
    %v3612 = vpack.c.b16 %v2522, %v2517
    %v3613 = vpack.c.b16 %v2523, %v2518
    %v3614 = vpack.c.b16 %v2524, %v2519
    %v3615 = vpack.c.b16 %v2525, %v2520
    %v3616 = vpack.c.b16 %v2526, %v2521
    %v3617 = vpack.c.b16 %v2532, %v2527
    %v3618 = vpack.c.b16 %v2533, %v2528
    %v3619 = vpack.c.b16 %v2534, %v2529
    %v3620 = vpack.c.b16 %v2535, %v2530
    %v3621 = vpack.c.b16 %v2536, %v2531
    %v3622 = vpack.c.b16 %v2542, %v2537
    %v3623 = vpack.c.b16 %v2543, %v2538
    %v3624 = vpack.c.b16 %v2544, %v2539
    %v3625 = vpack.c.b16 %v2545, %v2540
    %v3626 = vpack.c.b16 %v2546, %v2541
    %v3627 = vpack.c.b16 %v2552, %v2547
    %v3628 = vpack.c.b16 %v2553, %v2548
    %v3629 = vpack.c.b16 %v2554, %v2549
    %v3630 = vpack.c.b16 %v2555, %v2550
    %v3631 = vpack.c.b16 %v2556, %v2551
    %v3632 = vpack.c.b16 %v2562, %v2557
    %v3633 = vpack.c.b16 %v2563, %v2558
    %v3634 = vpack.c.b16 %v2564, %v2559
    %v3635 = vpack.c.b16 %v2565, %v2560
    %v3636 = vpack.c.b16 %v2566, %v2561
    %v3637 = vpack.c.b16 %v2572, %v2567
    %v3638 = vpack.c.b16 %v2573, %v2568
    %v3639 = vpack.c.b16 %v2574, %v2569
    %v3640 = vpack.c.b16 %v2575, %v2570
    %v3641 = vpack.c.b16 %v2576, %v2571
    %v3642 = vpack.c.b16 %v2582, %v2577
    %v3643 = vpack.c.b16 %v2583, %v2578
    %v3644 = vpack.c.b16 %v2584, %v2579
    %v3645 = vpack.c.b16 %v2585, %v2580
    %v3646 = vpack.c.b16 %v2586, %v2581
    %v3647 = vpack.c.b16 %v2592, %v2587
    %v3648 = vpack.c.b16 %v2593, %v2588
    %v3649 = vpack.c.b16 %v2594, %v2589
    %v3650 = vpack.c.b16 %v2595, %v2590
    %v3651 = vpack.c.b16 %v2596, %v2591
    %v3652 = vpack.c.b16 %v2602, %v2597
    %v3653 = vpack.c.b16 %v2603, %v2598
    %v3654 = vpack.c.b16 %v2604, %v2599
    %v3655 = vpack.c.b16 %v2605, %v2600
    %v3656 = vpack.c.b16 %v2606, %v2601
    %v3657 = vpack.c.b16 %v2612, %v2607
    %v3658 = vpack.c.b16 %v2613, %v2608
    %v3659 = vpack.c.b16 %v2614, %v2609
    %v3660 = vpack.c.b16 %v2615, %v2610
    %v3661 = vpack.c.b16 %v2616, %v2611
    %v3662 = vpack.c.b16 %v2622, %v2617
    %v3663 = vpack.c.b16 %v2623, %v2618
    %v3664 = vpack.c.b16 %v2624, %v2619
    %v3665 = vpack.c.b16 %v2625, %v2620
    %v3666 = vpack.c.b16 %v2626, %v2621
    %v3667 = vpack.c.b16 %v2632, %v2627
    %v3668 = vpack.c.b16 %v2633, %v2628
    %v3669 = vpack.c.b16 %v2634, %v2629
    %v3670 = vpack.c.b16 %v2635, %v2630
    %v3671 = vpack.c.b16 %v2636, %v2631
    %v3672 = vpack.c.b16 %v2642, %v2637
    %v3673 = vpack.c.b16 %v2643, %v2638
    %v3674 = vpack.c.b16 %v2644, %v2639
    %v3675 = vpack.c.b16 %v2645, %v2640
    %v3676 = vpack.c.b16 %v2646, %v2641
    %v3677 = vpack.c.b16 %v2652, %v2647
    %v3678 = vpack.c.b16 %v2653, %v2648
    %v3679 = vpack.c.b16 %v2654, %v2649
    %v3680 = vpack.c.b16 %v2655, %v2650
    %v3681 = vpack.c.b16 %v2656, %v2651
    %v3682 = vpack.c.b16 %v2662, %v2657
    %v3683 = vpack.c.b16 %v2663, %v2658
    %v3684 = vpack.c.b16 %v2664, %v2659
    %v3685 = vpack.c.b16 %v2665, %v2660
    %v3686 = vpack.c.b16 %v2666, %v2661
    %v3687 = vpack.c.b16 %v2672, %v2667
    %v3688 = vpack.c.b16 %v2673, %v2668
    %v3689 = vpack.c.b16 %v2674, %v2669
    %v3690 = vpack.c.b16 %v2675, %v2670
    %v3691 = vpack.c.b16 %v2676, %v2671
    %v3692 = vpack.c.b16 %v2682, %v2677
    %v3693 = vpack.c.b16 %v2683, %v2678
    %v3694 = vpack.c.b16 %v2684, %v2679
    %v3695 = vpack.c.b16 %v2685, %v2680
    %v3696 = vpack.c.b16 %v2686, %v2681
    %v3697 = vpack.c.b16 %v2692, %v2687
    %v3698 = vpack.c.b16 %v2693, %v2688
    %v3699 = vpack.c.b16 %v2694, %v2689
    %v3700 = vpack.c.b16 %v2695, %v2690
    %v3701 = vpack.c.b16 %v2696, %v2691
    %v3702 = vpack.c.b16 %v2702, %v2697
    %v3703 = vpack.c.b16 %v2703, %v2698
    %v3704 = vpack.c.b16 %v2704, %v2699
    %v3705 = vpack.c.b16 %v2705, %v2700
    %v3706 = vpack.c.b16 %v2706, %v2701
    %v3707 = vpack.c.b16 %v2712, %v2707
    %v3708 = vpack.c.b16 %v2713, %v2708
    %v3709 = vpack.c.b16 %v2714, %v2709
    %v3710 = vpack.c.b16 %v2715, %v2710
    %v3711 = vpack.c.b16 %v2716, %v2711
    %v3712 = vpack.c.b16 %v2722, %v2717
    %v3713 = vpack.c.b16 %v2723, %v2718
    %v3714 = vpack.c.b16 %v2724, %v2719
    %v3715 = vpack.c.b16 %v2725, %v2720
    %v3716 = vpack.c.b16 %v2726, %v2721
    %v3717 = vpack.c.b16 %v2732, %v2727
    %v3718 = vpack.c.b16 %v2733, %v2728
    %v3719 = vpack.c.b16 %v2734, %v2729
    %v3720 = vpack.c.b16 %v2735, %v2730
    %v3721 = vpack.c.b16 %v2736, %v2731
    %v3722 = vpack.c.b16 %v2742, %v2737
    %v3723 = vpack.c.b16 %v2743, %v2738
    %v3724 = vpack.c.b16 %v2744, %v2739
    %v3725 = vpack.c.b16 %v2745, %v2740
    %v3726 = vpack.c.b16 %v2746, %v2741
    %v3727 = vpack.c.b16 %v2752, %v2747
    %v3728 = vpack.c.b16 %v2753, %v2748
    %v3729 = vpack.c.b16 %v2754, %v2749
    %v3730 = vpack.c.b16 %v2755, %v2750
    %v3731 = vpack.c.b16 %v2756, %v2751
    %v3732 = vpack.c.b16 %v2762, %v2757
    %v3733 = vpack.c.b16 %v2763, %v2758
    %v3734 = vpack.c.b16 %v2764, %v2759
    %v3735 = vpack.c.b16 %v2765, %v2760
    %v3736 = vpack.c.b16 %v2766, %v2761
    %v3737 = vpack.c.b16 %v2772, %v2767
    %v3738 = vpack.c.b16 %v2773, %v2768
    %v3739 = vpack.c.b16 %v2774, %v2769
    %v3740 = vpack.c.b16 %v2775, %v2770
    %v3741 = vpack.c.b16 %v2776, %v2771
    %v3742 = vpack.c.b16 %v2782, %v2777
    %v3743 = vpack.c.b16 %v2783, %v2778
    %v3744 = vpack.c.b16 %v2784, %v2779
    %v3745 = vpack.c.b16 %v2785, %v2780
    %v3746 = vpack.c.b16 %v2786, %v2781
    %v3747 = vpack.c.b16 %v2792, %v2787
    %v3748 = vpack.c.b16 %v2793, %v2788
    %v3749 = vpack.c.b16 %v2794, %v2789
    %v3750 = vpack.c.b16 %v2795, %v2790
    %v3751 = vpack.c.b16 %v2796, %v2791
    %v3752 = vpack.c.b16 %v2802, %v2797
    %v3753 = vpack.c.b16 %v2803, %v2798
    %v3754 = vpack.c.b16 %v2804, %v2799
    %v3755 = vpack.c.b16 %v2805, %v2800
    %v3756 = vpack.c.b16 %v2806, %v2801
    %v3757 = vpack.c.b16 %v2812, %v2807
    %v3758 = vpack.c.b16 %v2813, %v2808
    %v3759 = vpack.c.b16 %v2814, %v2809
    %v3760 = vpack.c.b16 %v2815, %v2810
    %v3761 = vpack.c.b16 %v2816, %v2811
    %v3762 = vpack.c.b16 %v2822, %v2817
    %v3763 = vpack.c.b16 %v2823, %v2818
    %v3764 = vpack.c.b16 %v2824, %v2819
    %v3765 = vpack.c.b16 %v2825, %v2820
    %v3766 = vpack.c.b16 %v2826, %v2821
    %v3767 = vpack.c.b16 %v2832, %v2827
    %v3768 = vpack.c.b16 %v2833, %v2828
    %v3769 = vpack.c.b16 %v2834, %v2829
    %v3770 = vpack.c.b16 %v2835, %v2830
    %v3771 = vpack.c.b16 %v2836, %v2831
    %v3772 = vpack.c.b16 %v2842, %v2837
    %v3773 = vpack.c.b16 %v2843, %v2838
    %v3774 = vpack.c.b16 %v2844, %v2839
    %v3775 = vpack.c.b16 %v2845, %v2840
    %v3776 = vpack.c.b16 %v2846, %v2841
    %v3777 = vpack.c.b16 %v2852, %v2847
    %v3778 = vpack.c.b16 %v2853, %v2848
    %v3779 = vpack.c.b16 %v2854, %v2849
    %v3780 = vpack.c.b16 %v2855, %v2850
    %v3781 = vpack.c.b16 %v2856, %v2851
    %v3782 = vpack.c.b16 %v2862, %v2857
    %v3783 = vpack.c.b16 %v2863, %v2858
    %v3784 = vpack.c.b16 %v2864, %v2859
    %v3785 = vpack.c.b16 %v2865, %v2860
    %v3786 = vpack.c.b16 %v2866, %v2861
    %v3787 = vpack.c.b16 %v2872, %v2867
    %v3788 = vpack.c.b16 %v2873, %v2868
    %v3789 = vpack.c.b16 %v2874, %v2869
    %v3790 = vpack.c.b16 %v2875, %v2870
    %v3791 = vpack.c.b16 %v2876, %v2871
    %v3792 = vpack.c.b16 %v2882, %v2877
    %v3793 = vpack.c.b16 %v2883, %v2878
    %v3794 = vpack.c.b16 %v2884, %v2879
    %v3795 = vpack.c.b16 %v2885, %v2880
    %v3796 = vpack.c.b16 %v2886, %v2881
    %v3797 = vpack.c.b16 %v2892, %v2887
    %v3798 = vpack.c.b16 %v2893, %v2888
    %v3799 = vpack.c.b16 %v2894, %v2889
    %v3800 = vpack.c.b16 %v2895, %v2890
    %v3801 = vpack.c.b16 %v2896, %v2891
    %v3802 = vpack.c.b16 %v2902, %v2897
    %v3803 = vpack.c.b16 %v2903, %v2898
    %v3804 = vpack.c.b16 %v2904, %v2899
    %v3805 = vpack.c.b16 %v2905, %v2900
    %v3806 = vpack.c.b16 %v2906, %v2901
    %v3807 = vpack.c.b16 %v2912, %v2907
    %v3808 = vpack.c.b16 %v2913, %v2908
    %v3809 = vpack.c.b16 %v2914, %v2909
    %v3810 = vpack.c.b16 %v2915, %v2910
    %v3811 = vpack.c.b16 %v2916, %v2911
    %v3812 = vpack.c.b16 %v2922, %v2917
    %v3813 = vpack.c.b16 %v2923, %v2918
    %v3814 = vpack.c.b16 %v2924, %v2919
    %v3815 = vpack.c.b16 %v2925, %v2920
    %v3816 = vpack.c.b16 %v2926, %v2921
    %v3817 = vpack.c.b16 %v2932, %v2927
    %v3818 = vpack.c.b16 %v2933, %v2928
    %v3819 = vpack.c.b16 %v2934, %v2929
    %v3820 = vpack.c.b16 %v2935, %v2930
    %v3821 = vpack.c.b16 %v2936, %v2931
    %v3822 = vpack.c.b16 %v2942, %v2937
    %v3823 = vpack.c.b16 %v2943, %v2938
    %v3824 = vpack.c.b16 %v2944, %v2939
    %v3825 = vpack.c.b16 %v2945, %v2940
    %v3826 = vpack.c.b16 %v2946, %v2941
    %v3827 = vpack.c.b16 %v2952, %v2947
    %v3828 = vpack.c.b16 %v2953, %v2948
    %v3829 = vpack.c.b16 %v2954, %v2949
    %v3830 = vpack.c.b16 %v2955, %v2950
    %v3831 = vpack.c.b16 %v2956, %v2951
    %v3832 = vpack.c.b16 %v2962, %v2957
    %v3833 = vpack.c.b16 %v2963, %v2958
    %v3834 = vpack.c.b16 %v2964, %v2959
    %v3835 = vpack.c.b16 %v2965, %v2960
    %v3836 = vpack.c.b16 %v2966, %v2961
    %v3837 = vpack.c.b16 %v2972, %v2967
    %v3838 = vpack.c.b16 %v2973, %v2968
    %v3839 = vpack.c.b16 %v2974, %v2969
    %v3840 = vpack.c.b16 %v2975, %v2970
    %v3841 = vpack.c.b16 %v2976, %v2971
    %v3842 = vpack.c.b16 %v2982, %v2977
    %v3843 = vpack.c.b16 %v2983, %v2978
    %v3844 = vpack.c.b16 %v2984, %v2979
    %v3845 = vpack.c.b16 %v2985, %v2980
    %v3846 = vpack.c.b16 %v2986, %v2981
    %v3847 = vpack.c.b16 %v2992, %v2987
    %v3848 = vpack.c.b16 %v2993, %v2988
    %v3849 = vpack.c.b16 %v2994, %v2989
    %v3850 = vpack.c.b16 %v2995, %v2990
    %v3851 = vpack.c.b16 %v2996, %v2991
    %v3852 = vpack.c.b16 %v3002, %v2997
    %v3853 = vpack.c.b16 %v3003, %v2998
    %v3854 = vpack.c.b16 %v3004, %v2999
    %v3855 = vpack.c.b16 %v3005, %v3000
    %v3856 = vpack.c.b16 %v3006, %v3001
    %v3857 = vpack.c.b16 %v3012, %v3007
    %v3858 = vpack.c.b16 %v3013, %v3008
    %v3859 = vpack.c.b16 %v3014, %v3009
    %v3860 = vpack.c.b16 %v3015, %v3010
    %v3861 = vpack.c.b16 %v3016, %v3011
    %v3862 = vpack.c.b16 %v3022, %v3017
    %v3863 = vpack.c.b16 %v3023, %v3018
    %v3864 = vpack.c.b16 %v3024, %v3019
    %v3865 = vpack.c.b16 %v3025, %v3020
    %v3866 = vpack.c.b16 %v3026, %v3021
    %v3867 = vpack.c.b16 %v3032, %v3027
    %v3868 = vpack.c.b16 %v3033, %v3028
    %v3869 = vpack.c.b16 %v3034, %v3029
    %v3870 = vpack.c.b16 %v3035, %v3030
    %v3871 = vpack.c.b16 %v3036, %v3031
    %v3872 = vpack.c.b16 %v3042, %v3037
    %v3873 = vpack.c.b16 %v3043, %v3038
    %v3874 = vpack.c.b16 %v3044, %v3039
    %v3875 = vpack.c.b16 %v3045, %v3040
    %v3876 = vpack.c.b16 %v3046, %v3041
    %v3877 = vpack.c.b16 %v3052, %v3047
    %v3878 = vpack.c.b16 %v3053, %v3048
    %v3879 = vpack.c.b16 %v3054, %v3049
    %v3880 = vpack.c.b16 %v3055, %v3050
    %v3881 = vpack.c.b16 %v3056, %v3051
    %v3882 = vpack.c.b16 %v3062, %v3057
    %v3883 = vpack.c.b16 %v3063, %v3058
    %v3884 = vpack.c.b16 %v3064, %v3059
    %v3885 = vpack.c.b16 %v3065, %v3060
    %v3886 = vpack.c.b16 %v3066, %v3061
    %v3887 = vpack.c.b16 %v3072, %v3067
    %v3888 = vpack.c.b16 %v3073, %v3068
    %v3889 = vpack.c.b16 %v3074, %v3069
    %v3890 = vpack.c.b16 %v3075, %v3070
    %v3891 = vpack.c.b16 %v3076, %v3071
    %v3892 = vpack.c.b16 %v3082, %v3077
    %v3893 = vpack.c.b16 %v3083, %v3078
    %v3894 = vpack.c.b16 %v3084, %v3079
    %v3895 = vpack.c.b16 %v3085, %v3080
    %v3896 = vpack.c.b16 %v3086, %v3081
    %v3897 = vpack.c.b16 %v3092, %v3087
    %v3898 = vpack.c.b16 %v3093, %v3088
    %v3899 = vpack.c.b16 %v3094, %v3089
    %v3900 = vpack.c.b16 %v3095, %v3090
    %v3901 = vpack.c.b16 %v3096, %v3091
    %v3902 = vpack.c.b16 %v3102, %v3097
    %v3903 = vpack.c.b16 %v3103, %v3098
    %v3904 = vpack.c.b16 %v3104, %v3099
    %v3905 = vpack.c.b16 %v3105, %v3100
    %v3906 = vpack.c.b16 %v3106, %v3101
    %v3907 = vpack.c.b16 %v3112, %v3107
    %v3908 = vpack.c.b16 %v3113, %v3108
    %v3909 = vpack.c.b16 %v3114, %v3109
    %v3910 = vpack.c.b16 %v3115, %v3110
    %v3911 = vpack.c.b16 %v3116, %v3111
    %v3912 = vpack.c.b16 %v3122, %v3117
    %v3913 = vpack.c.b16 %v3123, %v3118
    %v3914 = vpack.c.b16 %v3124, %v3119
    %v3915 = vpack.c.b16 %v3125, %v3120
    %v3916 = vpack.c.b16 %v3126, %v3121
    %v3917 = vpack.c.b16 %v3132, %v3127
    %v3918 = vpack.c.b16 %v3133, %v3128
    %v3919 = vpack.c.b16 %v3134, %v3129
    %v3920 = vpack.c.b16 %v3135, %v3130
    %v3921 = vpack.c.b16 %v3136, %v3131
    %v3922 = vpack.c.b16 %v3142, %v3137
    %v3923 = vpack.c.b16 %v3143, %v3138
    %v3924 = vpack.c.b16 %v3144, %v3139
    %v3925 = vpack.c.b16 %v3145, %v3140
    %v3926 = vpack.c.b16 %v3146, %v3141
    %v3927 = vpack.c.b16 %v3152, %v3147
    %v3928 = vpack.c.b16 %v3153, %v3148
    %v3929 = vpack.c.b16 %v3154, %v3149
    %v3930 = vpack.c.b16 %v3155, %v3150
    %v3931 = vpack.c.b16 %v3156, %v3151
    %v3932 = vpack.c.b16 %v3162, %v3157
    %v3933 = vpack.c.b16 %v3163, %v3158
    %v3934 = vpack.c.b16 %v3164, %v3159
    %v3935 = vpack.c.b16 %v3165, %v3160
    %v3936 = vpack.c.b16 %v3166, %v3161
    %v3937 = vpack.c.b16 %v3172, %v3167
    %v3938 = vpack.c.b16 %v3173, %v3168
    %v3939 = vpack.c.b16 %v3174, %v3169
    %v3940 = vpack.c.b16 %v3175, %v3170
    %v3941 = vpack.c.b16 %v3176, %v3171
    %v3942 = vpack.c.b16 %v3182, %v3177
    %v3943 = vpack.c.b16 %v3183, %v3178
    %v3944 = vpack.c.b16 %v3184, %v3179
    %v3945 = vpack.c.b16 %v3185, %v3180
    %v3946 = vpack.c.b16 %v3186, %v3181
    %v3947 = vpack.c.b16 %v3192, %v3187
    %v3948 = vpack.c.b16 %v3193, %v3188
    %v3949 = vpack.c.b16 %v3194, %v3189
    %v3950 = vpack.c.b16 %v3195, %v3190
    %v3951 = vpack.c.b16 %v3196, %v3191
    %v3952 = vpack.c.b16 %v3202, %v3197
    %v3953 = vpack.c.b16 %v3203, %v3198
    %v3954 = vpack.c.b16 %v3204, %v3199
    %v3955 = vpack.c.b16 %v3205, %v3200
    %v3956 = vpack.c.b16 %v3206, %v3201
    %v3957 = vpack.c.b16 %v3212, %v3207
    %v3958 = vpack.c.b16 %v3213, %v3208
    %v3959 = vpack.c.b16 %v3214, %v3209
    %v3960 = vpack.c.b16 %v3215, %v3210
    %v3961 = vpack.c.b16 %v3216, %v3211
    %v3962 = vpack.c.b16 %v3222, %v3217
    %v3963 = vpack.c.b16 %v3223, %v3218
    %v3964 = vpack.c.b16 %v3224, %v3219
    %v3965 = vpack.c.b16 %v3225, %v3220
    %v3966 = vpack.c.b16 %v3226, %v3221
    %v3967 = vpack.c.b16 %v3232, %v3227
    %v3968 = vpack.c.b16 %v3233, %v3228
    %v3969 = vpack.c.b16 %v3234, %v3229
    %v3970 = vpack.c.b16 %v3235, %v3230
    %v3971 = vpack.c.b16 %v3236, %v3231
    %v3972 = vpack.c.b16 %v3242, %v3237
    %v3973 = vpack.c.b16 %v3243, %v3238
    %v3974 = vpack.c.b16 %v3244, %v3239
    %v3975 = vpack.c.b16 %v3245, %v3240
    %v3976 = vpack.c.b16 %v3246, %v3241
    %v3977 = vpack.c.b16 %v3252, %v3247
    %v3978 = vpack.c.b16 %v3253, %v3248
    %v3979 = vpack.c.b16 %v3254, %v3249
    %v3980 = vpack.c.b16 %v3255, %v3250
    %v3981 = vpack.c.b16 %v3256, %v3251
    %v3982 = vpack.c.b16 %v3262, %v3257
    %v3983 = vpack.c.b16 %v3263, %v3258
    %v3984 = vpack.c.b16 %v3264, %v3259
    %v3985 = vpack.c.b16 %v3265, %v3260
    %v3986 = vpack.c.b16 %v3266, %v3261
    %4707 = vmatpush.bf16.msra.mxu0 %v3302
    %4708 = vmatpush.bf16.msra.mxu0 %v3297
    %4709 = vmatpush.bf16.msra.mxu0 %v3292
    %4710 = vmatpush.bf16.msra.mxu0 %v3287
    %4711 = vmatpush.bf16.msra.mxu0 %v3282
    %4712 = vmatpush.bf16.msra.mxu0 %v3277
    %4713 = vmatpush.bf16.msra.mxu0 %v3272
    %4714 = vmatpush.bf16.msra.mxu0 %v3267
    %4715 = vmatmul.bf16.gmra.mxu0 %v927
    %v4716 = vpop.f32.mrf.mxu0
    %v4717 = vadd.f32 %v890, %v4716
    %v4718 = vpop.f32.mrf.mxu0
    %4719 = vdwg.mxu0
    %4720 = vmatpush.bf16.msra.mxu0 %v3342
    %4721 = vmatpush.bf16.msra.mxu0 %v3337
    %4722 = vmatpush.bf16.msra.mxu0 %v3332
    %4723 = vmatpush.bf16.msra.mxu0 %v3327
    %4724 = vmatpush.bf16.msra.mxu0 %v3322
    %4725 = vmatpush.bf16.msra.mxu0 %v3317
    %4726 = vmatpush.bf16.msra.mxu0 %v3312
    %4727 = vmatpush.bf16.msra.mxu0 %v3307
    %4728 = vmatmul.bf16.gmra.mxu0 %v928
    %v4729 = vpop.f32.mrf.mxu0
    %v4730 = vadd.f32 %v4717, %v4729
    %v4731 = vpop.f32.mrf.mxu0
    %4732 = vdwg.mxu0
    %4733 = vmatpush.bf16.msra.mxu0 %v3382
    %4734 = vmatpush.bf16.msra.mxu0 %v3377
    %4735 = vmatpush.bf16.msra.mxu0 %v3372
    %4736 = vmatpush.bf16.msra.mxu0 %v3367
    %4737 = vmatpush.bf16.msra.mxu0 %v3362
    %4738 = vmatpush.bf16.msra.mxu0 %v3357
    %4739 = vmatpush.bf16.msra.mxu0 %v3352
    %4740 = vmatpush.bf16.msra.mxu0 %v3347
    %4741 = vmatmul.bf16.gmra.mxu0 %v929
    %v4742 = vpop.f32.mrf.mxu0
    %v4743 = vadd.f32 %v4730, %v4742
    %v4744 = vpop.f32.mrf.mxu0
    %4745 = vdwg.mxu0
    %4746 = vmatpush.bf16.msra.mxu0 %v3422
    %4747 = vmatpush.bf16.msra.mxu0 %v3417
    %4748 = vmatpush.bf16.msra.mxu0 %v3412
    %4749 = vmatpush.bf16.msra.mxu0 %v3407
    %4750 = vmatpush.bf16.msra.mxu0 %v3402
    %4751 = vmatpush.bf16.msra.mxu0 %v3397
    %4752 = vmatpush.bf16.msra.mxu0 %v3392
    %4753 = vmatpush.bf16.msra.mxu0 %v3387
    %4754 = vmatmul.bf16.gmra.mxu0 %v930
    %v4755 = vpop.f32.mrf.mxu0
    %v4756 = vadd.f32 %v4743, %v4755
    %v4757 = vpop.f32.mrf.mxu0
    %4758 = vdwg.mxu0
    %4759 = vmatpush.bf16.msra.mxu0 %v3462
    %4760 = vmatpush.bf16.msra.mxu0 %v3457
    %4761 = vmatpush.bf16.msra.mxu0 %v3452
    %4762 = vmatpush.bf16.msra.mxu0 %v3447
    %4763 = vmatpush.bf16.msra.mxu0 %v3442
    %4764 = vmatpush.bf16.msra.mxu0 %v3437
    %4765 = vmatpush.bf16.msra.mxu0 %v3432
    %4766 = vmatpush.bf16.msra.mxu0 %v3427
    %4767 = vmatmul.bf16.gmra.mxu0 %v931
    %v4768 = vpop.f32.mrf.mxu0
    %v4769 = vadd.f32 %v4756, %v4768
    %v4770 = vpop.f32.mrf.mxu0
    %4771 = vdwg.mxu0
    %4772 = vmatpush.bf16.msra.mxu0 %v3502
    %4773 = vmatpush.bf16.msra.mxu0 %v3497
    %4774 = vmatpush.bf16.msra.mxu0 %v3492
    %4775 = vmatpush.bf16.msra.mxu0 %v3487
    %4776 = vmatpush.bf16.msra.mxu0 %v3482
    %4777 = vmatpush.bf16.msra.mxu0 %v3477
    %4778 = vmatpush.bf16.msra.mxu0 %v3472
    %4779 = vmatpush.bf16.msra.mxu0 %v3467
    %4780 = vmatmul.bf16.gmra.mxu0 %v932
    %v4781 = vpop.f32.mrf.mxu0
    %v4782 = vadd.f32 %v4769, %v4781
    %v4783 = vpop.f32.mrf.mxu0
    %4784 = vdwg.mxu0
    %4785 = vmatpush.bf16.msra.mxu0 %v3542
    %4786 = vmatpush.bf16.msra.mxu0 %v3537
    %4787 = vmatpush.bf16.msra.mxu0 %v3532
    %4788 = vmatpush.bf16.msra.mxu0 %v3527
    %4789 = vmatpush.bf16.msra.mxu0 %v3522
    %4790 = vmatpush.bf16.msra.mxu0 %v3517
    %4791 = vmatpush.bf16.msra.mxu0 %v3512
    %4792 = vmatpush.bf16.msra.mxu0 %v3507
    %4793 = vmatmul.bf16.gmra.mxu0 %v933
    %v4794 = vpop.f32.mrf.mxu0
    %v4795 = vadd.f32 %v4782, %v4794
    %v4796 = vpop.f32.mrf.mxu0
    %4797 = vdwg.mxu0
    %4798 = vmatpush.bf16.msra.mxu0 %v3582
    %4799 = vmatpush.bf16.msra.mxu0 %v3577
    %4800 = vmatpush.bf16.msra.mxu0 %v3572
    %4801 = vmatpush.bf16.msra.mxu0 %v3567
    %4802 = vmatpush.bf16.msra.mxu0 %v3562
    %4803 = vmatpush.bf16.msra.mxu0 %v3557
    %4804 = vmatpush.bf16.msra.mxu0 %v3552
    %4805 = vmatpush.bf16.msra.mxu0 %v3547
    %4806 = vmatmul.bf16.gmra.mxu0 %v934
    %v4807 = vpop.f32.mrf.mxu0
    %v4808 = vadd.f32 %v4795, %v4807
    %v4809 = vpop.f32.mrf.mxu0
    %4810 = vdwg.mxu0
    %4811 = vmatpush.bf16.msra.mxu0 %v3622
    %4812 = vmatpush.bf16.msra.mxu0 %v3617
    %4813 = vmatpush.bf16.msra.mxu0 %v3612
    %4814 = vmatpush.bf16.msra.mxu0 %v3607
    %4815 = vmatpush.bf16.msra.mxu0 %v3602
    %4816 = vmatpush.bf16.msra.mxu0 %v3597
    %4817 = vmatpush.bf16.msra.mxu0 %v3592
    %4818 = vmatpush.bf16.msra.mxu0 %v3587
    %4819 = vmatmul.bf16.gmra.mxu0 %v935
    %v4820 = vpop.f32.mrf.mxu0
    %v4821 = vadd.f32 %v4808, %v4820
    %v4822 = vpop.f32.mrf.mxu0
    %4823 = vdwg.mxu0
    %4824 = vmatpush.bf16.msra.mxu0 %v3662
    %4825 = vmatpush.bf16.msra.mxu0 %v3657
    %4826 = vmatpush.bf16.msra.mxu0 %v3652
    %4827 = vmatpush.bf16.msra.mxu0 %v3647
    %4828 = vmatpush.bf16.msra.mxu0 %v3642
    %4829 = vmatpush.bf16.msra.mxu0 %v3637
    %4830 = vmatpush.bf16.msra.mxu0 %v3632
    %4831 = vmatpush.bf16.msra.mxu0 %v3627
    %4832 = vmatmul.bf16.gmra.mxu0 %v936
    %v4833 = vpop.f32.mrf.mxu0
    %v4834 = vadd.f32 %v4821, %v4833
    %v4835 = vpop.f32.mrf.mxu0
    %4836 = vdwg.mxu0
    %4837 = vmatpush.bf16.msra.mxu0 %v3702
    %4838 = vmatpush.bf16.msra.mxu0 %v3697
    %4839 = vmatpush.bf16.msra.mxu0 %v3692
    %4840 = vmatpush.bf16.msra.mxu0 %v3687
    %4841 = vmatpush.bf16.msra.mxu0 %v3682
    %4842 = vmatpush.bf16.msra.mxu0 %v3677
    %4843 = vmatpush.bf16.msra.mxu0 %v3672
    %4844 = vmatpush.bf16.msra.mxu0 %v3667
    %4845 = vmatmul.bf16.gmra.mxu0 %v937
    %v4846 = vpop.f32.mrf.mxu0
    %v4847 = vadd.f32 %v4834, %v4846
    %v4848 = vpop.f32.mrf.mxu0
    %4849 = vdwg.mxu0
    %4850 = vmatpush.bf16.msra.mxu0 %v3742
    %4851 = vmatpush.bf16.msra.mxu0 %v3737
    %4852 = vmatpush.bf16.msra.mxu0 %v3732
    %4853 = vmatpush.bf16.msra.mxu0 %v3727
    %4854 = vmatpush.bf16.msra.mxu0 %v3722
    %4855 = vmatpush.bf16.msra.mxu0 %v3717
    %4856 = vmatpush.bf16.msra.mxu0 %v3712
    %4857 = vmatpush.bf16.msra.mxu0 %v3707
    %4858 = vmatmul.bf16.gmra.mxu0 %v938
    %v4859 = vpop.f32.mrf.mxu0
    %v4860 = vadd.f32 %v4847, %v4859
    %v4861 = vpop.f32.mrf.mxu0
    %4862 = vdwg.mxu0
    %4863 = vmatpush.bf16.msra.mxu0 %v3782
    %4864 = vmatpush.bf16.msra.mxu0 %v3777
    %4865 = vmatpush.bf16.msra.mxu0 %v3772
    %4866 = vmatpush.bf16.msra.mxu0 %v3767
    %4867 = vmatpush.bf16.msra.mxu0 %v3762
    %4868 = vmatpush.bf16.msra.mxu0 %v3757
    %4869 = vmatpush.bf16.msra.mxu0 %v3752
    %4870 = vmatpush.bf16.msra.mxu0 %v3747
    %4871 = vmatmul.bf16.gmra.mxu0 %v939
    %v4872 = vpop.f32.mrf.mxu0
    %v4873 = vadd.f32 %v4860, %v4872
    %v4874 = vpop.f32.mrf.mxu0
    %4875 = vdwg.mxu0
    %4876 = vmatpush.bf16.msra.mxu0 %v3822
    %4877 = vmatpush.bf16.msra.mxu0 %v3817
    %4878 = vmatpush.bf16.msra.mxu0 %v3812
    %4879 = vmatpush.bf16.msra.mxu0 %v3807
    %4880 = vmatpush.bf16.msra.mxu0 %v3802
    %4881 = vmatpush.bf16.msra.mxu0 %v3797
    %4882 = vmatpush.bf16.msra.mxu0 %v3792
    %4883 = vmatpush.bf16.msra.mxu0 %v3787
    %4884 = vmatmul.bf16.gmra.mxu0 %v940
    %v4885 = vpop.f32.mrf.mxu0
    %v4886 = vadd.f32 %v4873, %v4885
    %v4887 = vpop.f32.mrf.mxu0
    %4888 = vdwg.mxu0
    %4889 = vmatpush.bf16.msra.mxu0 %v3862
    %4890 = vmatpush.bf16.msra.mxu0 %v3857
    %4891 = vmatpush.bf16.msra.mxu0 %v3852
    %4892 = vmatpush.bf16.msra.mxu0 %v3847
    %4893 = vmatpush.bf16.msra.mxu0 %v3842
    %4894 = vmatpush.bf16.msra.mxu0 %v3837
    %4895 = vmatpush.bf16.msra.mxu0 %v3832
    %4896 = vmatpush.bf16.msra.mxu0 %v3827
    %4897 = vmatmul.bf16.gmra.mxu0 %v941
    %v4898 = vpop.f32.mrf.mxu0
    %v4899 = vadd.f32 %v4886, %v4898
    %v4900 = vpop.f32.mrf.mxu0
    %4901 = vdwg.mxu0
    %4902 = vmatpush.bf16.msra.mxu0 %v3902
    %4903 = vmatpush.bf16.msra.mxu0 %v3897
    %4904 = vmatpush.bf16.msra.mxu0 %v3892
    %4905 = vmatpush.bf16.msra.mxu0 %v3887
    %4906 = vmatpush.bf16.msra.mxu0 %v3882
    %4907 = vmatpush.bf16.msra.mxu0 %v3877
    %4908 = vmatpush.bf16.msra.mxu0 %v3872
    %4909 = vmatpush.bf16.msra.mxu0 %v3867
    %4910 = vmatmul.bf16.gmra.mxu0 %v942
    %v4911 = vpop.f32.mrf.mxu0
    %v4912 = vadd.f32 %v4899, %v4911
    %v4913 = vpop.f32.mrf.mxu0
    %4914 = vdwg.mxu0
    %4915 = vmatpush.bf16.msra.mxu0 %v3942
    %4916 = vmatpush.bf16.msra.mxu0 %v3937
    %4917 = vmatpush.bf16.msra.mxu0 %v3932
    %4918 = vmatpush.bf16.msra.mxu0 %v3927
    %4919 = vmatpush.bf16.msra.mxu0 %v3922
    %4920 = vmatpush.bf16.msra.mxu0 %v3917
    %4921 = vmatpush.bf16.msra.mxu0 %v3912
    %4922 = vmatpush.bf16.msra.mxu0 %v3907
    %4923 = vmatmul.bf16.gmra.mxu0 %v943
    %v4924 = vpop.f32.mrf.mxu0
    %v4925 = vadd.f32 %v4912, %v4924
    %v4926 = vpop.f32.mrf.mxu0
    %4927 = vdwg.mxu0
    %4928 = vmatpush.bf16.msra.mxu0 %v3982
    %4929 = vmatpush.bf16.msra.mxu0 %v3977
    %4930 = vmatpush.bf16.msra.mxu0 %v3972
    %4931 = vmatpush.bf16.msra.mxu0 %v3967
    %4932 = vmatpush.bf16.msra.mxu0 %v3962
    %4933 = vmatpush.bf16.msra.mxu0 %v3957
    %4934 = vmatpush.bf16.msra.mxu0 %v3952
    %4935 = vmatpush.bf16.msra.mxu0 %v3947
    %4936 = vmatmul.bf16.gmra.mxu0 %v944
    %v4937 = vpop.f32.mrf.mxu0
    %v4938 = vadd.f32 %v4925, %v4937
    %v4939 = vpop.f32.mrf.mxu0
    %4940 = vdwg.mxu0
    %4941 = vmatpush.bf16.msra.mxu0 %v3303
    %4942 = vmatpush.bf16.msra.mxu0 %v3298
    %4943 = vmatpush.bf16.msra.mxu0 %v3293
    %4944 = vmatpush.bf16.msra.mxu0 %v3288
    %4945 = vmatpush.bf16.msra.mxu0 %v3283
    %4946 = vmatpush.bf16.msra.mxu0 %v3278
    %4947 = vmatpush.bf16.msra.mxu0 %v3273
    %4948 = vmatpush.bf16.msra.mxu0 %v3268
    %4949 = vmatmul.bf16.gmra.mxu0 %v927
    %v4950 = vpop.f32.mrf.mxu0
    %v4951 = vadd.f32 %v891, %v4950
    %v4952 = vpop.f32.mrf.mxu0
    %4953 = vdwg.mxu0
    %4954 = vmatpush.bf16.msra.mxu0 %v3343
    %4955 = vmatpush.bf16.msra.mxu0 %v3338
    %4956 = vmatpush.bf16.msra.mxu0 %v3333
    %4957 = vmatpush.bf16.msra.mxu0 %v3328
    %4958 = vmatpush.bf16.msra.mxu0 %v3323
    %4959 = vmatpush.bf16.msra.mxu0 %v3318
    %4960 = vmatpush.bf16.msra.mxu0 %v3313
    %4961 = vmatpush.bf16.msra.mxu0 %v3308
    %4962 = vmatmul.bf16.gmra.mxu0 %v928
    %v4963 = vpop.f32.mrf.mxu0
    %v4964 = vadd.f32 %v4951, %v4963
    %v4965 = vpop.f32.mrf.mxu0
    %4966 = vdwg.mxu0
    %4967 = vmatpush.bf16.msra.mxu0 %v3383
    %4968 = vmatpush.bf16.msra.mxu0 %v3378
    %4969 = vmatpush.bf16.msra.mxu0 %v3373
    %4970 = vmatpush.bf16.msra.mxu0 %v3368
    %4971 = vmatpush.bf16.msra.mxu0 %v3363
    %4972 = vmatpush.bf16.msra.mxu0 %v3358
    %4973 = vmatpush.bf16.msra.mxu0 %v3353
    %4974 = vmatpush.bf16.msra.mxu0 %v3348
    %4975 = vmatmul.bf16.gmra.mxu0 %v929
    %v4976 = vpop.f32.mrf.mxu0
    %v4977 = vadd.f32 %v4964, %v4976
    %v4978 = vpop.f32.mrf.mxu0
    %4979 = vdwg.mxu0
    %4980 = vmatpush.bf16.msra.mxu0 %v3423
    %4981 = vmatpush.bf16.msra.mxu0 %v3418
    %4982 = vmatpush.bf16.msra.mxu0 %v3413
    %4983 = vmatpush.bf16.msra.mxu0 %v3408
    %4984 = vmatpush.bf16.msra.mxu0 %v3403
    %4985 = vmatpush.bf16.msra.mxu0 %v3398
    %4986 = vmatpush.bf16.msra.mxu0 %v3393
    %4987 = vmatpush.bf16.msra.mxu0 %v3388
    %4988 = vmatmul.bf16.gmra.mxu0 %v930
    %v4989 = vpop.f32.mrf.mxu0
    %v4990 = vadd.f32 %v4977, %v4989
    %v4991 = vpop.f32.mrf.mxu0
    %4992 = vdwg.mxu0
    %4993 = vmatpush.bf16.msra.mxu0 %v3463
    %4994 = vmatpush.bf16.msra.mxu0 %v3458
    %4995 = vmatpush.bf16.msra.mxu0 %v3453
    %4996 = vmatpush.bf16.msra.mxu0 %v3448
    %4997 = vmatpush.bf16.msra.mxu0 %v3443
    %4998 = vmatpush.bf16.msra.mxu0 %v3438
    %4999 = vmatpush.bf16.msra.mxu0 %v3433
    %5000 = vmatpush.bf16.msra.mxu0 %v3428
    %5001 = vmatmul.bf16.gmra.mxu0 %v931
    %v5002 = vpop.f32.mrf.mxu0
    %v5003 = vadd.f32 %v4990, %v5002
    %v5004 = vpop.f32.mrf.mxu0
    %5005 = vdwg.mxu0
    %5006 = vmatpush.bf16.msra.mxu0 %v3503
    %5007 = vmatpush.bf16.msra.mxu0 %v3498
    %5008 = vmatpush.bf16.msra.mxu0 %v3493
    %5009 = vmatpush.bf16.msra.mxu0 %v3488
    %5010 = vmatpush.bf16.msra.mxu0 %v3483
    %5011 = vmatpush.bf16.msra.mxu0 %v3478
    %5012 = vmatpush.bf16.msra.mxu0 %v3473
    %5013 = vmatpush.bf16.msra.mxu0 %v3468
    %5014 = vmatmul.bf16.gmra.mxu0 %v932
    %v5015 = vpop.f32.mrf.mxu0
    %v5016 = vadd.f32 %v5003, %v5015
    %v5017 = vpop.f32.mrf.mxu0
    %5018 = vdwg.mxu0
    %5019 = vmatpush.bf16.msra.mxu0 %v3543
    %5020 = vmatpush.bf16.msra.mxu0 %v3538
    %5021 = vmatpush.bf16.msra.mxu0 %v3533
    %5022 = vmatpush.bf16.msra.mxu0 %v3528
    %5023 = vmatpush.bf16.msra.mxu0 %v3523
    %5024 = vmatpush.bf16.msra.mxu0 %v3518
    %5025 = vmatpush.bf16.msra.mxu0 %v3513
    %5026 = vmatpush.bf16.msra.mxu0 %v3508
    %5027 = vmatmul.bf16.gmra.mxu0 %v933
    %v5028 = vpop.f32.mrf.mxu0
    %v5029 = vadd.f32 %v5016, %v5028
    %v5030 = vpop.f32.mrf.mxu0
    %5031 = vdwg.mxu0
    %5032 = vmatpush.bf16.msra.mxu0 %v3583
    %5033 = vmatpush.bf16.msra.mxu0 %v3578
    %5034 = vmatpush.bf16.msra.mxu0 %v3573
    %5035 = vmatpush.bf16.msra.mxu0 %v3568
    %5036 = vmatpush.bf16.msra.mxu0 %v3563
    %5037 = vmatpush.bf16.msra.mxu0 %v3558
    %5038 = vmatpush.bf16.msra.mxu0 %v3553
    %5039 = vmatpush.bf16.msra.mxu0 %v3548
    %5040 = vmatmul.bf16.gmra.mxu0 %v934
    %v5041 = vpop.f32.mrf.mxu0
    %v5042 = vadd.f32 %v5029, %v5041
    %v5043 = vpop.f32.mrf.mxu0
    %5044 = vdwg.mxu0
    %5045 = vmatpush.bf16.msra.mxu0 %v3623
    %5046 = vmatpush.bf16.msra.mxu0 %v3618
    %5047 = vmatpush.bf16.msra.mxu0 %v3613
    %5048 = vmatpush.bf16.msra.mxu0 %v3608
    %5049 = vmatpush.bf16.msra.mxu0 %v3603
    %5050 = vmatpush.bf16.msra.mxu0 %v3598
    %5051 = vmatpush.bf16.msra.mxu0 %v3593
    %5052 = vmatpush.bf16.msra.mxu0 %v3588
    %5053 = vmatmul.bf16.gmra.mxu0 %v935
    %v5054 = vpop.f32.mrf.mxu0
    %v5055 = vadd.f32 %v5042, %v5054
    %v5056 = vpop.f32.mrf.mxu0
    %5057 = vdwg.mxu0
    %5058 = vmatpush.bf16.msra.mxu0 %v3663
    %5059 = vmatpush.bf16.msra.mxu0 %v3658
    %5060 = vmatpush.bf16.msra.mxu0 %v3653
    %5061 = vmatpush.bf16.msra.mxu0 %v3648
    %5062 = vmatpush.bf16.msra.mxu0 %v3643
    %5063 = vmatpush.bf16.msra.mxu0 %v3638
    %5064 = vmatpush.bf16.msra.mxu0 %v3633
    %5065 = vmatpush.bf16.msra.mxu0 %v3628
    %5066 = vmatmul.bf16.gmra.mxu0 %v936
    %v5067 = vpop.f32.mrf.mxu0
    %v5068 = vadd.f32 %v5055, %v5067
    %v5069 = vpop.f32.mrf.mxu0
    %5070 = vdwg.mxu0
    %5071 = vmatpush.bf16.msra.mxu0 %v3703
    %5072 = vmatpush.bf16.msra.mxu0 %v3698
    %5073 = vmatpush.bf16.msra.mxu0 %v3693
    %5074 = vmatpush.bf16.msra.mxu0 %v3688
    %5075 = vmatpush.bf16.msra.mxu0 %v3683
    %5076 = vmatpush.bf16.msra.mxu0 %v3678
    %5077 = vmatpush.bf16.msra.mxu0 %v3673
    %5078 = vmatpush.bf16.msra.mxu0 %v3668
    %5079 = vmatmul.bf16.gmra.mxu0 %v937
    %v5080 = vpop.f32.mrf.mxu0
    %v5081 = vadd.f32 %v5068, %v5080
    %v5082 = vpop.f32.mrf.mxu0
    %5083 = vdwg.mxu0
    %5084 = vmatpush.bf16.msra.mxu0 %v3743
    %5085 = vmatpush.bf16.msra.mxu0 %v3738
    %5086 = vmatpush.bf16.msra.mxu0 %v3733
    %5087 = vmatpush.bf16.msra.mxu0 %v3728
    %5088 = vmatpush.bf16.msra.mxu0 %v3723
    %5089 = vmatpush.bf16.msra.mxu0 %v3718
    %5090 = vmatpush.bf16.msra.mxu0 %v3713
    %5091 = vmatpush.bf16.msra.mxu0 %v3708
    %5092 = vmatmul.bf16.gmra.mxu0 %v938
    %v5093 = vpop.f32.mrf.mxu0
    %v5094 = vadd.f32 %v5081, %v5093
    %v5095 = vpop.f32.mrf.mxu0
    %5096 = vdwg.mxu0
    %5097 = vmatpush.bf16.msra.mxu0 %v3783
    %5098 = vmatpush.bf16.msra.mxu0 %v3778
    %5099 = vmatpush.bf16.msra.mxu0 %v3773
    %5100 = vmatpush.bf16.msra.mxu0 %v3768
    %5101 = vmatpush.bf16.msra.mxu0 %v3763
    %5102 = vmatpush.bf16.msra.mxu0 %v3758
    %5103 = vmatpush.bf16.msra.mxu0 %v3753
    %5104 = vmatpush.bf16.msra.mxu0 %v3748
    %5105 = vmatmul.bf16.gmra.mxu0 %v939
    %v5106 = vpop.f32.mrf.mxu0
    %v5107 = vadd.f32 %v5094, %v5106
    %v5108 = vpop.f32.mrf.mxu0
    %5109 = vdwg.mxu0
    %5110 = vmatpush.bf16.msra.mxu0 %v3823
    %5111 = vmatpush.bf16.msra.mxu0 %v3818
    %5112 = vmatpush.bf16.msra.mxu0 %v3813
    %5113 = vmatpush.bf16.msra.mxu0 %v3808
    %5114 = vmatpush.bf16.msra.mxu0 %v3803
    %5115 = vmatpush.bf16.msra.mxu0 %v3798
    %5116 = vmatpush.bf16.msra.mxu0 %v3793
    %5117 = vmatpush.bf16.msra.mxu0 %v3788
    %5118 = vmatmul.bf16.gmra.mxu0 %v940
    %v5119 = vpop.f32.mrf.mxu0
    %v5120 = vadd.f32 %v5107, %v5119
    %v5121 = vpop.f32.mrf.mxu0
    %5122 = vdwg.mxu0
    %5123 = vmatpush.bf16.msra.mxu0 %v3863
    %5124 = vmatpush.bf16.msra.mxu0 %v3858
    %5125 = vmatpush.bf16.msra.mxu0 %v3853
    %5126 = vmatpush.bf16.msra.mxu0 %v3848
    %5127 = vmatpush.bf16.msra.mxu0 %v3843
    %5128 = vmatpush.bf16.msra.mxu0 %v3838
    %5129 = vmatpush.bf16.msra.mxu0 %v3833
    %5130 = vmatpush.bf16.msra.mxu0 %v3828
    %5131 = vmatmul.bf16.gmra.mxu0 %v941
    %v5132 = vpop.f32.mrf.mxu0
    %v5133 = vadd.f32 %v5120, %v5132
    %v5134 = vpop.f32.mrf.mxu0
    %5135 = vdwg.mxu0
    %5136 = vmatpush.bf16.msra.mxu0 %v3903
    %5137 = vmatpush.bf16.msra.mxu0 %v3898
    %5138 = vmatpush.bf16.msra.mxu0 %v3893
    %5139 = vmatpush.bf16.msra.mxu0 %v3888
    %5140 = vmatpush.bf16.msra.mxu0 %v3883
    %5141 = vmatpush.bf16.msra.mxu0 %v3878
    %5142 = vmatpush.bf16.msra.mxu0 %v3873
    %5143 = vmatpush.bf16.msra.mxu0 %v3868
    %5144 = vmatmul.bf16.gmra.mxu0 %v942
    %v5145 = vpop.f32.mrf.mxu0
    %v5146 = vadd.f32 %v5133, %v5145
    %v5147 = vpop.f32.mrf.mxu0
    %5148 = vdwg.mxu0
    %5149 = vmatpush.bf16.msra.mxu0 %v3943
    %5150 = vmatpush.bf16.msra.mxu0 %v3938
    %5151 = vmatpush.bf16.msra.mxu0 %v3933
    %5152 = vmatpush.bf16.msra.mxu0 %v3928
    %5153 = vmatpush.bf16.msra.mxu0 %v3923
    %5154 = vmatpush.bf16.msra.mxu0 %v3918
    %5155 = vmatpush.bf16.msra.mxu0 %v3913
    %5156 = vmatpush.bf16.msra.mxu0 %v3908
    %5157 = vmatmul.bf16.gmra.mxu0 %v943
    %v5158 = vpop.f32.mrf.mxu0
    %v5159 = vadd.f32 %v5146, %v5158
    %v5160 = vpop.f32.mrf.mxu0
    %5161 = vdwg.mxu0
    %5162 = vmatpush.bf16.msra.mxu0 %v3983
    %5163 = vmatpush.bf16.msra.mxu0 %v3978
    %5164 = vmatpush.bf16.msra.mxu0 %v3973
    %5165 = vmatpush.bf16.msra.mxu0 %v3968
    %5166 = vmatpush.bf16.msra.mxu0 %v3963
    %5167 = vmatpush.bf16.msra.mxu0 %v3958
    %5168 = vmatpush.bf16.msra.mxu0 %v3953
    %5169 = vmatpush.bf16.msra.mxu0 %v3948
    %5170 = vmatmul.bf16.gmra.mxu0 %v944
    %v5171 = vpop.f32.mrf.mxu0
    %v5172 = vadd.f32 %v5159, %v5171
    %v5173 = vpop.f32.mrf.mxu0
    %5174 = vdwg.mxu0
    %5175 = vmatpush.bf16.msra.mxu0 %v3304
    %5176 = vmatpush.bf16.msra.mxu0 %v3299
    %5177 = vmatpush.bf16.msra.mxu0 %v3294
    %5178 = vmatpush.bf16.msra.mxu0 %v3289
    %5179 = vmatpush.bf16.msra.mxu0 %v3284
    %5180 = vmatpush.bf16.msra.mxu0 %v3279
    %5181 = vmatpush.bf16.msra.mxu0 %v3274
    %5182 = vmatpush.bf16.msra.mxu0 %v3269
    %5183 = vmatmul.bf16.gmra.mxu0 %v927
    %v5184 = vpop.f32.mrf.mxu0
    %v5185 = vadd.f32 %v892, %v5184
    %v5186 = vpop.f32.mrf.mxu0
    %5187 = vdwg.mxu0
    %5188 = vmatpush.bf16.msra.mxu0 %v3344
    %5189 = vmatpush.bf16.msra.mxu0 %v3339
    %5190 = vmatpush.bf16.msra.mxu0 %v3334
    %5191 = vmatpush.bf16.msra.mxu0 %v3329
    %5192 = vmatpush.bf16.msra.mxu0 %v3324
    %5193 = vmatpush.bf16.msra.mxu0 %v3319
    %5194 = vmatpush.bf16.msra.mxu0 %v3314
    %5195 = vmatpush.bf16.msra.mxu0 %v3309
    %5196 = vmatmul.bf16.gmra.mxu0 %v928
    %v5197 = vpop.f32.mrf.mxu0
    %v5198 = vadd.f32 %v5185, %v5197
    %v5199 = vpop.f32.mrf.mxu0
    %5200 = vdwg.mxu0
    %5201 = vmatpush.bf16.msra.mxu0 %v3384
    %5202 = vmatpush.bf16.msra.mxu0 %v3379
    %5203 = vmatpush.bf16.msra.mxu0 %v3374
    %5204 = vmatpush.bf16.msra.mxu0 %v3369
    %5205 = vmatpush.bf16.msra.mxu0 %v3364
    %5206 = vmatpush.bf16.msra.mxu0 %v3359
    %5207 = vmatpush.bf16.msra.mxu0 %v3354
    %5208 = vmatpush.bf16.msra.mxu0 %v3349
    %5209 = vmatmul.bf16.gmra.mxu0 %v929
    %v5210 = vpop.f32.mrf.mxu0
    %v5211 = vadd.f32 %v5198, %v5210
    %v5212 = vpop.f32.mrf.mxu0
    %5213 = vdwg.mxu0
    %5214 = vmatpush.bf16.msra.mxu0 %v3424
    %5215 = vmatpush.bf16.msra.mxu0 %v3419
    %5216 = vmatpush.bf16.msra.mxu0 %v3414
    %5217 = vmatpush.bf16.msra.mxu0 %v3409
    %5218 = vmatpush.bf16.msra.mxu0 %v3404
    %5219 = vmatpush.bf16.msra.mxu0 %v3399
    %5220 = vmatpush.bf16.msra.mxu0 %v3394
    %5221 = vmatpush.bf16.msra.mxu0 %v3389
    %5222 = vmatmul.bf16.gmra.mxu0 %v930
    %v5223 = vpop.f32.mrf.mxu0
    %v5224 = vadd.f32 %v5211, %v5223
    %v5225 = vpop.f32.mrf.mxu0
    %5226 = vdwg.mxu0
    %5227 = vmatpush.bf16.msra.mxu0 %v3464
    %5228 = vmatpush.bf16.msra.mxu0 %v3459
    %5229 = vmatpush.bf16.msra.mxu0 %v3454
    %5230 = vmatpush.bf16.msra.mxu0 %v3449
    %5231 = vmatpush.bf16.msra.mxu0 %v3444
    %5232 = vmatpush.bf16.msra.mxu0 %v3439
    %5233 = vmatpush.bf16.msra.mxu0 %v3434
    %5234 = vmatpush.bf16.msra.mxu0 %v3429
    %5235 = vmatmul.bf16.gmra.mxu0 %v931
    %v5236 = vpop.f32.mrf.mxu0
    %v5237 = vadd.f32 %v5224, %v5236
    %v5238 = vpop.f32.mrf.mxu0
    %5239 = vdwg.mxu0
    %5240 = vmatpush.bf16.msra.mxu0 %v3504
    %5241 = vmatpush.bf16.msra.mxu0 %v3499
    %5242 = vmatpush.bf16.msra.mxu0 %v3494
    %5243 = vmatpush.bf16.msra.mxu0 %v3489
    %5244 = vmatpush.bf16.msra.mxu0 %v3484
    %5245 = vmatpush.bf16.msra.mxu0 %v3479
    %5246 = vmatpush.bf16.msra.mxu0 %v3474
    %5247 = vmatpush.bf16.msra.mxu0 %v3469
    %5248 = vmatmul.bf16.gmra.mxu0 %v932
    %v5249 = vpop.f32.mrf.mxu0
    %v5250 = vadd.f32 %v5237, %v5249
    %v5251 = vpop.f32.mrf.mxu0
    %5252 = vdwg.mxu0
    %5253 = vmatpush.bf16.msra.mxu0 %v3544
    %5254 = vmatpush.bf16.msra.mxu0 %v3539
    %5255 = vmatpush.bf16.msra.mxu0 %v3534
    %5256 = vmatpush.bf16.msra.mxu0 %v3529
    %5257 = vmatpush.bf16.msra.mxu0 %v3524
    %5258 = vmatpush.bf16.msra.mxu0 %v3519
    %5259 = vmatpush.bf16.msra.mxu0 %v3514
    %5260 = vmatpush.bf16.msra.mxu0 %v3509
    %5261 = vmatmul.bf16.gmra.mxu0 %v933
    %v5262 = vpop.f32.mrf.mxu0
    %v5263 = vadd.f32 %v5250, %v5262
    %v5264 = vpop.f32.mrf.mxu0
    %5265 = vdwg.mxu0
    %5266 = vmatpush.bf16.msra.mxu0 %v3584
    %5267 = vmatpush.bf16.msra.mxu0 %v3579
    %5268 = vmatpush.bf16.msra.mxu0 %v3574
    %5269 = vmatpush.bf16.msra.mxu0 %v3569
    %5270 = vmatpush.bf16.msra.mxu0 %v3564
    %5271 = vmatpush.bf16.msra.mxu0 %v3559
    %5272 = vmatpush.bf16.msra.mxu0 %v3554
    %5273 = vmatpush.bf16.msra.mxu0 %v3549
    %5274 = vmatmul.bf16.gmra.mxu0 %v934
    %v5275 = vpop.f32.mrf.mxu0
    %v5276 = vadd.f32 %v5263, %v5275
    %v5277 = vpop.f32.mrf.mxu0
    %5278 = vdwg.mxu0
    %5279 = vmatpush.bf16.msra.mxu0 %v3624
    %5280 = vmatpush.bf16.msra.mxu0 %v3619
    %5281 = vmatpush.bf16.msra.mxu0 %v3614
    %5282 = vmatpush.bf16.msra.mxu0 %v3609
    %5283 = vmatpush.bf16.msra.mxu0 %v3604
    %5284 = vmatpush.bf16.msra.mxu0 %v3599
    %5285 = vmatpush.bf16.msra.mxu0 %v3594
    %5286 = vmatpush.bf16.msra.mxu0 %v3589
    %5287 = vmatmul.bf16.gmra.mxu0 %v935
    %v5288 = vpop.f32.mrf.mxu0
    %v5289 = vadd.f32 %v5276, %v5288
    %v5290 = vpop.f32.mrf.mxu0
    %5291 = vdwg.mxu0
    %5292 = vmatpush.bf16.msra.mxu0 %v3664
    %5293 = vmatpush.bf16.msra.mxu0 %v3659
    %5294 = vmatpush.bf16.msra.mxu0 %v3654
    %5295 = vmatpush.bf16.msra.mxu0 %v3649
    %5296 = vmatpush.bf16.msra.mxu0 %v3644
    %5297 = vmatpush.bf16.msra.mxu0 %v3639
    %5298 = vmatpush.bf16.msra.mxu0 %v3634
    %5299 = vmatpush.bf16.msra.mxu0 %v3629
    %5300 = vmatmul.bf16.gmra.mxu0 %v936
    %v5301 = vpop.f32.mrf.mxu0
    %v5302 = vadd.f32 %v5289, %v5301
    %v5303 = vpop.f32.mrf.mxu0
    %5304 = vdwg.mxu0
    %5305 = vmatpush.bf16.msra.mxu0 %v3704
    %5306 = vmatpush.bf16.msra.mxu0 %v3699
    %5307 = vmatpush.bf16.msra.mxu0 %v3694
    %5308 = vmatpush.bf16.msra.mxu0 %v3689
    %5309 = vmatpush.bf16.msra.mxu0 %v3684
    %5310 = vmatpush.bf16.msra.mxu0 %v3679
    %5311 = vmatpush.bf16.msra.mxu0 %v3674
    %5312 = vmatpush.bf16.msra.mxu0 %v3669
    %5313 = vmatmul.bf16.gmra.mxu0 %v937
    %v5314 = vpop.f32.mrf.mxu0
    %v5315 = vadd.f32 %v5302, %v5314
    %v5316 = vpop.f32.mrf.mxu0
    %5317 = vdwg.mxu0
    %5318 = vmatpush.bf16.msra.mxu0 %v3744
    %5319 = vmatpush.bf16.msra.mxu0 %v3739
    %5320 = vmatpush.bf16.msra.mxu0 %v3734
    %5321 = vmatpush.bf16.msra.mxu0 %v3729
    %5322 = vmatpush.bf16.msra.mxu0 %v3724
    %5323 = vmatpush.bf16.msra.mxu0 %v3719
    %5324 = vmatpush.bf16.msra.mxu0 %v3714
    %5325 = vmatpush.bf16.msra.mxu0 %v3709
    %5326 = vmatmul.bf16.gmra.mxu0 %v938
    %v5327 = vpop.f32.mrf.mxu0
    %v5328 = vadd.f32 %v5315, %v5327
    %v5329 = vpop.f32.mrf.mxu0
    %5330 = vdwg.mxu0
    %5331 = vmatpush.bf16.msra.mxu0 %v3784
    %5332 = vmatpush.bf16.msra.mxu0 %v3779
    %5333 = vmatpush.bf16.msra.mxu0 %v3774
    %5334 = vmatpush.bf16.msra.mxu0 %v3769
    %5335 = vmatpush.bf16.msra.mxu0 %v3764
    %5336 = vmatpush.bf16.msra.mxu0 %v3759
    %5337 = vmatpush.bf16.msra.mxu0 %v3754
    %5338 = vmatpush.bf16.msra.mxu0 %v3749
    %5339 = vmatmul.bf16.gmra.mxu0 %v939
    %v5340 = vpop.f32.mrf.mxu0
    %v5341 = vadd.f32 %v5328, %v5340
    %v5342 = vpop.f32.mrf.mxu0
    %5343 = vdwg.mxu0
    %5344 = vmatpush.bf16.msra.mxu0 %v3824
    %5345 = vmatpush.bf16.msra.mxu0 %v3819
    %5346 = vmatpush.bf16.msra.mxu0 %v3814
    %5347 = vmatpush.bf16.msra.mxu0 %v3809
    %5348 = vmatpush.bf16.msra.mxu0 %v3804
    %5349 = vmatpush.bf16.msra.mxu0 %v3799
    %5350 = vmatpush.bf16.msra.mxu0 %v3794
    %5351 = vmatpush.bf16.msra.mxu0 %v3789
    %5352 = vmatmul.bf16.gmra.mxu0 %v940
    %v5353 = vpop.f32.mrf.mxu0
    %v5354 = vadd.f32 %v5341, %v5353
    %v5355 = vpop.f32.mrf.mxu0
    %5356 = vdwg.mxu0
    %5357 = vmatpush.bf16.msra.mxu0 %v3864
    %5358 = vmatpush.bf16.msra.mxu0 %v3859
    %5359 = vmatpush.bf16.msra.mxu0 %v3854
    %5360 = vmatpush.bf16.msra.mxu0 %v3849
    %5361 = vmatpush.bf16.msra.mxu0 %v3844
    %5362 = vmatpush.bf16.msra.mxu0 %v3839
    %5363 = vmatpush.bf16.msra.mxu0 %v3834
    %5364 = vmatpush.bf16.msra.mxu0 %v3829
    %5365 = vmatmul.bf16.gmra.mxu0 %v941
    %v5366 = vpop.f32.mrf.mxu0
    %v5367 = vadd.f32 %v5354, %v5366
    %v5368 = vpop.f32.mrf.mxu0
    %5369 = vdwg.mxu0
    %5370 = vmatpush.bf16.msra.mxu0 %v3904
    %5371 = vmatpush.bf16.msra.mxu0 %v3899
    %5372 = vmatpush.bf16.msra.mxu0 %v3894
    %5373 = vmatpush.bf16.msra.mxu0 %v3889
    %5374 = vmatpush.bf16.msra.mxu0 %v3884
    %5375 = vmatpush.bf16.msra.mxu0 %v3879
    %5376 = vmatpush.bf16.msra.mxu0 %v3874
    %5377 = vmatpush.bf16.msra.mxu0 %v3869
    %5378 = vmatmul.bf16.gmra.mxu0 %v942
    %v5379 = vpop.f32.mrf.mxu0
    %v5380 = vadd.f32 %v5367, %v5379
    %v5381 = vpop.f32.mrf.mxu0
    %5382 = vdwg.mxu0
    %5383 = vmatpush.bf16.msra.mxu0 %v3944
    %5384 = vmatpush.bf16.msra.mxu0 %v3939
    %5385 = vmatpush.bf16.msra.mxu0 %v3934
    %5386 = vmatpush.bf16.msra.mxu0 %v3929
    %5387 = vmatpush.bf16.msra.mxu0 %v3924
    %5388 = vmatpush.bf16.msra.mxu0 %v3919
    %5389 = vmatpush.bf16.msra.mxu0 %v3914
    %5390 = vmatpush.bf16.msra.mxu0 %v3909
    %5391 = vmatmul.bf16.gmra.mxu0 %v943
    %v5392 = vpop.f32.mrf.mxu0
    %v5393 = vadd.f32 %v5380, %v5392
    %v5394 = vpop.f32.mrf.mxu0
    %5395 = vdwg.mxu0
    %5396 = vmatpush.bf16.msra.mxu0 %v3984
    %5397 = vmatpush.bf16.msra.mxu0 %v3979
    %5398 = vmatpush.bf16.msra.mxu0 %v3974
    %5399 = vmatpush.bf16.msra.mxu0 %v3969
    %5400 = vmatpush.bf16.msra.mxu0 %v3964
    %5401 = vmatpush.bf16.msra.mxu0 %v3959
    %5402 = vmatpush.bf16.msra.mxu0 %v3954
    %5403 = vmatpush.bf16.msra.mxu0 %v3949
    %5404 = vmatmul.bf16.gmra.mxu0 %v944
    %v5405 = vpop.f32.mrf.mxu0
    %v5406 = vadd.f32 %v5393, %v5405
    %v5407 = vpop.f32.mrf.mxu0
    %5408 = vdwg.mxu0
    %5409 = vmatpush.bf16.msra.mxu0 %v3305
    %5410 = vmatpush.bf16.msra.mxu0 %v3300
    %5411 = vmatpush.bf16.msra.mxu0 %v3295
    %5412 = vmatpush.bf16.msra.mxu0 %v3290
    %5413 = vmatpush.bf16.msra.mxu0 %v3285
    %5414 = vmatpush.bf16.msra.mxu0 %v3280
    %5415 = vmatpush.bf16.msra.mxu0 %v3275
    %5416 = vmatpush.bf16.msra.mxu0 %v3270
    %5417 = vmatmul.bf16.gmra.mxu0 %v927
    %v5418 = vpop.f32.mrf.mxu0
    %v5419 = vadd.f32 %v893, %v5418
    %v5420 = vpop.f32.mrf.mxu0
    %5421 = vdwg.mxu0
    %5422 = vmatpush.bf16.msra.mxu0 %v3345
    %5423 = vmatpush.bf16.msra.mxu0 %v3340
    %5424 = vmatpush.bf16.msra.mxu0 %v3335
    %5425 = vmatpush.bf16.msra.mxu0 %v3330
    %5426 = vmatpush.bf16.msra.mxu0 %v3325
    %5427 = vmatpush.bf16.msra.mxu0 %v3320
    %5428 = vmatpush.bf16.msra.mxu0 %v3315
    %5429 = vmatpush.bf16.msra.mxu0 %v3310
    %5430 = vmatmul.bf16.gmra.mxu0 %v928
    %v5431 = vpop.f32.mrf.mxu0
    %v5432 = vadd.f32 %v5419, %v5431
    %v5433 = vpop.f32.mrf.mxu0
    %5434 = vdwg.mxu0
    %5435 = vmatpush.bf16.msra.mxu0 %v3385
    %5436 = vmatpush.bf16.msra.mxu0 %v3380
    %5437 = vmatpush.bf16.msra.mxu0 %v3375
    %5438 = vmatpush.bf16.msra.mxu0 %v3370
    %5439 = vmatpush.bf16.msra.mxu0 %v3365
    %5440 = vmatpush.bf16.msra.mxu0 %v3360
    %5441 = vmatpush.bf16.msra.mxu0 %v3355
    %5442 = vmatpush.bf16.msra.mxu0 %v3350
    %5443 = vmatmul.bf16.gmra.mxu0 %v929
    %v5444 = vpop.f32.mrf.mxu0
    %v5445 = vadd.f32 %v5432, %v5444
    %v5446 = vpop.f32.mrf.mxu0
    %5447 = vdwg.mxu0
    %5448 = vmatpush.bf16.msra.mxu0 %v3425
    %5449 = vmatpush.bf16.msra.mxu0 %v3420
    %5450 = vmatpush.bf16.msra.mxu0 %v3415
    %5451 = vmatpush.bf16.msra.mxu0 %v3410
    %5452 = vmatpush.bf16.msra.mxu0 %v3405
    %5453 = vmatpush.bf16.msra.mxu0 %v3400
    %5454 = vmatpush.bf16.msra.mxu0 %v3395
    %5455 = vmatpush.bf16.msra.mxu0 %v3390
    %5456 = vmatmul.bf16.gmra.mxu0 %v930
    %v5457 = vpop.f32.mrf.mxu0
    %v5458 = vadd.f32 %v5445, %v5457
    %v5459 = vpop.f32.mrf.mxu0
    %5460 = vdwg.mxu0
    %5461 = vmatpush.bf16.msra.mxu0 %v3465
    %5462 = vmatpush.bf16.msra.mxu0 %v3460
    %5463 = vmatpush.bf16.msra.mxu0 %v3455
    %5464 = vmatpush.bf16.msra.mxu0 %v3450
    %5465 = vmatpush.bf16.msra.mxu0 %v3445
    %5466 = vmatpush.bf16.msra.mxu0 %v3440
    %5467 = vmatpush.bf16.msra.mxu0 %v3435
    %5468 = vmatpush.bf16.msra.mxu0 %v3430
    %5469 = vmatmul.bf16.gmra.mxu0 %v931
    %v5470 = vpop.f32.mrf.mxu0
    %v5471 = vadd.f32 %v5458, %v5470
    %v5472 = vpop.f32.mrf.mxu0
    %5473 = vdwg.mxu0
    %5474 = vmatpush.bf16.msra.mxu0 %v3505
    %5475 = vmatpush.bf16.msra.mxu0 %v3500
    %5476 = vmatpush.bf16.msra.mxu0 %v3495
    %5477 = vmatpush.bf16.msra.mxu0 %v3490
    %5478 = vmatpush.bf16.msra.mxu0 %v3485
    %5479 = vmatpush.bf16.msra.mxu0 %v3480
    %5480 = vmatpush.bf16.msra.mxu0 %v3475
    %5481 = vmatpush.bf16.msra.mxu0 %v3470
    %5482 = vmatmul.bf16.gmra.mxu0 %v932
    %v5483 = vpop.f32.mrf.mxu0
    %v5484 = vadd.f32 %v5471, %v5483
    %v5485 = vpop.f32.mrf.mxu0
    %5486 = vdwg.mxu0
    %5487 = vmatpush.bf16.msra.mxu0 %v3545
    %5488 = vmatpush.bf16.msra.mxu0 %v3540
    %5489 = vmatpush.bf16.msra.mxu0 %v3535
    %5490 = vmatpush.bf16.msra.mxu0 %v3530
    %5491 = vmatpush.bf16.msra.mxu0 %v3525
    %5492 = vmatpush.bf16.msra.mxu0 %v3520
    %5493 = vmatpush.bf16.msra.mxu0 %v3515
    %5494 = vmatpush.bf16.msra.mxu0 %v3510
    %5495 = vmatmul.bf16.gmra.mxu0 %v933
    %v5496 = vpop.f32.mrf.mxu0
    %v5497 = vadd.f32 %v5484, %v5496
    %v5498 = vpop.f32.mrf.mxu0
    %5499 = vdwg.mxu0
    %5500 = vmatpush.bf16.msra.mxu0 %v3585
    %5501 = vmatpush.bf16.msra.mxu0 %v3580
    %5502 = vmatpush.bf16.msra.mxu0 %v3575
    %5503 = vmatpush.bf16.msra.mxu0 %v3570
    %5504 = vmatpush.bf16.msra.mxu0 %v3565
    %5505 = vmatpush.bf16.msra.mxu0 %v3560
    %5506 = vmatpush.bf16.msra.mxu0 %v3555
    %5507 = vmatpush.bf16.msra.mxu0 %v3550
    %5508 = vmatmul.bf16.gmra.mxu0 %v934
    %v5509 = vpop.f32.mrf.mxu0
    %v5510 = vadd.f32 %v5497, %v5509
    %v5511 = vpop.f32.mrf.mxu0
    %5512 = vdwg.mxu0
    %5513 = vmatpush.bf16.msra.mxu0 %v3625
    %5514 = vmatpush.bf16.msra.mxu0 %v3620
    %5515 = vmatpush.bf16.msra.mxu0 %v3615
    %5516 = vmatpush.bf16.msra.mxu0 %v3610
    %5517 = vmatpush.bf16.msra.mxu0 %v3605
    %5518 = vmatpush.bf16.msra.mxu0 %v3600
    %5519 = vmatpush.bf16.msra.mxu0 %v3595
    %5520 = vmatpush.bf16.msra.mxu0 %v3590
    %5521 = vmatmul.bf16.gmra.mxu0 %v935
    %v5522 = vpop.f32.mrf.mxu0
    %v5523 = vadd.f32 %v5510, %v5522
    %v5524 = vpop.f32.mrf.mxu0
    %5525 = vdwg.mxu0
    %5526 = vmatpush.bf16.msra.mxu0 %v3665
    %5527 = vmatpush.bf16.msra.mxu0 %v3660
    %5528 = vmatpush.bf16.msra.mxu0 %v3655
    %5529 = vmatpush.bf16.msra.mxu0 %v3650
    %5530 = vmatpush.bf16.msra.mxu0 %v3645
    %5531 = vmatpush.bf16.msra.mxu0 %v3640
    %5532 = vmatpush.bf16.msra.mxu0 %v3635
    %5533 = vmatpush.bf16.msra.mxu0 %v3630
    %5534 = vmatmul.bf16.gmra.mxu0 %v936
    %v5535 = vpop.f32.mrf.mxu0
    %v5536 = vadd.f32 %v5523, %v5535
    %v5537 = vpop.f32.mrf.mxu0
    %5538 = vdwg.mxu0
    %5539 = vmatpush.bf16.msra.mxu0 %v3705
    %5540 = vmatpush.bf16.msra.mxu0 %v3700
    %5541 = vmatpush.bf16.msra.mxu0 %v3695
    %5542 = vmatpush.bf16.msra.mxu0 %v3690
    %5543 = vmatpush.bf16.msra.mxu0 %v3685
    %5544 = vmatpush.bf16.msra.mxu0 %v3680
    %5545 = vmatpush.bf16.msra.mxu0 %v3675
    %5546 = vmatpush.bf16.msra.mxu0 %v3670
    %5547 = vmatmul.bf16.gmra.mxu0 %v937
    %v5548 = vpop.f32.mrf.mxu0
    %v5549 = vadd.f32 %v5536, %v5548
    %v5550 = vpop.f32.mrf.mxu0
    %5551 = vdwg.mxu0
    %5552 = vmatpush.bf16.msra.mxu0 %v3745
    %5553 = vmatpush.bf16.msra.mxu0 %v3740
    %5554 = vmatpush.bf16.msra.mxu0 %v3735
    %5555 = vmatpush.bf16.msra.mxu0 %v3730
    %5556 = vmatpush.bf16.msra.mxu0 %v3725
    %5557 = vmatpush.bf16.msra.mxu0 %v3720
    %5558 = vmatpush.bf16.msra.mxu0 %v3715
    %5559 = vmatpush.bf16.msra.mxu0 %v3710
    %5560 = vmatmul.bf16.gmra.mxu0 %v938
    %v5561 = vpop.f32.mrf.mxu0
    %v5562 = vadd.f32 %v5549, %v5561
    %v5563 = vpop.f32.mrf.mxu0
    %5564 = vdwg.mxu0
    %5565 = vmatpush.bf16.msra.mxu0 %v3785
    %5566 = vmatpush.bf16.msra.mxu0 %v3780
    %5567 = vmatpush.bf16.msra.mxu0 %v3775
    %5568 = vmatpush.bf16.msra.mxu0 %v3770
    %5569 = vmatpush.bf16.msra.mxu0 %v3765
    %5570 = vmatpush.bf16.msra.mxu0 %v3760
    %5571 = vmatpush.bf16.msra.mxu0 %v3755
    %5572 = vmatpush.bf16.msra.mxu0 %v3750
    %5573 = vmatmul.bf16.gmra.mxu0 %v939
    %v5574 = vpop.f32.mrf.mxu0
    %v5575 = vadd.f32 %v5562, %v5574
    %v5576 = vpop.f32.mrf.mxu0
    %5577 = vdwg.mxu0
    %5578 = vmatpush.bf16.msra.mxu0 %v3825
    %5579 = vmatpush.bf16.msra.mxu0 %v3820
    %5580 = vmatpush.bf16.msra.mxu0 %v3815
    %5581 = vmatpush.bf16.msra.mxu0 %v3810
    %5582 = vmatpush.bf16.msra.mxu0 %v3805
    %5583 = vmatpush.bf16.msra.mxu0 %v3800
    %5584 = vmatpush.bf16.msra.mxu0 %v3795
    %5585 = vmatpush.bf16.msra.mxu0 %v3790
    %5586 = vmatmul.bf16.gmra.mxu0 %v940
    %v5587 = vpop.f32.mrf.mxu0
    %v5588 = vadd.f32 %v5575, %v5587
    %v5589 = vpop.f32.mrf.mxu0
    %5590 = vdwg.mxu0
    %5591 = vmatpush.bf16.msra.mxu0 %v3865
    %5592 = vmatpush.bf16.msra.mxu0 %v3860
    %5593 = vmatpush.bf16.msra.mxu0 %v3855
    %5594 = vmatpush.bf16.msra.mxu0 %v3850
    %5595 = vmatpush.bf16.msra.mxu0 %v3845
    %5596 = vmatpush.bf16.msra.mxu0 %v3840
    %5597 = vmatpush.bf16.msra.mxu0 %v3835
    %5598 = vmatpush.bf16.msra.mxu0 %v3830
    %5599 = vmatmul.bf16.gmra.mxu0 %v941
    %v5600 = vpop.f32.mrf.mxu0
    %v5601 = vadd.f32 %v5588, %v5600
    %v5602 = vpop.f32.mrf.mxu0
    %5603 = vdwg.mxu0
    %5604 = vmatpush.bf16.msra.mxu0 %v3905
    %5605 = vmatpush.bf16.msra.mxu0 %v3900
    %5606 = vmatpush.bf16.msra.mxu0 %v3895
    %5607 = vmatpush.bf16.msra.mxu0 %v3890
    %5608 = vmatpush.bf16.msra.mxu0 %v3885
    %5609 = vmatpush.bf16.msra.mxu0 %v3880
    %5610 = vmatpush.bf16.msra.mxu0 %v3875
    %5611 = vmatpush.bf16.msra.mxu0 %v3870
    %5612 = vmatmul.bf16.gmra.mxu0 %v942
    %v5613 = vpop.f32.mrf.mxu0
    %v5614 = vadd.f32 %v5601, %v5613
    %v5615 = vpop.f32.mrf.mxu0
    %5616 = vdwg.mxu0
    %5617 = vmatpush.bf16.msra.mxu0 %v3945
    %5618 = vmatpush.bf16.msra.mxu0 %v3940
    %5619 = vmatpush.bf16.msra.mxu0 %v3935
    %5620 = vmatpush.bf16.msra.mxu0 %v3930
    %5621 = vmatpush.bf16.msra.mxu0 %v3925
    %5622 = vmatpush.bf16.msra.mxu0 %v3920
    %5623 = vmatpush.bf16.msra.mxu0 %v3915
    %5624 = vmatpush.bf16.msra.mxu0 %v3910
    %5625 = vmatmul.bf16.gmra.mxu0 %v943
    %v5626 = vpop.f32.mrf.mxu0
    %v5627 = vadd.f32 %v5614, %v5626
    %v5628 = vpop.f32.mrf.mxu0
    %5629 = vdwg.mxu0
    %5630 = vmatpush.bf16.msra.mxu0 %v3985
    %5631 = vmatpush.bf16.msra.mxu0 %v3980
    %5632 = vmatpush.bf16.msra.mxu0 %v3975
    %5633 = vmatpush.bf16.msra.mxu0 %v3970
    %5634 = vmatpush.bf16.msra.mxu0 %v3965
    %5635 = vmatpush.bf16.msra.mxu0 %v3960
    %5636 = vmatpush.bf16.msra.mxu0 %v3955
    %5637 = vmatpush.bf16.msra.mxu0 %v3950
    %5638 = vmatmul.bf16.gmra.mxu0 %v944
    %v5639 = vpop.f32.mrf.mxu0
    %v5640 = vadd.f32 %v5627, %v5639
    %v5641 = vpop.f32.mrf.mxu0
    %5642 = vdwg.mxu0
    %5643 = vmatpush.bf16.msra.mxu0 %v3306
    %5644 = vmatpush.bf16.msra.mxu0 %v3301
    %5645 = vmatpush.bf16.msra.mxu0 %v3296
    %5646 = vmatpush.bf16.msra.mxu0 %v3291
    %5647 = vmatpush.bf16.msra.mxu0 %v3286
    %5648 = vmatpush.bf16.msra.mxu0 %v3281
    %5649 = vmatpush.bf16.msra.mxu0 %v3276
    %5650 = vmatpush.bf16.msra.mxu0 %v3271
    %5651 = vmatmul.bf16.gmra.mxu0 %v927
    %v5652 = vpop.f32.mrf.mxu0
    %v5653 = vadd.f32 %v894, %v5652
    %v5654 = vpop.f32.mrf.mxu0
    %5655 = vdwg.mxu0
    %5656 = vmatpush.bf16.msra.mxu0 %v3346
    %5657 = vmatpush.bf16.msra.mxu0 %v3341
    %5658 = vmatpush.bf16.msra.mxu0 %v3336
    %5659 = vmatpush.bf16.msra.mxu0 %v3331
    %5660 = vmatpush.bf16.msra.mxu0 %v3326
    %5661 = vmatpush.bf16.msra.mxu0 %v3321
    %5662 = vmatpush.bf16.msra.mxu0 %v3316
    %5663 = vmatpush.bf16.msra.mxu0 %v3311
    %5664 = vmatmul.bf16.gmra.mxu0 %v928
    %v5665 = vpop.f32.mrf.mxu0
    %v5666 = vadd.f32 %v5653, %v5665
    %v5667 = vpop.f32.mrf.mxu0
    %5668 = vdwg.mxu0
    %5669 = vmatpush.bf16.msra.mxu0 %v3386
    %5670 = vmatpush.bf16.msra.mxu0 %v3381
    %5671 = vmatpush.bf16.msra.mxu0 %v3376
    %5672 = vmatpush.bf16.msra.mxu0 %v3371
    %5673 = vmatpush.bf16.msra.mxu0 %v3366
    %5674 = vmatpush.bf16.msra.mxu0 %v3361
    %5675 = vmatpush.bf16.msra.mxu0 %v3356
    %5676 = vmatpush.bf16.msra.mxu0 %v3351
    %5677 = vmatmul.bf16.gmra.mxu0 %v929
    %v5678 = vpop.f32.mrf.mxu0
    %v5679 = vadd.f32 %v5666, %v5678
    %v5680 = vpop.f32.mrf.mxu0
    %5681 = vdwg.mxu0
    %5682 = vmatpush.bf16.msra.mxu0 %v3426
    %5683 = vmatpush.bf16.msra.mxu0 %v3421
    %5684 = vmatpush.bf16.msra.mxu0 %v3416
    %5685 = vmatpush.bf16.msra.mxu0 %v3411
    %5686 = vmatpush.bf16.msra.mxu0 %v3406
    %5687 = vmatpush.bf16.msra.mxu0 %v3401
    %5688 = vmatpush.bf16.msra.mxu0 %v3396
    %5689 = vmatpush.bf16.msra.mxu0 %v3391
    %5690 = vmatmul.bf16.gmra.mxu0 %v930
    %v5691 = vpop.f32.mrf.mxu0
    %v5692 = vadd.f32 %v5679, %v5691
    %v5693 = vpop.f32.mrf.mxu0
    %5694 = vdwg.mxu0
    %5695 = vmatpush.bf16.msra.mxu0 %v3466
    %5696 = vmatpush.bf16.msra.mxu0 %v3461
    %5697 = vmatpush.bf16.msra.mxu0 %v3456
    %5698 = vmatpush.bf16.msra.mxu0 %v3451
    %5699 = vmatpush.bf16.msra.mxu0 %v3446
    %5700 = vmatpush.bf16.msra.mxu0 %v3441
    %5701 = vmatpush.bf16.msra.mxu0 %v3436
    %5702 = vmatpush.bf16.msra.mxu0 %v3431
    %5703 = vmatmul.bf16.gmra.mxu0 %v931
    %v5704 = vpop.f32.mrf.mxu0
    %v5705 = vadd.f32 %v5692, %v5704
    %v5706 = vpop.f32.mrf.mxu0
    %5707 = vdwg.mxu0
    %5708 = vmatpush.bf16.msra.mxu0 %v3506
    %5709 = vmatpush.bf16.msra.mxu0 %v3501
    %5710 = vmatpush.bf16.msra.mxu0 %v3496
    %5711 = vmatpush.bf16.msra.mxu0 %v3491
    %5712 = vmatpush.bf16.msra.mxu0 %v3486
    %5713 = vmatpush.bf16.msra.mxu0 %v3481
    %5714 = vmatpush.bf16.msra.mxu0 %v3476
    %5715 = vmatpush.bf16.msra.mxu0 %v3471
    %5716 = vmatmul.bf16.gmra.mxu0 %v932
    %v5717 = vpop.f32.mrf.mxu0
    %v5718 = vadd.f32 %v5705, %v5717
    %v5719 = vpop.f32.mrf.mxu0
    %5720 = vdwg.mxu0
    %5721 = vmatpush.bf16.msra.mxu0 %v3546
    %5722 = vmatpush.bf16.msra.mxu0 %v3541
    %5723 = vmatpush.bf16.msra.mxu0 %v3536
    %5724 = vmatpush.bf16.msra.mxu0 %v3531
    %5725 = vmatpush.bf16.msra.mxu0 %v3526
    %5726 = vmatpush.bf16.msra.mxu0 %v3521
    %5727 = vmatpush.bf16.msra.mxu0 %v3516
    %5728 = vmatpush.bf16.msra.mxu0 %v3511
    %5729 = vmatmul.bf16.gmra.mxu0 %v933
    %v5730 = vpop.f32.mrf.mxu0
    %v5731 = vadd.f32 %v5718, %v5730
    %v5732 = vpop.f32.mrf.mxu0
    %5733 = vdwg.mxu0
    %5734 = vmatpush.bf16.msra.mxu0 %v3586
    %5735 = vmatpush.bf16.msra.mxu0 %v3581
    %5736 = vmatpush.bf16.msra.mxu0 %v3576
    %5737 = vmatpush.bf16.msra.mxu0 %v3571
    %5738 = vmatpush.bf16.msra.mxu0 %v3566
    %5739 = vmatpush.bf16.msra.mxu0 %v3561
    %5740 = vmatpush.bf16.msra.mxu0 %v3556
    %5741 = vmatpush.bf16.msra.mxu0 %v3551
    %5742 = vmatmul.bf16.gmra.mxu0 %v934
    %v5743 = vpop.f32.mrf.mxu0
    %v5744 = vadd.f32 %v5731, %v5743
    %v5745 = vpop.f32.mrf.mxu0
    %5746 = vdwg.mxu0
    %5747 = vmatpush.bf16.msra.mxu0 %v3626
    %5748 = vmatpush.bf16.msra.mxu0 %v3621
    %5749 = vmatpush.bf16.msra.mxu0 %v3616
    %5750 = vmatpush.bf16.msra.mxu0 %v3611
    %5751 = vmatpush.bf16.msra.mxu0 %v3606
    %5752 = vmatpush.bf16.msra.mxu0 %v3601
    %5753 = vmatpush.bf16.msra.mxu0 %v3596
    %5754 = vmatpush.bf16.msra.mxu0 %v3591
    %5755 = vmatmul.bf16.gmra.mxu0 %v935
    %v5756 = vpop.f32.mrf.mxu0
    %v5757 = vadd.f32 %v5744, %v5756
    %v5758 = vpop.f32.mrf.mxu0
    %5759 = vdwg.mxu0
    %5760 = vmatpush.bf16.msra.mxu0 %v3666
    %5761 = vmatpush.bf16.msra.mxu0 %v3661
    %5762 = vmatpush.bf16.msra.mxu0 %v3656
    %5763 = vmatpush.bf16.msra.mxu0 %v3651
    %5764 = vmatpush.bf16.msra.mxu0 %v3646
    %5765 = vmatpush.bf16.msra.mxu0 %v3641
    %5766 = vmatpush.bf16.msra.mxu0 %v3636
    %5767 = vmatpush.bf16.msra.mxu0 %v3631
    %5768 = vmatmul.bf16.gmra.mxu0 %v936
    %v5769 = vpop.f32.mrf.mxu0
    %v5770 = vadd.f32 %v5757, %v5769
    %v5771 = vpop.f32.mrf.mxu0
    %5772 = vdwg.mxu0
    %5773 = vmatpush.bf16.msra.mxu0 %v3706
    %5774 = vmatpush.bf16.msra.mxu0 %v3701
    %5775 = vmatpush.bf16.msra.mxu0 %v3696
    %5776 = vmatpush.bf16.msra.mxu0 %v3691
    %5777 = vmatpush.bf16.msra.mxu0 %v3686
    %5778 = vmatpush.bf16.msra.mxu0 %v3681
    %5779 = vmatpush.bf16.msra.mxu0 %v3676
    %5780 = vmatpush.bf16.msra.mxu0 %v3671
    %5781 = vmatmul.bf16.gmra.mxu0 %v937
    %v5782 = vpop.f32.mrf.mxu0
    %v5783 = vadd.f32 %v5770, %v5782
    %v5784 = vpop.f32.mrf.mxu0
    %5785 = vdwg.mxu0
    %5786 = vmatpush.bf16.msra.mxu0 %v3746
    %5787 = vmatpush.bf16.msra.mxu0 %v3741
    %5788 = vmatpush.bf16.msra.mxu0 %v3736
    %5789 = vmatpush.bf16.msra.mxu0 %v3731
    %5790 = vmatpush.bf16.msra.mxu0 %v3726
    %5791 = vmatpush.bf16.msra.mxu0 %v3721
    %5792 = vmatpush.bf16.msra.mxu0 %v3716
    %5793 = vmatpush.bf16.msra.mxu0 %v3711
    %5794 = vmatmul.bf16.gmra.mxu0 %v938
    %v5795 = vpop.f32.mrf.mxu0
    %v5796 = vadd.f32 %v5783, %v5795
    %v5797 = vpop.f32.mrf.mxu0
    %5798 = vdwg.mxu0
    %5799 = vmatpush.bf16.msra.mxu0 %v3786
    %5800 = vmatpush.bf16.msra.mxu0 %v3781
    %5801 = vmatpush.bf16.msra.mxu0 %v3776
    %5802 = vmatpush.bf16.msra.mxu0 %v3771
    %5803 = vmatpush.bf16.msra.mxu0 %v3766
    %5804 = vmatpush.bf16.msra.mxu0 %v3761
    %5805 = vmatpush.bf16.msra.mxu0 %v3756
    %5806 = vmatpush.bf16.msra.mxu0 %v3751
    %5807 = vmatmul.bf16.gmra.mxu0 %v939
    %v5808 = vpop.f32.mrf.mxu0
    %v5809 = vadd.f32 %v5796, %v5808
    %v5810 = vpop.f32.mrf.mxu0
    %5811 = vdwg.mxu0
    %5812 = vmatpush.bf16.msra.mxu0 %v3826
    %5813 = vmatpush.bf16.msra.mxu0 %v3821
    %5814 = vmatpush.bf16.msra.mxu0 %v3816
    %5815 = vmatpush.bf16.msra.mxu0 %v3811
    %5816 = vmatpush.bf16.msra.mxu0 %v3806
    %5817 = vmatpush.bf16.msra.mxu0 %v3801
    %5818 = vmatpush.bf16.msra.mxu0 %v3796
    %5819 = vmatpush.bf16.msra.mxu0 %v3791
    %5820 = vmatmul.bf16.gmra.mxu0 %v940
    %v5821 = vpop.f32.mrf.mxu0
    %v5822 = vadd.f32 %v5809, %v5821
    %v5823 = vpop.f32.mrf.mxu0
    %5824 = vdwg.mxu0
    %5825 = vmatpush.bf16.msra.mxu0 %v3866
    %5826 = vmatpush.bf16.msra.mxu0 %v3861
    %5827 = vmatpush.bf16.msra.mxu0 %v3856
    %5828 = vmatpush.bf16.msra.mxu0 %v3851
    %5829 = vmatpush.bf16.msra.mxu0 %v3846
    %5830 = vmatpush.bf16.msra.mxu0 %v3841
    %5831 = vmatpush.bf16.msra.mxu0 %v3836
    %5832 = vmatpush.bf16.msra.mxu0 %v3831
    %5833 = vmatmul.bf16.gmra.mxu0 %v941
    %v5834 = vpop.f32.mrf.mxu0
    %v5835 = vadd.f32 %v5822, %v5834
    %v5836 = vpop.f32.mrf.mxu0
    %5837 = vdwg.mxu0
    %5838 = vmatpush.bf16.msra.mxu0 %v3906
    %5839 = vmatpush.bf16.msra.mxu0 %v3901
    %5840 = vmatpush.bf16.msra.mxu0 %v3896
    %5841 = vmatpush.bf16.msra.mxu0 %v3891
    %5842 = vmatpush.bf16.msra.mxu0 %v3886
    %5843 = vmatpush.bf16.msra.mxu0 %v3881
    %5844 = vmatpush.bf16.msra.mxu0 %v3876
    %5845 = vmatpush.bf16.msra.mxu0 %v3871
    %5846 = vmatmul.bf16.gmra.mxu0 %v942
    %v5847 = vpop.f32.mrf.mxu0
    %v5848 = vadd.f32 %v5835, %v5847
    %v5849 = vpop.f32.mrf.mxu0
    %5850 = vdwg.mxu0
    %5851 = vmatpush.bf16.msra.mxu0 %v3946
    %5852 = vmatpush.bf16.msra.mxu0 %v3941
    %5853 = vmatpush.bf16.msra.mxu0 %v3936
    %5854 = vmatpush.bf16.msra.mxu0 %v3931
    %5855 = vmatpush.bf16.msra.mxu0 %v3926
    %5856 = vmatpush.bf16.msra.mxu0 %v3921
    %5857 = vmatpush.bf16.msra.mxu0 %v3916
    %5858 = vmatpush.bf16.msra.mxu0 %v3911
    %5859 = vmatmul.bf16.gmra.mxu0 %v943
    %v5860 = vpop.f32.mrf.mxu0
    %v5861 = vadd.f32 %v5848, %v5860
    %v5862 = vpop.f32.mrf.mxu0
    %5863 = vdwg.mxu0
    %5864 = vmatpush.bf16.msra.mxu0 %v3986
    %5865 = vmatpush.bf16.msra.mxu0 %v3981
    %5866 = vmatpush.bf16.msra.mxu0 %v3976
    %5867 = vmatpush.bf16.msra.mxu0 %v3971
    %5868 = vmatpush.bf16.msra.mxu0 %v3966
    %5869 = vmatpush.bf16.msra.mxu0 %v3961
    %5870 = vmatpush.bf16.msra.mxu0 %v3956
    %5871 = vmatpush.bf16.msra.mxu0 %v3951
    %5872 = vmatmul.bf16.gmra.mxu0 %v944
    %v5873 = vpop.f32.mrf.mxu0
    %v5874 = vadd.f32 %v5861, %v5873
    %v5875 = vpop.f32.mrf.mxu0
    %5876 = vdwg.mxu0
    %5877 = vst [vmem:[#allocation2] sm:$0xff] %v4938
    %5878 = vst [vmem:[#allocation2 + $0x8] sm:$0xff] %v5172
    %5879 = vst [vmem:[#allocation2 + $0x10] sm:$0xff] %v5406
    %5880 = vst [vmem:[#allocation2 + $0x18] sm:$0xff] %v5640
    %5881 = vst [vmem:[#allocation2 + $0x20] sm:$0xff] %v5874
    // Predicated region
    $region14: #{pallas_forward.3} parent=1 // pred_check
      _
    $region15: #{pallas_forward.3} parent=1 // pred_check_branch
      %5883 = sbr.rel (0) target = $region17
    $region16: #{pallas_forward.3} parent=1 // pred_region
      %5885 = vsyncadd [#allocation3], 0
      %s5887 = sshll.u32 [#allocation2], 4
      %s5888 = int_to_ptr.vmem [resolvable:$true] %s5887
      %s5889 = sshll.u32 %s3, 4
      %s5890 = int_to_ptr.hbm [resolvable:$true] %s5889
      %5892 = dma.vmem_to_hbm [thread:$0]  %s5888, 640, %s5890, [#allocation3]
    $region17: #{pallas_forward.3} parent=1 // pred_fallthru
      _
    // Predicated region
    $region18: #{pallas_forward.3} parent=1 // pred_check
      _
    $region19: #{pallas_forward.3} parent=1 // pred_check_branch
      %5894 = sbr.rel (0) target = $region21
    $region20: #{pallas_forward.3} parent=1 // pred_region
      %5896 = dma.done [#allocation3], 640
    $region21: #{pallas_forward.3} parent=1 // pred_fallthru
      _
    %5897 = vsyncpa [#allocation3], 1

</llo_original>
